<compile_context>
chip_gen: v7x
topology: tpu7x:2x2x1
jax: 0.10.0
libtpu: 0.0.40
codegen_flags: <defaults>
</compile_context>

<pallas_src>
import functools

import numpy as np
import jax
import jax.numpy as jnp
from jax.experimental import pallas as pl
from jax.experimental.pallas import tpu as pltpu

NEG_SLOPE = 1.0   # nn.LeakyReLU(True) -> negative_slope == 1.0 (identity)
BN_EPS = 1e-5


# ----------------------------- in-kernel helpers ---------------------------- #

def _leaky_relu(y):
    # negative_slope == 1.0 is the identity; only emit the select on a general-slope path.
    if NEG_SLOPE == 1.0:
        return y
    return jnp.where(y >= 0, y, NEG_SLOPE * y)


def _batchnorm(y, g_ref, b_ref):
    """Training-mode BatchNorm over the lane axis (per-channel batch stats, biased var)."""
    inv_n = 1.0 / y.shape[1]
    mean = jnp.sum(y, axis=1, keepdims=True) * inv_n          # (C, 1)
    c = y - mean
    var = jnp.sum(c * c, axis=1, keepdims=True) * inv_n       # biased variance (PyTorch fwd)
    return c * jax.lax.rsqrt(var + BN_EPS) * g_ref[...] + b_ref[...]


def _conv3x3_roll(x, w_ref, mask_ref, img_w):
    """3x3 / pad=1 / stride=1 conv on x:(Cin, N*H*W) via 9 shifted dot-accumulates.

    w_ref: (9, Cout, Cin) tap weights (k = kh*3 + kw).
    mask_ref: (9, N*H*W) 0/1 boundary masks (zero where the tap reads padding / another image).
    """
    nlanes = x.shape[1]
    cout = w_ref.shape[1]
    acc = jnp.zeros((cout, nlanes), jnp.float32)
    for k in range(9):
        dh, dw = k // 3 - 1, k % 3 - 1
        delta = dh * img_w + dw                      # lane offset of input tap (h+dh, w+dw)
        if delta == 0:
            shifted = x
        else:
            # want shifted[:, p] = x[:, p + delta]  (jnp.roll semantics => shift = -delta)
            shifted = pltpu.roll(x, (-delta) % nlanes, axis=1)
        tap = shifted * mask_ref[k:k + 1, :]          # zero out padded / wrapped positions
        acc = acc + jnp.dot(w_ref[k], tap, preferred_element_type=jnp.float32)
    return acc


def _conv3x3_gather(x, w_ref, t_ref):
    """3x3 conv for the tiny tail layers via per-tap gather matrices.

    x: (Cin, P_in);  w_ref: (9, Cout, Cin);  t_ref: (9, P_in, P_out) 0/1 gather (stride folded in).
    """
    cout = w_ref.shape[1]
    pout = t_ref.shape[2]
    acc = jnp.zeros((cout, pout), jnp.float32)
    for k in range(9):
        g = jnp.dot(x, t_ref[k], preferred_element_type=jnp.float32)      # (Cin, P_out)
        acc = acc + jnp.dot(w_ref[k], g, preferred_element_type=jnp.float32)
    return acc


# --------------------------------- kernel ----------------------------------- #

def _discriminator_kernel(x_ref,
                          w1_ref, g1_ref, be1_ref,
                          w2_ref, g2_ref, be2_ref,
                          w3_ref, g3_ref, be3_ref,
                          w4_ref, b4_ref,
                          mask_ref, s2_ref, p2_ref, t3_ref, p3_ref, t4_ref,
                          o_ref, *, img_w):
    x = x_ref[...]                                                   # (4, N*H*W)

    # Conv2d(4,16,3,1,1) + BatchNorm2d(16) + LeakyReLU   (conv bias cancelled by BN)
    y = _conv3x3_roll(x, w1_ref, mask_ref, img_w)                    # (16, N*H*W)
    y = _leaky_relu(_batchnorm(y, g1_ref, be1_ref))

    # Conv2d(16,8,3,2,1) + BatchNorm2d(8) + LeakyReLU + AvgPool2d(2)
    y = _conv3x3_roll(y, w2_ref, mask_ref, img_w)                    # stride-1 conv, full grid
    y = jnp.dot(y, s2_ref[...], preferred_element_type=jnp.float32)  # stride-2 subsample
    y = _leaky_relu(_batchnorm(y, g2_ref, be2_ref))                  # (8, N*(H/2)*(W/2))
    y = jnp.dot(y, p2_ref[...], preferred_element_type=jnp.float32)  # avg pool 2x2

    # Conv2d(8,4,3,2,1) + BatchNorm2d(4) + LeakyReLU + AvgPool2d(2)
    y = _conv3x3_gather(y, w3_ref, t3_ref)                           # (4, N*(H/8)*(W/8))
    y = _leaky_relu(_batchnorm(y, g3_ref, be3_ref))
    y = jnp.dot(y, p3_ref[...], preferred_element_type=jnp.float32)  # (4, N*(H/16)*(W/16))

    # Conv2d(4,1,3,1,1) + LeakyReLU   (bias kept: no BN after this conv)
    y = _conv3x3_gather(y, w4_ref, t4_ref) + b4_ref[...]             # (1, N*(H/16)*(W/16))
    o_ref[...] = _leaky_relu(y)


# -------------------- constant structure matrices (host-built) -------------------- #

def _flat(n, h, w, H, W):
    return (n * H + h) * W + w


def _conv_boundary_masks(N, H, W):
    """mask[k, p] = 1 iff output position p reads a valid (non-padding, same-image) input."""
    m = np.zeros((9, N * H * W), np.float32)
    for k in range(9):
        dh, dw = k // 3 - 1, k % 3 - 1
        for n in range(N):
            for h in range(H):
                for w in range(W):
                    if 0 <= h + dh < H and 0 <= w + dw < W:
                        m[k, _flat(n, h, w, H, W)] = 1.0
    return m


def _stride2_subsample(N, H, W):
    Ho, Wo = (H - 1) // 2 + 1, (W - 1) // 2 + 1
    s = np.zeros((N * H * W, N * Ho * Wo), np.float32)
    for n in range(N):
        for i in range(Ho):
            for j in range(Wo):
                s[_flat(n, 2 * i, 2 * j, H, W), _flat(n, i, j, Ho, Wo)] = 1.0
    return s


def _avgpool2_matrix(N, H, W):
    Ho, Wo = H // 2, W // 2
    p = np.zeros((N * H * W, N * Ho * Wo), np.float32)
    for n in range(N):
        for i in range(Ho):
            for j in range(Wo):
                for u in range(2):
                    for v in range(2):
                        p[_flat(n, 2 * i + u, 2 * j + v, H, W),
                          _flat(n, i, j, Ho, Wo)] = 0.25
    return p


def _conv_tap_gather(N, H, W, stride):
    """Per-tap 0/1 gather matrices for a 3x3 / pad=1 conv with the given stride (folded in)."""
    Ho = (H + 2 - 3) // stride + 1
    Wo = (W + 2 - 3) // stride + 1
    t = np.zeros((9, N * H * W, N * Ho * Wo), np.float32)
    for k in range(9):
        dh, dw = k // 3 - 1, k % 3 - 1
        for n in range(N):
            for i in range(Ho):
                for j in range(Wo):
                    h, w = i * stride + dh, j * stride + dw
                    if 0 <= h < H and 0 <= w < W:
                        t[k, _flat(n, h, w, H, W), _flat(n, i, j, Ho, Wo)] = 1.0
    return t


def _structure_constants(N, H, W):
    c = {
        "mask": _conv_boundary_masks(N, H, W),          # layers 1 & 2 (H x W grid)
        "s2": _stride2_subsample(N, H, W),              # conv2 stride-2: H      -> H/2
        "p2": _avgpool2_matrix(N, H // 2, W // 2),      # avg pool:      H/2    -> H/4
        "t3": _conv_tap_gather(N, H // 4, W // 4, 2),   # conv3 stride-2: H/4   -> H/8
        "p3": _avgpool2_matrix(N, H // 8, W // 8),      # avg pool:      H/8    -> H/16
        "t4": _conv_tap_gather(N, H // 16, W // 16, 1), # conv4 stride-1: H/16  -> H/16
    }
    return {k: jnp.asarray(v) for k, v in c.items()}


# ------------------------------ params & forward ----------------------------- #

def _init_conv_weight(key, cout, cin):
    kw, kb = jax.random.split(key)
    w = 0.1 * jax.random.normal(kw, (cout, cin, 3, 3), jnp.float32)   # PyTorch layout
    b = 0.1 * jax.random.normal(kb, (cout,), jnp.float32)
    # (Cout, Cin, KH, KW) -> (KH*KW, Cout, Cin); tap index k = kh*3 + kw (matches masks/gathers)
    w_taps = jnp.transpose(w, (2, 3, 0, 1)).reshape(9, cout, cin)
    return w_taps, b


def init_discriminator(key):
    k1, k2, k3, k4 = jax.random.split(key, 4)
    p = {}
    # Conv biases of the BN layers are generated but not used: BN's mean subtraction cancels
    # them exactly, so they are dropped from the kernel (perf review item).
    p["w1"], _ = _init_conv_weight(k1, 16, 4)
    p["g1"], p["be1"] = jnp.ones((16, 1), jnp.float32), jnp.zeros((16, 1), jnp.float32)
    p["w2"], _ = _init_conv_weight(k2, 8, 16)
    p["g2"], p["be2"] = jnp.ones((8, 1), jnp.float32), jnp.zeros((8, 1), jnp.float32)
    p["w3"], _ = _init_conv_weight(k3, 4, 8)
    p["g3"], p["be3"] = jnp.ones((4, 1), jnp.float32), jnp.zeros((4, 1), jnp.float32)
    p["w4"], b4 = _init_conv_weight(k4, 1, 4)
    p["b4"] = b4.reshape(1, 1)
    return p


def discriminator_forward(params, x_nchw):
    N, C, H, W = x_nchw.shape
    assert C == 4, "Discriminator expects 4 input channels"
    assert H % 16 == 0 and W % 16 == 0, "spatial dims must be divisible by 16"

    consts = _structure_constants(N, H, W)
    # NCHW -> (C, N*H*W): channels on sublanes, flattened batch*spatial on lanes (lane-dense).
    x2d = jnp.transpose(x_nchw.astype(jnp.float32), (1, 0, 2, 3)).reshape(C, N * H * W)
    h4, w4 = H // 16, W // 16

    out = pl.pallas_call(
        functools.partial(_discriminator_kernel, img_w=W),
        out_shape=jax.ShapeDtypeStruct((1, N * h4 * w4), jnp.float32),
    )(x2d,
      params["w1"], params["g1"], params["be1"],
      params["w2"], params["g2"], params["be2"],
      params["w3"], params["g3"], params["be3"],
      params["w4"], params["b4"],
      consts["mask"], consts["s2"], consts["p2"], consts["t3"], consts["p3"], consts["t4"])

    # (1, N*h4*w4) -> (N, 1, h4, w4)  (NCHW, like the PyTorch module)
    return out.reshape(1, N, h4, w4).transpose(1, 0, 2, 3)


class DiscriminatorGroup:
    """Pallas port of Discriminator_group: 5 discriminators, selected by `ind`."""

    def __init__(self, key):
        self.params = [init_discriminator(k) for k in jax.random.split(key, 5)]
        self._fwd = jax.jit(discriminator_forward)

    def __call__(self, x, ind):
        # Same semantics as nn.ModuleList indexing: ind must be a concrete Python int.
        return self._fwd(self.params[int(ind)], x)


if __name__ == "__main__":
    key = jax.random.PRNGKey(0)
    kx, kp = jax.random.split(key)
    x = jax.random.normal(kx, (2, 4, 16, 16), jnp.float32)   # NCHW, matches Conv2d(4, ...)
    model = DiscriminatorGroup(kp)
    out = model(x, ind=2)
    out = jax.block_until_ready(out)
    assert out.shape == (2, 1, 1, 1), out.shape
    assert bool(jnp.all(jnp.isfinite(out)))
    print("KERNEL_OK")
</pallas_src>

<mosaic_0001>
module attributes {stable_mosaic.version = 11 : i64} {
  func.func @_discriminator_kernel(%arg0: memref<4x512xf32, #tpu.memory_space<vmem>>, %arg1: memref<9x16x4xf32, #tpu.memory_space<vmem>>, %arg2: memref<16x1xf32, #tpu.memory_space<vmem>>, %arg3: memref<16x1xf32, #tpu.memory_space<vmem>>, %arg4: memref<9x8x16xf32, #tpu.memory_space<vmem>>, %arg5: memref<8x1xf32, #tpu.memory_space<vmem>>, %arg6: memref<8x1xf32, #tpu.memory_space<vmem>>, %arg7: memref<9x4x8xf32, #tpu.memory_space<vmem>>, %arg8: memref<4x1xf32, #tpu.memory_space<vmem>>, %arg9: memref<4x1xf32, #tpu.memory_space<vmem>>, %arg10: memref<9x1x4xf32, #tpu.memory_space<vmem>>, %arg11: memref<1x1xf32, #tpu.memory_space<vmem>>, %arg12: memref<9x512xf32, #tpu.memory_space<vmem>>, %arg13: memref<512x128xf32, #tpu.memory_space<vmem>>, %arg14: memref<128x32xf32, #tpu.memory_space<vmem>>, %arg15: memref<9x32x8xf32, #tpu.memory_space<vmem>>, %arg16: memref<8x2xf32, #tpu.memory_space<vmem>>, %arg17: memref<9x2x2xf32, #tpu.memory_space<vmem>>, %arg18: memref<1x2xf32, #tpu.memory_space<vmem>>) attributes {dimension_semantics = [], scalar_prefetch = 0 : i64, scratch_operands = 0 : i64, tpu.core_type = #tpu.core_type<tc>} {
    %c0 = arith.constant 0 : index
    %c0_0 = arith.constant 0 : index
    %0 = vector.load %arg0[%c0, %c0_0] : memref<4x512xf32, #tpu.memory_space<vmem>>, vector<4x512xf32>
    %cst = arith.constant 0.000000e+00 : f32
    %1 = vector.broadcast %cst : f32 to vector<16x512xf32>
    %c17_i32 = arith.constant 17 : i32
    %2 = tpu.dynamic_rotate %0 by %c17_i32 dim 1 : vector<4x512xf32>, i32 -> vector<4x512xf32>
    %c0_1 = arith.constant 0 : index
    %c0_2 = arith.constant 0 : index
    %3 = vector.load %arg12[%c0_1, %c0_2] : memref<9x512xf32, #tpu.memory_space<vmem>>, vector<1x512xf32>
    %4 = vector.broadcast %3 : vector<1x512xf32> to vector<4x512xf32>
    %5 = arith.mulf %2, %4 : vector<4x512xf32>
    %c0_3 = arith.constant 0 : index
    %c0_4 = arith.constant 0 : index
    %c0_5 = arith.constant 0 : index
    %6 = vector.load %arg1[%c0_3, %c0_4, %c0_5] : memref<9x16x4xf32, #tpu.memory_space<vmem>>, vector<1x16x4xf32>
    %7 = vector.shape_cast %6 : vector<1x16x4xf32> to vector<16x4xf32>
    %cst_6 = arith.constant dense<0.000000e+00> : vector<16x512xf32>
    %8 = tpu.matmul %7, %5, %cst_6 {dimension_numbers = #tpu.dot_dimension_numbers<[1], [0], [0], [1], [0, 0, 1, 1], [], []>} : vector<16x4xf32>, vector<4x512xf32>, vector<16x512xf32> -> vector<16x512xf32>
    %9 = arith.addf %1, %8 : vector<16x512xf32>
    %c16_i32 = arith.constant 16 : i32
    %10 = tpu.dynamic_rotate %0 by %c16_i32 dim 1 : vector<4x512xf32>, i32 -> vector<4x512xf32>
    %c1 = arith.constant 1 : index
    %c0_7 = arith.constant 0 : index
    %11 = vector.load %arg12[%c1, %c0_7] : memref<9x512xf32, #tpu.memory_space<vmem>>, vector<1x512xf32>
    %12 = vector.broadcast %11 : vector<1x512xf32> to vector<4x512xf32>
    %13 = arith.mulf %10, %12 : vector<4x512xf32>
    %c1_8 = arith.constant 1 : index
    %c0_9 = arith.constant 0 : index
    %c0_10 = arith.constant 0 : index
    %14 = vector.load %arg1[%c1_8, %c0_9, %c0_10] : memref<9x16x4xf32, #tpu.memory_space<vmem>>, vector<1x16x4xf32>
    %15 = vector.shape_cast %14 : vector<1x16x4xf32> to vector<16x4xf32>
    %cst_11 = arith.constant dense<0.000000e+00> : vector<16x512xf32>
    %16 = tpu.matmul %15, %13, %cst_11 {dimension_numbers = #tpu.dot_dimension_numbers<[1], [0], [0], [1], [0, 0, 1, 1], [], []>} : vector<16x4xf32>, vector<4x512xf32>, vector<16x512xf32> -> vector<16x512xf32>
    %17 = arith.addf %9, %16 : vector<16x512xf32>
    %c15_i32 = arith.constant 15 : i32
    %18 = tpu.dynamic_rotate %0 by %c15_i32 dim 1 : vector<4x512xf32>, i32 -> vector<4x512xf32>
    %c2 = arith.constant 2 : index
    %c0_12 = arith.constant 0 : index
    %19 = vector.load %arg12[%c2, %c0_12] : memref<9x512xf32, #tpu.memory_space<vmem>>, vector<1x512xf32>
    %20 = vector.broadcast %19 : vector<1x512xf32> to vector<4x512xf32>
    %21 = arith.mulf %18, %20 : vector<4x512xf32>
    %c2_13 = arith.constant 2 : index
    %c0_14 = arith.constant 0 : index
    %c0_15 = arith.constant 0 : index
    %22 = vector.load %arg1[%c2_13, %c0_14, %c0_15] : memref<9x16x4xf32, #tpu.memory_space<vmem>>, vector<1x16x4xf32>
    %23 = vector.shape_cast %22 : vector<1x16x4xf32> to vector<16x4xf32>
    %cst_16 = arith.constant dense<0.000000e+00> : vector<16x512xf32>
    %24 = tpu.matmul %23, %21, %cst_16 {dimension_numbers = #tpu.dot_dimension_numbers<[1], [0], [0], [1], [0, 0, 1, 1], [], []>} : vector<16x4xf32>, vector<4x512xf32>, vector<16x512xf32> -> vector<16x512xf32>
    %25 = arith.addf %17, %24 : vector<16x512xf32>
    %c1_i32 = arith.constant 1 : i32
    %26 = tpu.dynamic_rotate %0 by %c1_i32 dim 1 : vector<4x512xf32>, i32 -> vector<4x512xf32>
    %c3 = arith.constant 3 : index
    %c0_17 = arith.constant 0 : index
    %27 = vector.load %arg12[%c3, %c0_17] : memref<9x512xf32, #tpu.memory_space<vmem>>, vector<1x512xf32>
    %28 = vector.broadcast %27 : vector<1x512xf32> to vector<4x512xf32>
    %29 = arith.mulf %26, %28 : vector<4x512xf32>
    %c3_18 = arith.constant 3 : index
    %c0_19 = arith.constant 0 : index
    %c0_20 = arith.constant 0 : index
    %30 = vector.load %arg1[%c3_18, %c0_19, %c0_20] : memref<9x16x4xf32, #tpu.memory_space<vmem>>, vector<1x16x4xf32>
    %31 = vector.shape_cast %30 : vector<1x16x4xf32> to vector<16x4xf32>
    %cst_21 = arith.constant dense<0.000000e+00> : vector<16x512xf32>
    %32 = tpu.matmul %31, %29, %cst_21 {dimension_numbers = #tpu.dot_dimension_numbers<[1], [0], [0], [1], [0, 0, 1, 1], [], []>} : vector<16x4xf32>, vector<4x512xf32>, vector<16x512xf32> -> vector<16x512xf32>
    %33 = arith.addf %25, %32 : vector<16x512xf32>
    %c4 = arith.constant 4 : index
    %c0_22 = arith.constant 0 : index
    %34 = vector.load %arg12[%c4, %c0_22] : memref<9x512xf32, #tpu.memory_space<vmem>>, vector<1x512xf32>
    %35 = vector.broadcast %34 : vector<1x512xf32> to vector<4x512xf32>
    %36 = arith.mulf %0, %35 : vector<4x512xf32>
    %c4_23 = arith.constant 4 : index
    %c0_24 = arith.constant 0 : index
    %c0_25 = arith.constant 0 : index
    %37 = vector.load %arg1[%c4_23, %c0_24, %c0_25] : memref<9x16x4xf32, #tpu.memory_space<vmem>>, vector<1x16x4xf32>
    %38 = vector.shape_cast %37 : vector<1x16x4xf32> to vector<16x4xf32>
    %cst_26 = arith.constant dense<0.000000e+00> : vector<16x512xf32>
    %39 = tpu.matmul %38, %36, %cst_26 {dimension_numbers = #tpu.dot_dimension_numbers<[1], [0], [0], [1], [0, 0, 1, 1], [], []>} : vector<16x4xf32>, vector<4x512xf32>, vector<16x512xf32> -> vector<16x512xf32>
    %40 = arith.addf %33, %39 : vector<16x512xf32>
    %c511_i32 = arith.constant 511 : i32
    %41 = tpu.dynamic_rotate %0 by %c511_i32 dim 1 : vector<4x512xf32>, i32 -> vector<4x512xf32>
    %c5 = arith.constant 5 : index
    %c0_27 = arith.constant 0 : index
    %42 = vector.load %arg12[%c5, %c0_27] : memref<9x512xf32, #tpu.memory_space<vmem>>, vector<1x512xf32>
    %43 = vector.broadcast %42 : vector<1x512xf32> to vector<4x512xf32>
    %44 = arith.mulf %41, %43 : vector<4x512xf32>
    %c5_28 = arith.constant 5 : index
    %c0_29 = arith.constant 0 : index
    %c0_30 = arith.constant 0 : index
    %45 = vector.load %arg1[%c5_28, %c0_29, %c0_30] : memref<9x16x4xf32, #tpu.memory_space<vmem>>, vector<1x16x4xf32>
    %46 = vector.shape_cast %45 : vector<1x16x4xf32> to vector<16x4xf32>
    %cst_31 = arith.constant dense<0.000000e+00> : vector<16x512xf32>
    %47 = tpu.matmul %46, %44, %cst_31 {dimension_numbers = #tpu.dot_dimension_numbers<[1], [0], [0], [1], [0, 0, 1, 1], [], []>} : vector<16x4xf32>, vector<4x512xf32>, vector<16x512xf32> -> vector<16x512xf32>
    %48 = arith.addf %40, %47 : vector<16x512xf32>
    %c497_i32 = arith.constant 497 : i32
    %49 = tpu.dynamic_rotate %0 by %c497_i32 dim 1 : vector<4x512xf32>, i32 -> vector<4x512xf32>
    %c6 = arith.constant 6 : index
    %c0_32 = arith.constant 0 : index
    %50 = vector.load %arg12[%c6, %c0_32] : memref<9x512xf32, #tpu.memory_space<vmem>>, vector<1x512xf32>
    %51 = vector.broadcast %50 : vector<1x512xf32> to vector<4x512xf32>
    %52 = arith.mulf %49, %51 : vector<4x512xf32>
    %c6_33 = arith.constant 6 : index
    %c0_34 = arith.constant 0 : index
    %c0_35 = arith.constant 0 : index
    %53 = vector.load %arg1[%c6_33, %c0_34, %c0_35] : memref<9x16x4xf32, #tpu.memory_space<vmem>>, vector<1x16x4xf32>
    %54 = vector.shape_cast %53 : vector<1x16x4xf32> to vector<16x4xf32>
    %cst_36 = arith.constant dense<0.000000e+00> : vector<16x512xf32>
    %55 = tpu.matmul %54, %52, %cst_36 {dimension_numbers = #tpu.dot_dimension_numbers<[1], [0], [0], [1], [0, 0, 1, 1], [], []>} : vector<16x4xf32>, vector<4x512xf32>, vector<16x512xf32> -> vector<16x512xf32>
    %56 = arith.addf %48, %55 : vector<16x512xf32>
    %c496_i32 = arith.constant 496 : i32
    %57 = tpu.dynamic_rotate %0 by %c496_i32 dim 1 : vector<4x512xf32>, i32 -> vector<4x512xf32>
    %c7 = arith.constant 7 : index
    %c0_37 = arith.constant 0 : index
    %58 = vector.load %arg12[%c7, %c0_37] : memref<9x512xf32, #tpu.memory_space<vmem>>, vector<1x512xf32>
    %59 = vector.broadcast %58 : vector<1x512xf32> to vector<4x512xf32>
    %60 = arith.mulf %57, %59 : vector<4x512xf32>
    %c7_38 = arith.constant 7 : index
    %c0_39 = arith.constant 0 : index
    %c0_40 = arith.constant 0 : index
    %61 = vector.load %arg1[%c7_38, %c0_39, %c0_40] : memref<9x16x4xf32, #tpu.memory_space<vmem>>, vector<1x16x4xf32>
    %62 = vector.shape_cast %61 : vector<1x16x4xf32> to vector<16x4xf32>
    %cst_41 = arith.constant dense<0.000000e+00> : vector<16x512xf32>
    %63 = tpu.matmul %62, %60, %cst_41 {dimension_numbers = #tpu.dot_dimension_numbers<[1], [0], [0], [1], [0, 0, 1, 1], [], []>} : vector<16x4xf32>, vector<4x512xf32>, vector<16x512xf32> -> vector<16x512xf32>
    %64 = arith.addf %56, %63 : vector<16x512xf32>
    %c495_i32 = arith.constant 495 : i32
    %65 = tpu.dynamic_rotate %0 by %c495_i32 dim 1 : vector<4x512xf32>, i32 -> vector<4x512xf32>
    %c8 = arith.constant 8 : index
    %c0_42 = arith.constant 0 : index
    %66 = vector.load %arg12[%c8, %c0_42] : memref<9x512xf32, #tpu.memory_space<vmem>>, vector<1x512xf32>
    %67 = vector.broadcast %66 : vector<1x512xf32> to vector<4x512xf32>
    %68 = arith.mulf %65, %67 : vector<4x512xf32>
    %c8_43 = arith.constant 8 : index
    %c0_44 = arith.constant 0 : index
    %c0_45 = arith.constant 0 : index
    %69 = vector.load %arg1[%c8_43, %c0_44, %c0_45] : memref<9x16x4xf32, #tpu.memory_space<vmem>>, vector<1x16x4xf32>
    %70 = vector.shape_cast %69 : vector<1x16x4xf32> to vector<16x4xf32>
    %cst_46 = arith.constant dense<0.000000e+00> : vector<16x512xf32>
    %71 = tpu.matmul %70, %68, %cst_46 {dimension_numbers = #tpu.dot_dimension_numbers<[1], [0], [0], [1], [0, 0, 1, 1], [], []>} : vector<16x4xf32>, vector<4x512xf32>, vector<16x512xf32> -> vector<16x512xf32>
    %72 = arith.addf %64, %71 : vector<16x512xf32>
    %cst_47 = arith.constant dense<0.000000e+00> : vector<16xf32>
    %73 = vector.multi_reduction <add>, %72, %cst_47 [1] : vector<16x512xf32> to vector<16xf32>
    %74 = vector.shape_cast %73 : vector<16xf32> to vector<16x1xf32>
    %cst_48 = arith.constant 0.001953125 : f32
    %75 = vector.broadcast %cst_48 : f32 to vector<16x1xf32>
    %76 = arith.mulf %74, %75 : vector<16x1xf32>
    %77 = vector.broadcast %76 : vector<16x1xf32> to vector<16x512xf32>
    %78 = arith.subf %72, %77 : vector<16x512xf32>
    %79 = arith.mulf %78, %78 : vector<16x512xf32>
    %cst_49 = arith.constant dense<0.000000e+00> : vector<16xf32>
    %80 = vector.multi_reduction <add>, %79, %cst_49 [1] : vector<16x512xf32> to vector<16xf32>
    %81 = vector.shape_cast %80 : vector<16xf32> to vector<16x1xf32>
    %cst_50 = arith.constant 0.001953125 : f32
    %82 = vector.broadcast %cst_50 : f32 to vector<16x1xf32>
    %83 = arith.mulf %81, %82 : vector<16x1xf32>
    %cst_51 = arith.constant 9.99999974E-6 : f32
    %84 = vector.broadcast %cst_51 : f32 to vector<16x1xf32>
    %85 = arith.addf %83, %84 : vector<16x1xf32>
    %86 = math.rsqrt %85 : vector<16x1xf32>
    %87 = vector.broadcast %86 : vector<16x1xf32> to vector<16x512xf32>
    %88 = arith.mulf %78, %87 : vector<16x512xf32>
    %c0_52 = arith.constant 0 : index
    %c0_53 = arith.constant 0 : index
    %89 = vector.load %arg2[%c0_52, %c0_53] : memref<16x1xf32, #tpu.memory_space<vmem>>, vector<16x1xf32>
    %90 = vector.broadcast %89 : vector<16x1xf32> to vector<16x512xf32>
    %91 = arith.mulf %88, %90 : vector<16x512xf32>
    %c0_54 = arith.constant 0 : index
    %c0_55 = arith.constant 0 : index
    %92 = vector.load %arg3[%c0_54, %c0_55] : memref<16x1xf32, #tpu.memory_space<vmem>>, vector<16x1xf32>
    %93 = vector.broadcast %92 : vector<16x1xf32> to vector<16x512xf32>
    %94 = arith.addf %91, %93 : vector<16x512xf32>
    %cst_56 = arith.constant 0.000000e+00 : f32
    %95 = vector.broadcast %cst_56 : f32 to vector<8x512xf32>
    %c17_i32_57 = arith.constant 17 : i32
    %96 = tpu.dynamic_rotate %94 by %c17_i32_57 dim 1 : vector<16x512xf32>, i32 -> vector<16x512xf32>
    %c0_58 = arith.constant 0 : index
    %c0_59 = arith.constant 0 : index
    %97 = vector.load %arg12[%c0_58, %c0_59] : memref<9x512xf32, #tpu.memory_space<vmem>>, vector<1x512xf32>
    %98 = vector.broadcast %97 : vector<1x512xf32> to vector<16x512xf32>
    %99 = arith.mulf %96, %98 : vector<16x512xf32>
    %c0_60 = arith.constant 0 : index
    %c0_61 = arith.constant 0 : index
    %c0_62 = arith.constant 0 : index
    %100 = vector.load %arg4[%c0_60, %c0_61, %c0_62] : memref<9x8x16xf32, #tpu.memory_space<vmem>>, vector<1x8x16xf32>
    %101 = vector.shape_cast %100 : vector<1x8x16xf32> to vector<8x16xf32>
    %cst_63 = arith.constant dense<0.000000e+00> : vector<8x512xf32>
    %102 = tpu.matmul %101, %99, %cst_63 {dimension_numbers = #tpu.dot_dimension_numbers<[1], [0], [0], [1], [0, 0, 1, 1], [], []>} : vector<8x16xf32>, vector<16x512xf32>, vector<8x512xf32> -> vector<8x512xf32>
    %103 = arith.addf %95, %102 : vector<8x512xf32>
    %c16_i32_64 = arith.constant 16 : i32
    %104 = tpu.dynamic_rotate %94 by %c16_i32_64 dim 1 : vector<16x512xf32>, i32 -> vector<16x512xf32>
    %c1_65 = arith.constant 1 : index
    %c0_66 = arith.constant 0 : index
    %105 = vector.load %arg12[%c1_65, %c0_66] : memref<9x512xf32, #tpu.memory_space<vmem>>, vector<1x512xf32>
    %106 = vector.broadcast %105 : vector<1x512xf32> to vector<16x512xf32>
    %107 = arith.mulf %104, %106 : vector<16x512xf32>
    %c1_67 = arith.constant 1 : index
    %c0_68 = arith.constant 0 : index
    %c0_69 = arith.constant 0 : index
    %108 = vector.load %arg4[%c1_67, %c0_68, %c0_69] : memref<9x8x16xf32, #tpu.memory_space<vmem>>, vector<1x8x16xf32>
    %109 = vector.shape_cast %108 : vector<1x8x16xf32> to vector<8x16xf32>
    %cst_70 = arith.constant dense<0.000000e+00> : vector<8x512xf32>
    %110 = tpu.matmul %109, %107, %cst_70 {dimension_numbers = #tpu.dot_dimension_numbers<[1], [0], [0], [1], [0, 0, 1, 1], [], []>} : vector<8x16xf32>, vector<16x512xf32>, vector<8x512xf32> -> vector<8x512xf32>
    %111 = arith.addf %103, %110 : vector<8x512xf32>
    %c15_i32_71 = arith.constant 15 : i32
    %112 = tpu.dynamic_rotate %94 by %c15_i32_71 dim 1 : vector<16x512xf32>, i32 -> vector<16x512xf32>
    %c2_72 = arith.constant 2 : index
    %c0_73 = arith.constant 0 : index
    %113 = vector.load %arg12[%c2_72, %c0_73] : memref<9x512xf32, #tpu.memory_space<vmem>>, vector<1x512xf32>
    %114 = vector.broadcast %113 : vector<1x512xf32> to vector<16x512xf32>
    %115 = arith.mulf %112, %114 : vector<16x512xf32>
    %c2_74 = arith.constant 2 : index
    %c0_75 = arith.constant 0 : index
    %c0_76 = arith.constant 0 : index
    %116 = vector.load %arg4[%c2_74, %c0_75, %c0_76] : memref<9x8x16xf32, #tpu.memory_space<vmem>>, vector<1x8x16xf32>
    %117 = vector.shape_cast %116 : vector<1x8x16xf32> to vector<8x16xf32>
    %cst_77 = arith.constant dense<0.000000e+00> : vector<8x512xf32>
    %118 = tpu.matmul %117, %115, %cst_77 {dimension_numbers = #tpu.dot_dimension_numbers<[1], [0], [0], [1], [0, 0, 1, 1], [], []>} : vector<8x16xf32>, vector<16x512xf32>, vector<8x512xf32> -> vector<8x512xf32>
    %119 = arith.addf %111, %118 : vector<8x512xf32>
    %c1_i32_78 = arith.constant 1 : i32
    %120 = tpu.dynamic_rotate %94 by %c1_i32_78 dim 1 : vector<16x512xf32>, i32 -> vector<16x512xf32>
    %c3_79 = arith.constant 3 : index
    %c0_80 = arith.constant 0 : index
    %121 = vector.load %arg12[%c3_79, %c0_80] : memref<9x512xf32, #tpu.memory_space<vmem>>, vector<1x512xf32>
    %122 = vector.broadcast %121 : vector<1x512xf32> to vector<16x512xf32>
    %123 = arith.mulf %120, %122 : vector<16x512xf32>
    %c3_81 = arith.constant 3 : index
    %c0_82 = arith.constant 0 : index
    %c0_83 = arith.constant 0 : index
    %124 = vector.load %arg4[%c3_81, %c0_82, %c0_83] : memref<9x8x16xf32, #tpu.memory_space<vmem>>, vector<1x8x16xf32>
    %125 = vector.shape_cast %124 : vector<1x8x16xf32> to vector<8x16xf32>
    %cst_84 = arith.constant dense<0.000000e+00> : vector<8x512xf32>
    %126 = tpu.matmul %125, %123, %cst_84 {dimension_numbers = #tpu.dot_dimension_numbers<[1], [0], [0], [1], [0, 0, 1, 1], [], []>} : vector<8x16xf32>, vector<16x512xf32>, vector<8x512xf32> -> vector<8x512xf32>
    %127 = arith.addf %119, %126 : vector<8x512xf32>
    %c4_85 = arith.constant 4 : index
    %c0_86 = arith.constant 0 : index
    %128 = vector.load %arg12[%c4_85, %c0_86] : memref<9x512xf32, #tpu.memory_space<vmem>>, vector<1x512xf32>
    %129 = vector.broadcast %128 : vector<1x512xf32> to vector<16x512xf32>
    %130 = arith.mulf %94, %129 : vector<16x512xf32>
    %c4_87 = arith.constant 4 : index
    %c0_88 = arith.constant 0 : index
    %c0_89 = arith.constant 0 : index
    %131 = vector.load %arg4[%c4_87, %c0_88, %c0_89] : memref<9x8x16xf32, #tpu.memory_space<vmem>>, vector<1x8x16xf32>
    %132 = vector.shape_cast %131 : vector<1x8x16xf32> to vector<8x16xf32>
    %cst_90 = arith.constant dense<0.000000e+00> : vector<8x512xf32>
    %133 = tpu.matmul %132, %130, %cst_90 {dimension_numbers = #tpu.dot_dimension_numbers<[1], [0], [0], [1], [0, 0, 1, 1], [], []>} : vector<8x16xf32>, vector<16x512xf32>, vector<8x512xf32> -> vector<8x512xf32>
    %134 = arith.addf %127, %133 : vector<8x512xf32>
    %c511_i32_91 = arith.constant 511 : i32
    %135 = tpu.dynamic_rotate %94 by %c511_i32_91 dim 1 : vector<16x512xf32>, i32 -> vector<16x512xf32>
    %c5_92 = arith.constant 5 : index
    %c0_93 = arith.constant 0 : index
    %136 = vector.load %arg12[%c5_92, %c0_93] : memref<9x512xf32, #tpu.memory_space<vmem>>, vector<1x512xf32>
    %137 = vector.broadcast %136 : vector<1x512xf32> to vector<16x512xf32>
    %138 = arith.mulf %135, %137 : vector<16x512xf32>
    %c5_94 = arith.constant 5 : index
    %c0_95 = arith.constant 0 : index
    %c0_96 = arith.constant 0 : index
    %139 = vector.load %arg4[%c5_94, %c0_95, %c0_96] : memref<9x8x16xf32, #tpu.memory_space<vmem>>, vector<1x8x16xf32>
    %140 = vector.shape_cast %139 : vector<1x8x16xf32> to vector<8x16xf32>
    %cst_97 = arith.constant dense<0.000000e+00> : vector<8x512xf32>
    %141 = tpu.matmul %140, %138, %cst_97 {dimension_numbers = #tpu.dot_dimension_numbers<[1], [0], [0], [1], [0, 0, 1, 1], [], []>} : vector<8x16xf32>, vector<16x512xf32>, vector<8x512xf32> -> vector<8x512xf32>
    %142 = arith.addf %134, %141 : vector<8x512xf32>
    %c497_i32_98 = arith.constant 497 : i32
    %143 = tpu.dynamic_rotate %94 by %c497_i32_98 dim 1 : vector<16x512xf32>, i32 -> vector<16x512xf32>
    %c6_99 = arith.constant 6 : index
    %c0_100 = arith.constant 0 : index
    %144 = vector.load %arg12[%c6_99, %c0_100] : memref<9x512xf32, #tpu.memory_space<vmem>>, vector<1x512xf32>
    %145 = vector.broadcast %144 : vector<1x512xf32> to vector<16x512xf32>
    %146 = arith.mulf %143, %145 : vector<16x512xf32>
    %c6_101 = arith.constant 6 : index
    %c0_102 = arith.constant 0 : index
    %c0_103 = arith.constant 0 : index
    %147 = vector.load %arg4[%c6_101, %c0_102, %c0_103] : memref<9x8x16xf32, #tpu.memory_space<vmem>>, vector<1x8x16xf32>
    %148 = vector.shape_cast %147 : vector<1x8x16xf32> to vector<8x16xf32>
    %cst_104 = arith.constant dense<0.000000e+00> : vector<8x512xf32>
    %149 = tpu.matmul %148, %146, %cst_104 {dimension_numbers = #tpu.dot_dimension_numbers<[1], [0], [0], [1], [0, 0, 1, 1], [], []>} : vector<8x16xf32>, vector<16x512xf32>, vector<8x512xf32> -> vector<8x512xf32>
    %150 = arith.addf %142, %149 : vector<8x512xf32>
    %c496_i32_105 = arith.constant 496 : i32
    %151 = tpu.dynamic_rotate %94 by %c496_i32_105 dim 1 : vector<16x512xf32>, i32 -> vector<16x512xf32>
    %c7_106 = arith.constant 7 : index
    %c0_107 = arith.constant 0 : index
    %152 = vector.load %arg12[%c7_106, %c0_107] : memref<9x512xf32, #tpu.memory_space<vmem>>, vector<1x512xf32>
    %153 = vector.broadcast %152 : vector<1x512xf32> to vector<16x512xf32>
    %154 = arith.mulf %151, %153 : vector<16x512xf32>
    %c7_108 = arith.constant 7 : index
    %c0_109 = arith.constant 0 : index
    %c0_110 = arith.constant 0 : index
    %155 = vector.load %arg4[%c7_108, %c0_109, %c0_110] : memref<9x8x16xf32, #tpu.memory_space<vmem>>, vector<1x8x16xf32>
    %156 = vector.shape_cast %155 : vector<1x8x16xf32> to vector<8x16xf32>
    %cst_111 = arith.constant dense<0.000000e+00> : vector<8x512xf32>
    %157 = tpu.matmul %156, %154, %cst_111 {dimension_numbers = #tpu.dot_dimension_numbers<[1], [0], [0], [1], [0, 0, 1, 1], [], []>} : vector<8x16xf32>, vector<16x512xf32>, vector<8x512xf32> -> vector<8x512xf32>
    %158 = arith.addf %150, %157 : vector<8x512xf32>
    %c495_i32_112 = arith.constant 495 : i32
    %159 = tpu.dynamic_rotate %94 by %c495_i32_112 dim 1 : vector<16x512xf32>, i32 -> vector<16x512xf32>
    %c8_113 = arith.constant 8 : index
    %c0_114 = arith.constant 0 : index
    %160 = vector.load %arg12[%c8_113, %c0_114] : memref<9x512xf32, #tpu.memory_space<vmem>>, vector<1x512xf32>
    %161 = vector.broadcast %160 : vector<1x512xf32> to vector<16x512xf32>
    %162 = arith.mulf %159, %161 : vector<16x512xf32>
    %c8_115 = arith.constant 8 : index
    %c0_116 = arith.constant 0 : index
    %c0_117 = arith.constant 0 : index
    %163 = vector.load %arg4[%c8_115, %c0_116, %c0_117] : memref<9x8x16xf32, #tpu.memory_space<vmem>>, vector<1x8x16xf32>
    %164 = vector.shape_cast %163 : vector<1x8x16xf32> to vector<8x16xf32>
    %cst_118 = arith.constant dense<0.000000e+00> : vector<8x512xf32>
    %165 = tpu.matmul %164, %162, %cst_118 {dimension_numbers = #tpu.dot_dimension_numbers<[1], [0], [0], [1], [0, 0, 1, 1], [], []>} : vector<8x16xf32>, vector<16x512xf32>, vector<8x512xf32> -> vector<8x512xf32>
    %166 = arith.addf %158, %165 : vector<8x512xf32>
    %c0_119 = arith.constant 0 : index
    %c0_120 = arith.constant 0 : index
    %167 = vector.load %arg13[%c0_119, %c0_120] : memref<512x128xf32, #tpu.memory_space<vmem>>, vector<512x128xf32>
    %cst_121 = arith.constant dense<0.000000e+00> : vector<8x128xf32>
    %168 = tpu.matmul %166, %167, %cst_121 {dimension_numbers = #tpu.dot_dimension_numbers<[1], [0], [0], [1], [0, 0, 1, 1], [], []>} : vector<8x512xf32>, vector<512x128xf32>, vector<8x128xf32> -> vector<8x128xf32>
    %cst_122 = arith.constant dense<0.000000e+00> : vector<8xf32>
    %169 = vector.multi_reduction <add>, %168, %cst_122 [1] : vector<8x128xf32> to vector<8xf32>
    %170 = vector.shape_cast %169 : vector<8xf32> to vector<8x1xf32>
    %cst_123 = arith.constant 7.812500e-03 : f32
    %171 = vector.broadcast %cst_123 : f32 to vector<8x1xf32>
    %172 = arith.mulf %170, %171 : vector<8x1xf32>
    %173 = vector.broadcast %172 : vector<8x1xf32> to vector<8x128xf32>
    %174 = arith.subf %168, %173 : vector<8x128xf32>
    %175 = arith.mulf %174, %174 : vector<8x128xf32>
    %cst_124 = arith.constant dense<0.000000e+00> : vector<8xf32>
    %176 = vector.multi_reduction <add>, %175, %cst_124 [1] : vector<8x128xf32> to vector<8xf32>
    %177 = vector.shape_cast %176 : vector<8xf32> to vector<8x1xf32>
    %cst_125 = arith.constant 7.812500e-03 : f32
    %178 = vector.broadcast %cst_125 : f32 to vector<8x1xf32>
    %179 = arith.mulf %177, %178 : vector<8x1xf32>
    %cst_126 = arith.constant 9.99999974E-6 : f32
    %180 = vector.broadcast %cst_126 : f32 to vector<8x1xf32>
    %181 = arith.addf %179, %180 : vector<8x1xf32>
    %182 = math.rsqrt %181 : vector<8x1xf32>
    %183 = vector.broadcast %182 : vector<8x1xf32> to vector<8x128xf32>
    %184 = arith.mulf %174, %183 : vector<8x128xf32>
    %c0_127 = arith.constant 0 : index
    %c0_128 = arith.constant 0 : index
    %185 = vector.load %arg5[%c0_127, %c0_128] : memref<8x1xf32, #tpu.memory_space<vmem>>, vector<8x1xf32>
    %186 = vector.broadcast %185 : vector<8x1xf32> to vector<8x128xf32>
    %187 = arith.mulf %184, %186 : vector<8x128xf32>
    %c0_129 = arith.constant 0 : index
    %c0_130 = arith.constant 0 : index
    %188 = vector.load %arg6[%c0_129, %c0_130] : memref<8x1xf32, #tpu.memory_space<vmem>>, vector<8x1xf32>
    %189 = vector.broadcast %188 : vector<8x1xf32> to vector<8x128xf32>
    %190 = arith.addf %187, %189 : vector<8x128xf32>
    %c0_131 = arith.constant 0 : index
    %c0_132 = arith.constant 0 : index
    %191 = vector.load %arg14[%c0_131, %c0_132] : memref<128x32xf32, #tpu.memory_space<vmem>>, vector<128x32xf32>
    %cst_133 = arith.constant dense<0.000000e+00> : vector<8x32xf32>
    %192 = tpu.matmul %190, %191, %cst_133 {dimension_numbers = #tpu.dot_dimension_numbers<[1], [0], [0], [1], [0, 0, 1, 1], [], []>} : vector<8x128xf32>, vector<128x32xf32>, vector<8x32xf32> -> vector<8x32xf32>
    %cst_134 = arith.constant 0.000000e+00 : f32
    %193 = vector.broadcast %cst_134 : f32 to vector<4x8xf32>
    %c0_135 = arith.constant 0 : index
    %c0_136 = arith.constant 0 : index
    %c0_137 = arith.constant 0 : index
    %194 = vector.load %arg15[%c0_135, %c0_136, %c0_137] : memref<9x32x8xf32, #tpu.memory_space<vmem>>, vector<1x32x8xf32>
    %195 = vector.shape_cast %194 : vector<1x32x8xf32> to vector<32x8xf32>
    %cst_138 = arith.constant dense<0.000000e+00> : vector<8x8xf32>
    %196 = tpu.matmul %192, %195, %cst_138 {dimension_numbers = #tpu.dot_dimension_numbers<[1], [0], [0], [1], [0, 0, 1, 1], [], []>} : vector<8x32xf32>, vector<32x8xf32>, vector<8x8xf32> -> vector<8x8xf32>
    %c0_139 = arith.constant 0 : index
    %c0_140 = arith.constant 0 : index
    %c0_141 = arith.constant 0 : index
    %197 = vector.load %arg7[%c0_139, %c0_140, %c0_141] : memref<9x4x8xf32, #tpu.memory_space<vmem>>, vector<1x4x8xf32>
    %198 = vector.shape_cast %197 : vector<1x4x8xf32> to vector<4x8xf32>
    %cst_142 = arith.constant dense<0.000000e+00> : vector<4x8xf32>
    %199 = tpu.matmul %198, %196, %cst_142 {dimension_numbers = #tpu.dot_dimension_numbers<[1], [0], [0], [1], [0, 0, 1, 1], [], []>} : vector<4x8xf32>, vector<8x8xf32>, vector<4x8xf32> -> vector<4x8xf32>
    %200 = arith.addf %193, %199 : vector<4x8xf32>
    %c1_143 = arith.constant 1 : index
    %c0_144 = arith.constant 0 : index
    %c0_145 = arith.constant 0 : index
    %201 = vector.load %arg15[%c1_143, %c0_144, %c0_145] : memref<9x32x8xf32, #tpu.memory_space<vmem>>, vector<1x32x8xf32>
    %202 = vector.shape_cast %201 : vector<1x32x8xf32> to vector<32x8xf32>
    %cst_146 = arith.constant dense<0.000000e+00> : vector<8x8xf32>
    %203 = tpu.matmul %192, %202, %cst_146 {dimension_numbers = #tpu.dot_dimension_numbers<[1], [0], [0], [1], [0, 0, 1, 1], [], []>} : vector<8x32xf32>, vector<32x8xf32>, vector<8x8xf32> -> vector<8x8xf32>
    %c1_147 = arith.constant 1 : index
    %c0_148 = arith.constant 0 : index
    %c0_149 = arith.constant 0 : index
    %204 = vector.load %arg7[%c1_147, %c0_148, %c0_149] : memref<9x4x8xf32, #tpu.memory_space<vmem>>, vector<1x4x8xf32>
    %205 = vector.shape_cast %204 : vector<1x4x8xf32> to vector<4x8xf32>
    %cst_150 = arith.constant dense<0.000000e+00> : vector<4x8xf32>
    %206 = tpu.matmul %205, %203, %cst_150 {dimension_numbers = #tpu.dot_dimension_numbers<[1], [0], [0], [1], [0, 0, 1, 1], [], []>} : vector<4x8xf32>, vector<8x8xf32>, vector<4x8xf32> -> vector<4x8xf32>
    %207 = arith.addf %200, %206 : vector<4x8xf32>
    %c2_151 = arith.constant 2 : index
    %c0_152 = arith.constant 0 : index
    %c0_153 = arith.constant 0 : index
    %208 = vector.load %arg15[%c2_151, %c0_152, %c0_153] : memref<9x32x8xf32, #tpu.memory_space<vmem>>, vector<1x32x8xf32>
    %209 = vector.shape_cast %208 : vector<1x32x8xf32> to vector<32x8xf32>
    %cst_154 = arith.constant dense<0.000000e+00> : vector<8x8xf32>
    %210 = tpu.matmul %192, %209, %cst_154 {dimension_numbers = #tpu.dot_dimension_numbers<[1], [0], [0], [1], [0, 0, 1, 1], [], []>} : vector<8x32xf32>, vector<32x8xf32>, vector<8x8xf32> -> vector<8x8xf32>
    %c2_155 = arith.constant 2 : index
    %c0_156 = arith.constant 0 : index
    %c0_157 = arith.constant 0 : index
    %211 = vector.load %arg7[%c2_155, %c0_156, %c0_157] : memref<9x4x8xf32, #tpu.memory_space<vmem>>, vector<1x4x8xf32>
    %212 = vector.shape_cast %211 : vector<1x4x8xf32> to vector<4x8xf32>
    %cst_158 = arith.constant dense<0.000000e+00> : vector<4x8xf32>
    %213 = tpu.matmul %212, %210, %cst_158 {dimension_numbers = #tpu.dot_dimension_numbers<[1], [0], [0], [1], [0, 0, 1, 1], [], []>} : vector<4x8xf32>, vector<8x8xf32>, vector<4x8xf32> -> vector<4x8xf32>
    %214 = arith.addf %207, %213 : vector<4x8xf32>
    %c3_159 = arith.constant 3 : index
    %c0_160 = arith.constant 0 : index
    %c0_161 = arith.constant 0 : index
    %215 = vector.load %arg15[%c3_159, %c0_160, %c0_161] : memref<9x32x8xf32, #tpu.memory_space<vmem>>, vector<1x32x8xf32>
    %216 = vector.shape_cast %215 : vector<1x32x8xf32> to vector<32x8xf32>
    %cst_162 = arith.constant dense<0.000000e+00> : vector<8x8xf32>
    %217 = tpu.matmul %192, %216, %cst_162 {dimension_numbers = #tpu.dot_dimension_numbers<[1], [0], [0], [1], [0, 0, 1, 1], [], []>} : vector<8x32xf32>, vector<32x8xf32>, vector<8x8xf32> -> vector<8x8xf32>
    %c3_163 = arith.constant 3 : index
    %c0_164 = arith.constant 0 : index
    %c0_165 = arith.constant 0 : index
    %218 = vector.load %arg7[%c3_163, %c0_164, %c0_165] : memref<9x4x8xf32, #tpu.memory_space<vmem>>, vector<1x4x8xf32>
    %219 = vector.shape_cast %218 : vector<1x4x8xf32> to vector<4x8xf32>
    %cst_166 = arith.constant dense<0.000000e+00> : vector<4x8xf32>
    %220 = tpu.matmul %219, %217, %cst_166 {dimension_numbers = #tpu.dot_dimension_numbers<[1], [0], [0], [1], [0, 0, 1, 1], [], []>} : vector<4x8xf32>, vector<8x8xf32>, vector<4x8xf32> -> vector<4x8xf32>
    %221 = arith.addf %214, %220 : vector<4x8xf32>
    %c4_167 = arith.constant 4 : index
    %c0_168 = arith.constant 0 : index
    %c0_169 = arith.constant 0 : index
    %222 = vector.load %arg15[%c4_167, %c0_168, %c0_169] : memref<9x32x8xf32, #tpu.memory_space<vmem>>, vector<1x32x8xf32>
    %223 = vector.shape_cast %222 : vector<1x32x8xf32> to vector<32x8xf32>
    %cst_170 = arith.constant dense<0.000000e+00> : vector<8x8xf32>
    %224 = tpu.matmul %192, %223, %cst_170 {dimension_numbers = #tpu.dot_dimension_numbers<[1], [0], [0], [1], [0, 0, 1, 1], [], []>} : vector<8x32xf32>, vector<32x8xf32>, vector<8x8xf32> -> vector<8x8xf32>
    %c4_171 = arith.constant 4 : index
    %c0_172 = arith.constant 0 : index
    %c0_173 = arith.constant 0 : index
    %225 = vector.load %arg7[%c4_171, %c0_172, %c0_173] : memref<9x4x8xf32, #tpu.memory_space<vmem>>, vector<1x4x8xf32>
    %226 = vector.shape_cast %225 : vector<1x4x8xf32> to vector<4x8xf32>
    %cst_174 = arith.constant dense<0.000000e+00> : vector<4x8xf32>
    %227 = tpu.matmul %226, %224, %cst_174 {dimension_numbers = #tpu.dot_dimension_numbers<[1], [0], [0], [1], [0, 0, 1, 1], [], []>} : vector<4x8xf32>, vector<8x8xf32>, vector<4x8xf32> -> vector<4x8xf32>
    %228 = arith.addf %221, %227 : vector<4x8xf32>
    %c5_175 = arith.constant 5 : index
    %c0_176 = arith.constant 0 : index
    %c0_177 = arith.constant 0 : index
    %229 = vector.load %arg15[%c5_175, %c0_176, %c0_177] : memref<9x32x8xf32, #tpu.memory_space<vmem>>, vector<1x32x8xf32>
    %230 = vector.shape_cast %229 : vector<1x32x8xf32> to vector<32x8xf32>
    %cst_178 = arith.constant dense<0.000000e+00> : vector<8x8xf32>
    %231 = tpu.matmul %192, %230, %cst_178 {dimension_numbers = #tpu.dot_dimension_numbers<[1], [0], [0], [1], [0, 0, 1, 1], [], []>} : vector<8x32xf32>, vector<32x8xf32>, vector<8x8xf32> -> vector<8x8xf32>
    %c5_179 = arith.constant 5 : index
    %c0_180 = arith.constant 0 : index
    %c0_181 = arith.constant 0 : index
    %232 = vector.load %arg7[%c5_179, %c0_180, %c0_181] : memref<9x4x8xf32, #tpu.memory_space<vmem>>, vector<1x4x8xf32>
    %233 = vector.shape_cast %232 : vector<1x4x8xf32> to vector<4x8xf32>
    %cst_182 = arith.constant dense<0.000000e+00> : vector<4x8xf32>
    %234 = tpu.matmul %233, %231, %cst_182 {dimension_numbers = #tpu.dot_dimension_numbers<[1], [0], [0], [1], [0, 0, 1, 1], [], []>} : vector<4x8xf32>, vector<8x8xf32>, vector<4x8xf32> -> vector<4x8xf32>
    %235 = arith.addf %228, %234 : vector<4x8xf32>
    %c6_183 = arith.constant 6 : index
    %c0_184 = arith.constant 0 : index
    %c0_185 = arith.constant 0 : index
    %236 = vector.load %arg15[%c6_183, %c0_184, %c0_185] : memref<9x32x8xf32, #tpu.memory_space<vmem>>, vector<1x32x8xf32>
    %237 = vector.shape_cast %236 : vector<1x32x8xf32> to vector<32x8xf32>
    %cst_186 = arith.constant dense<0.000000e+00> : vector<8x8xf32>
    %238 = tpu.matmul %192, %237, %cst_186 {dimension_numbers = #tpu.dot_dimension_numbers<[1], [0], [0], [1], [0, 0, 1, 1], [], []>} : vector<8x32xf32>, vector<32x8xf32>, vector<8x8xf32> -> vector<8x8xf32>
    %c6_187 = arith.constant 6 : index
    %c0_188 = arith.constant 0 : index
    %c0_189 = arith.constant 0 : index
    %239 = vector.load %arg7[%c6_187, %c0_188, %c0_189] : memref<9x4x8xf32, #tpu.memory_space<vmem>>, vector<1x4x8xf32>
    %240 = vector.shape_cast %239 : vector<1x4x8xf32> to vector<4x8xf32>
    %cst_190 = arith.constant dense<0.000000e+00> : vector<4x8xf32>
    %241 = tpu.matmul %240, %238, %cst_190 {dimension_numbers = #tpu.dot_dimension_numbers<[1], [0], [0], [1], [0, 0, 1, 1], [], []>} : vector<4x8xf32>, vector<8x8xf32>, vector<4x8xf32> -> vector<4x8xf32>
    %242 = arith.addf %235, %241 : vector<4x8xf32>
    %c7_191 = arith.constant 7 : index
    %c0_192 = arith.constant 0 : index
    %c0_193 = arith.constant 0 : index
    %243 = vector.load %arg15[%c7_191, %c0_192, %c0_193] : memref<9x32x8xf32, #tpu.memory_space<vmem>>, vector<1x32x8xf32>
    %244 = vector.shape_cast %243 : vector<1x32x8xf32> to vector<32x8xf32>
    %cst_194 = arith.constant dense<0.000000e+00> : vector<8x8xf32>
    %245 = tpu.matmul %192, %244, %cst_194 {dimension_numbers = #tpu.dot_dimension_numbers<[1], [0], [0], [1], [0, 0, 1, 1], [], []>} : vector<8x32xf32>, vector<32x8xf32>, vector<8x8xf32> -> vector<8x8xf32>
    %c7_195 = arith.constant 7 : index
    %c0_196 = arith.constant 0 : index
    %c0_197 = arith.constant 0 : index
    %246 = vector.load %arg7[%c7_195, %c0_196, %c0_197] : memref<9x4x8xf32, #tpu.memory_space<vmem>>, vector<1x4x8xf32>
    %247 = vector.shape_cast %246 : vector<1x4x8xf32> to vector<4x8xf32>
    %cst_198 = arith.constant dense<0.000000e+00> : vector<4x8xf32>
    %248 = tpu.matmul %247, %245, %cst_198 {dimension_numbers = #tpu.dot_dimension_numbers<[1], [0], [0], [1], [0, 0, 1, 1], [], []>} : vector<4x8xf32>, vector<8x8xf32>, vector<4x8xf32> -> vector<4x8xf32>
    %249 = arith.addf %242, %248 : vector<4x8xf32>
    %c8_199 = arith.constant 8 : index
    %c0_200 = arith.constant 0 : index
    %c0_201 = arith.constant 0 : index
    %250 = vector.load %arg15[%c8_199, %c0_200, %c0_201] : memref<9x32x8xf32, #tpu.memory_space<vmem>>, vector<1x32x8xf32>
    %251 = vector.shape_cast %250 : vector<1x32x8xf32> to vector<32x8xf32>
    %cst_202 = arith.constant dense<0.000000e+00> : vector<8x8xf32>
    %252 = tpu.matmul %192, %251, %cst_202 {dimension_numbers = #tpu.dot_dimension_numbers<[1], [0], [0], [1], [0, 0, 1, 1], [], []>} : vector<8x32xf32>, vector<32x8xf32>, vector<8x8xf32> -> vector<8x8xf32>
    %c8_203 = arith.constant 8 : index
    %c0_204 = arith.constant 0 : index
    %c0_205 = arith.constant 0 : index
    %253 = vector.load %arg7[%c8_203, %c0_204, %c0_205] : memref<9x4x8xf32, #tpu.memory_space<vmem>>, vector<1x4x8xf32>
    %254 = vector.shape_cast %253 : vector<1x4x8xf32> to vector<4x8xf32>
    %cst_206 = arith.constant dense<0.000000e+00> : vector<4x8xf32>
    %255 = tpu.matmul %254, %252, %cst_206 {dimension_numbers = #tpu.dot_dimension_numbers<[1], [0], [0], [1], [0, 0, 1, 1], [], []>} : vector<4x8xf32>, vector<8x8xf32>, vector<4x8xf32> -> vector<4x8xf32>
    %256 = arith.addf %249, %255 : vector<4x8xf32>
    %cst_207 = arith.constant dense<0.000000e+00> : vector<4xf32>
    %257 = vector.multi_reduction <add>, %256, %cst_207 [1] : vector<4x8xf32> to vector<4xf32>
    %258 = vector.shape_cast %257 : vector<4xf32> to vector<4x1xf32>
    %cst_208 = arith.constant 1.250000e-01 : f32
    %259 = vector.broadcast %cst_208 : f32 to vector<4x1xf32>
    %260 = arith.mulf %258, %259 : vector<4x1xf32>
    %261 = vector.broadcast %260 : vector<4x1xf32> to vector<4x8xf32>
    %262 = arith.subf %256, %261 : vector<4x8xf32>
    %263 = arith.mulf %262, %262 : vector<4x8xf32>
    %cst_209 = arith.constant dense<0.000000e+00> : vector<4xf32>
    %264 = vector.multi_reduction <add>, %263, %cst_209 [1] : vector<4x8xf32> to vector<4xf32>
    %265 = vector.shape_cast %264 : vector<4xf32> to vector<4x1xf32>
    %cst_210 = arith.constant 1.250000e-01 : f32
    %266 = vector.broadcast %cst_210 : f32 to vector<4x1xf32>
    %267 = arith.mulf %265, %266 : vector<4x1xf32>
    %cst_211 = arith.constant 9.99999974E-6 : f32
    %268 = vector.broadcast %cst_211 : f32 to vector<4x1xf32>
    %269 = arith.addf %267, %268 : vector<4x1xf32>
    %270 = math.rsqrt %269 : vector<4x1xf32>
    %271 = vector.broadcast %270 : vector<4x1xf32> to vector<4x8xf32>
    %272 = arith.mulf %262, %271 : vector<4x8xf32>
    %c0_212 = arith.constant 0 : index
    %c0_213 = arith.constant 0 : index
    %273 = vector.load %arg8[%c0_212, %c0_213] : memref<4x1xf32, #tpu.memory_space<vmem>>, vector<4x1xf32>
    %274 = vector.broadcast %273 : vector<4x1xf32> to vector<4x8xf32>
    %275 = arith.mulf %272, %274 : vector<4x8xf32>
    %c0_214 = arith.constant 0 : index
    %c0_215 = arith.constant 0 : index
    %276 = vector.load %arg9[%c0_214, %c0_215] : memref<4x1xf32, #tpu.memory_space<vmem>>, vector<4x1xf32>
    %277 = vector.broadcast %276 : vector<4x1xf32> to vector<4x8xf32>
    %278 = arith.addf %275, %277 : vector<4x8xf32>
    %c0_216 = arith.constant 0 : index
    %c0_217 = arith.constant 0 : index
    %279 = vector.load %arg16[%c0_216, %c0_217] : memref<8x2xf32, #tpu.memory_space<vmem>>, vector<8x2xf32>
    %cst_218 = arith.constant dense<0.000000e+00> : vector<4x2xf32>
    %280 = tpu.matmul %278, %279, %cst_218 {dimension_numbers = #tpu.dot_dimension_numbers<[1], [0], [0], [1], [0, 0, 1, 1], [], []>} : vector<4x8xf32>, vector<8x2xf32>, vector<4x2xf32> -> vector<4x2xf32>
    %cst_219 = arith.constant 0.000000e+00 : f32
    %281 = vector.broadcast %cst_219 : f32 to vector<1x2xf32>
    %c0_220 = arith.constant 0 : index
    %c0_221 = arith.constant 0 : index
    %c0_222 = arith.constant 0 : index
    %282 = vector.load %arg17[%c0_220, %c0_221, %c0_222] : memref<9x2x2xf32, #tpu.memory_space<vmem>>, vector<1x2x2xf32>
    %283 = vector.shape_cast %282 : vector<1x2x2xf32> to vector<2x2xf32>
    %cst_223 = arith.constant dense<0.000000e+00> : vector<4x2xf32>
    %284 = tpu.matmul %280, %283, %cst_223 {dimension_numbers = #tpu.dot_dimension_numbers<[1], [0], [0], [1], [0, 0, 1, 1], [], []>} : vector<4x2xf32>, vector<2x2xf32>, vector<4x2xf32> -> vector<4x2xf32>
    %c0_224 = arith.constant 0 : index
    %c0_225 = arith.constant 0 : index
    %c0_226 = arith.constant 0 : index
    %285 = vector.load %arg10[%c0_224, %c0_225, %c0_226] : memref<9x1x4xf32, #tpu.memory_space<vmem>>, vector<1x1x4xf32>
    %286 = vector.shape_cast %285 : vector<1x1x4xf32> to vector<1x4xf32>
    %cst_227 = arith.constant dense<0.000000e+00> : vector<1x2xf32>
    %287 = tpu.matmul %286, %284, %cst_227 {dimension_numbers = #tpu.dot_dimension_numbers<[1], [0], [0], [1], [0, 0, 1, 1], [], []>} : vector<1x4xf32>, vector<4x2xf32>, vector<1x2xf32> -> vector<1x2xf32>
    %288 = arith.addf %281, %287 : vector<1x2xf32>
    %c1_228 = arith.constant 1 : index
    %c0_229 = arith.constant 0 : index
    %c0_230 = arith.constant 0 : index
    %289 = vector.load %arg17[%c1_228, %c0_229, %c0_230] : memref<9x2x2xf32, #tpu.memory_space<vmem>>, vector<1x2x2xf32>
    %290 = vector.shape_cast %289 : vector<1x2x2xf32> to vector<2x2xf32>
    %cst_231 = arith.constant dense<0.000000e+00> : vector<4x2xf32>
    %291 = tpu.matmul %280, %290, %cst_231 {dimension_numbers = #tpu.dot_dimension_numbers<[1], [0], [0], [1], [0, 0, 1, 1], [], []>} : vector<4x2xf32>, vector<2x2xf32>, vector<4x2xf32> -> vector<4x2xf32>
    %c1_232 = arith.constant 1 : index
    %c0_233 = arith.constant 0 : index
    %c0_234 = arith.constant 0 : index
    %292 = vector.load %arg10[%c1_232, %c0_233, %c0_234] : memref<9x1x4xf32, #tpu.memory_space<vmem>>, vector<1x1x4xf32>
    %293 = vector.shape_cast %292 : vector<1x1x4xf32> to vector<1x4xf32>
    %cst_235 = arith.constant dense<0.000000e+00> : vector<1x2xf32>
    %294 = tpu.matmul %293, %291, %cst_235 {dimension_numbers = #tpu.dot_dimension_numbers<[1], [0], [0], [1], [0, 0, 1, 1], [], []>} : vector<1x4xf32>, vector<4x2xf32>, vector<1x2xf32> -> vector<1x2xf32>
    %295 = arith.addf %288, %294 : vector<1x2xf32>
    %c2_236 = arith.constant 2 : index
    %c0_237 = arith.constant 0 : index
    %c0_238 = arith.constant 0 : index
    %296 = vector.load %arg17[%c2_236, %c0_237, %c0_238] : memref<9x2x2xf32, #tpu.memory_space<vmem>>, vector<1x2x2xf32>
    %297 = vector.shape_cast %296 : vector<1x2x2xf32> to vector<2x2xf32>
    %cst_239 = arith.constant dense<0.000000e+00> : vector<4x2xf32>
    %298 = tpu.matmul %280, %297, %cst_239 {dimension_numbers = #tpu.dot_dimension_numbers<[1], [0], [0], [1], [0, 0, 1, 1], [], []>} : vector<4x2xf32>, vector<2x2xf32>, vector<4x2xf32> -> vector<4x2xf32>
    %c2_240 = arith.constant 2 : index
    %c0_241 = arith.constant 0 : index
    %c0_242 = arith.constant 0 : index
    %299 = vector.load %arg10[%c2_240, %c0_241, %c0_242] : memref<9x1x4xf32, #tpu.memory_space<vmem>>, vector<1x1x4xf32>
    %300 = vector.shape_cast %299 : vector<1x1x4xf32> to vector<1x4xf32>
    %cst_243 = arith.constant dense<0.000000e+00> : vector<1x2xf32>
    %301 = tpu.matmul %300, %298, %cst_243 {dimension_numbers = #tpu.dot_dimension_numbers<[1], [0], [0], [1], [0, 0, 1, 1], [], []>} : vector<1x4xf32>, vector<4x2xf32>, vector<1x2xf32> -> vector<1x2xf32>
    %302 = arith.addf %295, %301 : vector<1x2xf32>
    %c3_244 = arith.constant 3 : index
    %c0_245 = arith.constant 0 : index
    %c0_246 = arith.constant 0 : index
    %303 = vector.load %arg17[%c3_244, %c0_245, %c0_246] : memref<9x2x2xf32, #tpu.memory_space<vmem>>, vector<1x2x2xf32>
    %304 = vector.shape_cast %303 : vector<1x2x2xf32> to vector<2x2xf32>
    %cst_247 = arith.constant dense<0.000000e+00> : vector<4x2xf32>
    %305 = tpu.matmul %280, %304, %cst_247 {dimension_numbers = #tpu.dot_dimension_numbers<[1], [0], [0], [1], [0, 0, 1, 1], [], []>} : vector<4x2xf32>, vector<2x2xf32>, vector<4x2xf32> -> vector<4x2xf32>
    %c3_248 = arith.constant 3 : index
    %c0_249 = arith.constant 0 : index
    %c0_250 = arith.constant 0 : index
    %306 = vector.load %arg10[%c3_248, %c0_249, %c0_250] : memref<9x1x4xf32, #tpu.memory_space<vmem>>, vector<1x1x4xf32>
    %307 = vector.shape_cast %306 : vector<1x1x4xf32> to vector<1x4xf32>
    %cst_251 = arith.constant dense<0.000000e+00> : vector<1x2xf32>
    %308 = tpu.matmul %307, %305, %cst_251 {dimension_numbers = #tpu.dot_dimension_numbers<[1], [0], [0], [1], [0, 0, 1, 1], [], []>} : vector<1x4xf32>, vector<4x2xf32>, vector<1x2xf32> -> vector<1x2xf32>
    %309 = arith.addf %302, %308 : vector<1x2xf32>
    %c4_252 = arith.constant 4 : index
    %c0_253 = arith.constant 0 : index
    %c0_254 = arith.constant 0 : index
    %310 = vector.load %arg17[%c4_252, %c0_253, %c0_254] : memref<9x2x2xf32, #tpu.memory_space<vmem>>, vector<1x2x2xf32>
    %311 = vector.shape_cast %310 : vector<1x2x2xf32> to vector<2x2xf32>
    %cst_255 = arith.constant dense<0.000000e+00> : vector<4x2xf32>
    %312 = tpu.matmul %280, %311, %cst_255 {dimension_numbers = #tpu.dot_dimension_numbers<[1], [0], [0], [1], [0, 0, 1, 1], [], []>} : vector<4x2xf32>, vector<2x2xf32>, vector<4x2xf32> -> vector<4x2xf32>
    %c4_256 = arith.constant 4 : index
    %c0_257 = arith.constant 0 : index
    %c0_258 = arith.constant 0 : index
    %313 = vector.load %arg10[%c4_256, %c0_257, %c0_258] : memref<9x1x4xf32, #tpu.memory_space<vmem>>, vector<1x1x4xf32>
    %314 = vector.shape_cast %313 : vector<1x1x4xf32> to vector<1x4xf32>
    %cst_259 = arith.constant dense<0.000000e+00> : vector<1x2xf32>
    %315 = tpu.matmul %314, %312, %cst_259 {dimension_numbers = #tpu.dot_dimension_numbers<[1], [0], [0], [1], [0, 0, 1, 1], [], []>} : vector<1x4xf32>, vector<4x2xf32>, vector<1x2xf32> -> vector<1x2xf32>
    %316 = arith.addf %309, %315 : vector<1x2xf32>
    %c5_260 = arith.constant 5 : index
    %c0_261 = arith.constant 0 : index
    %c0_262 = arith.constant 0 : index
    %317 = vector.load %arg17[%c5_260, %c0_261, %c0_262] : memref<9x2x2xf32, #tpu.memory_space<vmem>>, vector<1x2x2xf32>
    %318 = vector.shape_cast %317 : vector<1x2x2xf32> to vector<2x2xf32>
    %cst_263 = arith.constant dense<0.000000e+00> : vector<4x2xf32>
    %319 = tpu.matmul %280, %318, %cst_263 {dimension_numbers = #tpu.dot_dimension_numbers<[1], [0], [0], [1], [0, 0, 1, 1], [], []>} : vector<4x2xf32>, vector<2x2xf32>, vector<4x2xf32> -> vector<4x2xf32>
    %c5_264 = arith.constant 5 : index
    %c0_265 = arith.constant 0 : index
    %c0_266 = arith.constant 0 : index
    %320 = vector.load %arg10[%c5_264, %c0_265, %c0_266] : memref<9x1x4xf32, #tpu.memory_space<vmem>>, vector<1x1x4xf32>
    %321 = vector.shape_cast %320 : vector<1x1x4xf32> to vector<1x4xf32>
    %cst_267 = arith.constant dense<0.000000e+00> : vector<1x2xf32>
    %322 = tpu.matmul %321, %319, %cst_267 {dimension_numbers = #tpu.dot_dimension_numbers<[1], [0], [0], [1], [0, 0, 1, 1], [], []>} : vector<1x4xf32>, vector<4x2xf32>, vector<1x2xf32> -> vector<1x2xf32>
    %323 = arith.addf %316, %322 : vector<1x2xf32>
    %c6_268 = arith.constant 6 : index
    %c0_269 = arith.constant 0 : index
    %c0_270 = arith.constant 0 : index
    %324 = vector.load %arg17[%c6_268, %c0_269, %c0_270] : memref<9x2x2xf32, #tpu.memory_space<vmem>>, vector<1x2x2xf32>
    %325 = vector.shape_cast %324 : vector<1x2x2xf32> to vector<2x2xf32>
    %cst_271 = arith.constant dense<0.000000e+00> : vector<4x2xf32>
    %326 = tpu.matmul %280, %325, %cst_271 {dimension_numbers = #tpu.dot_dimension_numbers<[1], [0], [0], [1], [0, 0, 1, 1], [], []>} : vector<4x2xf32>, vector<2x2xf32>, vector<4x2xf32> -> vector<4x2xf32>
    %c6_272 = arith.constant 6 : index
    %c0_273 = arith.constant 0 : index
    %c0_274 = arith.constant 0 : index
    %327 = vector.load %arg10[%c6_272, %c0_273, %c0_274] : memref<9x1x4xf32, #tpu.memory_space<vmem>>, vector<1x1x4xf32>
    %328 = vector.shape_cast %327 : vector<1x1x4xf32> to vector<1x4xf32>
    %cst_275 = arith.constant dense<0.000000e+00> : vector<1x2xf32>
    %329 = tpu.matmul %328, %326, %cst_275 {dimension_numbers = #tpu.dot_dimension_numbers<[1], [0], [0], [1], [0, 0, 1, 1], [], []>} : vector<1x4xf32>, vector<4x2xf32>, vector<1x2xf32> -> vector<1x2xf32>
    %330 = arith.addf %323, %329 : vector<1x2xf32>
    %c7_276 = arith.constant 7 : index
    %c0_277 = arith.constant 0 : index
    %c0_278 = arith.constant 0 : index
    %331 = vector.load %arg17[%c7_276, %c0_277, %c0_278] : memref<9x2x2xf32, #tpu.memory_space<vmem>>, vector<1x2x2xf32>
    %332 = vector.shape_cast %331 : vector<1x2x2xf32> to vector<2x2xf32>
    %cst_279 = arith.constant dense<0.000000e+00> : vector<4x2xf32>
    %333 = tpu.matmul %280, %332, %cst_279 {dimension_numbers = #tpu.dot_dimension_numbers<[1], [0], [0], [1], [0, 0, 1, 1], [], []>} : vector<4x2xf32>, vector<2x2xf32>, vector<4x2xf32> -> vector<4x2xf32>
    %c7_280 = arith.constant 7 : index
    %c0_281 = arith.constant 0 : index
    %c0_282 = arith.constant 0 : index
    %334 = vector.load %arg10[%c7_280, %c0_281, %c0_282] : memref<9x1x4xf32, #tpu.memory_space<vmem>>, vector<1x1x4xf32>
    %335 = vector.shape_cast %334 : vector<1x1x4xf32> to vector<1x4xf32>
    %cst_283 = arith.constant dense<0.000000e+00> : vector<1x2xf32>
    %336 = tpu.matmul %335, %333, %cst_283 {dimension_numbers = #tpu.dot_dimension_numbers<[1], [0], [0], [1], [0, 0, 1, 1], [], []>} : vector<1x4xf32>, vector<4x2xf32>, vector<1x2xf32> -> vector<1x2xf32>
    %337 = arith.addf %330, %336 : vector<1x2xf32>
    %c8_284 = arith.constant 8 : index
    %c0_285 = arith.constant 0 : index
    %c0_286 = arith.constant 0 : index
    %338 = vector.load %arg17[%c8_284, %c0_285, %c0_286] : memref<9x2x2xf32, #tpu.memory_space<vmem>>, vector<1x2x2xf32>
    %339 = vector.shape_cast %338 : vector<1x2x2xf32> to vector<2x2xf32>
    %cst_287 = arith.constant dense<0.000000e+00> : vector<4x2xf32>
    %340 = tpu.matmul %280, %339, %cst_287 {dimension_numbers = #tpu.dot_dimension_numbers<[1], [0], [0], [1], [0, 0, 1, 1], [], []>} : vector<4x2xf32>, vector<2x2xf32>, vector<4x2xf32> -> vector<4x2xf32>
    %c8_288 = arith.constant 8 : index
    %c0_289 = arith.constant 0 : index
    %c0_290 = arith.constant 0 : index
    %341 = vector.load %arg10[%c8_288, %c0_289, %c0_290] : memref<9x1x4xf32, #tpu.memory_space<vmem>>, vector<1x1x4xf32>
    %342 = vector.shape_cast %341 : vector<1x1x4xf32> to vector<1x4xf32>
    %cst_291 = arith.constant dense<0.000000e+00> : vector<1x2xf32>
    %343 = tpu.matmul %342, %340, %cst_291 {dimension_numbers = #tpu.dot_dimension_numbers<[1], [0], [0], [1], [0, 0, 1, 1], [], []>} : vector<1x4xf32>, vector<4x2xf32>, vector<1x2xf32> -> vector<1x2xf32>
    %344 = arith.addf %337, %343 : vector<1x2xf32>
    %c0_292 = arith.constant 0 : index
    %c0_293 = arith.constant 0 : index
    %345 = vector.load %arg11[%c0_292, %c0_293] : memref<1x1xf32, #tpu.memory_space<vmem>>, vector<1x1xf32>
    %346 = vector.broadcast %345 : vector<1x1xf32> to vector<1x2xf32>
    %347 = arith.addf %344, %346 : vector<1x2xf32>
    %c0_294 = arith.constant 0 : index
    %c0_295 = arith.constant 0 : index
    %348 = vector.load %arg18[%c0_294, %c0_295] : memref<1x2xf32, #tpu.memory_space<vmem>>, vector<1x2xf32>
    tpu.vector_store %arg18[%c0_294, %c0_295], %347 {strides = array<i32>} : memref<1x2xf32, #tpu.memory_space<vmem>>, vector<1x2xf32>,
    return
  }
}

</mosaic_0001>

<llo_original>
// kernel: discriminator_forward.1
$region0: #{discriminator_forward.1}
  #allocation0 [shape = 'u32[]', space=smem, size = 0x4, offset = 0x4, fixed_abs, tag = 'smem constant byte address 0x4 - core index']
  #allocation1 [shape = 'u32[144,128]{1,0:T(1,128)}', space=vmem, size = 0x12000, scoped, tag = 'internal scratch']
  #allocation2 [shape = 'f32[1,1]{1,0:T(1,128)S(1)}', space=vmem, size = 0x200, scoped, tag = 'scoped memory for discriminator_forward.1']
  %s0 = inlined_call_operand.vmem [shape: f32[4,512], index: 0, kind: input, shape index: {}]
  %s1 = inlined_call_operand.vmem [shape: f32[9,16,4], index: 1, kind: input, shape index: {}]
  %s2 = inlined_call_operand.vmem [shape: f32[16,1], index: 2, kind: input, shape index: {}]
  %s3 = inlined_call_operand.vmem [shape: f32[16,1], index: 3, kind: input, shape index: {}]
  %s4 = inlined_call_operand.vmem [shape: f32[9,8,16], index: 4, kind: input, shape index: {}]
  %s5 = inlined_call_operand.vmem [shape: f32[8,1], index: 5, kind: input, shape index: {}]
  %s6 = inlined_call_operand.vmem [shape: f32[8,1], index: 6, kind: input, shape index: {}]
  %s7 = inlined_call_operand.vmem [shape: f32[9,4,8], index: 7, kind: input, shape index: {}]
  %s8 = inlined_call_operand.vmem [shape: f32[4,1], index: 8, kind: input, shape index: {}]
  %s9 = inlined_call_operand.vmem [shape: f32[4,1], index: 9, kind: input, shape index: {}]
  %s10 = inlined_call_operand.vmem [shape: f32[9,1,4], index: 10, kind: input, shape index: {}]
  %s11 = inlined_call_operand.<no memory space> [shape: f32[1,1], index: 11, kind: input, shape index: {}]
  %s12 = inlined_call_operand.vmem [shape: f32[9,512], index: 12, kind: input, shape index: {}]
  %s13 = inlined_call_operand.vmem [shape: f32[512,128], index: 13, kind: input, shape index: {}]
  %s14 = inlined_call_operand.vmem [shape: f32[128,32], index: 14, kind: input, shape index: {}]
  %s15 = inlined_call_operand.hbm [shape: f32[9,32,8], index: 15, kind: input, shape index: {}]
  %s16 = inlined_call_operand.vmem [shape: f32[8,2], index: 16, kind: input, shape index: {}]
  %s17 = inlined_call_operand.hbm [shape: f32[9,2,2], index: 17, kind: input, shape index: {}]
  %s18 = inlined_call_operand.hbm [shape: f32[1,2], index: 18, kind: output, shape index: {}]
  %s19 = sld [smem:[#allocation0]]
  $region90: #{discriminator_forward.1} parent=0
    _
  %s21 = ssub.s32 1, %s19
  %s22 = scalar_select 0, %s21, %s19
  %v23 = vstv %s11
  %24 = vst [vmem:[#allocation2] sm:$0x1] %v23
  $region1: #{discriminator_forward.1} parent=0
    #allocation3 [shape = 'u8[147456]{0}', space=vmem, size = 0x24000, scoped, tag = 'input window, operand 15, single buffered']
    #allocation4 [shape = 's32[1]{0}', space=sflag, size = 0x4, scoped, tag = 'scoped memory for discriminator_forward.1']
    #allocation5 [shape = 's32[1]{0}', space=sflag, size = 0x4, scoped, tag = 'scoped memory for discriminator_forward.1']
    #allocation6 [shape = 'u8[9216]{0}', space=vmem, size = 0x2400, scoped, tag = 'input window, operand 17, single buffered']
    #allocation7 [shape = 's32[1]{0}', space=sflag, size = 0x4, scoped, tag = 'scoped memory for discriminator_forward.1']
    #allocation8 [shape = 'u8[512]{0}', space=vmem, size = 0x400, scoped, tag = 'output window, operand 0, single buffered']
    %25 = vsyncpa [#allocation4], 0
    %26 = vsyncpa [#allocation7], 0
    %27 = vsyncpa [#allocation5], 0
    // Predicated region
    $region2: #{discriminator_forward.1} parent=1 // pred_check
      _
    $region3: #{discriminator_forward.1} parent=1 // pred_check_branch
      %29 = sbr.rel (0) target = $region5
    $region4: #{discriminator_forward.1} parent=1 // pred_region
      _
    $region5: #{discriminator_forward.1} parent=1 // pred_fallthru
      _
    // Predicated region
    $region6: #{discriminator_forward.1} parent=1 // pred_check
      _
    $region7: #{discriminator_forward.1} parent=1 // pred_check_branch
      %31 = sbr.rel (0) target = $region9
    $region8: #{discriminator_forward.1} parent=1 // pred_region
      _
    $region9: #{discriminator_forward.1} parent=1 // pred_fallthru
      _
    // Predicated region
    $region10: #{discriminator_forward.1} parent=1 // pred_check
      _
    $region11: #{discriminator_forward.1} parent=1 // pred_check_branch
      %33 = sbr.rel (0) target = $region13
    $region12: #{discriminator_forward.1} parent=1 // pred_region
      _
    $region13: #{discriminator_forward.1} parent=1 // pred_fallthru
      _
    // Predicated region
    $region14: #{discriminator_forward.1} parent=1 // pred_check
      _
    $region15: #{discriminator_forward.1} parent=1 // pred_check_branch
      %35 = sbr.rel (0) target = $region17
    $region16: #{discriminator_forward.1} parent=1 // pred_region
      _
    $region17: #{discriminator_forward.1} parent=1 // pred_fallthru
      _
    // Predicated region
    $region18: #{discriminator_forward.1} parent=1 // pred_check
      _
    $region19: #{discriminator_forward.1} parent=1 // pred_check_branch
      %37 = sbr.rel (0) target = $region21
    $region20: #{discriminator_forward.1} parent=1 // pred_region
      _
    $region21: #{discriminator_forward.1} parent=1 // pred_fallthru
      _
    // Predicated region
    $region22: #{discriminator_forward.1} parent=1 // pred_check
      _
    $region23: #{discriminator_forward.1} parent=1 // pred_check_branch
      %39 = sbr.rel (0) target = $region25
    $region24: #{discriminator_forward.1} parent=1 // pred_region
      _
    $region25: #{discriminator_forward.1} parent=1 // pred_fallthru
      _
    // Predicated region
    $region26: #{discriminator_forward.1} parent=1 // pred_check
      _
    $region27: #{discriminator_forward.1} parent=1 // pred_check_branch
      %41 = sbr.rel (0) target = $region29
    $region28: #{discriminator_forward.1} parent=1 // pred_region
      _
    $region29: #{discriminator_forward.1} parent=1 // pred_fallthru
      _
    // Predicated region
    $region30: #{discriminator_forward.1} parent=1 // pred_check
      _
    $region31: #{discriminator_forward.1} parent=1 // pred_check_branch
      %43 = sbr.rel (0) target = $region33
    $region32: #{discriminator_forward.1} parent=1 // pred_region
      _
    $region33: #{discriminator_forward.1} parent=1 // pred_fallthru
      _
    // Predicated region
    $region34: #{discriminator_forward.1} parent=1 // pred_check
      _
    $region35: #{discriminator_forward.1} parent=1 // pred_check_branch
      %45 = sbr.rel (0) target = $region37
    $region36: #{discriminator_forward.1} parent=1 // pred_region
      _
    $region37: #{discriminator_forward.1} parent=1 // pred_fallthru
      _
    // Predicated region
    $region38: #{discriminator_forward.1} parent=1 // pred_check
      _
    $region39: #{discriminator_forward.1} parent=1 // pred_check_branch
      %47 = sbr.rel (0) target = $region41
    $region40: #{discriminator_forward.1} parent=1 // pred_region
      _
    $region41: #{discriminator_forward.1} parent=1 // pred_fallthru
      _
    // Predicated region
    $region42: #{discriminator_forward.1} parent=1 // pred_check
      _
    $region43: #{discriminator_forward.1} parent=1 // pred_check_branch
      %49 = sbr.rel (0) target = $region45
    $region44: #{discriminator_forward.1} parent=1 // pred_region
      _
    $region45: #{discriminator_forward.1} parent=1 // pred_fallthru
      _
    // Predicated region
    $region46: #{discriminator_forward.1} parent=1 // pred_check
      _
    $region47: #{discriminator_forward.1} parent=1 // pred_check_branch
      %51 = sbr.rel (0) target = $region49
    $region48: #{discriminator_forward.1} parent=1 // pred_region
      _
    $region49: #{discriminator_forward.1} parent=1 // pred_fallthru
      _
    // Predicated region
    $region50: #{discriminator_forward.1} parent=1 // pred_check
      _
    $region51: #{discriminator_forward.1} parent=1 // pred_check_branch
      %53 = sbr.rel (0) target = $region53
    $region52: #{discriminator_forward.1} parent=1 // pred_region
      _
    $region53: #{discriminator_forward.1} parent=1 // pred_fallthru
      _
    // Predicated region
    $region54: #{discriminator_forward.1} parent=1 // pred_check
      _
    $region55: #{discriminator_forward.1} parent=1 // pred_check_branch
      %55 = sbr.rel (0) target = $region57
    $region56: #{discriminator_forward.1} parent=1 // pred_region
      _
    $region57: #{discriminator_forward.1} parent=1 // pred_fallthru
      _
    // Predicated region
    $region58: #{discriminator_forward.1} parent=1 // pred_check
      _
    $region59: #{discriminator_forward.1} parent=1 // pred_check_branch
      %57 = sbr.rel (0) target = $region61
    $region60: #{discriminator_forward.1} parent=1 // pred_region
      _
    $region61: #{discriminator_forward.1} parent=1 // pred_fallthru
      _
    // Predicated region
    $region62: #{discriminator_forward.1} parent=1 // pred_check
      _
    $region63: #{discriminator_forward.1} parent=1 // pred_check_branch
      %59 = sbr.rel (0) target = $region65
    $region64: #{discriminator_forward.1} parent=1 // pred_region
      %s61 = ssub.s32 4608, 4608
      %62 = vsyncadd [#allocation4], %s61
      %s63 = sshll.u32 [#allocation3], 4
      %s64 = int_to_ptr.vmem [resolvable:$true] %s63
      %69 = dma.hbm_to_vmem [thread:$0]  %s15, 4608, %s64, [#allocation4], 128, 128, 8
    $region65: #{discriminator_forward.1} parent=1 // pred_fallthru
      _
    // Predicated region
    $region66: #{discriminator_forward.1} parent=1 // pred_check
      _
    $region67: #{discriminator_forward.1} parent=1 // pred_check_branch
      %71 = sbr.rel (0) target = $region69
    $region68: #{discriminator_forward.1} parent=1 // pred_region
      _
    $region69: #{discriminator_forward.1} parent=1 // pred_fallthru
      _
    // Predicated region
    $region70: #{discriminator_forward.1} parent=1 // pred_check
      _
    $region71: #{discriminator_forward.1} parent=1 // pred_check_branch
      %73 = sbr.rel (0) target = $region73
    $region72: #{discriminator_forward.1} parent=1 // pred_region
      %s75 = ssub.s32 288, 288
      %76 = vsyncadd [#allocation7], %s75
      %s77 = sshll.u32 [#allocation6], 4
      %s78 = int_to_ptr.vmem [resolvable:$true] %s77
      %83 = dma.hbm_to_vmem [thread:$0]  %s17, 288, %s78, [#allocation7], 32, 32, 2
    $region73: #{discriminator_forward.1} parent=1 // pred_fallthru
      _
    // Predicated region
    $region74: #{discriminator_forward.1} parent=1 // pred_check
      _
    $region75: #{discriminator_forward.1} parent=1 // pred_check_branch
      %85 = sbr.rel (0) target = $region77
    $region76: #{discriminator_forward.1} parent=1 // pred_region
      %86 = dma.done [#allocation4], 4608
    $region77: #{discriminator_forward.1} parent=1 // pred_fallthru
      _
    // Predicated region
    $region78: #{discriminator_forward.1} parent=1 // pred_check
      _
    $region79: #{discriminator_forward.1} parent=1 // pred_check_branch
      %88 = sbr.rel (0) target = $region81
    $region80: #{discriminator_forward.1} parent=1 // pred_region
      %89 = dma.done [#allocation7], 288
    $region81: #{discriminator_forward.1} parent=1 // pred_fallthru
      _
    %v90 = vld [vmem:[%s0] sm:$0xff]
    %v91 = vld [vmem:[%s0 + $0x8] sm:$0xff]
    %v94 = vcombine.high %v90, %v90
    %v95 = vcombine.high %v91, %v91
    %98 = vrot.lane.b32.xlu0 %v90, 17
    %v99 = vpop.permute.xlu0 %98
    %100 = vrot.lane.b32.xlu0 %v94, 17
    %v101 = vpop.permute.xlu0 %100
    %102 = vrot.lane.b32.xlu0 %v91, 17
    %v103 = vpop.permute.xlu0 %102
    %104 = vrot.lane.b32.xlu0 %v95, 17
    %v105 = vpop.permute.xlu0 %104
    %v106 = vlaneseq
    %v107 = vand.u32 %v106, 127
    %vm108 = vcmp.lt.s32.totalorder %v107, 17
    %v109 = vsel %vm108, %v103, %v105
    %v110 = vsel %vm108, %v101, %v103
    %v111 = vsel %vm108, %v99, %v101
    %v112 = vsel %vm108, %v105, %v99
    %v113 = vld [vmem:[%s12] ss:$8 sm:$0xf]
    %v115 = vlaneseq
    %v116 = vshrl.u32 %v115, 7
    %v117 = vsub.s32 0, %v116
    %v118 = vrot.slane %v113, %v117
    %v119 = vlaneseq
    %v120 = vshrl.u32 %v119, 7
    %v121 = vsub.s32 1, %v120
    %v122 = vrot.slane %v113, %v121
    %v123 = vlaneseq
    %v124 = vshrl.u32 %v123, 7
    %v125 = vsub.s32 2, %v124
    %v126 = vrot.slane %v113, %v125
    %v127 = vlaneseq
    %v128 = vshrl.u32 %v127, 7
    %v129 = vsub.s32 3, %v128
    %v130 = vrot.slane %v113, %v129
    %v135 = vmul.f32 %v112, %v118
    %v136 = vmul.f32 %v111, %v122
    %v137 = vmul.f32 %v110, %v126
    %v138 = vmul.f32 %v109, %v130
    %v139 = vld [vmem:[%s1] sm:$0xff]
    %v140 = vld [vmem:[%s1 + $0x8] sm:$0xff]
    %141 = vrot.lane.b32.xlu0 %v90, 16
    %v142 = vpop.permute.xlu0 %141
    %143 = vrot.lane.b32.xlu0 %v94, 16
    %v144 = vpop.permute.xlu0 %143
    %145 = vrot.lane.b32.xlu0 %v91, 16
    %v146 = vpop.permute.xlu0 %145
    %147 = vrot.lane.b32.xlu0 %v95, 16
    %v148 = vpop.permute.xlu0 %147
    %vm149 = vcmp.lt.s32.totalorder %v107, 16
    %v150 = vsel %vm149, %v146, %v148
    %v151 = vsel %vm149, %v144, %v146
    %v152 = vsel %vm149, %v142, %v144
    %v153 = vsel %vm149, %v148, %v142
    %s154 = scalar_lea.vmem %s12, 1
    %v155 = vld [vmem:[%s154] ss:$8 sm:$0xf]
    %v157 = vlaneseq
    %v158 = vshrl.u32 %v157, 7
    %v159 = vsub.s32 0, %v158
    %v160 = vrot.slane %v155, %v159
    %v161 = vlaneseq
    %v162 = vshrl.u32 %v161, 7
    %v163 = vsub.s32 1, %v162
    %v164 = vrot.slane %v155, %v163
    %v165 = vlaneseq
    %v166 = vshrl.u32 %v165, 7
    %v167 = vsub.s32 2, %v166
    %v168 = vrot.slane %v155, %v167
    %v169 = vlaneseq
    %v170 = vshrl.u32 %v169, 7
    %v171 = vsub.s32 3, %v170
    %v172 = vrot.slane %v155, %v171
    %v177 = vmul.f32 %v153, %v160
    %v178 = vmul.f32 %v152, %v164
    %v179 = vmul.f32 %v151, %v168
    %v180 = vmul.f32 %v150, %v172
    %s181 = scalar_lea.vmem %s1, 16
    %v182 = vld [vmem:[%s181] sm:$0xff]
    %v183 = vld [vmem:[%s181 + $0x8] sm:$0xff]
    %vm184 = vcmask 31744
    %v186 = vsel %vm184, %v182, 0
    %v189 = vsel %vm184, %v183, 0
    %vm191 = vcmask 1043456
    %v193 = vsel %vm191, %v177, 0
    %v196 = vsel %vm191, %v178, 0
    %v199 = vsel %vm191, %v179, 0
    %v202 = vsel %vm191, %v180, 0
    %204 = vmatprep.subr.mxu0 %v196
    %205 = vmatpush1.msra.mxu0 %v193
    %206 = vmatprep.subr.mxu0 0.0
    %207 = vmatpush1.msra.mxu0 0.0
    %208 = vmatprep.subr.mxu0 0.0
    %209 = vmatpush1.msra.mxu0 0.0
    %210 = vmatprep.subr.mxu0 0.0
    %211 = vmatpush1.msra.mxu0 0.0
    %212 = vmatprep.subr.mxu0 0.0
    %213 = vmatpush1.msra.mxu0 0.0
    %214 = vmatprep.subr.mxu0 0.0
    %215 = vmatpush1.msra.mxu0 0.0
    %216 = vmatprep.subr.mxu0 0.0
    %217 = vmatpush1.msra.mxu0 0.0
    %218 = vmatprep.subr.mxu0 0.0
    %219 = vmatpush1.msra.mxu0 0.0
    %220 = vmatprep.subr.mxu0 0.0
    %221 = vmatpush1.msra.mxu0 0.0
    %222 = vmatprep.subr.mxu0 0.0
    %223 = vmatpush1.msra.mxu0 0.0
    %224 = vmatprep.subr.mxu0 0.0
    %225 = vmatpush1.msra.mxu0 0.0
    %226 = vmatprep.subr.mxu0 0.0
    %227 = vmatpush1.msra.mxu0 0.0
    %228 = vmatprep.subr.mxu0 0.0
    %229 = vmatpush1.msra.mxu0 0.0
    %230 = vmatprep.subr.mxu0 0.0
    %231 = vmatpush1.msra.mxu0 0.0
    %232 = vmatprep.subr.mxu0 0.0
    %233 = vmatpush1.msra.mxu0 0.0
    %234 = vmatprep.subr.mxu0 0.0
    %235 = vmatpush1.msra.mxu0 0.0
    %236 = vmatprep.subr.mxu0 0.0
    %237 = vmatpush1.msra.mxu0 0.0
    %238 = vmatprep.subr.mxu0 0.0
    %239 = vmatpush1.msra.mxu0 0.0
    %240 = vmatprep.subr.mxu0 0.0
    %241 = vmatpush1.msra.mxu0 0.0
    %242 = vmatprep.subr.mxu0 0.0
    %243 = vmatpush1.msra.mxu0 0.0
    %244 = vmatprep.subr.mxu0 0.0
    %245 = vmatpush1.msra.mxu0 0.0
    %246 = vmatprep.subr.mxu0 0.0
    %247 = vmatpush1.msra.mxu0 0.0
    %248 = vmatprep.subr.mxu0 0.0
    %249 = vmatpush1.msra.mxu0 0.0
    %250 = vmatprep.subr.mxu0 0.0
    %251 = vmatpush1.msra.mxu0 0.0
    %252 = vmatprep.subr.mxu0 0.0
    %253 = vmatpush1.msra.mxu0 0.0
    %254 = vmatprep.subr.mxu0 0.0
    %255 = vmatpush1.msra.mxu0 0.0
    %256 = vmatprep.subr.mxu0 0.0
    %257 = vmatpush1.msra.mxu0 0.0
    %258 = vmatprep.subr.mxu0 0.0
    %259 = vmatpush1.msra.mxu0 0.0
    %260 = vmatprep.subr.mxu0 0.0
    %261 = vmatpush1.msra.mxu0 0.0
    %262 = vmatprep.subr.mxu0 0.0
    %263 = vmatpush1.msra.mxu0 0.0
    %264 = vmatprep.subr.mxu0 0.0
    %265 = vmatpush1.msra.mxu0 0.0
    %266 = vmatprep.subr.mxu0 0.0
    %267 = vmatpush1.msra.mxu0 0.0
    %268 = vmatprep.mubr.f32.mxu0 0.0
    %269 = vmatmul.mubr.f32.gmra.mrb[0].mxu0 %v186
    %v270 = vpop.f32.mrb[0].mxu0
    %v271 = vadd.f32 0.0, %v270
    %v272 = vpop.f32.mrb[0].mxu0
    %v273 = vadd.f32 0.0, %v272
    %274 = vmatprep.mubr.f32.mxu0 0.0
    %275 = vmatmul.mubr.f32.gmra.mrb[0].mxu0 %v189
    %v276 = vpop.f32.mrb[0].mxu0
    %v277 = vadd.f32 0.0, %v276
    %v278 = vpop.f32.mrb[0].mxu0
    %v279 = vadd.f32 0.0, %v278
    %280 = vdwg.mxu0
    %281 = vmatprep.subr.mxu0 %v202
    %282 = vmatpush1.msra.mxu0 %v199
    %283 = vmatprep.subr.mxu0 0.0
    %284 = vmatpush1.msra.mxu0 0.0
    %285 = vmatprep.subr.mxu0 0.0
    %286 = vmatpush1.msra.mxu0 0.0
    %287 = vmatprep.subr.mxu0 0.0
    %288 = vmatpush1.msra.mxu0 0.0
    %289 = vmatprep.subr.mxu0 0.0
    %290 = vmatpush1.msra.mxu0 0.0
    %291 = vmatprep.subr.mxu0 0.0
    %292 = vmatpush1.msra.mxu0 0.0
    %293 = vmatprep.subr.mxu0 0.0
    %294 = vmatpush1.msra.mxu0 0.0
    %295 = vmatprep.subr.mxu0 0.0
    %296 = vmatpush1.msra.mxu0 0.0
    %297 = vmatprep.subr.mxu0 0.0
    %298 = vmatpush1.msra.mxu0 0.0
    %299 = vmatprep.subr.mxu0 0.0
    %300 = vmatpush1.msra.mxu0 0.0
    %301 = vmatprep.subr.mxu0 0.0
    %302 = vmatpush1.msra.mxu0 0.0
    %303 = vmatprep.subr.mxu0 0.0
    %304 = vmatpush1.msra.mxu0 0.0
    %305 = vmatprep.subr.mxu0 0.0
    %306 = vmatpush1.msra.mxu0 0.0
    %307 = vmatprep.subr.mxu0 0.0
    %308 = vmatpush1.msra.mxu0 0.0
    %309 = vmatprep.subr.mxu0 0.0
    %310 = vmatpush1.msra.mxu0 0.0
    %311 = vmatprep.subr.mxu0 0.0
    %312 = vmatpush1.msra.mxu0 0.0
    %313 = vmatprep.subr.mxu0 0.0
    %314 = vmatpush1.msra.mxu0 0.0
    %315 = vmatprep.subr.mxu0 0.0
    %316 = vmatpush1.msra.mxu0 0.0
    %317 = vmatprep.subr.mxu0 0.0
    %318 = vmatpush1.msra.mxu0 0.0
    %319 = vmatprep.subr.mxu0 0.0
    %320 = vmatpush1.msra.mxu0 0.0
    %321 = vmatprep.subr.mxu0 0.0
    %322 = vmatpush1.msra.mxu0 0.0
    %323 = vmatprep.subr.mxu0 0.0
    %324 = vmatpush1.msra.mxu0 0.0
    %325 = vmatprep.subr.mxu0 0.0
    %326 = vmatpush1.msra.mxu0 0.0
    %327 = vmatprep.subr.mxu0 0.0
    %328 = vmatpush1.msra.mxu0 0.0
    %329 = vmatprep.subr.mxu0 0.0
    %330 = vmatpush1.msra.mxu0 0.0
    %331 = vmatprep.subr.mxu0 0.0
    %332 = vmatpush1.msra.mxu0 0.0
    %333 = vmatprep.subr.mxu0 0.0
    %334 = vmatpush1.msra.mxu0 0.0
    %335 = vmatprep.subr.mxu0 0.0
    %336 = vmatpush1.msra.mxu0 0.0
    %337 = vmatprep.subr.mxu0 0.0
    %338 = vmatpush1.msra.mxu0 0.0
    %339 = vmatprep.subr.mxu0 0.0
    %340 = vmatpush1.msra.mxu0 0.0
    %341 = vmatprep.subr.mxu0 0.0
    %342 = vmatpush1.msra.mxu0 0.0
    %343 = vmatprep.subr.mxu0 0.0
    %344 = vmatpush1.msra.mxu0 0.0
    %345 = vmatprep.mubr.f32.mxu0 0.0
    %346 = vmatmul.mubr.f32.gmra.mrb[0].mxu0 %v186
    %v347 = vpop.f32.mrb[0].mxu0
    %v348 = vadd.f32 0.0, %v347
    %v349 = vpop.f32.mrb[0].mxu0
    %v350 = vadd.f32 0.0, %v349
    %351 = vmatprep.mubr.f32.mxu0 0.0
    %352 = vmatmul.mubr.f32.gmra.mrb[0].mxu0 %v189
    %v353 = vpop.f32.mrb[0].mxu0
    %v354 = vadd.f32 0.0, %v353
    %v355 = vpop.f32.mrb[0].mxu0
    %v356 = vadd.f32 0.0, %v355
    %357 = vdwg.mxu0
    %v359 = vsel %vm184, %v139, 0
    %v362 = vsel %vm184, %v140, 0
    %v365 = vsel %vm191, %v135, 0
    %v368 = vsel %vm191, %v136, 0
    %v371 = vsel %vm191, %v137, 0
    %v374 = vsel %vm191, %v138, 0
    %376 = vmatprep.subr.mxu0 %v368
    %377 = vmatpush1.msra.mxu0 %v365
    %378 = vmatprep.subr.mxu0 0.0
    %379 = vmatpush1.msra.mxu0 0.0
    %380 = vmatprep.subr.mxu0 0.0
    %381 = vmatpush1.msra.mxu0 0.0
    %382 = vmatprep.subr.mxu0 0.0
    %383 = vmatpush1.msra.mxu0 0.0
    %384 = vmatprep.subr.mxu0 0.0
    %385 = vmatpush1.msra.mxu0 0.0
    %386 = vmatprep.subr.mxu0 0.0
    %387 = vmatpush1.msra.mxu0 0.0
    %388 = vmatprep.subr.mxu0 0.0
    %389 = vmatpush1.msra.mxu0 0.0
    %390 = vmatprep.subr.mxu0 0.0
    %391 = vmatpush1.msra.mxu0 0.0
    %392 = vmatprep.subr.mxu0 0.0
    %393 = vmatpush1.msra.mxu0 0.0
    %394 = vmatprep.subr.mxu0 0.0
    %395 = vmatpush1.msra.mxu0 0.0
    %396 = vmatprep.subr.mxu0 0.0
    %397 = vmatpush1.msra.mxu0 0.0
    %398 = vmatprep.subr.mxu0 0.0
    %399 = vmatpush1.msra.mxu0 0.0
    %400 = vmatprep.subr.mxu0 0.0
    %401 = vmatpush1.msra.mxu0 0.0
    %402 = vmatprep.subr.mxu0 0.0
    %403 = vmatpush1.msra.mxu0 0.0
    %404 = vmatprep.subr.mxu0 0.0
    %405 = vmatpush1.msra.mxu0 0.0
    %406 = vmatprep.subr.mxu0 0.0
    %407 = vmatpush1.msra.mxu0 0.0
    %408 = vmatprep.subr.mxu0 0.0
    %409 = vmatpush1.msra.mxu0 0.0
    %410 = vmatprep.subr.mxu0 0.0
    %411 = vmatpush1.msra.mxu0 0.0
    %412 = vmatprep.subr.mxu0 0.0
    %413 = vmatpush1.msra.mxu0 0.0
    %414 = vmatprep.subr.mxu0 0.0
    %415 = vmatpush1.msra.mxu0 0.0
    %416 = vmatprep.subr.mxu0 0.0
    %417 = vmatpush1.msra.mxu0 0.0
    %418 = vmatprep.subr.mxu0 0.0
    %419 = vmatpush1.msra.mxu0 0.0
    %420 = vmatprep.subr.mxu0 0.0
    %421 = vmatpush1.msra.mxu0 0.0
    %422 = vmatprep.subr.mxu0 0.0
    %423 = vmatpush1.msra.mxu0 0.0
    %424 = vmatprep.subr.mxu0 0.0
    %425 = vmatpush1.msra.mxu0 0.0
    %426 = vmatprep.subr.mxu0 0.0
    %427 = vmatpush1.msra.mxu0 0.0
    %428 = vmatprep.subr.mxu0 0.0
    %429 = vmatpush1.msra.mxu0 0.0
    %430 = vmatprep.subr.mxu0 0.0
    %431 = vmatpush1.msra.mxu0 0.0
    %432 = vmatprep.subr.mxu0 0.0
    %433 = vmatpush1.msra.mxu0 0.0
    %434 = vmatprep.subr.mxu0 0.0
    %435 = vmatpush1.msra.mxu0 0.0
    %436 = vmatprep.subr.mxu0 0.0
    %437 = vmatpush1.msra.mxu0 0.0
    %438 = vmatprep.subr.mxu0 0.0
    %439 = vmatpush1.msra.mxu0 0.0
    %440 = vmatprep.mubr.f32.mxu0 0.0
    %441 = vmatmul.mubr.f32.gmra.mrb[0].mxu0 %v359
    %v442 = vpop.f32.mrb[0].mxu0
    %v443 = vadd.f32 %v271, %v442
    %v444 = vpop.f32.mrb[0].mxu0
    %v445 = vadd.f32 %v273, %v444
    %446 = vmatprep.mubr.f32.mxu0 0.0
    %447 = vmatmul.mubr.f32.gmra.mrb[0].mxu0 %v362
    %v448 = vpop.f32.mrb[0].mxu0
    %v449 = vadd.f32 %v277, %v448
    %v450 = vpop.f32.mrb[0].mxu0
    %v451 = vadd.f32 %v279, %v450
    %452 = vdwg.mxu0
    %453 = vmatprep.subr.mxu0 %v374
    %454 = vmatpush1.msra.mxu0 %v371
    %455 = vmatprep.subr.mxu0 0.0
    %456 = vmatpush1.msra.mxu0 0.0
    %457 = vmatprep.subr.mxu0 0.0
    %458 = vmatpush1.msra.mxu0 0.0
    %459 = vmatprep.subr.mxu0 0.0
    %460 = vmatpush1.msra.mxu0 0.0
    %461 = vmatprep.subr.mxu0 0.0
    %462 = vmatpush1.msra.mxu0 0.0
    %463 = vmatprep.subr.mxu0 0.0
    %464 = vmatpush1.msra.mxu0 0.0
    %465 = vmatprep.subr.mxu0 0.0
    %466 = vmatpush1.msra.mxu0 0.0
    %467 = vmatprep.subr.mxu0 0.0
    %468 = vmatpush1.msra.mxu0 0.0
    %469 = vmatprep.subr.mxu0 0.0
    %470 = vmatpush1.msra.mxu0 0.0
    %471 = vmatprep.subr.mxu0 0.0
    %472 = vmatpush1.msra.mxu0 0.0
    %473 = vmatprep.subr.mxu0 0.0
    %474 = vmatpush1.msra.mxu0 0.0
    %475 = vmatprep.subr.mxu0 0.0
    %476 = vmatpush1.msra.mxu0 0.0
    %477 = vmatprep.subr.mxu0 0.0
    %478 = vmatpush1.msra.mxu0 0.0
    %479 = vmatprep.subr.mxu0 0.0
    %480 = vmatpush1.msra.mxu0 0.0
    %481 = vmatprep.subr.mxu0 0.0
    %482 = vmatpush1.msra.mxu0 0.0
    %483 = vmatprep.subr.mxu0 0.0
    %484 = vmatpush1.msra.mxu0 0.0
    %485 = vmatprep.subr.mxu0 0.0
    %486 = vmatpush1.msra.mxu0 0.0
    %487 = vmatprep.subr.mxu0 0.0
    %488 = vmatpush1.msra.mxu0 0.0
    %489 = vmatprep.subr.mxu0 0.0
    %490 = vmatpush1.msra.mxu0 0.0
    %491 = vmatprep.subr.mxu0 0.0
    %492 = vmatpush1.msra.mxu0 0.0
    %493 = vmatprep.subr.mxu0 0.0
    %494 = vmatpush1.msra.mxu0 0.0
    %495 = vmatprep.subr.mxu0 0.0
    %496 = vmatpush1.msra.mxu0 0.0
    %497 = vmatprep.subr.mxu0 0.0
    %498 = vmatpush1.msra.mxu0 0.0
    %499 = vmatprep.subr.mxu0 0.0
    %500 = vmatpush1.msra.mxu0 0.0
    %501 = vmatprep.subr.mxu0 0.0
    %502 = vmatpush1.msra.mxu0 0.0
    %503 = vmatprep.subr.mxu0 0.0
    %504 = vmatpush1.msra.mxu0 0.0
    %505 = vmatprep.subr.mxu0 0.0
    %506 = vmatpush1.msra.mxu0 0.0
    %507 = vmatprep.subr.mxu0 0.0
    %508 = vmatpush1.msra.mxu0 0.0
    %509 = vmatprep.subr.mxu0 0.0
    %510 = vmatpush1.msra.mxu0 0.0
    %511 = vmatprep.subr.mxu0 0.0
    %512 = vmatpush1.msra.mxu0 0.0
    %513 = vmatprep.subr.mxu0 0.0
    %514 = vmatpush1.msra.mxu0 0.0
    %515 = vmatprep.subr.mxu0 0.0
    %516 = vmatpush1.msra.mxu0 0.0
    %517 = vmatprep.mubr.f32.mxu0 0.0
    %518 = vmatmul.mubr.f32.gmra.mrb[0].mxu0 %v359
    %v519 = vpop.f32.mrb[0].mxu0
    %v520 = vadd.f32 %v348, %v519
    %v521 = vpop.f32.mrb[0].mxu0
    %v522 = vadd.f32 %v350, %v521
    %523 = vmatprep.mubr.f32.mxu0 0.0
    %524 = vmatmul.mubr.f32.gmra.mrb[0].mxu0 %v362
    %v525 = vpop.f32.mrb[0].mxu0
    %v526 = vadd.f32 %v354, %v525
    %v527 = vpop.f32.mrb[0].mxu0
    %v528 = vadd.f32 %v356, %v527
    %529 = vdwg.mxu0
    %530 = vrot.lane.b32.xlu0 %v90, 15
    %v531 = vpop.permute.xlu0 %530
    %532 = vrot.lane.b32.xlu0 %v94, 15
    %v533 = vpop.permute.xlu0 %532
    %534 = vrot.lane.b32.xlu0 %v91, 15
    %v535 = vpop.permute.xlu0 %534
    %536 = vrot.lane.b32.xlu0 %v95, 15
    %v537 = vpop.permute.xlu0 %536
    %vm538 = vcmp.lt.s32.totalorder %v107, 15
    %v539 = vsel %vm538, %v535, %v537
    %v540 = vsel %vm538, %v533, %v535
    %v541 = vsel %vm538, %v531, %v533
    %v542 = vsel %vm538, %v537, %v531
    %s543 = scalar_lea.vmem %s12, 2
    %v544 = vld [vmem:[%s543] ss:$8 sm:$0xf]
    %v546 = vlaneseq
    %v547 = vshrl.u32 %v546, 7
    %v548 = vsub.s32 0, %v547
    %v549 = vrot.slane %v544, %v548
    %v550 = vlaneseq
    %v551 = vshrl.u32 %v550, 7
    %v552 = vsub.s32 1, %v551
    %v553 = vrot.slane %v544, %v552
    %v554 = vlaneseq
    %v555 = vshrl.u32 %v554, 7
    %v556 = vsub.s32 2, %v555
    %v557 = vrot.slane %v544, %v556
    %v558 = vlaneseq
    %v559 = vshrl.u32 %v558, 7
    %v560 = vsub.s32 3, %v559
    %v561 = vrot.slane %v544, %v560
    %v566 = vmul.f32 %v542, %v549
    %v567 = vmul.f32 %v541, %v553
    %v568 = vmul.f32 %v540, %v557
    %v569 = vmul.f32 %v539, %v561
    %s570 = scalar_lea.vmem %s1, 32
    %v571 = vld [vmem:[%s570] sm:$0xff]
    %v572 = vld [vmem:[%s570 + $0x8] sm:$0xff]
    %v574 = vsel %vm184, %v571, 0
    %v577 = vsel %vm184, %v572, 0
    %v580 = vsel %vm191, %v566, 0
    %v583 = vsel %vm191, %v567, 0
    %v586 = vsel %vm191, %v568, 0
    %v589 = vsel %vm191, %v569, 0
    %591 = vmatprep.subr.mxu0 %v583
    %592 = vmatpush1.msra.mxu0 %v580
    %593 = vmatprep.subr.mxu0 0.0
    %594 = vmatpush1.msra.mxu0 0.0
    %595 = vmatprep.subr.mxu0 0.0
    %596 = vmatpush1.msra.mxu0 0.0
    %597 = vmatprep.subr.mxu0 0.0
    %598 = vmatpush1.msra.mxu0 0.0
    %599 = vmatprep.subr.mxu0 0.0
    %600 = vmatpush1.msra.mxu0 0.0
    %601 = vmatprep.subr.mxu0 0.0
    %602 = vmatpush1.msra.mxu0 0.0
    %603 = vmatprep.subr.mxu0 0.0
    %604 = vmatpush1.msra.mxu0 0.0
    %605 = vmatprep.subr.mxu0 0.0
    %606 = vmatpush1.msra.mxu0 0.0
    %607 = vmatprep.subr.mxu0 0.0
    %608 = vmatpush1.msra.mxu0 0.0
    %609 = vmatprep.subr.mxu0 0.0
    %610 = vmatpush1.msra.mxu0 0.0
    %611 = vmatprep.subr.mxu0 0.0
    %612 = vmatpush1.msra.mxu0 0.0
    %613 = vmatprep.subr.mxu0 0.0
    %614 = vmatpush1.msra.mxu0 0.0
    %615 = vmatprep.subr.mxu0 0.0
    %616 = vmatpush1.msra.mxu0 0.0
    %617 = vmatprep.subr.mxu0 0.0
    %618 = vmatpush1.msra.mxu0 0.0
    %619 = vmatprep.subr.mxu0 0.0
    %620 = vmatpush1.msra.mxu0 0.0
    %621 = vmatprep.subr.mxu0 0.0
    %622 = vmatpush1.msra.mxu0 0.0
    %623 = vmatprep.subr.mxu0 0.0
    %624 = vmatpush1.msra.mxu0 0.0
    %625 = vmatprep.subr.mxu0 0.0
    %626 = vmatpush1.msra.mxu0 0.0
    %627 = vmatprep.subr.mxu0 0.0
    %628 = vmatpush1.msra.mxu0 0.0
    %629 = vmatprep.subr.mxu0 0.0
    %630 = vmatpush1.msra.mxu0 0.0
    %631 = vmatprep.subr.mxu0 0.0
    %632 = vmatpush1.msra.mxu0 0.0
    %633 = vmatprep.subr.mxu0 0.0
    %634 = vmatpush1.msra.mxu0 0.0
    %635 = vmatprep.subr.mxu0 0.0
    %636 = vmatpush1.msra.mxu0 0.0
    %637 = vmatprep.subr.mxu0 0.0
    %638 = vmatpush1.msra.mxu0 0.0
    %639 = vmatprep.subr.mxu0 0.0
    %640 = vmatpush1.msra.mxu0 0.0
    %641 = vmatprep.subr.mxu0 0.0
    %642 = vmatpush1.msra.mxu0 0.0
    %643 = vmatprep.subr.mxu0 0.0
    %644 = vmatpush1.msra.mxu0 0.0
    %645 = vmatprep.subr.mxu0 0.0
    %646 = vmatpush1.msra.mxu0 0.0
    %647 = vmatprep.subr.mxu0 0.0
    %648 = vmatpush1.msra.mxu0 0.0
    %649 = vmatprep.subr.mxu0 0.0
    %650 = vmatpush1.msra.mxu0 0.0
    %651 = vmatprep.subr.mxu0 0.0
    %652 = vmatpush1.msra.mxu0 0.0
    %653 = vmatprep.subr.mxu0 0.0
    %654 = vmatpush1.msra.mxu0 0.0
    %655 = vmatprep.mubr.f32.mxu0 0.0
    %656 = vmatmul.mubr.f32.gmra.mrb[0].mxu0 %v574
    %v657 = vpop.f32.mrb[0].mxu0
    %v658 = vadd.f32 0.0, %v657
    %v659 = vpop.f32.mrb[0].mxu0
    %v660 = vadd.f32 0.0, %v659
    %661 = vmatprep.mubr.f32.mxu0 0.0
    %662 = vmatmul.mubr.f32.gmra.mrb[0].mxu0 %v577
    %v663 = vpop.f32.mrb[0].mxu0
    %v664 = vadd.f32 0.0, %v663
    %v665 = vpop.f32.mrb[0].mxu0
    %v666 = vadd.f32 0.0, %v665
    %667 = vdwg.mxu0
    %668 = vmatprep.subr.mxu0 %v589
    %669 = vmatpush1.msra.mxu0 %v586
    %670 = vmatprep.subr.mxu0 0.0
    %671 = vmatpush1.msra.mxu0 0.0
    %672 = vmatprep.subr.mxu0 0.0
    %673 = vmatpush1.msra.mxu0 0.0
    %674 = vmatprep.subr.mxu0 0.0
    %675 = vmatpush1.msra.mxu0 0.0
    %676 = vmatprep.subr.mxu0 0.0
    %677 = vmatpush1.msra.mxu0 0.0
    %678 = vmatprep.subr.mxu0 0.0
    %679 = vmatpush1.msra.mxu0 0.0
    %680 = vmatprep.subr.mxu0 0.0
    %681 = vmatpush1.msra.mxu0 0.0
    %682 = vmatprep.subr.mxu0 0.0
    %683 = vmatpush1.msra.mxu0 0.0
    %684 = vmatprep.subr.mxu0 0.0
    %685 = vmatpush1.msra.mxu0 0.0
    %686 = vmatprep.subr.mxu0 0.0
    %687 = vmatpush1.msra.mxu0 0.0
    %688 = vmatprep.subr.mxu0 0.0
    %689 = vmatpush1.msra.mxu0 0.0
    %690 = vmatprep.subr.mxu0 0.0
    %691 = vmatpush1.msra.mxu0 0.0
    %692 = vmatprep.subr.mxu0 0.0
    %693 = vmatpush1.msra.mxu0 0.0
    %694 = vmatprep.subr.mxu0 0.0
    %695 = vmatpush1.msra.mxu0 0.0
    %696 = vmatprep.subr.mxu0 0.0
    %697 = vmatpush1.msra.mxu0 0.0
    %698 = vmatprep.subr.mxu0 0.0
    %699 = vmatpush1.msra.mxu0 0.0
    %700 = vmatprep.subr.mxu0 0.0
    %701 = vmatpush1.msra.mxu0 0.0
    %702 = vmatprep.subr.mxu0 0.0
    %703 = vmatpush1.msra.mxu0 0.0
    %704 = vmatprep.subr.mxu0 0.0
    %705 = vmatpush1.msra.mxu0 0.0
    %706 = vmatprep.subr.mxu0 0.0
    %707 = vmatpush1.msra.mxu0 0.0
    %708 = vmatprep.subr.mxu0 0.0
    %709 = vmatpush1.msra.mxu0 0.0
    %710 = vmatprep.subr.mxu0 0.0
    %711 = vmatpush1.msra.mxu0 0.0
    %712 = vmatprep.subr.mxu0 0.0
    %713 = vmatpush1.msra.mxu0 0.0
    %714 = vmatprep.subr.mxu0 0.0
    %715 = vmatpush1.msra.mxu0 0.0
    %716 = vmatprep.subr.mxu0 0.0
    %717 = vmatpush1.msra.mxu0 0.0
    %718 = vmatprep.subr.mxu0 0.0
    %719 = vmatpush1.msra.mxu0 0.0
    %720 = vmatprep.subr.mxu0 0.0
    %721 = vmatpush1.msra.mxu0 0.0
    %722 = vmatprep.subr.mxu0 0.0
    %723 = vmatpush1.msra.mxu0 0.0
    %724 = vmatprep.subr.mxu0 0.0
    %725 = vmatpush1.msra.mxu0 0.0
    %726 = vmatprep.subr.mxu0 0.0
    %727 = vmatpush1.msra.mxu0 0.0
    %728 = vmatprep.subr.mxu0 0.0
    %729 = vmatpush1.msra.mxu0 0.0
    %730 = vmatprep.subr.mxu0 0.0
    %731 = vmatpush1.msra.mxu0 0.0
    %732 = vmatprep.mubr.f32.mxu0 0.0
    %733 = vmatmul.mubr.f32.gmra.mrb[0].mxu0 %v574
    %v734 = vpop.f32.mrb[0].mxu0
    %v735 = vadd.f32 0.0, %v734
    %v736 = vpop.f32.mrb[0].mxu0
    %v737 = vadd.f32 0.0, %v736
    %738 = vmatprep.mubr.f32.mxu0 0.0
    %739 = vmatmul.mubr.f32.gmra.mrb[0].mxu0 %v577
    %v740 = vpop.f32.mrb[0].mxu0
    %v741 = vadd.f32 0.0, %v740
    %v742 = vpop.f32.mrb[0].mxu0
    %v743 = vadd.f32 0.0, %v742
    %744 = vdwg.mxu0
    %v745 = vadd.f32 %v443, %v658
    %v746 = vadd.f32 %v445, %v660
    %v747 = vadd.f32 %v520, %v735
    %v748 = vadd.f32 %v522, %v737
    %v749 = vadd.f32 %v449, %v664
    %v750 = vadd.f32 %v451, %v666
    %v751 = vadd.f32 %v526, %v741
    %v752 = vadd.f32 %v528, %v743
    %753 = vrot.lane.b32.xlu0 %v90, 1
    %v754 = vpop.permute.xlu0 %753
    %755 = vrot.lane.b32.xlu0 %v94, 1
    %v756 = vpop.permute.xlu0 %755
    %757 = vrot.lane.b32.xlu0 %v91, 1
    %v758 = vpop.permute.xlu0 %757
    %759 = vrot.lane.b32.xlu0 %v95, 1
    %v760 = vpop.permute.xlu0 %759
    %vm761 = vcmp.lt.s32.totalorder %v107, 1
    %v762 = vsel %vm761, %v758, %v760
    %v763 = vsel %vm761, %v756, %v758
    %v764 = vsel %vm761, %v754, %v756
    %v765 = vsel %vm761, %v760, %v754
    %s766 = scalar_lea.vmem %s12, 3
    %v767 = vld [vmem:[%s766] ss:$8 sm:$0xf]
    %v769 = vlaneseq
    %v770 = vshrl.u32 %v769, 7
    %v771 = vsub.s32 0, %v770
    %v772 = vrot.slane %v767, %v771
    %v773 = vlaneseq
    %v774 = vshrl.u32 %v773, 7
    %v775 = vsub.s32 1, %v774
    %v776 = vrot.slane %v767, %v775
    %v777 = vlaneseq
    %v778 = vshrl.u32 %v777, 7
    %v779 = vsub.s32 2, %v778
    %v780 = vrot.slane %v767, %v779
    %v781 = vlaneseq
    %v782 = vshrl.u32 %v781, 7
    %v783 = vsub.s32 3, %v782
    %v784 = vrot.slane %v767, %v783
    %v789 = vmul.f32 %v765, %v772
    %v790 = vmul.f32 %v764, %v776
    %v791 = vmul.f32 %v763, %v780
    %v792 = vmul.f32 %v762, %v784
    %s793 = scalar_lea.vmem %s1, 48
    %v794 = vld [vmem:[%s793] sm:$0xff]
    %v795 = vld [vmem:[%s793 + $0x8] sm:$0xff]
    %v797 = vsel %vm184, %v794, 0
    %v800 = vsel %vm184, %v795, 0
    %v803 = vsel %vm191, %v789, 0
    %v806 = vsel %vm191, %v790, 0
    %v809 = vsel %vm191, %v791, 0
    %v812 = vsel %vm191, %v792, 0
    %814 = vmatprep.subr.mxu0 %v806
    %815 = vmatpush1.msra.mxu0 %v803
    %816 = vmatprep.subr.mxu0 0.0
    %817 = vmatpush1.msra.mxu0 0.0
    %818 = vmatprep.subr.mxu0 0.0
    %819 = vmatpush1.msra.mxu0 0.0
    %820 = vmatprep.subr.mxu0 0.0
    %821 = vmatpush1.msra.mxu0 0.0
    %822 = vmatprep.subr.mxu0 0.0
    %823 = vmatpush1.msra.mxu0 0.0
    %824 = vmatprep.subr.mxu0 0.0
    %825 = vmatpush1.msra.mxu0 0.0
    %826 = vmatprep.subr.mxu0 0.0
    %827 = vmatpush1.msra.mxu0 0.0
    %828 = vmatprep.subr.mxu0 0.0
    %829 = vmatpush1.msra.mxu0 0.0
    %830 = vmatprep.subr.mxu0 0.0
    %831 = vmatpush1.msra.mxu0 0.0
    %832 = vmatprep.subr.mxu0 0.0
    %833 = vmatpush1.msra.mxu0 0.0
    %834 = vmatprep.subr.mxu0 0.0
    %835 = vmatpush1.msra.mxu0 0.0
    %836 = vmatprep.subr.mxu0 0.0
    %837 = vmatpush1.msra.mxu0 0.0
    %838 = vmatprep.subr.mxu0 0.0
    %839 = vmatpush1.msra.mxu0 0.0
    %840 = vmatprep.subr.mxu0 0.0
    %841 = vmatpush1.msra.mxu0 0.0
    %842 = vmatprep.subr.mxu0 0.0
    %843 = vmatpush1.msra.mxu0 0.0
    %844 = vmatprep.subr.mxu0 0.0
    %845 = vmatpush1.msra.mxu0 0.0
    %846 = vmatprep.subr.mxu0 0.0
    %847 = vmatpush1.msra.mxu0 0.0
    %848 = vmatprep.subr.mxu0 0.0
    %849 = vmatpush1.msra.mxu0 0.0
    %850 = vmatprep.subr.mxu0 0.0
    %851 = vmatpush1.msra.mxu0 0.0
    %852 = vmatprep.subr.mxu0 0.0
    %853 = vmatpush1.msra.mxu0 0.0
    %854 = vmatprep.subr.mxu0 0.0
    %855 = vmatpush1.msra.mxu0 0.0
    %856 = vmatprep.subr.mxu0 0.0
    %857 = vmatpush1.msra.mxu0 0.0
    %858 = vmatprep.subr.mxu0 0.0
    %859 = vmatpush1.msra.mxu0 0.0
    %860 = vmatprep.subr.mxu0 0.0
    %861 = vmatpush1.msra.mxu0 0.0
    %862 = vmatprep.subr.mxu0 0.0
    %863 = vmatpush1.msra.mxu0 0.0
    %864 = vmatprep.subr.mxu0 0.0
    %865 = vmatpush1.msra.mxu0 0.0
    %866 = vmatprep.subr.mxu0 0.0
    %867 = vmatpush1.msra.mxu0 0.0
    %868 = vmatprep.subr.mxu0 0.0
    %869 = vmatpush1.msra.mxu0 0.0
    %870 = vmatprep.subr.mxu0 0.0
    %871 = vmatpush1.msra.mxu0 0.0
    %872 = vmatprep.subr.mxu0 0.0
    %873 = vmatpush1.msra.mxu0 0.0
    %874 = vmatprep.subr.mxu0 0.0
    %875 = vmatpush1.msra.mxu0 0.0
    %876 = vmatprep.subr.mxu0 0.0
    %877 = vmatpush1.msra.mxu0 0.0
    %878 = vmatprep.mubr.f32.mxu0 0.0
    %879 = vmatmul.mubr.f32.gmra.mrb[0].mxu0 %v797
    %v880 = vpop.f32.mrb[0].mxu0
    %v881 = vadd.f32 0.0, %v880
    %v882 = vpop.f32.mrb[0].mxu0
    %v883 = vadd.f32 0.0, %v882
    %884 = vmatprep.mubr.f32.mxu0 0.0
    %885 = vmatmul.mubr.f32.gmra.mrb[0].mxu0 %v800
    %v886 = vpop.f32.mrb[0].mxu0
    %v887 = vadd.f32 0.0, %v886
    %v888 = vpop.f32.mrb[0].mxu0
    %v889 = vadd.f32 0.0, %v888
    %890 = vdwg.mxu0
    %891 = vmatprep.subr.mxu0 %v812
    %892 = vmatpush1.msra.mxu0 %v809
    %893 = vmatprep.subr.mxu0 0.0
    %894 = vmatpush1.msra.mxu0 0.0
    %895 = vmatprep.subr.mxu0 0.0
    %896 = vmatpush1.msra.mxu0 0.0
    %897 = vmatprep.subr.mxu0 0.0
    %898 = vmatpush1.msra.mxu0 0.0
    %899 = vmatprep.subr.mxu0 0.0
    %900 = vmatpush1.msra.mxu0 0.0
    %901 = vmatprep.subr.mxu0 0.0
    %902 = vmatpush1.msra.mxu0 0.0
    %903 = vmatprep.subr.mxu0 0.0
    %904 = vmatpush1.msra.mxu0 0.0
    %905 = vmatprep.subr.mxu0 0.0
    %906 = vmatpush1.msra.mxu0 0.0
    %907 = vmatprep.subr.mxu0 0.0
    %908 = vmatpush1.msra.mxu0 0.0
    %909 = vmatprep.subr.mxu0 0.0
    %910 = vmatpush1.msra.mxu0 0.0
    %911 = vmatprep.subr.mxu0 0.0
    %912 = vmatpush1.msra.mxu0 0.0
    %913 = vmatprep.subr.mxu0 0.0
    %914 = vmatpush1.msra.mxu0 0.0
    %915 = vmatprep.subr.mxu0 0.0
    %916 = vmatpush1.msra.mxu0 0.0
    %917 = vmatprep.subr.mxu0 0.0
    %918 = vmatpush1.msra.mxu0 0.0
    %919 = vmatprep.subr.mxu0 0.0
    %920 = vmatpush1.msra.mxu0 0.0
    %921 = vmatprep.subr.mxu0 0.0
    %922 = vmatpush1.msra.mxu0 0.0
    %923 = vmatprep.subr.mxu0 0.0
    %924 = vmatpush1.msra.mxu0 0.0
    %925 = vmatprep.subr.mxu0 0.0
    %926 = vmatpush1.msra.mxu0 0.0
    %927 = vmatprep.subr.mxu0 0.0
    %928 = vmatpush1.msra.mxu0 0.0
    %929 = vmatprep.subr.mxu0 0.0
    %930 = vmatpush1.msra.mxu0 0.0
    %931 = vmatprep.subr.mxu0 0.0
    %932 = vmatpush1.msra.mxu0 0.0
    %933 = vmatprep.subr.mxu0 0.0
    %934 = vmatpush1.msra.mxu0 0.0
    %935 = vmatprep.subr.mxu0 0.0
    %936 = vmatpush1.msra.mxu0 0.0
    %937 = vmatprep.subr.mxu0 0.0
    %938 = vmatpush1.msra.mxu0 0.0
    %939 = vmatprep.subr.mxu0 0.0
    %940 = vmatpush1.msra.mxu0 0.0
    %941 = vmatprep.subr.mxu0 0.0
    %942 = vmatpush1.msra.mxu0 0.0
    %943 = vmatprep.subr.mxu0 0.0
    %944 = vmatpush1.msra.mxu0 0.0
    %945 = vmatprep.subr.mxu0 0.0
    %946 = vmatpush1.msra.mxu0 0.0
    %947 = vmatprep.subr.mxu0 0.0
    %948 = vmatpush1.msra.mxu0 0.0
    %949 = vmatprep.subr.mxu0 0.0
    %950 = vmatpush1.msra.mxu0 0.0
    %951 = vmatprep.subr.mxu0 0.0
    %952 = vmatpush1.msra.mxu0 0.0
    %953 = vmatprep.subr.mxu0 0.0
    %954 = vmatpush1.msra.mxu0 0.0
    %955 = vmatprep.mubr.f32.mxu0 0.0
    %956 = vmatmul.mubr.f32.gmra.mrb[0].mxu0 %v797
    %v957 = vpop.f32.mrb[0].mxu0
    %v958 = vadd.f32 0.0, %v957
    %v959 = vpop.f32.mrb[0].mxu0
    %v960 = vadd.f32 0.0, %v959
    %961 = vmatprep.mubr.f32.mxu0 0.0
    %962 = vmatmul.mubr.f32.gmra.mrb[0].mxu0 %v800
    %v963 = vpop.f32.mrb[0].mxu0
    %v964 = vadd.f32 0.0, %v963
    %v965 = vpop.f32.mrb[0].mxu0
    %v966 = vadd.f32 0.0, %v965
    %967 = vdwg.mxu0
    %v968 = vadd.f32 %v745, %v881
    %v969 = vadd.f32 %v746, %v883
    %v970 = vadd.f32 %v747, %v958
    %v971 = vadd.f32 %v748, %v960
    %v972 = vadd.f32 %v749, %v887
    %v973 = vadd.f32 %v750, %v889
    %v974 = vadd.f32 %v751, %v964
    %v975 = vadd.f32 %v752, %v966
    %s976 = scalar_lea.vmem %s12, 4
    %v977 = vld [vmem:[%s976] ss:$8 sm:$0xf]
    %v979 = vlaneseq
    %v980 = vshrl.u32 %v979, 7
    %v981 = vsub.s32 0, %v980
    %v982 = vrot.slane %v977, %v981
    %v983 = vlaneseq
    %v984 = vshrl.u32 %v983, 7
    %v985 = vsub.s32 1, %v984
    %v986 = vrot.slane %v977, %v985
    %v987 = vlaneseq
    %v988 = vshrl.u32 %v987, 7
    %v989 = vsub.s32 2, %v988
    %v990 = vrot.slane %v977, %v989
    %v991 = vlaneseq
    %v992 = vshrl.u32 %v991, 7
    %v993 = vsub.s32 3, %v992
    %v994 = vrot.slane %v977, %v993
    %v995 = vcombine.low %v982, %v986
    %v996 = vcombine.low %v990, %v994
    %v999 = vmul.f32 %v90, %v995
    %v1000 = vmul.f32 %v91, %v996
    %s1001 = scalar_lea.vmem %s1, 64
    %v1002 = vld [vmem:[%s1001] sm:$0xff]
    %v1003 = vld [vmem:[%s1001 + $0x8] sm:$0xff]
    %v1006 = vcombine.high %v999, %v999
    %v1007 = vcombine.high %v1000, %v1000
    %v1009 = vsel %vm184, %v1002, 0
    %v1012 = vsel %vm184, %v1003, 0
    %v1014 = vsel %vm191, %v999, 0
    %v1016 = vsel %vm191, %v1006, 0
    %v1018 = vsel %vm191, %v1000, 0
    %v1020 = vsel %vm191, %v1007, 0
    %1022 = vmatprep.subr.mxu0 %v1016
    %1023 = vmatpush1.msra.mxu0 %v1014
    %1024 = vmatprep.subr.mxu0 0.0
    %1025 = vmatpush1.msra.mxu0 0.0
    %1026 = vmatprep.subr.mxu0 0.0
    %1027 = vmatpush1.msra.mxu0 0.0
    %1028 = vmatprep.subr.mxu0 0.0
    %1029 = vmatpush1.msra.mxu0 0.0
    %1030 = vmatprep.subr.mxu0 0.0
    %1031 = vmatpush1.msra.mxu0 0.0
    %1032 = vmatprep.subr.mxu0 0.0
    %1033 = vmatpush1.msra.mxu0 0.0
    %1034 = vmatprep.subr.mxu0 0.0
    %1035 = vmatpush1.msra.mxu0 0.0
    %1036 = vmatprep.subr.mxu0 0.0
    %1037 = vmatpush1.msra.mxu0 0.0
    %1038 = vmatprep.subr.mxu0 0.0
    %1039 = vmatpush1.msra.mxu0 0.0
    %1040 = vmatprep.subr.mxu0 0.0
    %1041 = vmatpush1.msra.mxu0 0.0
    %1042 = vmatprep.subr.mxu0 0.0
    %1043 = vmatpush1.msra.mxu0 0.0
    %1044 = vmatprep.subr.mxu0 0.0
    %1045 = vmatpush1.msra.mxu0 0.0
    %1046 = vmatprep.subr.mxu0 0.0
    %1047 = vmatpush1.msra.mxu0 0.0
    %1048 = vmatprep.subr.mxu0 0.0
    %1049 = vmatpush1.msra.mxu0 0.0
    %1050 = vmatprep.subr.mxu0 0.0
    %1051 = vmatpush1.msra.mxu0 0.0
    %1052 = vmatprep.subr.mxu0 0.0
    %1053 = vmatpush1.msra.mxu0 0.0
    %1054 = vmatprep.subr.mxu0 0.0
    %1055 = vmatpush1.msra.mxu0 0.0
    %1056 = vmatprep.subr.mxu0 0.0
    %1057 = vmatpush1.msra.mxu0 0.0
    %1058 = vmatprep.subr.mxu0 0.0
    %1059 = vmatpush1.msra.mxu0 0.0
    %1060 = vmatprep.subr.mxu0 0.0
    %1061 = vmatpush1.msra.mxu0 0.0
    %1062 = vmatprep.subr.mxu0 0.0
    %1063 = vmatpush1.msra.mxu0 0.0
    %1064 = vmatprep.subr.mxu0 0.0
    %1065 = vmatpush1.msra.mxu0 0.0
    %1066 = vmatprep.subr.mxu0 0.0
    %1067 = vmatpush1.msra.mxu0 0.0
    %1068 = vmatprep.subr.mxu0 0.0
    %1069 = vmatpush1.msra.mxu0 0.0
    %1070 = vmatprep.subr.mxu0 0.0
    %1071 = vmatpush1.msra.mxu0 0.0
    %1072 = vmatprep.subr.mxu0 0.0
    %1073 = vmatpush1.msra.mxu0 0.0
    %1074 = vmatprep.subr.mxu0 0.0
    %1075 = vmatpush1.msra.mxu0 0.0
    %1076 = vmatprep.subr.mxu0 0.0
    %1077 = vmatpush1.msra.mxu0 0.0
    %1078 = vmatprep.subr.mxu0 0.0
    %1079 = vmatpush1.msra.mxu0 0.0
    %1080 = vmatprep.subr.mxu0 0.0
    %1081 = vmatpush1.msra.mxu0 0.0
    %1082 = vmatprep.subr.mxu0 0.0
    %1083 = vmatpush1.msra.mxu0 0.0
    %1084 = vmatprep.subr.mxu0 0.0
    %1085 = vmatpush1.msra.mxu0 0.0
    %1086 = vmatprep.mubr.f32.mxu0 0.0
    %1087 = vmatmul.mubr.f32.gmra.mrb[0].mxu0 %v1009
    %v1088 = vpop.f32.mrb[0].mxu0
    %v1089 = vadd.f32 0.0, %v1088
    %v1090 = vpop.f32.mrb[0].mxu0
    %v1091 = vadd.f32 0.0, %v1090
    %1092 = vmatprep.mubr.f32.mxu0 0.0
    %1093 = vmatmul.mubr.f32.gmra.mrb[0].mxu0 %v1012
    %v1094 = vpop.f32.mrb[0].mxu0
    %v1095 = vadd.f32 0.0, %v1094
    %v1096 = vpop.f32.mrb[0].mxu0
    %v1097 = vadd.f32 0.0, %v1096
    %1098 = vdwg.mxu0
    %1099 = vmatprep.subr.mxu0 %v1020
    %1100 = vmatpush1.msra.mxu0 %v1018
    %1101 = vmatprep.subr.mxu0 0.0
    %1102 = vmatpush1.msra.mxu0 0.0
    %1103 = vmatprep.subr.mxu0 0.0
    %1104 = vmatpush1.msra.mxu0 0.0
    %1105 = vmatprep.subr.mxu0 0.0
    %1106 = vmatpush1.msra.mxu0 0.0
    %1107 = vmatprep.subr.mxu0 0.0
    %1108 = vmatpush1.msra.mxu0 0.0
    %1109 = vmatprep.subr.mxu0 0.0
    %1110 = vmatpush1.msra.mxu0 0.0
    %1111 = vmatprep.subr.mxu0 0.0
    %1112 = vmatpush1.msra.mxu0 0.0
    %1113 = vmatprep.subr.mxu0 0.0
    %1114 = vmatpush1.msra.mxu0 0.0
    %1115 = vmatprep.subr.mxu0 0.0
    %1116 = vmatpush1.msra.mxu0 0.0
    %1117 = vmatprep.subr.mxu0 0.0
    %1118 = vmatpush1.msra.mxu0 0.0
    %1119 = vmatprep.subr.mxu0 0.0
    %1120 = vmatpush1.msra.mxu0 0.0
    %1121 = vmatprep.subr.mxu0 0.0
    %1122 = vmatpush1.msra.mxu0 0.0
    %1123 = vmatprep.subr.mxu0 0.0
    %1124 = vmatpush1.msra.mxu0 0.0
    %1125 = vmatprep.subr.mxu0 0.0
    %1126 = vmatpush1.msra.mxu0 0.0
    %1127 = vmatprep.subr.mxu0 0.0
    %1128 = vmatpush1.msra.mxu0 0.0
    %1129 = vmatprep.subr.mxu0 0.0
    %1130 = vmatpush1.msra.mxu0 0.0
    %1131 = vmatprep.subr.mxu0 0.0
    %1132 = vmatpush1.msra.mxu0 0.0
    %1133 = vmatprep.subr.mxu0 0.0
    %1134 = vmatpush1.msra.mxu0 0.0
    %1135 = vmatprep.subr.mxu0 0.0
    %1136 = vmatpush1.msra.mxu0 0.0
    %1137 = vmatprep.subr.mxu0 0.0
    %1138 = vmatpush1.msra.mxu0 0.0
    %1139 = vmatprep.subr.mxu0 0.0
    %1140 = vmatpush1.msra.mxu0 0.0
    %1141 = vmatprep.subr.mxu0 0.0
    %1142 = vmatpush1.msra.mxu0 0.0
    %1143 = vmatprep.subr.mxu0 0.0
    %1144 = vmatpush1.msra.mxu0 0.0
    %1145 = vmatprep.subr.mxu0 0.0
    %1146 = vmatpush1.msra.mxu0 0.0
    %1147 = vmatprep.subr.mxu0 0.0
    %1148 = vmatpush1.msra.mxu0 0.0
    %1149 = vmatprep.subr.mxu0 0.0
    %1150 = vmatpush1.msra.mxu0 0.0
    %1151 = vmatprep.subr.mxu0 0.0
    %1152 = vmatpush1.msra.mxu0 0.0
    %1153 = vmatprep.subr.mxu0 0.0
    %1154 = vmatpush1.msra.mxu0 0.0
    %1155 = vmatprep.subr.mxu0 0.0
    %1156 = vmatpush1.msra.mxu0 0.0
    %1157 = vmatprep.subr.mxu0 0.0
    %1158 = vmatpush1.msra.mxu0 0.0
    %1159 = vmatprep.subr.mxu0 0.0
    %1160 = vmatpush1.msra.mxu0 0.0
    %1161 = vmatprep.subr.mxu0 0.0
    %1162 = vmatpush1.msra.mxu0 0.0
    %1163 = vmatprep.mubr.f32.mxu0 0.0
    %1164 = vmatmul.mubr.f32.gmra.mrb[0].mxu0 %v1009
    %v1165 = vpop.f32.mrb[0].mxu0
    %v1166 = vadd.f32 0.0, %v1165
    %v1167 = vpop.f32.mrb[0].mxu0
    %v1168 = vadd.f32 0.0, %v1167
    %1169 = vmatprep.mubr.f32.mxu0 0.0
    %1170 = vmatmul.mubr.f32.gmra.mrb[0].mxu0 %v1012
    %v1171 = vpop.f32.mrb[0].mxu0
    %v1172 = vadd.f32 0.0, %v1171
    %v1173 = vpop.f32.mrb[0].mxu0
    %v1174 = vadd.f32 0.0, %v1173
    %1175 = vdwg.mxu0
    %v1176 = vadd.f32 %v968, %v1089
    %v1177 = vadd.f32 %v969, %v1091
    %v1178 = vadd.f32 %v970, %v1166
    %v1179 = vadd.f32 %v971, %v1168
    %v1180 = vadd.f32 %v972, %v1095
    %v1181 = vadd.f32 %v973, %v1097
    %v1182 = vadd.f32 %v974, %v1172
    %v1183 = vadd.f32 %v975, %v1174
    %1184 = vrot.lane.b32.xlu0 %v90, 127
    %v1185 = vpop.permute.xlu0 %1184
    %1186 = vrot.lane.b32.xlu0 %v94, 127
    %v1187 = vpop.permute.xlu0 %1186
    %1188 = vrot.lane.b32.xlu0 %v91, 127
    %v1189 = vpop.permute.xlu0 %1188
    %1190 = vrot.lane.b32.xlu0 %v95, 127
    %v1191 = vpop.permute.xlu0 %1190
    %vm1192 = vcmp.lt.s32.totalorder %v107, 127
    %v1193 = vsel %vm1192, %v1189, %v1191
    %v1194 = vsel %vm1192, %v1187, %v1189
    %v1195 = vsel %vm1192, %v1185, %v1187
    %v1196 = vsel %vm1192, %v1191, %v1185
    %s1197 = scalar_lea.vmem %s12, 5
    %v1198 = vld [vmem:[%s1197] ss:$8 sm:$0xf]
    %v1200 = vlaneseq
    %v1201 = vshrl.u32 %v1200, 7
    %v1202 = vsub.s32 0, %v1201
    %v1203 = vrot.slane %v1198, %v1202
    %v1204 = vlaneseq
    %v1205 = vshrl.u32 %v1204, 7
    %v1206 = vsub.s32 1, %v1205
    %v1207 = vrot.slane %v1198, %v1206
    %v1208 = vlaneseq
    %v1209 = vshrl.u32 %v1208, 7
    %v1210 = vsub.s32 2, %v1209
    %v1211 = vrot.slane %v1198, %v1210
    %v1212 = vlaneseq
    %v1213 = vshrl.u32 %v1212, 7
    %v1214 = vsub.s32 3, %v1213
    %v1215 = vrot.slane %v1198, %v1214
    %v1220 = vmul.f32 %v1195, %v1203
    %v1221 = vmul.f32 %v1194, %v1207
    %v1222 = vmul.f32 %v1193, %v1211
    %v1223 = vmul.f32 %v1196, %v1215
    %s1224 = scalar_lea.vmem %s1, 80
    %v1225 = vld [vmem:[%s1224] sm:$0xff]
    %v1226 = vld [vmem:[%s1224 + $0x8] sm:$0xff]
    %v1228 = vsel %vm184, %v1225, 0
    %v1231 = vsel %vm184, %v1226, 0
    %v1234 = vsel %vm191, %v1220, 0
    %v1237 = vsel %vm191, %v1221, 0
    %v1240 = vsel %vm191, %v1222, 0
    %v1243 = vsel %vm191, %v1223, 0
    %1245 = vmatprep.subr.mxu0 %v1237
    %1246 = vmatpush1.msra.mxu0 %v1234
    %1247 = vmatprep.subr.mxu0 0.0
    %1248 = vmatpush1.msra.mxu0 0.0
    %1249 = vmatprep.subr.mxu0 0.0
    %1250 = vmatpush1.msra.mxu0 0.0
    %1251 = vmatprep.subr.mxu0 0.0
    %1252 = vmatpush1.msra.mxu0 0.0
    %1253 = vmatprep.subr.mxu0 0.0
    %1254 = vmatpush1.msra.mxu0 0.0
    %1255 = vmatprep.subr.mxu0 0.0
    %1256 = vmatpush1.msra.mxu0 0.0
    %1257 = vmatprep.subr.mxu0 0.0
    %1258 = vmatpush1.msra.mxu0 0.0
    %1259 = vmatprep.subr.mxu0 0.0
    %1260 = vmatpush1.msra.mxu0 0.0
    %1261 = vmatprep.subr.mxu0 0.0
    %1262 = vmatpush1.msra.mxu0 0.0
    %1263 = vmatprep.subr.mxu0 0.0
    %1264 = vmatpush1.msra.mxu0 0.0
    %1265 = vmatprep.subr.mxu0 0.0
    %1266 = vmatpush1.msra.mxu0 0.0
    %1267 = vmatprep.subr.mxu0 0.0
    %1268 = vmatpush1.msra.mxu0 0.0
    %1269 = vmatprep.subr.mxu0 0.0
    %1270 = vmatpush1.msra.mxu0 0.0
    %1271 = vmatprep.subr.mxu0 0.0
    %1272 = vmatpush1.msra.mxu0 0.0
    %1273 = vmatprep.subr.mxu0 0.0
    %1274 = vmatpush1.msra.mxu0 0.0
    %1275 = vmatprep.subr.mxu0 0.0
    %1276 = vmatpush1.msra.mxu0 0.0
    %1277 = vmatprep.subr.mxu0 0.0
    %1278 = vmatpush1.msra.mxu0 0.0
    %1279 = vmatprep.subr.mxu0 0.0
    %1280 = vmatpush1.msra.mxu0 0.0
    %1281 = vmatprep.subr.mxu0 0.0
    %1282 = vmatpush1.msra.mxu0 0.0
    %1283 = vmatprep.subr.mxu0 0.0
    %1284 = vmatpush1.msra.mxu0 0.0
    %1285 = vmatprep.subr.mxu0 0.0
    %1286 = vmatpush1.msra.mxu0 0.0
    %1287 = vmatprep.subr.mxu0 0.0
    %1288 = vmatpush1.msra.mxu0 0.0
    %1289 = vmatprep.subr.mxu0 0.0
    %1290 = vmatpush1.msra.mxu0 0.0
    %1291 = vmatprep.subr.mxu0 0.0
    %1292 = vmatpush1.msra.mxu0 0.0
    %1293 = vmatprep.subr.mxu0 0.0
    %1294 = vmatpush1.msra.mxu0 0.0
    %1295 = vmatprep.subr.mxu0 0.0
    %1296 = vmatpush1.msra.mxu0 0.0
    %1297 = vmatprep.subr.mxu0 0.0
    %1298 = vmatpush1.msra.mxu0 0.0
    %1299 = vmatprep.subr.mxu0 0.0
    %1300 = vmatpush1.msra.mxu0 0.0
    %1301 = vmatprep.subr.mxu0 0.0
    %1302 = vmatpush1.msra.mxu0 0.0
    %1303 = vmatprep.subr.mxu0 0.0
    %1304 = vmatpush1.msra.mxu0 0.0
    %1305 = vmatprep.subr.mxu0 0.0
    %1306 = vmatpush1.msra.mxu0 0.0
    %1307 = vmatprep.subr.mxu0 0.0
    %1308 = vmatpush1.msra.mxu0 0.0
    %1309 = vmatprep.mubr.f32.mxu0 0.0
    %1310 = vmatmul.mubr.f32.gmra.mrb[0].mxu0 %v1228
    %v1311 = vpop.f32.mrb[0].mxu0
    %v1312 = vadd.f32 0.0, %v1311
    %v1313 = vpop.f32.mrb[0].mxu0
    %v1314 = vadd.f32 0.0, %v1313
    %1315 = vmatprep.mubr.f32.mxu0 0.0
    %1316 = vmatmul.mubr.f32.gmra.mrb[0].mxu0 %v1231
    %v1317 = vpop.f32.mrb[0].mxu0
    %v1318 = vadd.f32 0.0, %v1317
    %v1319 = vpop.f32.mrb[0].mxu0
    %v1320 = vadd.f32 0.0, %v1319
    %1321 = vdwg.mxu0
    %1322 = vmatprep.subr.mxu0 %v1243
    %1323 = vmatpush1.msra.mxu0 %v1240
    %1324 = vmatprep.subr.mxu0 0.0
    %1325 = vmatpush1.msra.mxu0 0.0
    %1326 = vmatprep.subr.mxu0 0.0
    %1327 = vmatpush1.msra.mxu0 0.0
    %1328 = vmatprep.subr.mxu0 0.0
    %1329 = vmatpush1.msra.mxu0 0.0
    %1330 = vmatprep.subr.mxu0 0.0
    %1331 = vmatpush1.msra.mxu0 0.0
    %1332 = vmatprep.subr.mxu0 0.0
    %1333 = vmatpush1.msra.mxu0 0.0
    %1334 = vmatprep.subr.mxu0 0.0
    %1335 = vmatpush1.msra.mxu0 0.0
    %1336 = vmatprep.subr.mxu0 0.0
    %1337 = vmatpush1.msra.mxu0 0.0
    %1338 = vmatprep.subr.mxu0 0.0
    %1339 = vmatpush1.msra.mxu0 0.0
    %1340 = vmatprep.subr.mxu0 0.0
    %1341 = vmatpush1.msra.mxu0 0.0
    %1342 = vmatprep.subr.mxu0 0.0
    %1343 = vmatpush1.msra.mxu0 0.0
    %1344 = vmatprep.subr.mxu0 0.0
    %1345 = vmatpush1.msra.mxu0 0.0
    %1346 = vmatprep.subr.mxu0 0.0
    %1347 = vmatpush1.msra.mxu0 0.0
    %1348 = vmatprep.subr.mxu0 0.0
    %1349 = vmatpush1.msra.mxu0 0.0
    %1350 = vmatprep.subr.mxu0 0.0
    %1351 = vmatpush1.msra.mxu0 0.0
    %1352 = vmatprep.subr.mxu0 0.0
    %1353 = vmatpush1.msra.mxu0 0.0
    %1354 = vmatprep.subr.mxu0 0.0
    %1355 = vmatpush1.msra.mxu0 0.0
    %1356 = vmatprep.subr.mxu0 0.0
    %1357 = vmatpush1.msra.mxu0 0.0
    %1358 = vmatprep.subr.mxu0 0.0
    %1359 = vmatpush1.msra.mxu0 0.0
    %1360 = vmatprep.subr.mxu0 0.0
    %1361 = vmatpush1.msra.mxu0 0.0
    %1362 = vmatprep.subr.mxu0 0.0
    %1363 = vmatpush1.msra.mxu0 0.0
    %1364 = vmatprep.subr.mxu0 0.0
    %1365 = vmatpush1.msra.mxu0 0.0
    %1366 = vmatprep.subr.mxu0 0.0
    %1367 = vmatpush1.msra.mxu0 0.0
    %1368 = vmatprep.subr.mxu0 0.0
    %1369 = vmatpush1.msra.mxu0 0.0
    %1370 = vmatprep.subr.mxu0 0.0
    %1371 = vmatpush1.msra.mxu0 0.0
    %1372 = vmatprep.subr.mxu0 0.0
    %1373 = vmatpush1.msra.mxu0 0.0
    %1374 = vmatprep.subr.mxu0 0.0
    %1375 = vmatpush1.msra.mxu0 0.0
    %1376 = vmatprep.subr.mxu0 0.0
    %1377 = vmatpush1.msra.mxu0 0.0
    %1378 = vmatprep.subr.mxu0 0.0
    %1379 = vmatpush1.msra.mxu0 0.0
    %1380 = vmatprep.subr.mxu0 0.0
    %1381 = vmatpush1.msra.mxu0 0.0
    %1382 = vmatprep.subr.mxu0 0.0
    %1383 = vmatpush1.msra.mxu0 0.0
    %1384 = vmatprep.subr.mxu0 0.0
    %1385 = vmatpush1.msra.mxu0 0.0
    %1386 = vmatprep.mubr.f32.mxu0 0.0
    %1387 = vmatmul.mubr.f32.gmra.mrb[0].mxu0 %v1228
    %v1388 = vpop.f32.mrb[0].mxu0
    %v1389 = vadd.f32 0.0, %v1388
    %v1390 = vpop.f32.mrb[0].mxu0
    %v1391 = vadd.f32 0.0, %v1390
    %1392 = vmatprep.mubr.f32.mxu0 0.0
    %1393 = vmatmul.mubr.f32.gmra.mrb[0].mxu0 %v1231
    %v1394 = vpop.f32.mrb[0].mxu0
    %v1395 = vadd.f32 0.0, %v1394
    %v1396 = vpop.f32.mrb[0].mxu0
    %v1397 = vadd.f32 0.0, %v1396
    %1398 = vdwg.mxu0
    %v1399 = vadd.f32 %v1176, %v1312
    %v1400 = vadd.f32 %v1177, %v1314
    %v1401 = vadd.f32 %v1178, %v1389
    %v1402 = vadd.f32 %v1179, %v1391
    %v1403 = vadd.f32 %v1180, %v1318
    %v1404 = vadd.f32 %v1181, %v1320
    %v1405 = vadd.f32 %v1182, %v1395
    %v1406 = vadd.f32 %v1183, %v1397
    %1407 = vrot.lane.b32.xlu0 %v90, 113
    %v1408 = vpop.permute.xlu0 %1407
    %1409 = vrot.lane.b32.xlu0 %v94, 113
    %v1410 = vpop.permute.xlu0 %1409
    %1411 = vrot.lane.b32.xlu0 %v91, 113
    %v1412 = vpop.permute.xlu0 %1411
    %1413 = vrot.lane.b32.xlu0 %v95, 113
    %v1414 = vpop.permute.xlu0 %1413
    %vm1415 = vcmp.lt.s32.totalorder %v107, 113
    %v1416 = vsel %vm1415, %v1412, %v1414
    %v1417 = vsel %vm1415, %v1410, %v1412
    %v1418 = vsel %vm1415, %v1408, %v1410
    %v1419 = vsel %vm1415, %v1414, %v1408
    %s1420 = scalar_lea.vmem %s12, 6
    %v1421 = vld [vmem:[%s1420] ss:$8 sm:$0xf]
    %v1423 = vlaneseq
    %v1424 = vshrl.u32 %v1423, 7
    %v1425 = vsub.s32 0, %v1424
    %v1426 = vrot.slane %v1421, %v1425
    %v1427 = vlaneseq
    %v1428 = vshrl.u32 %v1427, 7
    %v1429 = vsub.s32 1, %v1428
    %v1430 = vrot.slane %v1421, %v1429
    %v1431 = vlaneseq
    %v1432 = vshrl.u32 %v1431, 7
    %v1433 = vsub.s32 2, %v1432
    %v1434 = vrot.slane %v1421, %v1433
    %v1435 = vlaneseq
    %v1436 = vshrl.u32 %v1435, 7
    %v1437 = vsub.s32 3, %v1436
    %v1438 = vrot.slane %v1421, %v1437
    %v1443 = vmul.f32 %v1418, %v1426
    %v1444 = vmul.f32 %v1417, %v1430
    %v1445 = vmul.f32 %v1416, %v1434
    %v1446 = vmul.f32 %v1419, %v1438
    %s1447 = scalar_lea.vmem %s1, 96
    %v1448 = vld [vmem:[%s1447] sm:$0xff]
    %v1449 = vld [vmem:[%s1447 + $0x8] sm:$0xff]
    %v1451 = vsel %vm184, %v1448, 0
    %v1454 = vsel %vm184, %v1449, 0
    %v1457 = vsel %vm191, %v1443, 0
    %v1460 = vsel %vm191, %v1444, 0
    %v1463 = vsel %vm191, %v1445, 0
    %v1466 = vsel %vm191, %v1446, 0
    %1468 = vmatprep.subr.mxu0 %v1460
    %1469 = vmatpush1.msra.mxu0 %v1457
    %1470 = vmatprep.subr.mxu0 0.0
    %1471 = vmatpush1.msra.mxu0 0.0
    %1472 = vmatprep.subr.mxu0 0.0
    %1473 = vmatpush1.msra.mxu0 0.0
    %1474 = vmatprep.subr.mxu0 0.0
    %1475 = vmatpush1.msra.mxu0 0.0
    %1476 = vmatprep.subr.mxu0 0.0
    %1477 = vmatpush1.msra.mxu0 0.0
    %1478 = vmatprep.subr.mxu0 0.0
    %1479 = vmatpush1.msra.mxu0 0.0
    %1480 = vmatprep.subr.mxu0 0.0
    %1481 = vmatpush1.msra.mxu0 0.0
    %1482 = vmatprep.subr.mxu0 0.0
    %1483 = vmatpush1.msra.mxu0 0.0
    %1484 = vmatprep.subr.mxu0 0.0
    %1485 = vmatpush1.msra.mxu0 0.0
    %1486 = vmatprep.subr.mxu0 0.0
    %1487 = vmatpush1.msra.mxu0 0.0
    %1488 = vmatprep.subr.mxu0 0.0
    %1489 = vmatpush1.msra.mxu0 0.0
    %1490 = vmatprep.subr.mxu0 0.0
    %1491 = vmatpush1.msra.mxu0 0.0
    %1492 = vmatprep.subr.mxu0 0.0
    %1493 = vmatpush1.msra.mxu0 0.0
    %1494 = vmatprep.subr.mxu0 0.0
    %1495 = vmatpush1.msra.mxu0 0.0
    %1496 = vmatprep.subr.mxu0 0.0
    %1497 = vmatpush1.msra.mxu0 0.0
    %1498 = vmatprep.subr.mxu0 0.0
    %1499 = vmatpush1.msra.mxu0 0.0
    %1500 = vmatprep.subr.mxu0 0.0
    %1501 = vmatpush1.msra.mxu0 0.0
    %1502 = vmatprep.subr.mxu0 0.0
    %1503 = vmatpush1.msra.mxu0 0.0
    %1504 = vmatprep.subr.mxu0 0.0
    %1505 = vmatpush1.msra.mxu0 0.0
    %1506 = vmatprep.subr.mxu0 0.0
    %1507 = vmatpush1.msra.mxu0 0.0
    %1508 = vmatprep.subr.mxu0 0.0
    %1509 = vmatpush1.msra.mxu0 0.0
    %1510 = vmatprep.subr.mxu0 0.0
    %1511 = vmatpush1.msra.mxu0 0.0
    %1512 = vmatprep.subr.mxu0 0.0
    %1513 = vmatpush1.msra.mxu0 0.0
    %1514 = vmatprep.subr.mxu0 0.0
    %1515 = vmatpush1.msra.mxu0 0.0
    %1516 = vmatprep.subr.mxu0 0.0
    %1517 = vmatpush1.msra.mxu0 0.0
    %1518 = vmatprep.subr.mxu0 0.0
    %1519 = vmatpush1.msra.mxu0 0.0
    %1520 = vmatprep.subr.mxu0 0.0
    %1521 = vmatpush1.msra.mxu0 0.0
    %1522 = vmatprep.subr.mxu0 0.0
    %1523 = vmatpush1.msra.mxu0 0.0
    %1524 = vmatprep.subr.mxu0 0.0
    %1525 = vmatpush1.msra.mxu0 0.0
    %1526 = vmatprep.subr.mxu0 0.0
    %1527 = vmatpush1.msra.mxu0 0.0
    %1528 = vmatprep.subr.mxu0 0.0
    %1529 = vmatpush1.msra.mxu0 0.0
    %1530 = vmatprep.subr.mxu0 0.0
    %1531 = vmatpush1.msra.mxu0 0.0
    %1532 = vmatprep.mubr.f32.mxu0 0.0
    %1533 = vmatmul.mubr.f32.gmra.mrb[0].mxu0 %v1451
    %v1534 = vpop.f32.mrb[0].mxu0
    %v1535 = vadd.f32 0.0, %v1534
    %v1536 = vpop.f32.mrb[0].mxu0
    %v1537 = vadd.f32 0.0, %v1536
    %1538 = vmatprep.mubr.f32.mxu0 0.0
    %1539 = vmatmul.mubr.f32.gmra.mrb[0].mxu0 %v1454
    %v1540 = vpop.f32.mrb[0].mxu0
    %v1541 = vadd.f32 0.0, %v1540
    %v1542 = vpop.f32.mrb[0].mxu0
    %v1543 = vadd.f32 0.0, %v1542
    %1544 = vdwg.mxu0
    %1545 = vmatprep.subr.mxu0 %v1466
    %1546 = vmatpush1.msra.mxu0 %v1463
    %1547 = vmatprep.subr.mxu0 0.0
    %1548 = vmatpush1.msra.mxu0 0.0
    %1549 = vmatprep.subr.mxu0 0.0
    %1550 = vmatpush1.msra.mxu0 0.0
    %1551 = vmatprep.subr.mxu0 0.0
    %1552 = vmatpush1.msra.mxu0 0.0
    %1553 = vmatprep.subr.mxu0 0.0
    %1554 = vmatpush1.msra.mxu0 0.0
    %1555 = vmatprep.subr.mxu0 0.0
    %1556 = vmatpush1.msra.mxu0 0.0
    %1557 = vmatprep.subr.mxu0 0.0
    %1558 = vmatpush1.msra.mxu0 0.0
    %1559 = vmatprep.subr.mxu0 0.0
    %1560 = vmatpush1.msra.mxu0 0.0
    %1561 = vmatprep.subr.mxu0 0.0
    %1562 = vmatpush1.msra.mxu0 0.0
    %1563 = vmatprep.subr.mxu0 0.0
    %1564 = vmatpush1.msra.mxu0 0.0
    %1565 = vmatprep.subr.mxu0 0.0
    %1566 = vmatpush1.msra.mxu0 0.0
    %1567 = vmatprep.subr.mxu0 0.0
    %1568 = vmatpush1.msra.mxu0 0.0
    %1569 = vmatprep.subr.mxu0 0.0
    %1570 = vmatpush1.msra.mxu0 0.0
    %1571 = vmatprep.subr.mxu0 0.0
    %1572 = vmatpush1.msra.mxu0 0.0
    %1573 = vmatprep.subr.mxu0 0.0
    %1574 = vmatpush1.msra.mxu0 0.0
    %1575 = vmatprep.subr.mxu0 0.0
    %1576 = vmatpush1.msra.mxu0 0.0
    %1577 = vmatprep.subr.mxu0 0.0
    %1578 = vmatpush1.msra.mxu0 0.0
    %1579 = vmatprep.subr.mxu0 0.0
    %1580 = vmatpush1.msra.mxu0 0.0
    %1581 = vmatprep.subr.mxu0 0.0
    %1582 = vmatpush1.msra.mxu0 0.0
    %1583 = vmatprep.subr.mxu0 0.0
    %1584 = vmatpush1.msra.mxu0 0.0
    %1585 = vmatprep.subr.mxu0 0.0
    %1586 = vmatpush1.msra.mxu0 0.0
    %1587 = vmatprep.subr.mxu0 0.0
    %1588 = vmatpush1.msra.mxu0 0.0
    %1589 = vmatprep.subr.mxu0 0.0
    %1590 = vmatpush1.msra.mxu0 0.0
    %1591 = vmatprep.subr.mxu0 0.0
    %1592 = vmatpush1.msra.mxu0 0.0
    %1593 = vmatprep.subr.mxu0 0.0
    %1594 = vmatpush1.msra.mxu0 0.0
    %1595 = vmatprep.subr.mxu0 0.0
    %1596 = vmatpush1.msra.mxu0 0.0
    %1597 = vmatprep.subr.mxu0 0.0
    %1598 = vmatpush1.msra.mxu0 0.0
    %1599 = vmatprep.subr.mxu0 0.0
    %1600 = vmatpush1.msra.mxu0 0.0
    %1601 = vmatprep.subr.mxu0 0.0
    %1602 = vmatpush1.msra.mxu0 0.0
    %1603 = vmatprep.subr.mxu0 0.0
    %1604 = vmatpush1.msra.mxu0 0.0
    %1605 = vmatprep.subr.mxu0 0.0
    %1606 = vmatpush1.msra.mxu0 0.0
    %1607 = vmatprep.subr.mxu0 0.0
    %1608 = vmatpush1.msra.mxu0 0.0
    %1609 = vmatprep.mubr.f32.mxu0 0.0
    %1610 = vmatmul.mubr.f32.gmra.mrb[0].mxu0 %v1451
    %v1611 = vpop.f32.mrb[0].mxu0
    %v1612 = vadd.f32 0.0, %v1611
    %v1613 = vpop.f32.mrb[0].mxu0
    %v1614 = vadd.f32 0.0, %v1613
    %1615 = vmatprep.mubr.f32.mxu0 0.0
    %1616 = vmatmul.mubr.f32.gmra.mrb[0].mxu0 %v1454
    %v1617 = vpop.f32.mrb[0].mxu0
    %v1618 = vadd.f32 0.0, %v1617
    %v1619 = vpop.f32.mrb[0].mxu0
    %v1620 = vadd.f32 0.0, %v1619
    %1621 = vdwg.mxu0
    %v1622 = vadd.f32 %v1399, %v1535
    %v1623 = vadd.f32 %v1400, %v1537
    %v1624 = vadd.f32 %v1401, %v1612
    %v1625 = vadd.f32 %v1402, %v1614
    %v1626 = vadd.f32 %v1403, %v1541
    %v1627 = vadd.f32 %v1404, %v1543
    %v1628 = vadd.f32 %v1405, %v1618
    %v1629 = vadd.f32 %v1406, %v1620
    %1630 = vrot.lane.b32.xlu0 %v90, 112
    %v1631 = vpop.permute.xlu0 %1630
    %1632 = vrot.lane.b32.xlu0 %v94, 112
    %v1633 = vpop.permute.xlu0 %1632
    %1634 = vrot.lane.b32.xlu0 %v91, 112
    %v1635 = vpop.permute.xlu0 %1634
    %1636 = vrot.lane.b32.xlu0 %v95, 112
    %v1637 = vpop.permute.xlu0 %1636
    %vm1638 = vcmp.lt.s32.totalorder %v107, 112
    %v1639 = vsel %vm1638, %v1635, %v1637
    %v1640 = vsel %vm1638, %v1633, %v1635
    %v1641 = vsel %vm1638, %v1631, %v1633
    %v1642 = vsel %vm1638, %v1637, %v1631
    %s1643 = scalar_lea.vmem %s12, 7
    %v1644 = vld [vmem:[%s1643] ss:$8 sm:$0xf]
    %v1646 = vlaneseq
    %v1647 = vshrl.u32 %v1646, 7
    %v1648 = vsub.s32 0, %v1647
    %v1649 = vrot.slane %v1644, %v1648
    %v1650 = vlaneseq
    %v1651 = vshrl.u32 %v1650, 7
    %v1652 = vsub.s32 1, %v1651
    %v1653 = vrot.slane %v1644, %v1652
    %v1654 = vlaneseq
    %v1655 = vshrl.u32 %v1654, 7
    %v1656 = vsub.s32 2, %v1655
    %v1657 = vrot.slane %v1644, %v1656
    %v1658 = vlaneseq
    %v1659 = vshrl.u32 %v1658, 7
    %v1660 = vsub.s32 3, %v1659
    %v1661 = vrot.slane %v1644, %v1660
    %v1666 = vmul.f32 %v1641, %v1649
    %v1667 = vmul.f32 %v1640, %v1653
    %v1668 = vmul.f32 %v1639, %v1657
    %v1669 = vmul.f32 %v1642, %v1661
    %s1670 = scalar_lea.vmem %s1, 112
    %v1671 = vld [vmem:[%s1670] sm:$0xff]
    %v1672 = vld [vmem:[%s1670 + $0x8] sm:$0xff]
    %v1674 = vsel %vm184, %v1671, 0
    %v1677 = vsel %vm184, %v1672, 0
    %v1680 = vsel %vm191, %v1666, 0
    %v1683 = vsel %vm191, %v1667, 0
    %v1686 = vsel %vm191, %v1668, 0
    %v1689 = vsel %vm191, %v1669, 0
    %1691 = vmatprep.subr.mxu0 %v1683
    %1692 = vmatpush1.msra.mxu0 %v1680
    %1693 = vmatprep.subr.mxu0 0.0
    %1694 = vmatpush1.msra.mxu0 0.0
    %1695 = vmatprep.subr.mxu0 0.0
    %1696 = vmatpush1.msra.mxu0 0.0
    %1697 = vmatprep.subr.mxu0 0.0
    %1698 = vmatpush1.msra.mxu0 0.0
    %1699 = vmatprep.subr.mxu0 0.0
    %1700 = vmatpush1.msra.mxu0 0.0
    %1701 = vmatprep.subr.mxu0 0.0
    %1702 = vmatpush1.msra.mxu0 0.0
    %1703 = vmatprep.subr.mxu0 0.0
    %1704 = vmatpush1.msra.mxu0 0.0
    %1705 = vmatprep.subr.mxu0 0.0
    %1706 = vmatpush1.msra.mxu0 0.0
    %1707 = vmatprep.subr.mxu0 0.0
    %1708 = vmatpush1.msra.mxu0 0.0
    %1709 = vmatprep.subr.mxu0 0.0
    %1710 = vmatpush1.msra.mxu0 0.0
    %1711 = vmatprep.subr.mxu0 0.0
    %1712 = vmatpush1.msra.mxu0 0.0
    %1713 = vmatprep.subr.mxu0 0.0
    %1714 = vmatpush1.msra.mxu0 0.0
    %1715 = vmatprep.subr.mxu0 0.0
    %1716 = vmatpush1.msra.mxu0 0.0
    %1717 = vmatprep.subr.mxu0 0.0
    %1718 = vmatpush1.msra.mxu0 0.0
    %1719 = vmatprep.subr.mxu0 0.0
    %1720 = vmatpush1.msra.mxu0 0.0
    %1721 = vmatprep.subr.mxu0 0.0
    %1722 = vmatpush1.msra.mxu0 0.0
    %1723 = vmatprep.subr.mxu0 0.0
    %1724 = vmatpush1.msra.mxu0 0.0
    %1725 = vmatprep.subr.mxu0 0.0
    %1726 = vmatpush1.msra.mxu0 0.0
    %1727 = vmatprep.subr.mxu0 0.0
    %1728 = vmatpush1.msra.mxu0 0.0
    %1729 = vmatprep.subr.mxu0 0.0
    %1730 = vmatpush1.msra.mxu0 0.0
    %1731 = vmatprep.subr.mxu0 0.0
    %1732 = vmatpush1.msra.mxu0 0.0
    %1733 = vmatprep.subr.mxu0 0.0
    %1734 = vmatpush1.msra.mxu0 0.0
    %1735 = vmatprep.subr.mxu0 0.0
    %1736 = vmatpush1.msra.mxu0 0.0
    %1737 = vmatprep.subr.mxu0 0.0
    %1738 = vmatpush1.msra.mxu0 0.0
    %1739 = vmatprep.subr.mxu0 0.0
    %1740 = vmatpush1.msra.mxu0 0.0
    %1741 = vmatprep.subr.mxu0 0.0
    %1742 = vmatpush1.msra.mxu0 0.0
    %1743 = vmatprep.subr.mxu0 0.0
    %1744 = vmatpush1.msra.mxu0 0.0
    %1745 = vmatprep.subr.mxu0 0.0
    %1746 = vmatpush1.msra.mxu0 0.0
    %1747 = vmatprep.subr.mxu0 0.0
    %1748 = vmatpush1.msra.mxu0 0.0
    %1749 = vmatprep.subr.mxu0 0.0
    %1750 = vmatpush1.msra.mxu0 0.0
    %1751 = vmatprep.subr.mxu0 0.0
    %1752 = vmatpush1.msra.mxu0 0.0
    %1753 = vmatprep.subr.mxu0 0.0
    %1754 = vmatpush1.msra.mxu0 0.0
    %1755 = vmatprep.mubr.f32.mxu0 0.0
    %1756 = vmatmul.mubr.f32.gmra.mrb[0].mxu0 %v1674
    %v1757 = vpop.f32.mrb[0].mxu0
    %v1758 = vadd.f32 0.0, %v1757
    %v1759 = vpop.f32.mrb[0].mxu0
    %v1760 = vadd.f32 0.0, %v1759
    %1761 = vmatprep.mubr.f32.mxu0 0.0
    %1762 = vmatmul.mubr.f32.gmra.mrb[0].mxu0 %v1677
    %v1763 = vpop.f32.mrb[0].mxu0
    %v1764 = vadd.f32 0.0, %v1763
    %v1765 = vpop.f32.mrb[0].mxu0
    %v1766 = vadd.f32 0.0, %v1765
    %1767 = vdwg.mxu0
    %1768 = vmatprep.subr.mxu0 %v1689
    %1769 = vmatpush1.msra.mxu0 %v1686
    %1770 = vmatprep.subr.mxu0 0.0
    %1771 = vmatpush1.msra.mxu0 0.0
    %1772 = vmatprep.subr.mxu0 0.0
    %1773 = vmatpush1.msra.mxu0 0.0
    %1774 = vmatprep.subr.mxu0 0.0
    %1775 = vmatpush1.msra.mxu0 0.0
    %1776 = vmatprep.subr.mxu0 0.0
    %1777 = vmatpush1.msra.mxu0 0.0
    %1778 = vmatprep.subr.mxu0 0.0
    %1779 = vmatpush1.msra.mxu0 0.0
    %1780 = vmatprep.subr.mxu0 0.0
    %1781 = vmatpush1.msra.mxu0 0.0
    %1782 = vmatprep.subr.mxu0 0.0
    %1783 = vmatpush1.msra.mxu0 0.0
    %1784 = vmatprep.subr.mxu0 0.0
    %1785 = vmatpush1.msra.mxu0 0.0
    %1786 = vmatprep.subr.mxu0 0.0
    %1787 = vmatpush1.msra.mxu0 0.0
    %1788 = vmatprep.subr.mxu0 0.0
    %1789 = vmatpush1.msra.mxu0 0.0
    %1790 = vmatprep.subr.mxu0 0.0
    %1791 = vmatpush1.msra.mxu0 0.0
    %1792 = vmatprep.subr.mxu0 0.0
    %1793 = vmatpush1.msra.mxu0 0.0
    %1794 = vmatprep.subr.mxu0 0.0
    %1795 = vmatpush1.msra.mxu0 0.0
    %1796 = vmatprep.subr.mxu0 0.0
    %1797 = vmatpush1.msra.mxu0 0.0
    %1798 = vmatprep.subr.mxu0 0.0
    %1799 = vmatpush1.msra.mxu0 0.0
    %1800 = vmatprep.subr.mxu0 0.0
    %1801 = vmatpush1.msra.mxu0 0.0
    %1802 = vmatprep.subr.mxu0 0.0
    %1803 = vmatpush1.msra.mxu0 0.0
    %1804 = vmatprep.subr.mxu0 0.0
    %1805 = vmatpush1.msra.mxu0 0.0
    %1806 = vmatprep.subr.mxu0 0.0
    %1807 = vmatpush1.msra.mxu0 0.0
    %1808 = vmatprep.subr.mxu0 0.0
    %1809 = vmatpush1.msra.mxu0 0.0
    %1810 = vmatprep.subr.mxu0 0.0
    %1811 = vmatpush1.msra.mxu0 0.0
    %1812 = vmatprep.subr.mxu0 0.0
    %1813 = vmatpush1.msra.mxu0 0.0
    %1814 = vmatprep.subr.mxu0 0.0
    %1815 = vmatpush1.msra.mxu0 0.0
    %1816 = vmatprep.subr.mxu0 0.0
    %1817 = vmatpush1.msra.mxu0 0.0
    %1818 = vmatprep.subr.mxu0 0.0
    %1819 = vmatpush1.msra.mxu0 0.0
    %1820 = vmatprep.subr.mxu0 0.0
    %1821 = vmatpush1.msra.mxu0 0.0
    %1822 = vmatprep.subr.mxu0 0.0
    %1823 = vmatpush1.msra.mxu0 0.0
    %1824 = vmatprep.subr.mxu0 0.0
    %1825 = vmatpush1.msra.mxu0 0.0
    %1826 = vmatprep.subr.mxu0 0.0
    %1827 = vmatpush1.msra.mxu0 0.0
    %1828 = vmatprep.subr.mxu0 0.0
    %1829 = vmatpush1.msra.mxu0 0.0
    %1830 = vmatprep.subr.mxu0 0.0
    %1831 = vmatpush1.msra.mxu0 0.0
    %1832 = vmatprep.mubr.f32.mxu0 0.0
    %1833 = vmatmul.mubr.f32.gmra.mrb[0].mxu0 %v1674
    %v1834 = vpop.f32.mrb[0].mxu0
    %v1835 = vadd.f32 0.0, %v1834
    %v1836 = vpop.f32.mrb[0].mxu0
    %v1837 = vadd.f32 0.0, %v1836
    %1838 = vmatprep.mubr.f32.mxu0 0.0
    %1839 = vmatmul.mubr.f32.gmra.mrb[0].mxu0 %v1677
    %v1840 = vpop.f32.mrb[0].mxu0
    %v1841 = vadd.f32 0.0, %v1840
    %v1842 = vpop.f32.mrb[0].mxu0
    %v1843 = vadd.f32 0.0, %v1842
    %1844 = vdwg.mxu0
    %v1845 = vadd.f32 %v1622, %v1758
    %v1846 = vadd.f32 %v1623, %v1760
    %v1847 = vadd.f32 %v1624, %v1835
    %v1848 = vadd.f32 %v1625, %v1837
    %v1849 = vadd.f32 %v1626, %v1764
    %v1850 = vadd.f32 %v1627, %v1766
    %v1851 = vadd.f32 %v1628, %v1841
    %v1852 = vadd.f32 %v1629, %v1843
    %1853 = vrot.lane.b32.xlu0 %v90, 111
    %v1854 = vpop.permute.xlu0 %1853
    %1855 = vrot.lane.b32.xlu0 %v94, 111
    %v1856 = vpop.permute.xlu0 %1855
    %1857 = vrot.lane.b32.xlu0 %v91, 111
    %v1858 = vpop.permute.xlu0 %1857
    %1859 = vrot.lane.b32.xlu0 %v95, 111
    %v1860 = vpop.permute.xlu0 %1859
    %vm1861 = vcmp.lt.s32.totalorder %v107, 111
    %v1862 = vsel %vm1861, %v1858, %v1860
    %v1863 = vsel %vm1861, %v1856, %v1858
    %v1864 = vsel %vm1861, %v1854, %v1856
    %v1865 = vsel %vm1861, %v1860, %v1854
    %s1866 = scalar_lea.vmem %s12, 32
    %v1867 = vld [vmem:[%s1866] ss:$8 sm:$0xf]
    %v1869 = vlaneseq
    %v1870 = vshrl.u32 %v1869, 7
    %v1871 = vsub.s32 0, %v1870
    %v1872 = vrot.slane %v1867, %v1871
    %v1873 = vlaneseq
    %v1874 = vshrl.u32 %v1873, 7
    %v1875 = vsub.s32 1, %v1874
    %v1876 = vrot.slane %v1867, %v1875
    %v1877 = vlaneseq
    %v1878 = vshrl.u32 %v1877, 7
    %v1879 = vsub.s32 2, %v1878
    %v1880 = vrot.slane %v1867, %v1879
    %v1881 = vlaneseq
    %v1882 = vshrl.u32 %v1881, 7
    %v1883 = vsub.s32 3, %v1882
    %v1884 = vrot.slane %v1867, %v1883
    %v1889 = vmul.f32 %v1864, %v1872
    %v1890 = vmul.f32 %v1863, %v1876
    %v1891 = vmul.f32 %v1862, %v1880
    %v1892 = vmul.f32 %v1865, %v1884
    %s1893 = scalar_lea.vmem %s1, 128
    %v1894 = vld [vmem:[%s1893] sm:$0xff]
    %v1895 = vld [vmem:[%s1893 + $0x8] sm:$0xff]
    %v1897 = vsel %vm184, %v1894, 0
    %v1900 = vsel %vm184, %v1895, 0
    %v1903 = vsel %vm191, %v1889, 0
    %v1906 = vsel %vm191, %v1890, 0
    %v1909 = vsel %vm191, %v1891, 0
    %v1912 = vsel %vm191, %v1892, 0
    %1914 = vmatprep.subr.mxu0 %v1906
    %1915 = vmatpush1.msra.mxu0 %v1903
    %1916 = vmatprep.subr.mxu0 0.0
    %1917 = vmatpush1.msra.mxu0 0.0
    %1918 = vmatprep.subr.mxu0 0.0
    %1919 = vmatpush1.msra.mxu0 0.0
    %1920 = vmatprep.subr.mxu0 0.0
    %1921 = vmatpush1.msra.mxu0 0.0
    %1922 = vmatprep.subr.mxu0 0.0
    %1923 = vmatpush1.msra.mxu0 0.0
    %1924 = vmatprep.subr.mxu0 0.0
    %1925 = vmatpush1.msra.mxu0 0.0
    %1926 = vmatprep.subr.mxu0 0.0
    %1927 = vmatpush1.msra.mxu0 0.0
    %1928 = vmatprep.subr.mxu0 0.0
    %1929 = vmatpush1.msra.mxu0 0.0
    %1930 = vmatprep.subr.mxu0 0.0
    %1931 = vmatpush1.msra.mxu0 0.0
    %1932 = vmatprep.subr.mxu0 0.0
    %1933 = vmatpush1.msra.mxu0 0.0
    %1934 = vmatprep.subr.mxu0 0.0
    %1935 = vmatpush1.msra.mxu0 0.0
    %1936 = vmatprep.subr.mxu0 0.0
    %1937 = vmatpush1.msra.mxu0 0.0
    %1938 = vmatprep.subr.mxu0 0.0
    %1939 = vmatpush1.msra.mxu0 0.0
    %1940 = vmatprep.subr.mxu0 0.0
    %1941 = vmatpush1.msra.mxu0 0.0
    %1942 = vmatprep.subr.mxu0 0.0
    %1943 = vmatpush1.msra.mxu0 0.0
    %1944 = vmatprep.subr.mxu0 0.0
    %1945 = vmatpush1.msra.mxu0 0.0
    %1946 = vmatprep.subr.mxu0 0.0
    %1947 = vmatpush1.msra.mxu0 0.0
    %1948 = vmatprep.subr.mxu0 0.0
    %1949 = vmatpush1.msra.mxu0 0.0
    %1950 = vmatprep.subr.mxu0 0.0
    %1951 = vmatpush1.msra.mxu0 0.0
    %1952 = vmatprep.subr.mxu0 0.0
    %1953 = vmatpush1.msra.mxu0 0.0
    %1954 = vmatprep.subr.mxu0 0.0
    %1955 = vmatpush1.msra.mxu0 0.0
    %1956 = vmatprep.subr.mxu0 0.0
    %1957 = vmatpush1.msra.mxu0 0.0
    %1958 = vmatprep.subr.mxu0 0.0
    %1959 = vmatpush1.msra.mxu0 0.0
    %1960 = vmatprep.subr.mxu0 0.0
    %1961 = vmatpush1.msra.mxu0 0.0
    %1962 = vmatprep.subr.mxu0 0.0
    %1963 = vmatpush1.msra.mxu0 0.0
    %1964 = vmatprep.subr.mxu0 0.0
    %1965 = vmatpush1.msra.mxu0 0.0
    %1966 = vmatprep.subr.mxu0 0.0
    %1967 = vmatpush1.msra.mxu0 0.0
    %1968 = vmatprep.subr.mxu0 0.0
    %1969 = vmatpush1.msra.mxu0 0.0
    %1970 = vmatprep.subr.mxu0 0.0
    %1971 = vmatpush1.msra.mxu0 0.0
    %1972 = vmatprep.subr.mxu0 0.0
    %1973 = vmatpush1.msra.mxu0 0.0
    %1974 = vmatprep.subr.mxu0 0.0
    %1975 = vmatpush1.msra.mxu0 0.0
    %1976 = vmatprep.subr.mxu0 0.0
    %1977 = vmatpush1.msra.mxu0 0.0
    %1978 = vmatprep.mubr.f32.mxu0 0.0
    %1979 = vmatmul.mubr.f32.gmra.mrb[0].mxu0 %v1897
    %v1980 = vpop.f32.mrb[0].mxu0
    %v1981 = vadd.f32 0.0, %v1980
    %v1982 = vpop.f32.mrb[0].mxu0
    %v1983 = vadd.f32 0.0, %v1982
    %1984 = vmatprep.mubr.f32.mxu0 0.0
    %1985 = vmatmul.mubr.f32.gmra.mrb[0].mxu0 %v1900
    %v1986 = vpop.f32.mrb[0].mxu0
    %v1987 = vadd.f32 0.0, %v1986
    %v1988 = vpop.f32.mrb[0].mxu0
    %v1989 = vadd.f32 0.0, %v1988
    %1990 = vdwg.mxu0
    %1991 = vmatprep.subr.mxu0 %v1912
    %1992 = vmatpush1.msra.mxu0 %v1909
    %1993 = vmatprep.subr.mxu0 0.0
    %1994 = vmatpush1.msra.mxu0 0.0
    %1995 = vmatprep.subr.mxu0 0.0
    %1996 = vmatpush1.msra.mxu0 0.0
    %1997 = vmatprep.subr.mxu0 0.0
    %1998 = vmatpush1.msra.mxu0 0.0
    %1999 = vmatprep.subr.mxu0 0.0
    %2000 = vmatpush1.msra.mxu0 0.0
    %2001 = vmatprep.subr.mxu0 0.0
    %2002 = vmatpush1.msra.mxu0 0.0
    %2003 = vmatprep.subr.mxu0 0.0
    %2004 = vmatpush1.msra.mxu0 0.0
    %2005 = vmatprep.subr.mxu0 0.0
    %2006 = vmatpush1.msra.mxu0 0.0
    %2007 = vmatprep.subr.mxu0 0.0
    %2008 = vmatpush1.msra.mxu0 0.0
    %2009 = vmatprep.subr.mxu0 0.0
    %2010 = vmatpush1.msra.mxu0 0.0
    %2011 = vmatprep.subr.mxu0 0.0
    %2012 = vmatpush1.msra.mxu0 0.0
    %2013 = vmatprep.subr.mxu0 0.0
    %2014 = vmatpush1.msra.mxu0 0.0
    %2015 = vmatprep.subr.mxu0 0.0
    %2016 = vmatpush1.msra.mxu0 0.0
    %2017 = vmatprep.subr.mxu0 0.0
    %2018 = vmatpush1.msra.mxu0 0.0
    %2019 = vmatprep.subr.mxu0 0.0
    %2020 = vmatpush1.msra.mxu0 0.0
    %2021 = vmatprep.subr.mxu0 0.0
    %2022 = vmatpush1.msra.mxu0 0.0
    %2023 = vmatprep.subr.mxu0 0.0
    %2024 = vmatpush1.msra.mxu0 0.0
    %2025 = vmatprep.subr.mxu0 0.0
    %2026 = vmatpush1.msra.mxu0 0.0
    %2027 = vmatprep.subr.mxu0 0.0
    %2028 = vmatpush1.msra.mxu0 0.0
    %2029 = vmatprep.subr.mxu0 0.0
    %2030 = vmatpush1.msra.mxu0 0.0
    %2031 = vmatprep.subr.mxu0 0.0
    %2032 = vmatpush1.msra.mxu0 0.0
    %2033 = vmatprep.subr.mxu0 0.0
    %2034 = vmatpush1.msra.mxu0 0.0
    %2035 = vmatprep.subr.mxu0 0.0
    %2036 = vmatpush1.msra.mxu0 0.0
    %2037 = vmatprep.subr.mxu0 0.0
    %2038 = vmatpush1.msra.mxu0 0.0
    %2039 = vmatprep.subr.mxu0 0.0
    %2040 = vmatpush1.msra.mxu0 0.0
    %2041 = vmatprep.subr.mxu0 0.0
    %2042 = vmatpush1.msra.mxu0 0.0
    %2043 = vmatprep.subr.mxu0 0.0
    %2044 = vmatpush1.msra.mxu0 0.0
    %2045 = vmatprep.subr.mxu0 0.0
    %2046 = vmatpush1.msra.mxu0 0.0
    %2047 = vmatprep.subr.mxu0 0.0
    %2048 = vmatpush1.msra.mxu0 0.0
    %2049 = vmatprep.subr.mxu0 0.0
    %2050 = vmatpush1.msra.mxu0 0.0
    %2051 = vmatprep.subr.mxu0 0.0
    %2052 = vmatpush1.msra.mxu0 0.0
    %2053 = vmatprep.subr.mxu0 0.0
    %2054 = vmatpush1.msra.mxu0 0.0
    %2055 = vmatprep.mubr.f32.mxu0 0.0
    %2056 = vmatmul.mubr.f32.gmra.mrb[0].mxu0 %v1897
    %v2057 = vpop.f32.mrb[0].mxu0
    %v2058 = vadd.f32 0.0, %v2057
    %v2059 = vpop.f32.mrb[0].mxu0
    %v2060 = vadd.f32 0.0, %v2059
    %2061 = vmatprep.mubr.f32.mxu0 0.0
    %2062 = vmatmul.mubr.f32.gmra.mrb[0].mxu0 %v1900
    %v2063 = vpop.f32.mrb[0].mxu0
    %v2064 = vadd.f32 0.0, %v2063
    %v2065 = vpop.f32.mrb[0].mxu0
    %v2066 = vadd.f32 0.0, %v2065
    %2067 = vdwg.mxu0
    %v2068 = vadd.f32 %v1845, %v1981
    %v2069 = vadd.f32 %v1846, %v1983
    %v2070 = vadd.f32 %v1847, %v2058
    %v2071 = vadd.f32 %v1848, %v2060
    %v2072 = vadd.f32 %v1849, %v1987
    %v2073 = vadd.f32 %v1850, %v1989
    %v2074 = vadd.f32 %v1851, %v2064
    %v2075 = vadd.f32 %v1852, %v2066
    %v2076 = vadd.f32 %v2068, %v2069
    %v2077 = vadd.f32 %v2076, %v2070
    %v2078 = vadd.f32 %v2077, %v2071
    %2079 = vadd.xlane.f32.xlu0 %v2078
    %v2080 = vpop.xlane.xlu0 %2079
    %v2081 = vadd.f32 %v2072, %v2073
    %v2082 = vadd.f32 %v2081, %v2074
    %v2083 = vadd.f32 %v2082, %v2075
    %2084 = vadd.xlane.f32.xlu0 %v2083
    %v2085 = vpop.xlane.xlu0 %2084
    %v2086 = vmul.f32 %v2080, 0.001953125
    %v2087 = vmul.f32 %v2085, 0.001953125
    %v2088 = vsub.f32 %v2068, %v2086
    %v2089 = vsub.f32 %v2069, %v2086
    %v2090 = vsub.f32 %v2070, %v2086
    %v2091 = vsub.f32 %v2071, %v2086
    %v2092 = vsub.f32 %v2072, %v2087
    %v2093 = vsub.f32 %v2073, %v2087
    %v2094 = vsub.f32 %v2074, %v2087
    %v2095 = vsub.f32 %v2075, %v2087
    %v2096 = vmul.f32 %v2088, %v2088
    %v2097 = vmul.f32 %v2089, %v2089
    %v2098 = vmul.f32 %v2090, %v2090
    %v2099 = vmul.f32 %v2091, %v2091
    %v2100 = vmul.f32 %v2092, %v2092
    %v2101 = vmul.f32 %v2093, %v2093
    %v2102 = vmul.f32 %v2094, %v2094
    %v2103 = vmul.f32 %v2095, %v2095
    %v2104 = vadd.f32 %v2096, %v2097
    %v2105 = vadd.f32 %v2104, %v2098
    %v2106 = vadd.f32 %v2105, %v2099
    %2107 = vadd.xlane.f32.xlu0 %v2106
    %v2108 = vpop.xlane.xlu0 %2107
    %v2109 = vadd.f32 %v2100, %v2101
    %v2110 = vadd.f32 %v2109, %v2102
    %v2111 = vadd.f32 %v2110, %v2103
    %2112 = vadd.xlane.f32.xlu0 %v2111
    %v2113 = vpop.xlane.xlu0 %2112
    %v2114 = vmul.f32 %v2108, 0.001953125
    %v2115 = vmul.f32 %v2113, 0.001953125
    %v2116 = vadd.f32 %v2114, 1e-05
    %v2117 = vadd.f32 %v2115, 1e-05
    %v2118 = vrsqrt.pop %v2116
    %v2119 = vrsqrt.pop %v2117
    %v2120 = vmul.f32 %v2088, %v2118
    %v2121 = vmul.f32 %v2089, %v2118
    %v2122 = vmul.f32 %v2090, %v2118
    %v2123 = vmul.f32 %v2091, %v2118
    %v2124 = vmul.f32 %v2092, %v2119
    %v2125 = vmul.f32 %v2093, %v2119
    %v2126 = vmul.f32 %v2094, %v2119
    %v2127 = vmul.f32 %v2095, %v2119
    %v2128 = vld [vmem:[%s2] sm:$0xff]
    %v2129 = vld [vmem:[%s2 + $0x8] sm:$0xff]
    %2131 = vset.pattern.permute.xlu0 0
    %2132 = vperm.xlu0 %2131, %v2128
    %v2133 = vpop.permute.xlu0 %2132
    %2136 = vset.pattern.permute.xlu0 0
    %2137 = vperm.xlu0 %2136, %v2129
    %v2138 = vpop.permute.xlu0 %2137
    %v2140 = vmul.f32 %v2120, %v2133
    %v2141 = vmul.f32 %v2121, %v2133
    %v2142 = vmul.f32 %v2122, %v2133
    %v2143 = vmul.f32 %v2123, %v2133
    %v2144 = vmul.f32 %v2124, %v2138
    %v2145 = vmul.f32 %v2125, %v2138
    %v2146 = vmul.f32 %v2126, %v2138
    %v2147 = vmul.f32 %v2127, %v2138
    %v2148 = vld [vmem:[%s3] sm:$0xff]
    %v2149 = vld [vmem:[%s3 + $0x8] sm:$0xff]
    %2151 = vset.pattern.permute.xlu0 0
    %2152 = vperm.xlu0 %2151, %v2148
    %v2153 = vpop.permute.xlu0 %2152
    %2156 = vset.pattern.permute.xlu0 0
    %2157 = vperm.xlu0 %2156, %v2149
    %v2158 = vpop.permute.xlu0 %2157
    %v2160 = vadd.f32 %v2140, %v2153
    %v2161 = vadd.f32 %v2141, %v2153
    %v2162 = vadd.f32 %v2142, %v2153
    %v2163 = vadd.f32 %v2143, %v2153
    %v2164 = vadd.f32 %v2144, %v2158
    %v2165 = vadd.f32 %v2145, %v2158
    %v2166 = vadd.f32 %v2146, %v2158
    %v2167 = vadd.f32 %v2147, %v2158
    %2168 = vrot.lane.b32.xlu0 %v2160, 17
    %v2169 = vpop.permute.xlu0 %2168
    %2170 = vrot.lane.b32.xlu0 %v2164, 17
    %v2171 = vpop.permute.xlu0 %2170
    %2172 = vrot.lane.b32.xlu0 %v2161, 17
    %v2173 = vpop.permute.xlu0 %2172
    %2174 = vrot.lane.b32.xlu0 %v2165, 17
    %v2175 = vpop.permute.xlu0 %2174
    %2176 = vrot.lane.b32.xlu0 %v2162, 17
    %v2177 = vpop.permute.xlu0 %2176
    %2178 = vrot.lane.b32.xlu0 %v2166, 17
    %v2179 = vpop.permute.xlu0 %2178
    %2180 = vrot.lane.b32.xlu0 %v2163, 17
    %v2181 = vpop.permute.xlu0 %2180
    %2182 = vrot.lane.b32.xlu0 %v2167, 17
    %v2183 = vpop.permute.xlu0 %2182
    %v2184 = vsel %vm108, %v2177, %v2181
    %v2185 = vsel %vm108, %v2179, %v2183
    %v2186 = vsel %vm108, %v2173, %v2177
    %v2187 = vsel %vm108, %v2175, %v2179
    %v2188 = vsel %vm108, %v2169, %v2173
    %v2189 = vsel %vm108, %v2171, %v2175
    %v2190 = vsel %vm108, %v2181, %v2169
    %v2191 = vsel %vm108, %v2183, %v2171
    %v2192 = vmul.f32 %v2190, %v118
    %v2193 = vmul.f32 %v2188, %v122
    %v2194 = vmul.f32 %v2186, %v126
    %v2195 = vmul.f32 %v2184, %v130
    %v2196 = vmul.f32 %v2191, %v118
    %v2197 = vmul.f32 %v2189, %v122
    %v2198 = vmul.f32 %v2187, %v126
    %v2199 = vmul.f32 %v2185, %v130
    %v2200 = vld [vmem:[%s4] sm:$0xff]
    %2201 = vrot.lane.b32.xlu0 %v2160, 16
    %v2202 = vpop.permute.xlu0 %2201
    %2203 = vrot.lane.b32.xlu0 %v2164, 16
    %v2204 = vpop.permute.xlu0 %2203
    %2205 = vrot.lane.b32.xlu0 %v2161, 16
    %v2206 = vpop.permute.xlu0 %2205
    %2207 = vrot.lane.b32.xlu0 %v2165, 16
    %v2208 = vpop.permute.xlu0 %2207
    %2209 = vrot.lane.b32.xlu0 %v2162, 16
    %v2210 = vpop.permute.xlu0 %2209
    %2211 = vrot.lane.b32.xlu0 %v2166, 16
    %v2212 = vpop.permute.xlu0 %2211
    %2213 = vrot.lane.b32.xlu0 %v2163, 16
    %v2214 = vpop.permute.xlu0 %2213
    %2215 = vrot.lane.b32.xlu0 %v2167, 16
    %v2216 = vpop.permute.xlu0 %2215
    %v2217 = vsel %vm149, %v2210, %v2214
    %v2218 = vsel %vm149, %v2212, %v2216
    %v2219 = vsel %vm149, %v2206, %v2210
    %v2220 = vsel %vm149, %v2208, %v2212
    %v2221 = vsel %vm149, %v2202, %v2206
    %v2222 = vsel %vm149, %v2204, %v2208
    %v2223 = vsel %vm149, %v2214, %v2202
    %v2224 = vsel %vm149, %v2216, %v2204
    %v2225 = vmul.f32 %v2223, %v160
    %v2226 = vmul.f32 %v2221, %v164
    %v2227 = vmul.f32 %v2219, %v168
    %v2228 = vmul.f32 %v2217, %v172
    %v2229 = vmul.f32 %v2224, %v160
    %v2230 = vmul.f32 %v2222, %v164
    %v2231 = vmul.f32 %v2220, %v168
    %v2232 = vmul.f32 %v2218, %v172
    %s2233 = scalar_lea.vmem %s4, 8
    %v2234 = vld [vmem:[%s2233] sm:$0xff]
    %vm2235 = vcmask 130048
    %v2237 = vsel %vm2235, %v2234, 0
    %2239 = vmatprep.subr.mxu0 %v2226
    %2240 = vmatpush1.msra.mxu0 %v2225
    %2241 = vmatprep.subr.mxu0 %v2230
    %2242 = vmatpush1.msra.mxu0 %v2229
    %2243 = vmatprep.subr.mxu0 0.0
    %2244 = vmatpush1.msra.mxu0 0.0
    %2245 = vmatprep.subr.mxu0 0.0
    %2246 = vmatpush1.msra.mxu0 0.0
    %2247 = vmatprep.subr.mxu0 0.0
    %2248 = vmatpush1.msra.mxu0 0.0
    %2249 = vmatprep.subr.mxu0 0.0
    %2250 = vmatpush1.msra.mxu0 0.0
    %2251 = vmatprep.subr.mxu0 0.0
    %2252 = vmatpush1.msra.mxu0 0.0
    %2253 = vmatprep.subr.mxu0 0.0
    %2254 = vmatpush1.msra.mxu0 0.0
    %2255 = vmatprep.subr.mxu0 0.0
    %2256 = vmatpush1.msra.mxu0 0.0
    %2257 = vmatprep.subr.mxu0 0.0
    %2258 = vmatpush1.msra.mxu0 0.0
    %2259 = vmatprep.subr.mxu0 0.0
    %2260 = vmatpush1.msra.mxu0 0.0
    %2261 = vmatprep.subr.mxu0 0.0
    %2262 = vmatpush1.msra.mxu0 0.0
    %2263 = vmatprep.subr.mxu0 0.0
    %2264 = vmatpush1.msra.mxu0 0.0
    %2265 = vmatprep.subr.mxu0 0.0
    %2266 = vmatpush1.msra.mxu0 0.0
    %2267 = vmatprep.subr.mxu0 0.0
    %2268 = vmatpush1.msra.mxu0 0.0
    %2269 = vmatprep.subr.mxu0 0.0
    %2270 = vmatpush1.msra.mxu0 0.0
    %2271 = vmatprep.subr.mxu0 0.0
    %2272 = vmatpush1.msra.mxu0 0.0
    %2273 = vmatprep.subr.mxu0 0.0
    %2274 = vmatpush1.msra.mxu0 0.0
    %2275 = vmatprep.subr.mxu0 0.0
    %2276 = vmatpush1.msra.mxu0 0.0
    %2277 = vmatprep.subr.mxu0 0.0
    %2278 = vmatpush1.msra.mxu0 0.0
    %2279 = vmatprep.subr.mxu0 0.0
    %2280 = vmatpush1.msra.mxu0 0.0
    %2281 = vmatprep.subr.mxu0 0.0
    %2282 = vmatpush1.msra.mxu0 0.0
    %2283 = vmatprep.subr.mxu0 0.0
    %2284 = vmatpush1.msra.mxu0 0.0
    %2285 = vmatprep.subr.mxu0 0.0
    %2286 = vmatpush1.msra.mxu0 0.0
    %2287 = vmatprep.subr.mxu0 0.0
    %2288 = vmatpush1.msra.mxu0 0.0
    %2289 = vmatprep.subr.mxu0 0.0
    %2290 = vmatpush1.msra.mxu0 0.0
    %2291 = vmatprep.subr.mxu0 0.0
    %2292 = vmatpush1.msra.mxu0 0.0
    %2293 = vmatprep.subr.mxu0 0.0
    %2294 = vmatpush1.msra.mxu0 0.0
    %2295 = vmatprep.subr.mxu0 0.0
    %2296 = vmatpush1.msra.mxu0 0.0
    %2297 = vmatprep.subr.mxu0 0.0
    %2298 = vmatpush1.msra.mxu0 0.0
    %2299 = vmatprep.subr.mxu0 0.0
    %2300 = vmatpush1.msra.mxu0 0.0
    %2301 = vmatprep.subr.mxu0 0.0
    %2302 = vmatpush1.msra.mxu0 0.0
    %2303 = vmatprep.mubr.f32.mxu0 0.0
    %2304 = vmatmul.mubr.f32.gmra.mrb[0].mxu0 %v2237
    %v2305 = vpop.f32.mrb[0].mxu0
    %v2306 = vadd.f32 0.0, %v2305
    %v2307 = vpop.f32.mrb[0].mxu0
    %v2308 = vadd.f32 0.0, %v2307
    %2309 = vdwg.mxu0
    %2310 = vmatprep.subr.mxu0 %v2228
    %2311 = vmatpush1.msra.mxu0 %v2227
    %2312 = vmatprep.subr.mxu0 %v2232
    %2313 = vmatpush1.msra.mxu0 %v2231
    %2314 = vmatprep.subr.mxu0 0.0
    %2315 = vmatpush1.msra.mxu0 0.0
    %2316 = vmatprep.subr.mxu0 0.0
    %2317 = vmatpush1.msra.mxu0 0.0
    %2318 = vmatprep.subr.mxu0 0.0
    %2319 = vmatpush1.msra.mxu0 0.0
    %2320 = vmatprep.subr.mxu0 0.0
    %2321 = vmatpush1.msra.mxu0 0.0
    %2322 = vmatprep.subr.mxu0 0.0
    %2323 = vmatpush1.msra.mxu0 0.0
    %2324 = vmatprep.subr.mxu0 0.0
    %2325 = vmatpush1.msra.mxu0 0.0
    %2326 = vmatprep.subr.mxu0 0.0
    %2327 = vmatpush1.msra.mxu0 0.0
    %2328 = vmatprep.subr.mxu0 0.0
    %2329 = vmatpush1.msra.mxu0 0.0
    %2330 = vmatprep.subr.mxu0 0.0
    %2331 = vmatpush1.msra.mxu0 0.0
    %2332 = vmatprep.subr.mxu0 0.0
    %2333 = vmatpush1.msra.mxu0 0.0
    %2334 = vmatprep.subr.mxu0 0.0
    %2335 = vmatpush1.msra.mxu0 0.0
    %2336 = vmatprep.subr.mxu0 0.0
    %2337 = vmatpush1.msra.mxu0 0.0
    %2338 = vmatprep.subr.mxu0 0.0
    %2339 = vmatpush1.msra.mxu0 0.0
    %2340 = vmatprep.subr.mxu0 0.0
    %2341 = vmatpush1.msra.mxu0 0.0
    %2342 = vmatprep.subr.mxu0 0.0
    %2343 = vmatpush1.msra.mxu0 0.0
    %2344 = vmatprep.subr.mxu0 0.0
    %2345 = vmatpush1.msra.mxu0 0.0
    %2346 = vmatprep.subr.mxu0 0.0
    %2347 = vmatpush1.msra.mxu0 0.0
    %2348 = vmatprep.subr.mxu0 0.0
    %2349 = vmatpush1.msra.mxu0 0.0
    %2350 = vmatprep.subr.mxu0 0.0
    %2351 = vmatpush1.msra.mxu0 0.0
    %2352 = vmatprep.subr.mxu0 0.0
    %2353 = vmatpush1.msra.mxu0 0.0
    %2354 = vmatprep.subr.mxu0 0.0
    %2355 = vmatpush1.msra.mxu0 0.0
    %2356 = vmatprep.subr.mxu0 0.0
    %2357 = vmatpush1.msra.mxu0 0.0
    %2358 = vmatprep.subr.mxu0 0.0
    %2359 = vmatpush1.msra.mxu0 0.0
    %2360 = vmatprep.subr.mxu0 0.0
    %2361 = vmatpush1.msra.mxu0 0.0
    %2362 = vmatprep.subr.mxu0 0.0
    %2363 = vmatpush1.msra.mxu0 0.0
    %2364 = vmatprep.subr.mxu0 0.0
    %2365 = vmatpush1.msra.mxu0 0.0
    %2366 = vmatprep.subr.mxu0 0.0
    %2367 = vmatpush1.msra.mxu0 0.0
    %2368 = vmatprep.subr.mxu0 0.0
    %2369 = vmatpush1.msra.mxu0 0.0
    %2370 = vmatprep.subr.mxu0 0.0
    %2371 = vmatpush1.msra.mxu0 0.0
    %2372 = vmatprep.subr.mxu0 0.0
    %2373 = vmatpush1.msra.mxu0 0.0
    %2374 = vmatprep.mubr.f32.mxu0 0.0
    %2375 = vmatmul.mubr.f32.gmra.mrb[0].mxu0 %v2237
    %v2376 = vpop.f32.mrb[0].mxu0
    %v2377 = vadd.f32 0.0, %v2376
    %v2378 = vpop.f32.mrb[0].mxu0
    %v2379 = vadd.f32 0.0, %v2378
    %2380 = vdwg.mxu0
    %v2382 = vsel %vm2235, %v2200, 0
    %2384 = vmatprep.subr.mxu0 %v2193
    %2385 = vmatpush1.msra.mxu0 %v2192
    %2386 = vmatprep.subr.mxu0 %v2197
    %2387 = vmatpush1.msra.mxu0 %v2196
    %2388 = vmatprep.subr.mxu0 0.0
    %2389 = vmatpush1.msra.mxu0 0.0
    %2390 = vmatprep.subr.mxu0 0.0
    %2391 = vmatpush1.msra.mxu0 0.0
    %2392 = vmatprep.subr.mxu0 0.0
    %2393 = vmatpush1.msra.mxu0 0.0
    %2394 = vmatprep.subr.mxu0 0.0
    %2395 = vmatpush1.msra.mxu0 0.0
    %2396 = vmatprep.subr.mxu0 0.0
    %2397 = vmatpush1.msra.mxu0 0.0
    %2398 = vmatprep.subr.mxu0 0.0
    %2399 = vmatpush1.msra.mxu0 0.0
    %2400 = vmatprep.subr.mxu0 0.0
    %2401 = vmatpush1.msra.mxu0 0.0
    %2402 = vmatprep.subr.mxu0 0.0
    %2403 = vmatpush1.msra.mxu0 0.0
    %2404 = vmatprep.subr.mxu0 0.0
    %2405 = vmatpush1.msra.mxu0 0.0
    %2406 = vmatprep.subr.mxu0 0.0
    %2407 = vmatpush1.msra.mxu0 0.0
    %2408 = vmatprep.subr.mxu0 0.0
    %2409 = vmatpush1.msra.mxu0 0.0
    %2410 = vmatprep.subr.mxu0 0.0
    %2411 = vmatpush1.msra.mxu0 0.0
    %2412 = vmatprep.subr.mxu0 0.0
    %2413 = vmatpush1.msra.mxu0 0.0
    %2414 = vmatprep.subr.mxu0 0.0
    %2415 = vmatpush1.msra.mxu0 0.0
    %2416 = vmatprep.subr.mxu0 0.0
    %2417 = vmatpush1.msra.mxu0 0.0
    %2418 = vmatprep.subr.mxu0 0.0
    %2419 = vmatpush1.msra.mxu0 0.0
    %2420 = vmatprep.subr.mxu0 0.0
    %2421 = vmatpush1.msra.mxu0 0.0
    %2422 = vmatprep.subr.mxu0 0.0
    %2423 = vmatpush1.msra.mxu0 0.0
    %2424 = vmatprep.subr.mxu0 0.0
    %2425 = vmatpush1.msra.mxu0 0.0
    %2426 = vmatprep.subr.mxu0 0.0
    %2427 = vmatpush1.msra.mxu0 0.0
    %2428 = vmatprep.subr.mxu0 0.0
    %2429 = vmatpush1.msra.mxu0 0.0
    %2430 = vmatprep.subr.mxu0 0.0
    %2431 = vmatpush1.msra.mxu0 0.0
    %2432 = vmatprep.subr.mxu0 0.0
    %2433 = vmatpush1.msra.mxu0 0.0
    %2434 = vmatprep.subr.mxu0 0.0
    %2435 = vmatpush1.msra.mxu0 0.0
    %2436 = vmatprep.subr.mxu0 0.0
    %2437 = vmatpush1.msra.mxu0 0.0
    %2438 = vmatprep.subr.mxu0 0.0
    %2439 = vmatpush1.msra.mxu0 0.0
    %2440 = vmatprep.subr.mxu0 0.0
    %2441 = vmatpush1.msra.mxu0 0.0
    %2442 = vmatprep.subr.mxu0 0.0
    %2443 = vmatpush1.msra.mxu0 0.0
    %2444 = vmatprep.subr.mxu0 0.0
    %2445 = vmatpush1.msra.mxu0 0.0
    %2446 = vmatprep.subr.mxu0 0.0
    %2447 = vmatpush1.msra.mxu0 0.0
    %2448 = vmatprep.mubr.f32.mxu0 0.0
    %2449 = vmatmul.mubr.f32.gmra.mrb[0].mxu0 %v2382
    %v2450 = vpop.f32.mrb[0].mxu0
    %v2451 = vadd.f32 %v2306, %v2450
    %v2452 = vpop.f32.mrb[0].mxu0
    %v2453 = vadd.f32 %v2308, %v2452
    %2454 = vdwg.mxu0
    %2455 = vmatprep.subr.mxu0 %v2195
    %2456 = vmatpush1.msra.mxu0 %v2194
    %2457 = vmatprep.subr.mxu0 %v2199
    %2458 = vmatpush1.msra.mxu0 %v2198
    %2459 = vmatprep.subr.mxu0 0.0
    %2460 = vmatpush1.msra.mxu0 0.0
    %2461 = vmatprep.subr.mxu0 0.0
    %2462 = vmatpush1.msra.mxu0 0.0
    %2463 = vmatprep.subr.mxu0 0.0
    %2464 = vmatpush1.msra.mxu0 0.0
    %2465 = vmatprep.subr.mxu0 0.0
    %2466 = vmatpush1.msra.mxu0 0.0
    %2467 = vmatprep.subr.mxu0 0.0
    %2468 = vmatpush1.msra.mxu0 0.0
    %2469 = vmatprep.subr.mxu0 0.0
    %2470 = vmatpush1.msra.mxu0 0.0
    %2471 = vmatprep.subr.mxu0 0.0
    %2472 = vmatpush1.msra.mxu0 0.0
    %2473 = vmatprep.subr.mxu0 0.0
    %2474 = vmatpush1.msra.mxu0 0.0
    %2475 = vmatprep.subr.mxu0 0.0
    %2476 = vmatpush1.msra.mxu0 0.0
    %2477 = vmatprep.subr.mxu0 0.0
    %2478 = vmatpush1.msra.mxu0 0.0
    %2479 = vmatprep.subr.mxu0 0.0
    %2480 = vmatpush1.msra.mxu0 0.0
    %2481 = vmatprep.subr.mxu0 0.0
    %2482 = vmatpush1.msra.mxu0 0.0
    %2483 = vmatprep.subr.mxu0 0.0
    %2484 = vmatpush1.msra.mxu0 0.0
    %2485 = vmatprep.subr.mxu0 0.0
    %2486 = vmatpush1.msra.mxu0 0.0
    %2487 = vmatprep.subr.mxu0 0.0
    %2488 = vmatpush1.msra.mxu0 0.0
    %2489 = vmatprep.subr.mxu0 0.0
    %2490 = vmatpush1.msra.mxu0 0.0
    %2491 = vmatprep.subr.mxu0 0.0
    %2492 = vmatpush1.msra.mxu0 0.0
    %2493 = vmatprep.subr.mxu0 0.0
    %2494 = vmatpush1.msra.mxu0 0.0
    %2495 = vmatprep.subr.mxu0 0.0
    %2496 = vmatpush1.msra.mxu0 0.0
    %2497 = vmatprep.subr.mxu0 0.0
    %2498 = vmatpush1.msra.mxu0 0.0
    %2499 = vmatprep.subr.mxu0 0.0
    %2500 = vmatpush1.msra.mxu0 0.0
    %2501 = vmatprep.subr.mxu0 0.0
    %2502 = vmatpush1.msra.mxu0 0.0
    %2503 = vmatprep.subr.mxu0 0.0
    %2504 = vmatpush1.msra.mxu0 0.0
    %2505 = vmatprep.subr.mxu0 0.0
    %2506 = vmatpush1.msra.mxu0 0.0
    %2507 = vmatprep.subr.mxu0 0.0
    %2508 = vmatpush1.msra.mxu0 0.0
    %2509 = vmatprep.subr.mxu0 0.0
    %2510 = vmatpush1.msra.mxu0 0.0
    %2511 = vmatprep.subr.mxu0 0.0
    %2512 = vmatpush1.msra.mxu0 0.0
    %2513 = vmatprep.subr.mxu0 0.0
    %2514 = vmatpush1.msra.mxu0 0.0
    %2515 = vmatprep.subr.mxu0 0.0
    %2516 = vmatpush1.msra.mxu0 0.0
    %2517 = vmatprep.subr.mxu0 0.0
    %2518 = vmatpush1.msra.mxu0 0.0
    %2519 = vmatprep.mubr.f32.mxu0 0.0
    %2520 = vmatmul.mubr.f32.gmra.mrb[0].mxu0 %v2382
    %v2521 = vpop.f32.mrb[0].mxu0
    %v2522 = vadd.f32 %v2377, %v2521
    %v2523 = vpop.f32.mrb[0].mxu0
    %v2524 = vadd.f32 %v2379, %v2523
    %2525 = vdwg.mxu0
    %2526 = vrot.lane.b32.xlu0 %v2160, 15
    %v2527 = vpop.permute.xlu0 %2526
    %2528 = vrot.lane.b32.xlu0 %v2164, 15
    %v2529 = vpop.permute.xlu0 %2528
    %2530 = vrot.lane.b32.xlu0 %v2161, 15
    %v2531 = vpop.permute.xlu0 %2530
    %2532 = vrot.lane.b32.xlu0 %v2165, 15
    %v2533 = vpop.permute.xlu0 %2532
    %2534 = vrot.lane.b32.xlu0 %v2162, 15
    %v2535 = vpop.permute.xlu0 %2534
    %2536 = vrot.lane.b32.xlu0 %v2166, 15
    %v2537 = vpop.permute.xlu0 %2536
    %2538 = vrot.lane.b32.xlu0 %v2163, 15
    %v2539 = vpop.permute.xlu0 %2538
    %2540 = vrot.lane.b32.xlu0 %v2167, 15
    %v2541 = vpop.permute.xlu0 %2540
    %v2542 = vsel %vm538, %v2535, %v2539
    %v2543 = vsel %vm538, %v2537, %v2541
    %v2544 = vsel %vm538, %v2531, %v2535
    %v2545 = vsel %vm538, %v2533, %v2537
    %v2546 = vsel %vm538, %v2527, %v2531
    %v2547 = vsel %vm538, %v2529, %v2533
    %v2548 = vsel %vm538, %v2539, %v2527
    %v2549 = vsel %vm538, %v2541, %v2529
    %v2550 = vmul.f32 %v2548, %v549
    %v2551 = vmul.f32 %v2546, %v553
    %v2552 = vmul.f32 %v2544, %v557
    %v2553 = vmul.f32 %v2542, %v561
    %v2554 = vmul.f32 %v2549, %v549
    %v2555 = vmul.f32 %v2547, %v553
    %v2556 = vmul.f32 %v2545, %v557
    %v2557 = vmul.f32 %v2543, %v561
    %s2558 = scalar_lea.vmem %s4, 16
    %v2559 = vld [vmem:[%s2558] sm:$0xff]
    %v2561 = vsel %vm2235, %v2559, 0
    %2563 = vmatprep.subr.mxu0 %v2551
    %2564 = vmatpush1.msra.mxu0 %v2550
    %2565 = vmatprep.subr.mxu0 %v2555
    %2566 = vmatpush1.msra.mxu0 %v2554
    %2567 = vmatprep.subr.mxu0 0.0
    %2568 = vmatpush1.msra.mxu0 0.0
    %2569 = vmatprep.subr.mxu0 0.0
    %2570 = vmatpush1.msra.mxu0 0.0
    %2571 = vmatprep.subr.mxu0 0.0
    %2572 = vmatpush1.msra.mxu0 0.0
    %2573 = vmatprep.subr.mxu0 0.0
    %2574 = vmatpush1.msra.mxu0 0.0
    %2575 = vmatprep.subr.mxu0 0.0
    %2576 = vmatpush1.msra.mxu0 0.0
    %2577 = vmatprep.subr.mxu0 0.0
    %2578 = vmatpush1.msra.mxu0 0.0
    %2579 = vmatprep.subr.mxu0 0.0
    %2580 = vmatpush1.msra.mxu0 0.0
    %2581 = vmatprep.subr.mxu0 0.0
    %2582 = vmatpush1.msra.mxu0 0.0
    %2583 = vmatprep.subr.mxu0 0.0
    %2584 = vmatpush1.msra.mxu0 0.0
    %2585 = vmatprep.subr.mxu0 0.0
    %2586 = vmatpush1.msra.mxu0 0.0
    %2587 = vmatprep.subr.mxu0 0.0
    %2588 = vmatpush1.msra.mxu0 0.0
    %2589 = vmatprep.subr.mxu0 0.0
    %2590 = vmatpush1.msra.mxu0 0.0
    %2591 = vmatprep.subr.mxu0 0.0
    %2592 = vmatpush1.msra.mxu0 0.0
    %2593 = vmatprep.subr.mxu0 0.0
    %2594 = vmatpush1.msra.mxu0 0.0
    %2595 = vmatprep.subr.mxu0 0.0
    %2596 = vmatpush1.msra.mxu0 0.0
    %2597 = vmatprep.subr.mxu0 0.0
    %2598 = vmatpush1.msra.mxu0 0.0
    %2599 = vmatprep.subr.mxu0 0.0
    %2600 = vmatpush1.msra.mxu0 0.0
    %2601 = vmatprep.subr.mxu0 0.0
    %2602 = vmatpush1.msra.mxu0 0.0
    %2603 = vmatprep.subr.mxu0 0.0
    %2604 = vmatpush1.msra.mxu0 0.0
    %2605 = vmatprep.subr.mxu0 0.0
    %2606 = vmatpush1.msra.mxu0 0.0
    %2607 = vmatprep.subr.mxu0 0.0
    %2608 = vmatpush1.msra.mxu0 0.0
    %2609 = vmatprep.subr.mxu0 0.0
    %2610 = vmatpush1.msra.mxu0 0.0
    %2611 = vmatprep.subr.mxu0 0.0
    %2612 = vmatpush1.msra.mxu0 0.0
    %2613 = vmatprep.subr.mxu0 0.0
    %2614 = vmatpush1.msra.mxu0 0.0
    %2615 = vmatprep.subr.mxu0 0.0
    %2616 = vmatpush1.msra.mxu0 0.0
    %2617 = vmatprep.subr.mxu0 0.0
    %2618 = vmatpush1.msra.mxu0 0.0
    %2619 = vmatprep.subr.mxu0 0.0
    %2620 = vmatpush1.msra.mxu0 0.0
    %2621 = vmatprep.subr.mxu0 0.0
    %2622 = vmatpush1.msra.mxu0 0.0
    %2623 = vmatprep.subr.mxu0 0.0
    %2624 = vmatpush1.msra.mxu0 0.0
    %2625 = vmatprep.subr.mxu0 0.0
    %2626 = vmatpush1.msra.mxu0 0.0
    %2627 = vmatprep.mubr.f32.mxu0 0.0
    %2628 = vmatmul.mubr.f32.gmra.mrb[0].mxu0 %v2561
    %v2629 = vpop.f32.mrb[0].mxu0
    %v2630 = vadd.f32 0.0, %v2629
    %v2631 = vpop.f32.mrb[0].mxu0
    %v2632 = vadd.f32 0.0, %v2631
    %2633 = vdwg.mxu0
    %2634 = vmatprep.subr.mxu0 %v2553
    %2635 = vmatpush1.msra.mxu0 %v2552
    %2636 = vmatprep.subr.mxu0 %v2557
    %2637 = vmatpush1.msra.mxu0 %v2556
    %2638 = vmatprep.subr.mxu0 0.0
    %2639 = vmatpush1.msra.mxu0 0.0
    %2640 = vmatprep.subr.mxu0 0.0
    %2641 = vmatpush1.msra.mxu0 0.0
    %2642 = vmatprep.subr.mxu0 0.0
    %2643 = vmatpush1.msra.mxu0 0.0
    %2644 = vmatprep.subr.mxu0 0.0
    %2645 = vmatpush1.msra.mxu0 0.0
    %2646 = vmatprep.subr.mxu0 0.0
    %2647 = vmatpush1.msra.mxu0 0.0
    %2648 = vmatprep.subr.mxu0 0.0
    %2649 = vmatpush1.msra.mxu0 0.0
    %2650 = vmatprep.subr.mxu0 0.0
    %2651 = vmatpush1.msra.mxu0 0.0
    %2652 = vmatprep.subr.mxu0 0.0
    %2653 = vmatpush1.msra.mxu0 0.0
    %2654 = vmatprep.subr.mxu0 0.0
    %2655 = vmatpush1.msra.mxu0 0.0
    %2656 = vmatprep.subr.mxu0 0.0
    %2657 = vmatpush1.msra.mxu0 0.0
    %2658 = vmatprep.subr.mxu0 0.0
    %2659 = vmatpush1.msra.mxu0 0.0
    %2660 = vmatprep.subr.mxu0 0.0
    %2661 = vmatpush1.msra.mxu0 0.0
    %2662 = vmatprep.subr.mxu0 0.0
    %2663 = vmatpush1.msra.mxu0 0.0
    %2664 = vmatprep.subr.mxu0 0.0
    %2665 = vmatpush1.msra.mxu0 0.0
    %2666 = vmatprep.subr.mxu0 0.0
    %2667 = vmatpush1.msra.mxu0 0.0
    %2668 = vmatprep.subr.mxu0 0.0
    %2669 = vmatpush1.msra.mxu0 0.0
    %2670 = vmatprep.subr.mxu0 0.0
    %2671 = vmatpush1.msra.mxu0 0.0
    %2672 = vmatprep.subr.mxu0 0.0
    %2673 = vmatpush1.msra.mxu0 0.0
    %2674 = vmatprep.subr.mxu0 0.0
    %2675 = vmatpush1.msra.mxu0 0.0
    %2676 = vmatprep.subr.mxu0 0.0
    %2677 = vmatpush1.msra.mxu0 0.0
    %2678 = vmatprep.subr.mxu0 0.0
    %2679 = vmatpush1.msra.mxu0 0.0
    %2680 = vmatprep.subr.mxu0 0.0
    %2681 = vmatpush1.msra.mxu0 0.0
    %2682 = vmatprep.subr.mxu0 0.0
    %2683 = vmatpush1.msra.mxu0 0.0
    %2684 = vmatprep.subr.mxu0 0.0
    %2685 = vmatpush1.msra.mxu0 0.0
    %2686 = vmatprep.subr.mxu0 0.0
    %2687 = vmatpush1.msra.mxu0 0.0
    %2688 = vmatprep.subr.mxu0 0.0
    %2689 = vmatpush1.msra.mxu0 0.0
    %2690 = vmatprep.subr.mxu0 0.0
    %2691 = vmatpush1.msra.mxu0 0.0
    %2692 = vmatprep.subr.mxu0 0.0
    %2693 = vmatpush1.msra.mxu0 0.0
    %2694 = vmatprep.subr.mxu0 0.0
    %2695 = vmatpush1.msra.mxu0 0.0
    %2696 = vmatprep.subr.mxu0 0.0
    %2697 = vmatpush1.msra.mxu0 0.0
    %2698 = vmatprep.mubr.f32.mxu0 0.0
    %2699 = vmatmul.mubr.f32.gmra.mrb[0].mxu0 %v2561
    %v2700 = vpop.f32.mrb[0].mxu0
    %v2701 = vadd.f32 0.0, %v2700
    %v2702 = vpop.f32.mrb[0].mxu0
    %v2703 = vadd.f32 0.0, %v2702
    %2704 = vdwg.mxu0
    %v2705 = vadd.f32 %v2451, %v2630
    %v2706 = vadd.f32 %v2453, %v2632
    %v2707 = vadd.f32 %v2522, %v2701
    %v2708 = vadd.f32 %v2524, %v2703
    %2709 = vrot.lane.b32.xlu0 %v2160, 1
    %v2710 = vpop.permute.xlu0 %2709
    %2711 = vrot.lane.b32.xlu0 %v2164, 1
    %v2712 = vpop.permute.xlu0 %2711
    %2713 = vrot.lane.b32.xlu0 %v2161, 1
    %v2714 = vpop.permute.xlu0 %2713
    %2715 = vrot.lane.b32.xlu0 %v2165, 1
    %v2716 = vpop.permute.xlu0 %2715
    %2717 = vrot.lane.b32.xlu0 %v2162, 1
    %v2718 = vpop.permute.xlu0 %2717
    %2719 = vrot.lane.b32.xlu0 %v2166, 1
    %v2720 = vpop.permute.xlu0 %2719
    %2721 = vrot.lane.b32.xlu0 %v2163, 1
    %v2722 = vpop.permute.xlu0 %2721
    %2723 = vrot.lane.b32.xlu0 %v2167, 1
    %v2724 = vpop.permute.xlu0 %2723
    %v2725 = vsel %vm761, %v2718, %v2722
    %v2726 = vsel %vm761, %v2720, %v2724
    %v2727 = vsel %vm761, %v2714, %v2718
    %v2728 = vsel %vm761, %v2716, %v2720
    %v2729 = vsel %vm761, %v2710, %v2714
    %v2730 = vsel %vm761, %v2712, %v2716
    %v2731 = vsel %vm761, %v2722, %v2710
    %v2732 = vsel %vm761, %v2724, %v2712
    %v2733 = vmul.f32 %v2731, %v772
    %v2734 = vmul.f32 %v2729, %v776
    %v2735 = vmul.f32 %v2727, %v780
    %v2736 = vmul.f32 %v2725, %v784
    %v2737 = vmul.f32 %v2732, %v772
    %v2738 = vmul.f32 %v2730, %v776
    %v2739 = vmul.f32 %v2728, %v780
    %v2740 = vmul.f32 %v2726, %v784
    %s2741 = scalar_lea.vmem %s4, 24
    %v2742 = vld [vmem:[%s2741] sm:$0xff]
    %v2744 = vsel %vm2235, %v2742, 0
    %2746 = vmatprep.subr.mxu0 %v2734
    %2747 = vmatpush1.msra.mxu0 %v2733
    %2748 = vmatprep.subr.mxu0 %v2738
    %2749 = vmatpush1.msra.mxu0 %v2737
    %2750 = vmatprep.subr.mxu0 0.0
    %2751 = vmatpush1.msra.mxu0 0.0
    %2752 = vmatprep.subr.mxu0 0.0
    %2753 = vmatpush1.msra.mxu0 0.0
    %2754 = vmatprep.subr.mxu0 0.0
    %2755 = vmatpush1.msra.mxu0 0.0
    %2756 = vmatprep.subr.mxu0 0.0
    %2757 = vmatpush1.msra.mxu0 0.0
    %2758 = vmatprep.subr.mxu0 0.0
    %2759 = vmatpush1.msra.mxu0 0.0
    %2760 = vmatprep.subr.mxu0 0.0
    %2761 = vmatpush1.msra.mxu0 0.0
    %2762 = vmatprep.subr.mxu0 0.0
    %2763 = vmatpush1.msra.mxu0 0.0
    %2764 = vmatprep.subr.mxu0 0.0
    %2765 = vmatpush1.msra.mxu0 0.0
    %2766 = vmatprep.subr.mxu0 0.0
    %2767 = vmatpush1.msra.mxu0 0.0
    %2768 = vmatprep.subr.mxu0 0.0
    %2769 = vmatpush1.msra.mxu0 0.0
    %2770 = vmatprep.subr.mxu0 0.0
    %2771 = vmatpush1.msra.mxu0 0.0
    %2772 = vmatprep.subr.mxu0 0.0
    %2773 = vmatpush1.msra.mxu0 0.0
    %2774 = vmatprep.subr.mxu0 0.0
    %2775 = vmatpush1.msra.mxu0 0.0
    %2776 = vmatprep.subr.mxu0 0.0
    %2777 = vmatpush1.msra.mxu0 0.0
    %2778 = vmatprep.subr.mxu0 0.0
    %2779 = vmatpush1.msra.mxu0 0.0
    %2780 = vmatprep.subr.mxu0 0.0
    %2781 = vmatpush1.msra.mxu0 0.0
    %2782 = vmatprep.subr.mxu0 0.0
    %2783 = vmatpush1.msra.mxu0 0.0
    %2784 = vmatprep.subr.mxu0 0.0
    %2785 = vmatpush1.msra.mxu0 0.0
    %2786 = vmatprep.subr.mxu0 0.0
    %2787 = vmatpush1.msra.mxu0 0.0
    %2788 = vmatprep.subr.mxu0 0.0
    %2789 = vmatpush1.msra.mxu0 0.0
    %2790 = vmatprep.subr.mxu0 0.0
    %2791 = vmatpush1.msra.mxu0 0.0
    %2792 = vmatprep.subr.mxu0 0.0
    %2793 = vmatpush1.msra.mxu0 0.0
    %2794 = vmatprep.subr.mxu0 0.0
    %2795 = vmatpush1.msra.mxu0 0.0
    %2796 = vmatprep.subr.mxu0 0.0
    %2797 = vmatpush1.msra.mxu0 0.0
    %2798 = vmatprep.subr.mxu0 0.0
    %2799 = vmatpush1.msra.mxu0 0.0
    %2800 = vmatprep.subr.mxu0 0.0
    %2801 = vmatpush1.msra.mxu0 0.0
    %2802 = vmatprep.subr.mxu0 0.0
    %2803 = vmatpush1.msra.mxu0 0.0
    %2804 = vmatprep.subr.mxu0 0.0
    %2805 = vmatpush1.msra.mxu0 0.0
    %2806 = vmatprep.subr.mxu0 0.0
    %2807 = vmatpush1.msra.mxu0 0.0
    %2808 = vmatprep.subr.mxu0 0.0
    %2809 = vmatpush1.msra.mxu0 0.0
    %2810 = vmatprep.mubr.f32.mxu0 0.0
    %2811 = vmatmul.mubr.f32.gmra.mrb[0].mxu0 %v2744
    %v2812 = vpop.f32.mrb[0].mxu0
    %v2813 = vadd.f32 0.0, %v2812
    %v2814 = vpop.f32.mrb[0].mxu0
    %v2815 = vadd.f32 0.0, %v2814
    %2816 = vdwg.mxu0
    %2817 = vmatprep.subr.mxu0 %v2736
    %2818 = vmatpush1.msra.mxu0 %v2735
    %2819 = vmatprep.subr.mxu0 %v2740
    %2820 = vmatpush1.msra.mxu0 %v2739
    %2821 = vmatprep.subr.mxu0 0.0
    %2822 = vmatpush1.msra.mxu0 0.0
    %2823 = vmatprep.subr.mxu0 0.0
    %2824 = vmatpush1.msra.mxu0 0.0
    %2825 = vmatprep.subr.mxu0 0.0
    %2826 = vmatpush1.msra.mxu0 0.0
    %2827 = vmatprep.subr.mxu0 0.0
    %2828 = vmatpush1.msra.mxu0 0.0
    %2829 = vmatprep.subr.mxu0 0.0
    %2830 = vmatpush1.msra.mxu0 0.0
    %2831 = vmatprep.subr.mxu0 0.0
    %2832 = vmatpush1.msra.mxu0 0.0
    %2833 = vmatprep.subr.mxu0 0.0
    %2834 = vmatpush1.msra.mxu0 0.0
    %2835 = vmatprep.subr.mxu0 0.0
    %2836 = vmatpush1.msra.mxu0 0.0
    %2837 = vmatprep.subr.mxu0 0.0
    %2838 = vmatpush1.msra.mxu0 0.0
    %2839 = vmatprep.subr.mxu0 0.0
    %2840 = vmatpush1.msra.mxu0 0.0
    %2841 = vmatprep.subr.mxu0 0.0
    %2842 = vmatpush1.msra.mxu0 0.0
    %2843 = vmatprep.subr.mxu0 0.0
    %2844 = vmatpush1.msra.mxu0 0.0
    %2845 = vmatprep.subr.mxu0 0.0
    %2846 = vmatpush1.msra.mxu0 0.0
    %2847 = vmatprep.subr.mxu0 0.0
    %2848 = vmatpush1.msra.mxu0 0.0
    %2849 = vmatprep.subr.mxu0 0.0
    %2850 = vmatpush1.msra.mxu0 0.0
    %2851 = vmatprep.subr.mxu0 0.0
    %2852 = vmatpush1.msra.mxu0 0.0
    %2853 = vmatprep.subr.mxu0 0.0
    %2854 = vmatpush1.msra.mxu0 0.0
    %2855 = vmatprep.subr.mxu0 0.0
    %2856 = vmatpush1.msra.mxu0 0.0
    %2857 = vmatprep.subr.mxu0 0.0
    %2858 = vmatpush1.msra.mxu0 0.0
    %2859 = vmatprep.subr.mxu0 0.0
    %2860 = vmatpush1.msra.mxu0 0.0
    %2861 = vmatprep.subr.mxu0 0.0
    %2862 = vmatpush1.msra.mxu0 0.0
    %2863 = vmatprep.subr.mxu0 0.0
    %2864 = vmatpush1.msra.mxu0 0.0
    %2865 = vmatprep.subr.mxu0 0.0
    %2866 = vmatpush1.msra.mxu0 0.0
    %2867 = vmatprep.subr.mxu0 0.0
    %2868 = vmatpush1.msra.mxu0 0.0
    %2869 = vmatprep.subr.mxu0 0.0
    %2870 = vmatpush1.msra.mxu0 0.0
    %2871 = vmatprep.subr.mxu0 0.0
    %2872 = vmatpush1.msra.mxu0 0.0
    %2873 = vmatprep.subr.mxu0 0.0
    %2874 = vmatpush1.msra.mxu0 0.0
    %2875 = vmatprep.subr.mxu0 0.0
    %2876 = vmatpush1.msra.mxu0 0.0
    %2877 = vmatprep.subr.mxu0 0.0
    %2878 = vmatpush1.msra.mxu0 0.0
    %2879 = vmatprep.subr.mxu0 0.0
    %2880 = vmatpush1.msra.mxu0 0.0
    %2881 = vmatprep.mubr.f32.mxu0 0.0
    %2882 = vmatmul.mubr.f32.gmra.mrb[0].mxu0 %v2744
    %v2883 = vpop.f32.mrb[0].mxu0
    %v2884 = vadd.f32 0.0, %v2883
    %v2885 = vpop.f32.mrb[0].mxu0
    %v2886 = vadd.f32 0.0, %v2885
    %2887 = vdwg.mxu0
    %v2888 = vadd.f32 %v2705, %v2813
    %v2889 = vadd.f32 %v2706, %v2815
    %v2890 = vadd.f32 %v2707, %v2884
    %v2891 = vadd.f32 %v2708, %v2886
    %v2896 = vmul.f32 %v2160, %v982
    %v2897 = vmul.f32 %v2161, %v986
    %v2898 = vmul.f32 %v2162, %v990
    %v2899 = vmul.f32 %v2163, %v994
    %v2900 = vmul.f32 %v2164, %v982
    %v2901 = vmul.f32 %v2165, %v986
    %v2902 = vmul.f32 %v2166, %v990
    %v2903 = vmul.f32 %v2167, %v994
    %s2904 = scalar_lea.vmem %s4, 32
    %v2905 = vld [vmem:[%s2904] sm:$0xff]
    %v2907 = vsel %vm2235, %v2905, 0
    %2909 = vmatprep.subr.mxu0 %v2897
    %2910 = vmatpush1.msra.mxu0 %v2896
    %2911 = vmatprep.subr.mxu0 %v2901
    %2912 = vmatpush1.msra.mxu0 %v2900
    %2913 = vmatprep.subr.mxu0 0.0
    %2914 = vmatpush1.msra.mxu0 0.0
    %2915 = vmatprep.subr.mxu0 0.0
    %2916 = vmatpush1.msra.mxu0 0.0
    %2917 = vmatprep.subr.mxu0 0.0
    %2918 = vmatpush1.msra.mxu0 0.0
    %2919 = vmatprep.subr.mxu0 0.0
    %2920 = vmatpush1.msra.mxu0 0.0
    %2921 = vmatprep.subr.mxu0 0.0
    %2922 = vmatpush1.msra.mxu0 0.0
    %2923 = vmatprep.subr.mxu0 0.0
    %2924 = vmatpush1.msra.mxu0 0.0
    %2925 = vmatprep.subr.mxu0 0.0
    %2926 = vmatpush1.msra.mxu0 0.0
    %2927 = vmatprep.subr.mxu0 0.0
    %2928 = vmatpush1.msra.mxu0 0.0
    %2929 = vmatprep.subr.mxu0 0.0
    %2930 = vmatpush1.msra.mxu0 0.0
    %2931 = vmatprep.subr.mxu0 0.0
    %2932 = vmatpush1.msra.mxu0 0.0
    %2933 = vmatprep.subr.mxu0 0.0
    %2934 = vmatpush1.msra.mxu0 0.0
    %2935 = vmatprep.subr.mxu0 0.0
    %2936 = vmatpush1.msra.mxu0 0.0
    %2937 = vmatprep.subr.mxu0 0.0
    %2938 = vmatpush1.msra.mxu0 0.0
    %2939 = vmatprep.subr.mxu0 0.0
    %2940 = vmatpush1.msra.mxu0 0.0
    %2941 = vmatprep.subr.mxu0 0.0
    %2942 = vmatpush1.msra.mxu0 0.0
    %2943 = vmatprep.subr.mxu0 0.0
    %2944 = vmatpush1.msra.mxu0 0.0
    %2945 = vmatprep.subr.mxu0 0.0
    %2946 = vmatpush1.msra.mxu0 0.0
    %2947 = vmatprep.subr.mxu0 0.0
    %2948 = vmatpush1.msra.mxu0 0.0
    %2949 = vmatprep.subr.mxu0 0.0
    %2950 = vmatpush1.msra.mxu0 0.0
    %2951 = vmatprep.subr.mxu0 0.0
    %2952 = vmatpush1.msra.mxu0 0.0
    %2953 = vmatprep.subr.mxu0 0.0
    %2954 = vmatpush1.msra.mxu0 0.0
    %2955 = vmatprep.subr.mxu0 0.0
    %2956 = vmatpush1.msra.mxu0 0.0
    %2957 = vmatprep.subr.mxu0 0.0
    %2958 = vmatpush1.msra.mxu0 0.0
    %2959 = vmatprep.subr.mxu0 0.0
    %2960 = vmatpush1.msra.mxu0 0.0
    %2961 = vmatprep.subr.mxu0 0.0
    %2962 = vmatpush1.msra.mxu0 0.0
    %2963 = vmatprep.subr.mxu0 0.0
    %2964 = vmatpush1.msra.mxu0 0.0
    %2965 = vmatprep.subr.mxu0 0.0
    %2966 = vmatpush1.msra.mxu0 0.0
    %2967 = vmatprep.subr.mxu0 0.0
    %2968 = vmatpush1.msra.mxu0 0.0
    %2969 = vmatprep.subr.mxu0 0.0
    %2970 = vmatpush1.msra.mxu0 0.0
    %2971 = vmatprep.subr.mxu0 0.0
    %2972 = vmatpush1.msra.mxu0 0.0
    %2973 = vmatprep.mubr.f32.mxu0 0.0
    %2974 = vmatmul.mubr.f32.gmra.mrb[0].mxu0 %v2907
    %v2975 = vpop.f32.mrb[0].mxu0
    %v2976 = vadd.f32 0.0, %v2975
    %v2977 = vpop.f32.mrb[0].mxu0
    %v2978 = vadd.f32 0.0, %v2977
    %2979 = vdwg.mxu0
    %2980 = vmatprep.subr.mxu0 %v2899
    %2981 = vmatpush1.msra.mxu0 %v2898
    %2982 = vmatprep.subr.mxu0 %v2903
    %2983 = vmatpush1.msra.mxu0 %v2902
    %2984 = vmatprep.subr.mxu0 0.0
    %2985 = vmatpush1.msra.mxu0 0.0
    %2986 = vmatprep.subr.mxu0 0.0
    %2987 = vmatpush1.msra.mxu0 0.0
    %2988 = vmatprep.subr.mxu0 0.0
    %2989 = vmatpush1.msra.mxu0 0.0
    %2990 = vmatprep.subr.mxu0 0.0
    %2991 = vmatpush1.msra.mxu0 0.0
    %2992 = vmatprep.subr.mxu0 0.0
    %2993 = vmatpush1.msra.mxu0 0.0
    %2994 = vmatprep.subr.mxu0 0.0
    %2995 = vmatpush1.msra.mxu0 0.0
    %2996 = vmatprep.subr.mxu0 0.0
    %2997 = vmatpush1.msra.mxu0 0.0
    %2998 = vmatprep.subr.mxu0 0.0
    %2999 = vmatpush1.msra.mxu0 0.0
    %3000 = vmatprep.subr.mxu0 0.0
    %3001 = vmatpush1.msra.mxu0 0.0
    %3002 = vmatprep.subr.mxu0 0.0
    %3003 = vmatpush1.msra.mxu0 0.0
    %3004 = vmatprep.subr.mxu0 0.0
    %3005 = vmatpush1.msra.mxu0 0.0
    %3006 = vmatprep.subr.mxu0 0.0
    %3007 = vmatpush1.msra.mxu0 0.0
    %3008 = vmatprep.subr.mxu0 0.0
    %3009 = vmatpush1.msra.mxu0 0.0
    %3010 = vmatprep.subr.mxu0 0.0
    %3011 = vmatpush1.msra.mxu0 0.0
    %3012 = vmatprep.subr.mxu0 0.0
    %3013 = vmatpush1.msra.mxu0 0.0
    %3014 = vmatprep.subr.mxu0 0.0
    %3015 = vmatpush1.msra.mxu0 0.0
    %3016 = vmatprep.subr.mxu0 0.0
    %3017 = vmatpush1.msra.mxu0 0.0
    %3018 = vmatprep.subr.mxu0 0.0
    %3019 = vmatpush1.msra.mxu0 0.0
    %3020 = vmatprep.subr.mxu0 0.0
    %3021 = vmatpush1.msra.mxu0 0.0
    %3022 = vmatprep.subr.mxu0 0.0
    %3023 = vmatpush1.msra.mxu0 0.0
    %3024 = vmatprep.subr.mxu0 0.0
    %3025 = vmatpush1.msra.mxu0 0.0
    %3026 = vmatprep.subr.mxu0 0.0
    %3027 = vmatpush1.msra.mxu0 0.0
    %3028 = vmatprep.subr.mxu0 0.0
    %3029 = vmatpush1.msra.mxu0 0.0
    %3030 = vmatprep.subr.mxu0 0.0
    %3031 = vmatpush1.msra.mxu0 0.0
    %3032 = vmatprep.subr.mxu0 0.0
    %3033 = vmatpush1.msra.mxu0 0.0
    %3034 = vmatprep.subr.mxu0 0.0
    %3035 = vmatpush1.msra.mxu0 0.0
    %3036 = vmatprep.subr.mxu0 0.0
    %3037 = vmatpush1.msra.mxu0 0.0
    %3038 = vmatprep.subr.mxu0 0.0
    %3039 = vmatpush1.msra.mxu0 0.0
    %3040 = vmatprep.subr.mxu0 0.0
    %3041 = vmatpush1.msra.mxu0 0.0
    %3042 = vmatprep.subr.mxu0 0.0
    %3043 = vmatpush1.msra.mxu0 0.0
    %3044 = vmatprep.mubr.f32.mxu0 0.0
    %3045 = vmatmul.mubr.f32.gmra.mrb[0].mxu0 %v2907
    %v3046 = vpop.f32.mrb[0].mxu0
    %v3047 = vadd.f32 0.0, %v3046
    %v3048 = vpop.f32.mrb[0].mxu0
    %v3049 = vadd.f32 0.0, %v3048
    %3050 = vdwg.mxu0
    %v3051 = vadd.f32 %v2888, %v2976
    %v3052 = vadd.f32 %v2889, %v2978
    %v3053 = vadd.f32 %v2890, %v3047
    %v3054 = vadd.f32 %v2891, %v3049
    %3055 = vrot.lane.b32.xlu0 %v2160, 127
    %v3056 = vpop.permute.xlu0 %3055
    %3057 = vrot.lane.b32.xlu0 %v2164, 127
    %v3058 = vpop.permute.xlu0 %3057
    %3059 = vrot.lane.b32.xlu0 %v2161, 127
    %v3060 = vpop.permute.xlu0 %3059
    %3061 = vrot.lane.b32.xlu0 %v2165, 127
    %v3062 = vpop.permute.xlu0 %3061
    %3063 = vrot.lane.b32.xlu0 %v2162, 127
    %v3064 = vpop.permute.xlu0 %3063
    %3065 = vrot.lane.b32.xlu0 %v2166, 127
    %v3066 = vpop.permute.xlu0 %3065
    %3067 = vrot.lane.b32.xlu0 %v2163, 127
    %v3068 = vpop.permute.xlu0 %3067
    %3069 = vrot.lane.b32.xlu0 %v2167, 127
    %v3070 = vpop.permute.xlu0 %3069
    %v3071 = vsel %vm1192, %v3064, %v3068
    %v3072 = vsel %vm1192, %v3066, %v3070
    %v3073 = vsel %vm1192, %v3060, %v3064
    %v3074 = vsel %vm1192, %v3062, %v3066
    %v3075 = vsel %vm1192, %v3056, %v3060
    %v3076 = vsel %vm1192, %v3058, %v3062
    %v3077 = vsel %vm1192, %v3068, %v3056
    %v3078 = vsel %vm1192, %v3070, %v3058
    %v3079 = vmul.f32 %v3075, %v1203
    %v3080 = vmul.f32 %v3073, %v1207
    %v3081 = vmul.f32 %v3071, %v1211
    %v3082 = vmul.f32 %v3077, %v1215
    %v3083 = vmul.f32 %v3076, %v1203
    %v3084 = vmul.f32 %v3074, %v1207
    %v3085 = vmul.f32 %v3072, %v1211
    %v3086 = vmul.f32 %v3078, %v1215
    %s3087 = scalar_lea.vmem %s4, 40
    %v3088 = vld [vmem:[%s3087] sm:$0xff]
    %v3090 = vsel %vm2235, %v3088, 0
    %3092 = vmatprep.subr.mxu0 %v3080
    %3093 = vmatpush1.msra.mxu0 %v3079
    %3094 = vmatprep.subr.mxu0 %v3084
    %3095 = vmatpush1.msra.mxu0 %v3083
    %3096 = vmatprep.subr.mxu0 0.0
    %3097 = vmatpush1.msra.mxu0 0.0
    %3098 = vmatprep.subr.mxu0 0.0
    %3099 = vmatpush1.msra.mxu0 0.0
    %3100 = vmatprep.subr.mxu0 0.0
    %3101 = vmatpush1.msra.mxu0 0.0
    %3102 = vmatprep.subr.mxu0 0.0
    %3103 = vmatpush1.msra.mxu0 0.0
    %3104 = vmatprep.subr.mxu0 0.0
    %3105 = vmatpush1.msra.mxu0 0.0
    %3106 = vmatprep.subr.mxu0 0.0
    %3107 = vmatpush1.msra.mxu0 0.0
    %3108 = vmatprep.subr.mxu0 0.0
    %3109 = vmatpush1.msra.mxu0 0.0
    %3110 = vmatprep.subr.mxu0 0.0
    %3111 = vmatpush1.msra.mxu0 0.0
    %3112 = vmatprep.subr.mxu0 0.0
    %3113 = vmatpush1.msra.mxu0 0.0
    %3114 = vmatprep.subr.mxu0 0.0
    %3115 = vmatpush1.msra.mxu0 0.0
    %3116 = vmatprep.subr.mxu0 0.0
    %3117 = vmatpush1.msra.mxu0 0.0
    %3118 = vmatprep.subr.mxu0 0.0
    %3119 = vmatpush1.msra.mxu0 0.0
    %3120 = vmatprep.subr.mxu0 0.0
    %3121 = vmatpush1.msra.mxu0 0.0
    %3122 = vmatprep.subr.mxu0 0.0
    %3123 = vmatpush1.msra.mxu0 0.0
    %3124 = vmatprep.subr.mxu0 0.0
    %3125 = vmatpush1.msra.mxu0 0.0
    %3126 = vmatprep.subr.mxu0 0.0
    %3127 = vmatpush1.msra.mxu0 0.0
    %3128 = vmatprep.subr.mxu0 0.0
    %3129 = vmatpush1.msra.mxu0 0.0
    %3130 = vmatprep.subr.mxu0 0.0
    %3131 = vmatpush1.msra.mxu0 0.0
    %3132 = vmatprep.subr.mxu0 0.0
    %3133 = vmatpush1.msra.mxu0 0.0
    %3134 = vmatprep.subr.mxu0 0.0
    %3135 = vmatpush1.msra.mxu0 0.0
    %3136 = vmatprep.subr.mxu0 0.0
    %3137 = vmatpush1.msra.mxu0 0.0
    %3138 = vmatprep.subr.mxu0 0.0
    %3139 = vmatpush1.msra.mxu0 0.0
    %3140 = vmatprep.subr.mxu0 0.0
    %3141 = vmatpush1.msra.mxu0 0.0
    %3142 = vmatprep.subr.mxu0 0.0
    %3143 = vmatpush1.msra.mxu0 0.0
    %3144 = vmatprep.subr.mxu0 0.0
    %3145 = vmatpush1.msra.mxu0 0.0
    %3146 = vmatprep.subr.mxu0 0.0
    %3147 = vmatpush1.msra.mxu0 0.0
    %3148 = vmatprep.subr.mxu0 0.0
    %3149 = vmatpush1.msra.mxu0 0.0
    %3150 = vmatprep.subr.mxu0 0.0
    %3151 = vmatpush1.msra.mxu0 0.0
    %3152 = vmatprep.subr.mxu0 0.0
    %3153 = vmatpush1.msra.mxu0 0.0
    %3154 = vmatprep.subr.mxu0 0.0
    %3155 = vmatpush1.msra.mxu0 0.0
    %3156 = vmatprep.mubr.f32.mxu0 0.0
    %3157 = vmatmul.mubr.f32.gmra.mrb[0].mxu0 %v3090
    %v3158 = vpop.f32.mrb[0].mxu0
    %v3159 = vadd.f32 0.0, %v3158
    %v3160 = vpop.f32.mrb[0].mxu0
    %v3161 = vadd.f32 0.0, %v3160
    %3162 = vdwg.mxu0
    %3163 = vmatprep.subr.mxu0 %v3082
    %3164 = vmatpush1.msra.mxu0 %v3081
    %3165 = vmatprep.subr.mxu0 %v3086
    %3166 = vmatpush1.msra.mxu0 %v3085
    %3167 = vmatprep.subr.mxu0 0.0
    %3168 = vmatpush1.msra.mxu0 0.0
    %3169 = vmatprep.subr.mxu0 0.0
    %3170 = vmatpush1.msra.mxu0 0.0
    %3171 = vmatprep.subr.mxu0 0.0
    %3172 = vmatpush1.msra.mxu0 0.0
    %3173 = vmatprep.subr.mxu0 0.0
    %3174 = vmatpush1.msra.mxu0 0.0
    %3175 = vmatprep.subr.mxu0 0.0
    %3176 = vmatpush1.msra.mxu0 0.0
    %3177 = vmatprep.subr.mxu0 0.0
    %3178 = vmatpush1.msra.mxu0 0.0
    %3179 = vmatprep.subr.mxu0 0.0
    %3180 = vmatpush1.msra.mxu0 0.0
    %3181 = vmatprep.subr.mxu0 0.0
    %3182 = vmatpush1.msra.mxu0 0.0
    %3183 = vmatprep.subr.mxu0 0.0
    %3184 = vmatpush1.msra.mxu0 0.0
    %3185 = vmatprep.subr.mxu0 0.0
    %3186 = vmatpush1.msra.mxu0 0.0
    %3187 = vmatprep.subr.mxu0 0.0
    %3188 = vmatpush1.msra.mxu0 0.0
    %3189 = vmatprep.subr.mxu0 0.0
    %3190 = vmatpush1.msra.mxu0 0.0
    %3191 = vmatprep.subr.mxu0 0.0
    %3192 = vmatpush1.msra.mxu0 0.0
    %3193 = vmatprep.subr.mxu0 0.0
    %3194 = vmatpush1.msra.mxu0 0.0
    %3195 = vmatprep.subr.mxu0 0.0
    %3196 = vmatpush1.msra.mxu0 0.0
    %3197 = vmatprep.subr.mxu0 0.0
    %3198 = vmatpush1.msra.mxu0 0.0
    %3199 = vmatprep.subr.mxu0 0.0
    %3200 = vmatpush1.msra.mxu0 0.0
    %3201 = vmatprep.subr.mxu0 0.0
    %3202 = vmatpush1.msra.mxu0 0.0
    %3203 = vmatprep.subr.mxu0 0.0
    %3204 = vmatpush1.msra.mxu0 0.0
    %3205 = vmatprep.subr.mxu0 0.0
    %3206 = vmatpush1.msra.mxu0 0.0
    %3207 = vmatprep.subr.mxu0 0.0
    %3208 = vmatpush1.msra.mxu0 0.0
    %3209 = vmatprep.subr.mxu0 0.0
    %3210 = vmatpush1.msra.mxu0 0.0
    %3211 = vmatprep.subr.mxu0 0.0
    %3212 = vmatpush1.msra.mxu0 0.0
    %3213 = vmatprep.subr.mxu0 0.0
    %3214 = vmatpush1.msra.mxu0 0.0
    %3215 = vmatprep.subr.mxu0 0.0
    %3216 = vmatpush1.msra.mxu0 0.0
    %3217 = vmatprep.subr.mxu0 0.0
    %3218 = vmatpush1.msra.mxu0 0.0
    %3219 = vmatprep.subr.mxu0 0.0
    %3220 = vmatpush1.msra.mxu0 0.0
    %3221 = vmatprep.subr.mxu0 0.0
    %3222 = vmatpush1.msra.mxu0 0.0
    %3223 = vmatprep.subr.mxu0 0.0
    %3224 = vmatpush1.msra.mxu0 0.0
    %3225 = vmatprep.subr.mxu0 0.0
    %3226 = vmatpush1.msra.mxu0 0.0
    %3227 = vmatprep.mubr.f32.mxu0 0.0
    %3228 = vmatmul.mubr.f32.gmra.mrb[0].mxu0 %v3090
    %v3229 = vpop.f32.mrb[0].mxu0
    %v3230 = vadd.f32 0.0, %v3229
    %v3231 = vpop.f32.mrb[0].mxu0
    %v3232 = vadd.f32 0.0, %v3231
    %3233 = vdwg.mxu0
    %v3234 = vadd.f32 %v3051, %v3159
    %v3235 = vadd.f32 %v3052, %v3161
    %v3236 = vadd.f32 %v3053, %v3230
    %v3237 = vadd.f32 %v3054, %v3232
    %3238 = vrot.lane.b32.xlu0 %v2160, 113
    %v3239 = vpop.permute.xlu0 %3238
    %3240 = vrot.lane.b32.xlu0 %v2164, 113
    %v3241 = vpop.permute.xlu0 %3240
    %3242 = vrot.lane.b32.xlu0 %v2161, 113
    %v3243 = vpop.permute.xlu0 %3242
    %3244 = vrot.lane.b32.xlu0 %v2165, 113
    %v3245 = vpop.permute.xlu0 %3244
    %3246 = vrot.lane.b32.xlu0 %v2162, 113
    %v3247 = vpop.permute.xlu0 %3246
    %3248 = vrot.lane.b32.xlu0 %v2166, 113
    %v3249 = vpop.permute.xlu0 %3248
    %3250 = vrot.lane.b32.xlu0 %v2163, 113
    %v3251 = vpop.permute.xlu0 %3250
    %3252 = vrot.lane.b32.xlu0 %v2167, 113
    %v3253 = vpop.permute.xlu0 %3252
    %v3254 = vsel %vm1415, %v3247, %v3251
    %v3255 = vsel %vm1415, %v3249, %v3253
    %v3256 = vsel %vm1415, %v3243, %v3247
    %v3257 = vsel %vm1415, %v3245, %v3249
    %v3258 = vsel %vm1415, %v3239, %v3243
    %v3259 = vsel %vm1415, %v3241, %v3245
    %v3260 = vsel %vm1415, %v3251, %v3239
    %v3261 = vsel %vm1415, %v3253, %v3241
    %v3262 = vmul.f32 %v3258, %v1426
    %v3263 = vmul.f32 %v3256, %v1430
    %v3264 = vmul.f32 %v3254, %v1434
    %v3265 = vmul.f32 %v3260, %v1438
    %v3266 = vmul.f32 %v3259, %v1426
    %v3267 = vmul.f32 %v3257, %v1430
    %v3268 = vmul.f32 %v3255, %v1434
    %v3269 = vmul.f32 %v3261, %v1438
    %s3270 = scalar_lea.vmem %s4, 48
    %v3271 = vld [vmem:[%s3270] sm:$0xff]
    %v3273 = vsel %vm2235, %v3271, 0
    %3275 = vmatprep.subr.mxu0 %v3263
    %3276 = vmatpush1.msra.mxu0 %v3262
    %3277 = vmatprep.subr.mxu0 %v3267
    %3278 = vmatpush1.msra.mxu0 %v3266
    %3279 = vmatprep.subr.mxu0 0.0
    %3280 = vmatpush1.msra.mxu0 0.0
    %3281 = vmatprep.subr.mxu0 0.0
    %3282 = vmatpush1.msra.mxu0 0.0
    %3283 = vmatprep.subr.mxu0 0.0
    %3284 = vmatpush1.msra.mxu0 0.0
    %3285 = vmatprep.subr.mxu0 0.0
    %3286 = vmatpush1.msra.mxu0 0.0
    %3287 = vmatprep.subr.mxu0 0.0
    %3288 = vmatpush1.msra.mxu0 0.0
    %3289 = vmatprep.subr.mxu0 0.0
    %3290 = vmatpush1.msra.mxu0 0.0
    %3291 = vmatprep.subr.mxu0 0.0
    %3292 = vmatpush1.msra.mxu0 0.0
    %3293 = vmatprep.subr.mxu0 0.0
    %3294 = vmatpush1.msra.mxu0 0.0
    %3295 = vmatprep.subr.mxu0 0.0
    %3296 = vmatpush1.msra.mxu0 0.0
    %3297 = vmatprep.subr.mxu0 0.0
    %3298 = vmatpush1.msra.mxu0 0.0
    %3299 = vmatprep.subr.mxu0 0.0
    %3300 = vmatpush1.msra.mxu0 0.0
    %3301 = vmatprep.subr.mxu0 0.0
    %3302 = vmatpush1.msra.mxu0 0.0
    %3303 = vmatprep.subr.mxu0 0.0
    %3304 = vmatpush1.msra.mxu0 0.0
    %3305 = vmatprep.subr.mxu0 0.0
    %3306 = vmatpush1.msra.mxu0 0.0
    %3307 = vmatprep.subr.mxu0 0.0
    %3308 = vmatpush1.msra.mxu0 0.0
    %3309 = vmatprep.subr.mxu0 0.0
    %3310 = vmatpush1.msra.mxu0 0.0
    %3311 = vmatprep.subr.mxu0 0.0
    %3312 = vmatpush1.msra.mxu0 0.0
    %3313 = vmatprep.subr.mxu0 0.0
    %3314 = vmatpush1.msra.mxu0 0.0
    %3315 = vmatprep.subr.mxu0 0.0
    %3316 = vmatpush1.msra.mxu0 0.0
    %3317 = vmatprep.subr.mxu0 0.0
    %3318 = vmatpush1.msra.mxu0 0.0
    %3319 = vmatprep.subr.mxu0 0.0
    %3320 = vmatpush1.msra.mxu0 0.0
    %3321 = vmatprep.subr.mxu0 0.0
    %3322 = vmatpush1.msra.mxu0 0.0
    %3323 = vmatprep.subr.mxu0 0.0
    %3324 = vmatpush1.msra.mxu0 0.0
    %3325 = vmatprep.subr.mxu0 0.0
    %3326 = vmatpush1.msra.mxu0 0.0
    %3327 = vmatprep.subr.mxu0 0.0
    %3328 = vmatpush1.msra.mxu0 0.0
    %3329 = vmatprep.subr.mxu0 0.0
    %3330 = vmatpush1.msra.mxu0 0.0
    %3331 = vmatprep.subr.mxu0 0.0
    %3332 = vmatpush1.msra.mxu0 0.0
    %3333 = vmatprep.subr.mxu0 0.0
    %3334 = vmatpush1.msra.mxu0 0.0
    %3335 = vmatprep.subr.mxu0 0.0
    %3336 = vmatpush1.msra.mxu0 0.0
    %3337 = vmatprep.subr.mxu0 0.0
    %3338 = vmatpush1.msra.mxu0 0.0
    %3339 = vmatprep.mubr.f32.mxu0 0.0
    %3340 = vmatmul.mubr.f32.gmra.mrb[0].mxu0 %v3273
    %v3341 = vpop.f32.mrb[0].mxu0
    %v3342 = vadd.f32 0.0, %v3341
    %v3343 = vpop.f32.mrb[0].mxu0
    %v3344 = vadd.f32 0.0, %v3343
    %3345 = vdwg.mxu0
    %3346 = vmatprep.subr.mxu0 %v3265
    %3347 = vmatpush1.msra.mxu0 %v3264
    %3348 = vmatprep.subr.mxu0 %v3269
    %3349 = vmatpush1.msra.mxu0 %v3268
    %3350 = vmatprep.subr.mxu0 0.0
    %3351 = vmatpush1.msra.mxu0 0.0
    %3352 = vmatprep.subr.mxu0 0.0
    %3353 = vmatpush1.msra.mxu0 0.0
    %3354 = vmatprep.subr.mxu0 0.0
    %3355 = vmatpush1.msra.mxu0 0.0
    %3356 = vmatprep.subr.mxu0 0.0
    %3357 = vmatpush1.msra.mxu0 0.0
    %3358 = vmatprep.subr.mxu0 0.0
    %3359 = vmatpush1.msra.mxu0 0.0
    %3360 = vmatprep.subr.mxu0 0.0
    %3361 = vmatpush1.msra.mxu0 0.0
    %3362 = vmatprep.subr.mxu0 0.0
    %3363 = vmatpush1.msra.mxu0 0.0
    %3364 = vmatprep.subr.mxu0 0.0
    %3365 = vmatpush1.msra.mxu0 0.0
    %3366 = vmatprep.subr.mxu0 0.0
    %3367 = vmatpush1.msra.mxu0 0.0
    %3368 = vmatprep.subr.mxu0 0.0
    %3369 = vmatpush1.msra.mxu0 0.0
    %3370 = vmatprep.subr.mxu0 0.0
    %3371 = vmatpush1.msra.mxu0 0.0
    %3372 = vmatprep.subr.mxu0 0.0
    %3373 = vmatpush1.msra.mxu0 0.0
    %3374 = vmatprep.subr.mxu0 0.0
    %3375 = vmatpush1.msra.mxu0 0.0
    %3376 = vmatprep.subr.mxu0 0.0
    %3377 = vmatpush1.msra.mxu0 0.0
    %3378 = vmatprep.subr.mxu0 0.0
    %3379 = vmatpush1.msra.mxu0 0.0
    %3380 = vmatprep.subr.mxu0 0.0
    %3381 = vmatpush1.msra.mxu0 0.0
    %3382 = vmatprep.subr.mxu0 0.0
    %3383 = vmatpush1.msra.mxu0 0.0
    %3384 = vmatprep.subr.mxu0 0.0
    %3385 = vmatpush1.msra.mxu0 0.0
    %3386 = vmatprep.subr.mxu0 0.0
    %3387 = vmatpush1.msra.mxu0 0.0
    %3388 = vmatprep.subr.mxu0 0.0
    %3389 = vmatpush1.msra.mxu0 0.0
    %3390 = vmatprep.subr.mxu0 0.0
    %3391 = vmatpush1.msra.mxu0 0.0
    %3392 = vmatprep.subr.mxu0 0.0
    %3393 = vmatpush1.msra.mxu0 0.0
    %3394 = vmatprep.subr.mxu0 0.0
    %3395 = vmatpush1.msra.mxu0 0.0
    %3396 = vmatprep.subr.mxu0 0.0
    %3397 = vmatpush1.msra.mxu0 0.0
    %3398 = vmatprep.subr.mxu0 0.0
    %3399 = vmatpush1.msra.mxu0 0.0
    %3400 = vmatprep.subr.mxu0 0.0
    %3401 = vmatpush1.msra.mxu0 0.0
    %3402 = vmatprep.subr.mxu0 0.0
    %3403 = vmatpush1.msra.mxu0 0.0
    %3404 = vmatprep.subr.mxu0 0.0
    %3405 = vmatpush1.msra.mxu0 0.0
    %3406 = vmatprep.subr.mxu0 0.0
    %3407 = vmatpush1.msra.mxu0 0.0
    %3408 = vmatprep.subr.mxu0 0.0
    %3409 = vmatpush1.msra.mxu0 0.0
    %3410 = vmatprep.mubr.f32.mxu0 0.0
    %3411 = vmatmul.mubr.f32.gmra.mrb[0].mxu0 %v3273
    %v3412 = vpop.f32.mrb[0].mxu0
    %v3413 = vadd.f32 0.0, %v3412
    %v3414 = vpop.f32.mrb[0].mxu0
    %v3415 = vadd.f32 0.0, %v3414
    %3416 = vdwg.mxu0
    %v3417 = vadd.f32 %v3234, %v3342
    %v3418 = vadd.f32 %v3235, %v3344
    %v3419 = vadd.f32 %v3236, %v3413
    %v3420 = vadd.f32 %v3237, %v3415
    %3421 = vrot.lane.b32.xlu0 %v2160, 112
    %v3422 = vpop.permute.xlu0 %3421
    %3423 = vrot.lane.b32.xlu0 %v2164, 112
    %v3424 = vpop.permute.xlu0 %3423
    %3425 = vrot.lane.b32.xlu0 %v2161, 112
    %v3426 = vpop.permute.xlu0 %3425
    %3427 = vrot.lane.b32.xlu0 %v2165, 112
    %v3428 = vpop.permute.xlu0 %3427
    %3429 = vrot.lane.b32.xlu0 %v2162, 112
    %v3430 = vpop.permute.xlu0 %3429
    %3431 = vrot.lane.b32.xlu0 %v2166, 112
    %v3432 = vpop.permute.xlu0 %3431
    %3433 = vrot.lane.b32.xlu0 %v2163, 112
    %v3434 = vpop.permute.xlu0 %3433
    %3435 = vrot.lane.b32.xlu0 %v2167, 112
    %v3436 = vpop.permute.xlu0 %3435
    %v3437 = vsel %vm1638, %v3430, %v3434
    %v3438 = vsel %vm1638, %v3432, %v3436
    %v3439 = vsel %vm1638, %v3426, %v3430
    %v3440 = vsel %vm1638, %v3428, %v3432
    %v3441 = vsel %vm1638, %v3422, %v3426
    %v3442 = vsel %vm1638, %v3424, %v3428
    %v3443 = vsel %vm1638, %v3434, %v3422
    %v3444 = vsel %vm1638, %v3436, %v3424
    %v3445 = vmul.f32 %v3441, %v1649
    %v3446 = vmul.f32 %v3439, %v1653
    %v3447 = vmul.f32 %v3437, %v1657
    %v3448 = vmul.f32 %v3443, %v1661
    %v3449 = vmul.f32 %v3442, %v1649
    %v3450 = vmul.f32 %v3440, %v1653
    %v3451 = vmul.f32 %v3438, %v1657
    %v3452 = vmul.f32 %v3444, %v1661
    %s3453 = scalar_lea.vmem %s4, 56
    %v3454 = vld [vmem:[%s3453] sm:$0xff]
    %v3456 = vsel %vm2235, %v3454, 0
    %3458 = vmatprep.subr.mxu0 %v3446
    %3459 = vmatpush1.msra.mxu0 %v3445
    %3460 = vmatprep.subr.mxu0 %v3450
    %3461 = vmatpush1.msra.mxu0 %v3449
    %3462 = vmatprep.subr.mxu0 0.0
    %3463 = vmatpush1.msra.mxu0 0.0
    %3464 = vmatprep.subr.mxu0 0.0
    %3465 = vmatpush1.msra.mxu0 0.0
    %3466 = vmatprep.subr.mxu0 0.0
    %3467 = vmatpush1.msra.mxu0 0.0
    %3468 = vmatprep.subr.mxu0 0.0
    %3469 = vmatpush1.msra.mxu0 0.0
    %3470 = vmatprep.subr.mxu0 0.0
    %3471 = vmatpush1.msra.mxu0 0.0
    %3472 = vmatprep.subr.mxu0 0.0
    %3473 = vmatpush1.msra.mxu0 0.0
    %3474 = vmatprep.subr.mxu0 0.0
    %3475 = vmatpush1.msra.mxu0 0.0
    %3476 = vmatprep.subr.mxu0 0.0
    %3477 = vmatpush1.msra.mxu0 0.0
    %3478 = vmatprep.subr.mxu0 0.0
    %3479 = vmatpush1.msra.mxu0 0.0
    %3480 = vmatprep.subr.mxu0 0.0
    %3481 = vmatpush1.msra.mxu0 0.0
    %3482 = vmatprep.subr.mxu0 0.0
    %3483 = vmatpush1.msra.mxu0 0.0
    %3484 = vmatprep.subr.mxu0 0.0
    %3485 = vmatpush1.msra.mxu0 0.0
    %3486 = vmatprep.subr.mxu0 0.0
    %3487 = vmatpush1.msra.mxu0 0.0
    %3488 = vmatprep.subr.mxu0 0.0
    %3489 = vmatpush1.msra.mxu0 0.0
    %3490 = vmatprep.subr.mxu0 0.0
    %3491 = vmatpush1.msra.mxu0 0.0
    %3492 = vmatprep.subr.mxu0 0.0
    %3493 = vmatpush1.msra.mxu0 0.0
    %3494 = vmatprep.subr.mxu0 0.0
    %3495 = vmatpush1.msra.mxu0 0.0
    %3496 = vmatprep.subr.mxu0 0.0
    %3497 = vmatpush1.msra.mxu0 0.0
    %3498 = vmatprep.subr.mxu0 0.0
    %3499 = vmatpush1.msra.mxu0 0.0
    %3500 = vmatprep.subr.mxu0 0.0
    %3501 = vmatpush1.msra.mxu0 0.0
    %3502 = vmatprep.subr.mxu0 0.0
    %3503 = vmatpush1.msra.mxu0 0.0
    %3504 = vmatprep.subr.mxu0 0.0
    %3505 = vmatpush1.msra.mxu0 0.0
    %3506 = vmatprep.subr.mxu0 0.0
    %3507 = vmatpush1.msra.mxu0 0.0
    %3508 = vmatprep.subr.mxu0 0.0
    %3509 = vmatpush1.msra.mxu0 0.0
    %3510 = vmatprep.subr.mxu0 0.0
    %3511 = vmatpush1.msra.mxu0 0.0
    %3512 = vmatprep.subr.mxu0 0.0
    %3513 = vmatpush1.msra.mxu0 0.0
    %3514 = vmatprep.subr.mxu0 0.0
    %3515 = vmatpush1.msra.mxu0 0.0
    %3516 = vmatprep.subr.mxu0 0.0
    %3517 = vmatpush1.msra.mxu0 0.0
    %3518 = vmatprep.subr.mxu0 0.0
    %3519 = vmatpush1.msra.mxu0 0.0
    %3520 = vmatprep.subr.mxu0 0.0
    %3521 = vmatpush1.msra.mxu0 0.0
    %3522 = vmatprep.mubr.f32.mxu0 0.0
    %3523 = vmatmul.mubr.f32.gmra.mrb[0].mxu0 %v3456
    %v3524 = vpop.f32.mrb[0].mxu0
    %v3525 = vadd.f32 0.0, %v3524
    %v3526 = vpop.f32.mrb[0].mxu0
    %v3527 = vadd.f32 0.0, %v3526
    %3528 = vdwg.mxu0
    %3529 = vmatprep.subr.mxu0 %v3448
    %3530 = vmatpush1.msra.mxu0 %v3447
    %3531 = vmatprep.subr.mxu0 %v3452
    %3532 = vmatpush1.msra.mxu0 %v3451
    %3533 = vmatprep.subr.mxu0 0.0
    %3534 = vmatpush1.msra.mxu0 0.0
    %3535 = vmatprep.subr.mxu0 0.0
    %3536 = vmatpush1.msra.mxu0 0.0
    %3537 = vmatprep.subr.mxu0 0.0
    %3538 = vmatpush1.msra.mxu0 0.0
    %3539 = vmatprep.subr.mxu0 0.0
    %3540 = vmatpush1.msra.mxu0 0.0
    %3541 = vmatprep.subr.mxu0 0.0
    %3542 = vmatpush1.msra.mxu0 0.0
    %3543 = vmatprep.subr.mxu0 0.0
    %3544 = vmatpush1.msra.mxu0 0.0
    %3545 = vmatprep.subr.mxu0 0.0
    %3546 = vmatpush1.msra.mxu0 0.0
    %3547 = vmatprep.subr.mxu0 0.0
    %3548 = vmatpush1.msra.mxu0 0.0
    %3549 = vmatprep.subr.mxu0 0.0
    %3550 = vmatpush1.msra.mxu0 0.0
    %3551 = vmatprep.subr.mxu0 0.0
    %3552 = vmatpush1.msra.mxu0 0.0
    %3553 = vmatprep.subr.mxu0 0.0
    %3554 = vmatpush1.msra.mxu0 0.0
    %3555 = vmatprep.subr.mxu0 0.0
    %3556 = vmatpush1.msra.mxu0 0.0
    %3557 = vmatprep.subr.mxu0 0.0
    %3558 = vmatpush1.msra.mxu0 0.0
    %3559 = vmatprep.subr.mxu0 0.0
    %3560 = vmatpush1.msra.mxu0 0.0
    %3561 = vmatprep.subr.mxu0 0.0
    %3562 = vmatpush1.msra.mxu0 0.0
    %3563 = vmatprep.subr.mxu0 0.0
    %3564 = vmatpush1.msra.mxu0 0.0
    %3565 = vmatprep.subr.mxu0 0.0
    %3566 = vmatpush1.msra.mxu0 0.0
    %3567 = vmatprep.subr.mxu0 0.0
    %3568 = vmatpush1.msra.mxu0 0.0
    %3569 = vmatprep.subr.mxu0 0.0
    %3570 = vmatpush1.msra.mxu0 0.0
    %3571 = vmatprep.subr.mxu0 0.0
    %3572 = vmatpush1.msra.mxu0 0.0
    %3573 = vmatprep.subr.mxu0 0.0
    %3574 = vmatpush1.msra.mxu0 0.0
    %3575 = vmatprep.subr.mxu0 0.0
    %3576 = vmatpush1.msra.mxu0 0.0
    %3577 = vmatprep.subr.mxu0 0.0
    %3578 = vmatpush1.msra.mxu0 0.0
    %3579 = vmatprep.subr.mxu0 0.0
    %3580 = vmatpush1.msra.mxu0 0.0
    %3581 = vmatprep.subr.mxu0 0.0
    %3582 = vmatpush1.msra.mxu0 0.0
    %3583 = vmatprep.subr.mxu0 0.0
    %3584 = vmatpush1.msra.mxu0 0.0
    %3585 = vmatprep.subr.mxu0 0.0
    %3586 = vmatpush1.msra.mxu0 0.0
    %3587 = vmatprep.subr.mxu0 0.0
    %3588 = vmatpush1.msra.mxu0 0.0
    %3589 = vmatprep.subr.mxu0 0.0
    %3590 = vmatpush1.msra.mxu0 0.0
    %3591 = vmatprep.subr.mxu0 0.0
    %3592 = vmatpush1.msra.mxu0 0.0
    %3593 = vmatprep.mubr.f32.mxu0 0.0
    %3594 = vmatmul.mubr.f32.gmra.mrb[0].mxu0 %v3456
    %v3595 = vpop.f32.mrb[0].mxu0
    %v3596 = vadd.f32 0.0, %v3595
    %v3597 = vpop.f32.mrb[0].mxu0
    %v3598 = vadd.f32 0.0, %v3597
    %3599 = vdwg.mxu0
    %v3600 = vadd.f32 %v3417, %v3525
    %v3601 = vadd.f32 %v3418, %v3527
    %v3602 = vadd.f32 %v3419, %v3596
    %v3603 = vadd.f32 %v3420, %v3598
    %3604 = vrot.lane.b32.xlu0 %v2160, 111
    %v3605 = vpop.permute.xlu0 %3604
    %3606 = vrot.lane.b32.xlu0 %v2164, 111
    %v3607 = vpop.permute.xlu0 %3606
    %3608 = vrot.lane.b32.xlu0 %v2161, 111
    %v3609 = vpop.permute.xlu0 %3608
    %3610 = vrot.lane.b32.xlu0 %v2165, 111
    %v3611 = vpop.permute.xlu0 %3610
    %3612 = vrot.lane.b32.xlu0 %v2162, 111
    %v3613 = vpop.permute.xlu0 %3612
    %3614 = vrot.lane.b32.xlu0 %v2166, 111
    %v3615 = vpop.permute.xlu0 %3614
    %3616 = vrot.lane.b32.xlu0 %v2163, 111
    %v3617 = vpop.permute.xlu0 %3616
    %3618 = vrot.lane.b32.xlu0 %v2167, 111
    %v3619 = vpop.permute.xlu0 %3618
    %v3620 = vsel %vm1861, %v3613, %v3617
    %v3621 = vsel %vm1861, %v3615, %v3619
    %v3622 = vsel %vm1861, %v3609, %v3613
    %v3623 = vsel %vm1861, %v3611, %v3615
    %v3624 = vsel %vm1861, %v3605, %v3609
    %v3625 = vsel %vm1861, %v3607, %v3611
    %v3626 = vsel %vm1861, %v3617, %v3605
    %v3627 = vsel %vm1861, %v3619, %v3607
    %v3628 = vmul.f32 %v3624, %v1872
    %v3629 = vmul.f32 %v3622, %v1876
    %v3630 = vmul.f32 %v3620, %v1880
    %v3631 = vmul.f32 %v3626, %v1884
    %v3632 = vmul.f32 %v3625, %v1872
    %v3633 = vmul.f32 %v3623, %v1876
    %v3634 = vmul.f32 %v3621, %v1880
    %v3635 = vmul.f32 %v3627, %v1884
    %s3636 = scalar_lea.vmem %s4, 64
    %v3637 = vld [vmem:[%s3636] sm:$0xff]
    %v3639 = vsel %vm2235, %v3637, 0
    %3641 = vmatprep.subr.mxu0 %v3629
    %3642 = vmatpush1.msra.mxu0 %v3628
    %3643 = vmatprep.subr.mxu0 %v3633
    %3644 = vmatpush1.msra.mxu0 %v3632
    %3645 = vmatprep.subr.mxu0 0.0
    %3646 = vmatpush1.msra.mxu0 0.0
    %3647 = vmatprep.subr.mxu0 0.0
    %3648 = vmatpush1.msra.mxu0 0.0
    %3649 = vmatprep.subr.mxu0 0.0
    %3650 = vmatpush1.msra.mxu0 0.0
    %3651 = vmatprep.subr.mxu0 0.0
    %3652 = vmatpush1.msra.mxu0 0.0
    %3653 = vmatprep.subr.mxu0 0.0
    %3654 = vmatpush1.msra.mxu0 0.0
    %3655 = vmatprep.subr.mxu0 0.0
    %3656 = vmatpush1.msra.mxu0 0.0
    %3657 = vmatprep.subr.mxu0 0.0
    %3658 = vmatpush1.msra.mxu0 0.0
    %3659 = vmatprep.subr.mxu0 0.0
    %3660 = vmatpush1.msra.mxu0 0.0
    %3661 = vmatprep.subr.mxu0 0.0
    %3662 = vmatpush1.msra.mxu0 0.0
    %3663 = vmatprep.subr.mxu0 0.0
    %3664 = vmatpush1.msra.mxu0 0.0
    %3665 = vmatprep.subr.mxu0 0.0
    %3666 = vmatpush1.msra.mxu0 0.0
    %3667 = vmatprep.subr.mxu0 0.0
    %3668 = vmatpush1.msra.mxu0 0.0
    %3669 = vmatprep.subr.mxu0 0.0
    %3670 = vmatpush1.msra.mxu0 0.0
    %3671 = vmatprep.subr.mxu0 0.0
    %3672 = vmatpush1.msra.mxu0 0.0
    %3673 = vmatprep.subr.mxu0 0.0
    %3674 = vmatpush1.msra.mxu0 0.0
    %3675 = vmatprep.subr.mxu0 0.0
    %3676 = vmatpush1.msra.mxu0 0.0
    %3677 = vmatprep.subr.mxu0 0.0
    %3678 = vmatpush1.msra.mxu0 0.0
    %3679 = vmatprep.subr.mxu0 0.0
    %3680 = vmatpush1.msra.mxu0 0.0
    %3681 = vmatprep.subr.mxu0 0.0
    %3682 = vmatpush1.msra.mxu0 0.0
    %3683 = vmatprep.subr.mxu0 0.0
    %3684 = vmatpush1.msra.mxu0 0.0
    %3685 = vmatprep.subr.mxu0 0.0
    %3686 = vmatpush1.msra.mxu0 0.0
    %3687 = vmatprep.subr.mxu0 0.0
    %3688 = vmatpush1.msra.mxu0 0.0
    %3689 = vmatprep.subr.mxu0 0.0
    %3690 = vmatpush1.msra.mxu0 0.0
    %3691 = vmatprep.subr.mxu0 0.0
    %3692 = vmatpush1.msra.mxu0 0.0
    %3693 = vmatprep.subr.mxu0 0.0
    %3694 = vmatpush1.msra.mxu0 0.0
    %3695 = vmatprep.subr.mxu0 0.0
    %3696 = vmatpush1.msra.mxu0 0.0
    %3697 = vmatprep.subr.mxu0 0.0
    %3698 = vmatpush1.msra.mxu0 0.0
    %3699 = vmatprep.subr.mxu0 0.0
    %3700 = vmatpush1.msra.mxu0 0.0
    %3701 = vmatprep.subr.mxu0 0.0
    %3702 = vmatpush1.msra.mxu0 0.0
    %3703 = vmatprep.subr.mxu0 0.0
    %3704 = vmatpush1.msra.mxu0 0.0
    %3705 = vmatprep.mubr.f32.mxu0 0.0
    %3706 = vmatmul.mubr.f32.gmra.mrb[0].mxu0 %v3639
    %v3707 = vpop.f32.mrb[0].mxu0
    %v3708 = vadd.f32 0.0, %v3707
    %v3709 = vpop.f32.mrb[0].mxu0
    %v3710 = vadd.f32 0.0, %v3709
    %3711 = vdwg.mxu0
    %3712 = vmatprep.subr.mxu0 %v3631
    %3713 = vmatpush1.msra.mxu0 %v3630
    %3714 = vmatprep.subr.mxu0 %v3635
    %3715 = vmatpush1.msra.mxu0 %v3634
    %3716 = vmatprep.subr.mxu0 0.0
    %3717 = vmatpush1.msra.mxu0 0.0
    %3718 = vmatprep.subr.mxu0 0.0
    %3719 = vmatpush1.msra.mxu0 0.0
    %3720 = vmatprep.subr.mxu0 0.0
    %3721 = vmatpush1.msra.mxu0 0.0
    %3722 = vmatprep.subr.mxu0 0.0
    %3723 = vmatpush1.msra.mxu0 0.0
    %3724 = vmatprep.subr.mxu0 0.0
    %3725 = vmatpush1.msra.mxu0 0.0
    %3726 = vmatprep.subr.mxu0 0.0
    %3727 = vmatpush1.msra.mxu0 0.0
    %3728 = vmatprep.subr.mxu0 0.0
    %3729 = vmatpush1.msra.mxu0 0.0
    %3730 = vmatprep.subr.mxu0 0.0
    %3731 = vmatpush1.msra.mxu0 0.0
    %3732 = vmatprep.subr.mxu0 0.0
    %3733 = vmatpush1.msra.mxu0 0.0
    %3734 = vmatprep.subr.mxu0 0.0
    %3735 = vmatpush1.msra.mxu0 0.0
    %3736 = vmatprep.subr.mxu0 0.0
    %3737 = vmatpush1.msra.mxu0 0.0
    %3738 = vmatprep.subr.mxu0 0.0
    %3739 = vmatpush1.msra.mxu0 0.0
    %3740 = vmatprep.subr.mxu0 0.0
    %3741 = vmatpush1.msra.mxu0 0.0
    %3742 = vmatprep.subr.mxu0 0.0
    %3743 = vmatpush1.msra.mxu0 0.0
    %3744 = vmatprep.subr.mxu0 0.0
    %3745 = vmatpush1.msra.mxu0 0.0
    %3746 = vmatprep.subr.mxu0 0.0
    %3747 = vmatpush1.msra.mxu0 0.0
    %3748 = vmatprep.subr.mxu0 0.0
    %3749 = vmatpush1.msra.mxu0 0.0
    %3750 = vmatprep.subr.mxu0 0.0
    %3751 = vmatpush1.msra.mxu0 0.0
    %3752 = vmatprep.subr.mxu0 0.0
    %3753 = vmatpush1.msra.mxu0 0.0
    %3754 = vmatprep.subr.mxu0 0.0
    %3755 = vmatpush1.msra.mxu0 0.0
    %3756 = vmatprep.subr.mxu0 0.0
    %3757 = vmatpush1.msra.mxu0 0.0
    %3758 = vmatprep.subr.mxu0 0.0
    %3759 = vmatpush1.msra.mxu0 0.0
    %3760 = vmatprep.subr.mxu0 0.0
    %3761 = vmatpush1.msra.mxu0 0.0
    %3762 = vmatprep.subr.mxu0 0.0
    %3763 = vmatpush1.msra.mxu0 0.0
    %3764 = vmatprep.subr.mxu0 0.0
    %3765 = vmatpush1.msra.mxu0 0.0
    %3766 = vmatprep.subr.mxu0 0.0
    %3767 = vmatpush1.msra.mxu0 0.0
    %3768 = vmatprep.subr.mxu0 0.0
    %3769 = vmatpush1.msra.mxu0 0.0
    %3770 = vmatprep.subr.mxu0 0.0
    %3771 = vmatpush1.msra.mxu0 0.0
    %3772 = vmatprep.subr.mxu0 0.0
    %3773 = vmatpush1.msra.mxu0 0.0
    %3774 = vmatprep.subr.mxu0 0.0
    %3775 = vmatpush1.msra.mxu0 0.0
    %3776 = vmatprep.mubr.f32.mxu0 0.0
    %3777 = vmatmul.mubr.f32.gmra.mrb[0].mxu0 %v3639
    %v3778 = vpop.f32.mrb[0].mxu0
    %v3779 = vadd.f32 0.0, %v3778
    %v3780 = vpop.f32.mrb[0].mxu0
    %v3781 = vadd.f32 0.0, %v3780
    %3782 = vdwg.mxu0
    %v3783 = vadd.f32 %v3600, %v3708
    %v3784 = vadd.f32 %v3601, %v3710
    %v3785 = vadd.f32 %v3602, %v3779
    %v3786 = vadd.f32 %v3603, %v3781
    %v3787 = vld [vmem:[%s13] sm:$0xff]
    %v3788 = vld [vmem:[%s13 + $0x8] sm:$0xff]
    %v3789 = vld [vmem:[%s13 + $0x10] sm:$0xff]
    %v3790 = vld [vmem:[%s13 + $0x18] sm:$0xff]
    %v3791 = vld [vmem:[%s13 + $0x20] sm:$0xff]
    %v3792 = vld [vmem:[%s13 + $0x28] sm:$0xff]
    %v3793 = vld [vmem:[%s13 + $0x30] sm:$0xff]
    %v3794 = vld [vmem:[%s13 + $0x38] sm:$0xff]
    %v3795 = vld [vmem:[%s13 + $0x40] sm:$0xff]
    %v3796 = vld [vmem:[%s13 + $0x48] sm:$0xff]
    %v3797 = vld [vmem:[%s13 + $0x50] sm:$0xff]
    %v3798 = vld [vmem:[%s13 + $0x58] sm:$0xff]
    %v3799 = vld [vmem:[%s13 + $0x60] sm:$0xff]
    %v3800 = vld [vmem:[%s13 + $0x68] sm:$0xff]
    %v3801 = vld [vmem:[%s13 + $0x70] sm:$0xff]
    %v3802 = vld [vmem:[%s13 + $0x78] sm:$0xff]
    %v3803 = vld [vmem:[%s13 + $0x80] sm:$0xff]
    %v3804 = vld [vmem:[%s13 + $0x88] sm:$0xff]
    %v3805 = vld [vmem:[%s13 + $0x90] sm:$0xff]
    %v3806 = vld [vmem:[%s13 + $0x98] sm:$0xff]
    %v3807 = vld [vmem:[%s13 + $0xa0] sm:$0xff]
    %v3808 = vld [vmem:[%s13 + $0xa8] sm:$0xff]
    %v3809 = vld [vmem:[%s13 + $0xb0] sm:$0xff]
    %v3810 = vld [vmem:[%s13 + $0xb8] sm:$0xff]
    %v3811 = vld [vmem:[%s13 + $0xc0] sm:$0xff]
    %v3812 = vld [vmem:[%s13 + $0xc8] sm:$0xff]
    %v3813 = vld [vmem:[%s13 + $0xd0] sm:$0xff]
    %v3814 = vld [vmem:[%s13 + $0xd8] sm:$0xff]
    %v3815 = vld [vmem:[%s13 + $0xe0] sm:$0xff]
    %v3816 = vld [vmem:[%s13 + $0xe8] sm:$0xff]
    %v3817 = vld [vmem:[%s13 + $0xf0] sm:$0xff]
    %v3818 = vld [vmem:[%s13 + $0xf8] sm:$0xff]
    %v3819 = vld [vmem:[%s13 + $0x100] sm:$0xff]
    %v3820 = vld [vmem:[%s13 + $0x108] sm:$0xff]
    %v3821 = vld [vmem:[%s13 + $0x110] sm:$0xff]
    %v3822 = vld [vmem:[%s13 + $0x118] sm:$0xff]
    %v3823 = vld [vmem:[%s13 + $0x120] sm:$0xff]
    %v3824 = vld [vmem:[%s13 + $0x128] sm:$0xff]
    %v3825 = vld [vmem:[%s13 + $0x130] sm:$0xff]
    %v3826 = vld [vmem:[%s13 + $0x138] sm:$0xff]
    %v3827 = vld [vmem:[%s13 + $0x140] sm:$0xff]
    %v3828 = vld [vmem:[%s13 + $0x148] sm:$0xff]
    %v3829 = vld [vmem:[%s13 + $0x150] sm:$0xff]
    %v3830 = vld [vmem:[%s13 + $0x158] sm:$0xff]
    %v3831 = vld [vmem:[%s13 + $0x160] sm:$0xff]
    %v3832 = vld [vmem:[%s13 + $0x168] sm:$0xff]
    %v3833 = vld [vmem:[%s13 + $0x170] sm:$0xff]
    %v3834 = vld [vmem:[%s13 + $0x178] sm:$0xff]
    %v3835 = vld [vmem:[%s13 + $0x180] sm:$0xff]
    %v3836 = vld [vmem:[%s13 + $0x188] sm:$0xff]
    %v3837 = vld [vmem:[%s13 + $0x190] sm:$0xff]
    %v3838 = vld [vmem:[%s13 + $0x198] sm:$0xff]
    %v3839 = vld [vmem:[%s13 + $0x1a0] sm:$0xff]
    %v3840 = vld [vmem:[%s13 + $0x1a8] sm:$0xff]
    %v3841 = vld [vmem:[%s13 + $0x1b0] sm:$0xff]
    %v3842 = vld [vmem:[%s13 + $0x1b8] sm:$0xff]
    %v3843 = vld [vmem:[%s13 + $0x1c0] sm:$0xff]
    %v3844 = vld [vmem:[%s13 + $0x1c8] sm:$0xff]
    %v3845 = vld [vmem:[%s13 + $0x1d0] sm:$0xff]
    %v3846 = vld [vmem:[%s13 + $0x1d8] sm:$0xff]
    %v3847 = vld [vmem:[%s13 + $0x1e0] sm:$0xff]
    %v3848 = vld [vmem:[%s13 + $0x1e8] sm:$0xff]
    %v3849 = vld [vmem:[%s13 + $0x1f0] sm:$0xff]
    %v3850 = vld [vmem:[%s13 + $0x1f8] sm:$0xff]
    %3851 = vmatprep.subr.mxu0 0.0
    %3852 = vmatpush1.msra.mxu0 %v3787
    %3853 = vmatprep.subr.mxu0 0.0
    %3854 = vmatpush1.msra.mxu0 %v3788
    %3855 = vmatprep.subr.mxu0 0.0
    %3856 = vmatpush1.msra.mxu0 %v3789
    %3857 = vmatprep.subr.mxu0 0.0
    %3858 = vmatpush1.msra.mxu0 %v3790
    %3859 = vmatprep.subr.mxu0 0.0
    %3860 = vmatpush1.msra.mxu0 %v3791
    %3861 = vmatprep.subr.mxu0 0.0
    %3862 = vmatpush1.msra.mxu0 %v3792
    %3863 = vmatprep.subr.mxu0 0.0
    %3864 = vmatpush1.msra.mxu0 %v3793
    %3865 = vmatprep.subr.mxu0 0.0
    %3866 = vmatpush1.msra.mxu0 %v3794
    %3867 = vmatprep.subr.mxu0 0.0
    %3868 = vmatpush1.msra.mxu0 %v3795
    %3869 = vmatprep.subr.mxu0 0.0
    %3870 = vmatpush1.msra.mxu0 %v3796
    %3871 = vmatprep.subr.mxu0 0.0
    %3872 = vmatpush1.msra.mxu0 %v3797
    %3873 = vmatprep.subr.mxu0 0.0
    %3874 = vmatpush1.msra.mxu0 %v3798
    %3875 = vmatprep.subr.mxu0 0.0
    %3876 = vmatpush1.msra.mxu0 %v3799
    %3877 = vmatprep.subr.mxu0 0.0
    %3878 = vmatpush1.msra.mxu0 %v3800
    %3879 = vmatprep.subr.mxu0 0.0
    %3880 = vmatpush1.msra.mxu0 %v3801
    %3881 = vmatprep.subr.mxu0 0.0
    %3882 = vmatpush1.msra.mxu0 %v3802
    %3883 = vmatprep.subr.mxu0 0.0
    %3884 = vmatpush1.msra.mxu0 %v3803
    %3885 = vmatprep.subr.mxu0 0.0
    %3886 = vmatpush1.msra.mxu0 %v3804
    %3887 = vmatprep.subr.mxu0 0.0
    %3888 = vmatpush1.msra.mxu0 %v3805
    %3889 = vmatprep.subr.mxu0 0.0
    %3890 = vmatpush1.msra.mxu0 %v3806
    %3891 = vmatprep.subr.mxu0 0.0
    %3892 = vmatpush1.msra.mxu0 %v3807
    %3893 = vmatprep.subr.mxu0 0.0
    %3894 = vmatpush1.msra.mxu0 %v3808
    %3895 = vmatprep.subr.mxu0 0.0
    %3896 = vmatpush1.msra.mxu0 %v3809
    %3897 = vmatprep.subr.mxu0 0.0
    %3898 = vmatpush1.msra.mxu0 %v3810
    %3899 = vmatprep.subr.mxu0 0.0
    %3900 = vmatpush1.msra.mxu0 %v3811
    %3901 = vmatprep.subr.mxu0 0.0
    %3902 = vmatpush1.msra.mxu0 %v3812
    %3903 = vmatprep.subr.mxu0 0.0
    %3904 = vmatpush1.msra.mxu0 %v3813
    %3905 = vmatprep.subr.mxu0 0.0
    %3906 = vmatpush1.msra.mxu0 %v3814
    %3907 = vmatprep.subr.mxu0 0.0
    %3908 = vmatpush1.msra.mxu0 %v3815
    %3909 = vmatprep.subr.mxu0 0.0
    %3910 = vmatpush1.msra.mxu0 %v3816
    %3911 = vmatprep.subr.mxu0 0.0
    %3912 = vmatpush1.msra.mxu0 %v3817
    %3913 = vmatprep.subr.mxu0 0.0
    %3914 = vmatpush1.msra.mxu0 %v3818
    %3915 = vmatprep.mubr.f32.mxu0 %v3784
    %3916 = vmatmul.mubr.f32.gmra.mrb[0].mxu0 %v3783
    %v3917 = vpop.f32.mrb[0].mxu0
    %v3918 = vadd.f32 0.0, %v3917
    %v3919 = vpop.f32.mrb[0].mxu0
    %3920 = vdwg.mxu0
    %3921 = vmatprep.subr.mxu0 0.0
    %3922 = vmatpush1.msra.mxu0 %v3819
    %3923 = vmatprep.subr.mxu0 0.0
    %3924 = vmatpush1.msra.mxu0 %v3820
    %3925 = vmatprep.subr.mxu0 0.0
    %3926 = vmatpush1.msra.mxu0 %v3821
    %3927 = vmatprep.subr.mxu0 0.0
    %3928 = vmatpush1.msra.mxu0 %v3822
    %3929 = vmatprep.subr.mxu0 0.0
    %3930 = vmatpush1.msra.mxu0 %v3823
    %3931 = vmatprep.subr.mxu0 0.0
    %3932 = vmatpush1.msra.mxu0 %v3824
    %3933 = vmatprep.subr.mxu0 0.0
    %3934 = vmatpush1.msra.mxu0 %v3825
    %3935 = vmatprep.subr.mxu0 0.0
    %3936 = vmatpush1.msra.mxu0 %v3826
    %3937 = vmatprep.subr.mxu0 0.0
    %3938 = vmatpush1.msra.mxu0 %v3827
    %3939 = vmatprep.subr.mxu0 0.0
    %3940 = vmatpush1.msra.mxu0 %v3828
    %3941 = vmatprep.subr.mxu0 0.0
    %3942 = vmatpush1.msra.mxu0 %v3829
    %3943 = vmatprep.subr.mxu0 0.0
    %3944 = vmatpush1.msra.mxu0 %v3830
    %3945 = vmatprep.subr.mxu0 0.0
    %3946 = vmatpush1.msra.mxu0 %v3831
    %3947 = vmatprep.subr.mxu0 0.0
    %3948 = vmatpush1.msra.mxu0 %v3832
    %3949 = vmatprep.subr.mxu0 0.0
    %3950 = vmatpush1.msra.mxu0 %v3833
    %3951 = vmatprep.subr.mxu0 0.0
    %3952 = vmatpush1.msra.mxu0 %v3834
    %3953 = vmatprep.subr.mxu0 0.0
    %3954 = vmatpush1.msra.mxu0 %v3835
    %3955 = vmatprep.subr.mxu0 0.0
    %3956 = vmatpush1.msra.mxu0 %v3836
    %3957 = vmatprep.subr.mxu0 0.0
    %3958 = vmatpush1.msra.mxu0 %v3837
    %3959 = vmatprep.subr.mxu0 0.0
    %3960 = vmatpush1.msra.mxu0 %v3838
    %3961 = vmatprep.subr.mxu0 0.0
    %3962 = vmatpush1.msra.mxu0 %v3839
    %3963 = vmatprep.subr.mxu0 0.0
    %3964 = vmatpush1.msra.mxu0 %v3840
    %3965 = vmatprep.subr.mxu0 0.0
    %3966 = vmatpush1.msra.mxu0 %v3841
    %3967 = vmatprep.subr.mxu0 0.0
    %3968 = vmatpush1.msra.mxu0 %v3842
    %3969 = vmatprep.subr.mxu0 0.0
    %3970 = vmatpush1.msra.mxu0 %v3843
    %3971 = vmatprep.subr.mxu0 0.0
    %3972 = vmatpush1.msra.mxu0 %v3844
    %3973 = vmatprep.subr.mxu0 0.0
    %3974 = vmatpush1.msra.mxu0 %v3845
    %3975 = vmatprep.subr.mxu0 0.0
    %3976 = vmatpush1.msra.mxu0 %v3846
    %3977 = vmatprep.subr.mxu0 0.0
    %3978 = vmatpush1.msra.mxu0 %v3847
    %3979 = vmatprep.subr.mxu0 0.0
    %3980 = vmatpush1.msra.mxu0 %v3848
    %3981 = vmatprep.subr.mxu0 0.0
    %3982 = vmatpush1.msra.mxu0 %v3849
    %3983 = vmatprep.subr.mxu0 0.0
    %3984 = vmatpush1.msra.mxu0 %v3850
    %3985 = vmatprep.mubr.f32.mxu0 %v3786
    %3986 = vmatmul.mubr.f32.gmra.mrb[0].mxu0 %v3785
    %v3987 = vpop.f32.mrb[0].mxu0
    %v3988 = vadd.f32 %v3918, %v3987
    %v3989 = vpop.f32.mrb[0].mxu0
    %3990 = vdwg.mxu0
    %3991 = vadd.xlane.f32.xlu0 %v3988
    %v3992 = vpop.xlane.xlu0 %3991
    %v3993 = vmul.f32 %v3992, 0.0078125
    %v3994 = vsub.f32 %v3988, %v3993
    %v3995 = vmul.f32 %v3994, %v3994
    %3996 = vadd.xlane.f32.xlu0 %v3995
    %v3997 = vpop.xlane.xlu0 %3996
    %v3998 = vmul.f32 %v3997, 0.0078125
    %v3999 = vadd.f32 %v3998, 1e-05
    %v4000 = vrsqrt.pop %v3999
    %v4001 = vmul.f32 %v3994, %v4000
    %v4002 = vld [vmem:[%s5] sm:$0xff]
    %4004 = vset.pattern.permute.xlu0 0
    %4005 = vperm.xlu0 %4004, %v4002
    %v4006 = vpop.permute.xlu0 %4005
    %v4008 = vmul.f32 %v4001, %v4006
    %v4009 = vld [vmem:[%s6] sm:$0xff]
    %4011 = vset.pattern.permute.xlu0 0
    %4012 = vperm.xlu0 %4011, %v4009
    %v4013 = vpop.permute.xlu0 %4012
    %v4015 = vadd.f32 %v4008, %v4013
    %v4016 = vld [vmem:[%s14] sm:$0xff]
    %v4017 = vld [vmem:[%s14 + $0x8] sm:$0xff]
    %v4018 = vld [vmem:[%s14 + $0x10] sm:$0xff]
    %v4019 = vld [vmem:[%s14 + $0x18] sm:$0xff]
    %v4020 = vld [vmem:[%s14 + $0x20] sm:$0xff]
    %v4021 = vld [vmem:[%s14 + $0x28] sm:$0xff]
    %v4022 = vld [vmem:[%s14 + $0x30] sm:$0xff]
    %v4023 = vld [vmem:[%s14 + $0x38] sm:$0xff]
    %v4024 = vld [vmem:[%s14 + $0x40] sm:$0xff]
    %v4025 = vld [vmem:[%s14 + $0x48] sm:$0xff]
    %v4026 = vld [vmem:[%s14 + $0x50] sm:$0xff]
    %v4027 = vld [vmem:[%s14 + $0x58] sm:$0xff]
    %v4028 = vld [vmem:[%s14 + $0x60] sm:$0xff]
    %v4029 = vld [vmem:[%s14 + $0x68] sm:$0xff]
    %v4030 = vld [vmem:[%s14 + $0x70] sm:$0xff]
    %v4031 = vld [vmem:[%s14 + $0x78] sm:$0xff]
    %4032 = vmatprep.subr.mxu0 0.0
    %4033 = vmatpush1.msra.mxu0 %v4016
    %4034 = vmatprep.subr.mxu0 0.0
    %4035 = vmatpush1.msra.mxu0 %v4017
    %4036 = vmatprep.subr.mxu0 0.0
    %4037 = vmatpush1.msra.mxu0 %v4018
    %4038 = vmatprep.subr.mxu0 0.0
    %4039 = vmatpush1.msra.mxu0 %v4019
    %4040 = vmatprep.subr.mxu0 0.0
    %4041 = vmatpush1.msra.mxu0 %v4020
    %4042 = vmatprep.subr.mxu0 0.0
    %4043 = vmatpush1.msra.mxu0 %v4021
    %4044 = vmatprep.subr.mxu0 0.0
    %4045 = vmatpush1.msra.mxu0 %v4022
    %4046 = vmatprep.subr.mxu0 0.0
    %4047 = vmatpush1.msra.mxu0 %v4023
    %4048 = vmatprep.subr.mxu0 0.0
    %4049 = vmatpush1.msra.mxu0 %v4024
    %4050 = vmatprep.subr.mxu0 0.0
    %4051 = vmatpush1.msra.mxu0 %v4025
    %4052 = vmatprep.subr.mxu0 0.0
    %4053 = vmatpush1.msra.mxu0 %v4026
    %4054 = vmatprep.subr.mxu0 0.0
    %4055 = vmatpush1.msra.mxu0 %v4027
    %4056 = vmatprep.subr.mxu0 0.0
    %4057 = vmatpush1.msra.mxu0 %v4028
    %4058 = vmatprep.subr.mxu0 0.0
    %4059 = vmatpush1.msra.mxu0 %v4029
    %4060 = vmatprep.subr.mxu0 0.0
    %4061 = vmatpush1.msra.mxu0 %v4030
    %4062 = vmatprep.subr.mxu0 0.0
    %4063 = vmatpush1.msra.mxu0 %v4031
    %4064 = vmatprep.subr.mxu0 0.0
    %4065 = vmatpush1.msra.mxu0 0.0
    %4066 = vmatprep.subr.mxu0 0.0
    %4067 = vmatpush1.msra.mxu0 0.0
    %4068 = vmatprep.subr.mxu0 0.0
    %4069 = vmatpush1.msra.mxu0 0.0
    %4070 = vmatprep.subr.mxu0 0.0
    %4071 = vmatpush1.msra.mxu0 0.0
    %4072 = vmatprep.subr.mxu0 0.0
    %4073 = vmatpush1.msra.mxu0 0.0
    %4074 = vmatprep.subr.mxu0 0.0
    %4075 = vmatpush1.msra.mxu0 0.0
    %4076 = vmatprep.subr.mxu0 0.0
    %4077 = vmatpush1.msra.mxu0 0.0
    %4078 = vmatprep.subr.mxu0 0.0
    %4079 = vmatpush1.msra.mxu0 0.0
    %4080 = vmatprep.subr.mxu0 0.0
    %4081 = vmatpush1.msra.mxu0 0.0
    %4082 = vmatprep.subr.mxu0 0.0
    %4083 = vmatpush1.msra.mxu0 0.0
    %4084 = vmatprep.subr.mxu0 0.0
    %4085 = vmatpush1.msra.mxu0 0.0
    %4086 = vmatprep.subr.mxu0 0.0
    %4087 = vmatpush1.msra.mxu0 0.0
    %4088 = vmatprep.subr.mxu0 0.0
    %4089 = vmatpush1.msra.mxu0 0.0
    %4090 = vmatprep.subr.mxu0 0.0
    %4091 = vmatpush1.msra.mxu0 0.0
    %4092 = vmatprep.subr.mxu0 0.0
    %4093 = vmatpush1.msra.mxu0 0.0
    %4094 = vmatprep.subr.mxu0 0.0
    %4095 = vmatpush1.msra.mxu0 0.0
    %4096 = vmatprep.mubr.f32.mxu0 0.0
    %4097 = vmatmul.mubr.f32.gmra.mrb[0].mxu0 %v4015
    %v4098 = vpop.f32.mrb[0].mxu0
    %v4099 = vadd.f32 0.0, %v4098
    %v4100 = vpop.f32.mrb[0].mxu0
    %4101 = vdwg.mxu0
    %v4102 = vld [vmem:[#allocation3] sm:$0xff]
    %v4103 = vld [vmem:[#allocation3 + $0x8] sm:$0xff]
    %v4104 = vld [vmem:[#allocation3 + $0x10] sm:$0xff]
    %v4105 = vld [vmem:[#allocation3 + $0x18] sm:$0xff]
    %vm4106 = vcmask 261120
    %v4108 = vsel %vm4106, %v4099, 0
    %4110 = vmatprep.subr.mxu0 0.0
    %4111 = vmatpush1.msra.mxu0 %v4102
    %4112 = vmatprep.subr.mxu0 0.0
    %4113 = vmatpush1.msra.mxu0 %v4103
    %4114 = vmatprep.subr.mxu0 0.0
    %4115 = vmatpush1.msra.mxu0 %v4104
    %4116 = vmatprep.subr.mxu0 0.0
    %4117 = vmatpush1.msra.mxu0 %v4105
    %4118 = vmatprep.subr.mxu0 0.0
    %4119 = vmatpush1.msra.mxu0 0.0
    %4120 = vmatprep.subr.mxu0 0.0
    %4121 = vmatpush1.msra.mxu0 0.0
    %4122 = vmatprep.subr.mxu0 0.0
    %4123 = vmatpush1.msra.mxu0 0.0
    %4124 = vmatprep.subr.mxu0 0.0
    %4125 = vmatpush1.msra.mxu0 0.0
    %4126 = vmatprep.subr.mxu0 0.0
    %4127 = vmatpush1.msra.mxu0 0.0
    %4128 = vmatprep.subr.mxu0 0.0
    %4129 = vmatpush1.msra.mxu0 0.0
    %4130 = vmatprep.subr.mxu0 0.0
    %4131 = vmatpush1.msra.mxu0 0.0
    %4132 = vmatprep.subr.mxu0 0.0
    %4133 = vmatpush1.msra.mxu0 0.0
    %4134 = vmatprep.subr.mxu0 0.0
    %4135 = vmatpush1.msra.mxu0 0.0
    %4136 = vmatprep.subr.mxu0 0.0
    %4137 = vmatpush1.msra.mxu0 0.0
    %4138 = vmatprep.subr.mxu0 0.0
    %4139 = vmatpush1.msra.mxu0 0.0
    %4140 = vmatprep.subr.mxu0 0.0
    %4141 = vmatpush1.msra.mxu0 0.0
    %4142 = vmatprep.subr.mxu0 0.0
    %4143 = vmatpush1.msra.mxu0 0.0
    %4144 = vmatprep.subr.mxu0 0.0
    %4145 = vmatpush1.msra.mxu0 0.0
    %4146 = vmatprep.subr.mxu0 0.0
    %4147 = vmatpush1.msra.mxu0 0.0
    %4148 = vmatprep.subr.mxu0 0.0
    %4149 = vmatpush1.msra.mxu0 0.0
    %4150 = vmatprep.subr.mxu0 0.0
    %4151 = vmatpush1.msra.mxu0 0.0
    %4152 = vmatprep.subr.mxu0 0.0
    %4153 = vmatpush1.msra.mxu0 0.0
    %4154 = vmatprep.subr.mxu0 0.0
    %4155 = vmatpush1.msra.mxu0 0.0
    %4156 = vmatprep.subr.mxu0 0.0
    %4157 = vmatpush1.msra.mxu0 0.0
    %4158 = vmatprep.subr.mxu0 0.0
    %4159 = vmatpush1.msra.mxu0 0.0
    %4160 = vmatprep.subr.mxu0 0.0
    %4161 = vmatpush1.msra.mxu0 0.0
    %4162 = vmatprep.subr.mxu0 0.0
    %4163 = vmatpush1.msra.mxu0 0.0
    %4164 = vmatprep.subr.mxu0 0.0
    %4165 = vmatpush1.msra.mxu0 0.0
    %4166 = vmatprep.subr.mxu0 0.0
    %4167 = vmatpush1.msra.mxu0 0.0
    %4168 = vmatprep.subr.mxu0 0.0
    %4169 = vmatpush1.msra.mxu0 0.0
    %4170 = vmatprep.subr.mxu0 0.0
    %4171 = vmatpush1.msra.mxu0 0.0
    %4172 = vmatprep.subr.mxu0 0.0
    %4173 = vmatpush1.msra.mxu0 0.0
    %4174 = vmatprep.mubr.f32.mxu0 0.0
    %4175 = vmatmul.mubr.f32.gmra.mrb[0].mxu0 %v4108
    %v4176 = vpop.f32.mrb[0].mxu0
    %v4177 = vadd.f32 0.0, %v4176
    %v4178 = vpop.f32.mrb[0].mxu0
    %4179 = vdwg.mxu0
    %v4180 = vld [vmem:[%s7] sm:$0xf]
    %s4181 = scalar_lea.vmem [#allocation3], 32
    %v4182 = vld [vmem:[%s4181] sm:$0xff]
    %v4183 = vld [vmem:[%s4181 + $0x8] sm:$0xff]
    %v4184 = vld [vmem:[%s4181 + $0x10] sm:$0xff]
    %v4185 = vld [vmem:[%s4181 + $0x18] sm:$0xff]
    %4186 = vmatprep.subr.mxu0 0.0
    %4187 = vmatpush1.msra.mxu0 %v4182
    %4188 = vmatprep.subr.mxu0 0.0
    %4189 = vmatpush1.msra.mxu0 %v4183
    %4190 = vmatprep.subr.mxu0 0.0
    %4191 = vmatpush1.msra.mxu0 %v4184
    %4192 = vmatprep.subr.mxu0 0.0
    %4193 = vmatpush1.msra.mxu0 %v4185
    %4194 = vmatprep.subr.mxu0 0.0
    %4195 = vmatpush1.msra.mxu0 0.0
    %4196 = vmatprep.subr.mxu0 0.0
    %4197 = vmatpush1.msra.mxu0 0.0
    %4198 = vmatprep.subr.mxu0 0.0
    %4199 = vmatpush1.msra.mxu0 0.0
    %4200 = vmatprep.subr.mxu0 0.0
    %4201 = vmatpush1.msra.mxu0 0.0
    %4202 = vmatprep.subr.mxu0 0.0
    %4203 = vmatpush1.msra.mxu0 0.0
    %4204 = vmatprep.subr.mxu0 0.0
    %4205 = vmatpush1.msra.mxu0 0.0
    %4206 = vmatprep.subr.mxu0 0.0
    %4207 = vmatpush1.msra.mxu0 0.0
    %4208 = vmatprep.subr.mxu0 0.0
    %4209 = vmatpush1.msra.mxu0 0.0
    %4210 = vmatprep.subr.mxu0 0.0
    %4211 = vmatpush1.msra.mxu0 0.0
    %4212 = vmatprep.subr.mxu0 0.0
    %4213 = vmatpush1.msra.mxu0 0.0
    %4214 = vmatprep.subr.mxu0 0.0
    %4215 = vmatpush1.msra.mxu0 0.0
    %4216 = vmatprep.subr.mxu0 0.0
    %4217 = vmatpush1.msra.mxu0 0.0
    %4218 = vmatprep.subr.mxu0 0.0
    %4219 = vmatpush1.msra.mxu0 0.0
    %4220 = vmatprep.subr.mxu0 0.0
    %4221 = vmatpush1.msra.mxu0 0.0
    %4222 = vmatprep.subr.mxu0 0.0
    %4223 = vmatpush1.msra.mxu0 0.0
    %4224 = vmatprep.subr.mxu0 0.0
    %4225 = vmatpush1.msra.mxu0 0.0
    %4226 = vmatprep.subr.mxu0 0.0
    %4227 = vmatpush1.msra.mxu0 0.0
    %4228 = vmatprep.subr.mxu0 0.0
    %4229 = vmatpush1.msra.mxu0 0.0
    %4230 = vmatprep.subr.mxu0 0.0
    %4231 = vmatpush1.msra.mxu0 0.0
    %4232 = vmatprep.subr.mxu0 0.0
    %4233 = vmatpush1.msra.mxu0 0.0
    %4234 = vmatprep.subr.mxu0 0.0
    %4235 = vmatpush1.msra.mxu0 0.0
    %4236 = vmatprep.subr.mxu0 0.0
    %4237 = vmatpush1.msra.mxu0 0.0
    %4238 = vmatprep.subr.mxu0 0.0
    %4239 = vmatpush1.msra.mxu0 0.0
    %4240 = vmatprep.subr.mxu0 0.0
    %4241 = vmatpush1.msra.mxu0 0.0
    %4242 = vmatprep.subr.mxu0 0.0
    %4243 = vmatpush1.msra.mxu0 0.0
    %4244 = vmatprep.subr.mxu0 0.0
    %4245 = vmatpush1.msra.mxu0 0.0
    %4246 = vmatprep.subr.mxu0 0.0
    %4247 = vmatpush1.msra.mxu0 0.0
    %4248 = vmatprep.subr.mxu0 0.0
    %4249 = vmatpush1.msra.mxu0 0.0
    %4250 = vmatprep.mubr.f32.mxu0 0.0
    %4251 = vmatmul.mubr.f32.gmra.mrb[0].mxu0 %v4108
    %v4252 = vpop.f32.mrb[0].mxu0
    %v4253 = vadd.f32 0.0, %v4252
    %v4254 = vpop.f32.mrb[0].mxu0
    %4255 = vdwg.mxu0
    %s4256 = scalar_lea.vmem %s7, 4
    %v4257 = vld [vmem:[%s4256] sm:$0xf]
    %vm4258 = vcmask 64512
    %v4260 = vsel %vm4258, %v4257, 0
    %4262 = vmatprep.subr.mxu0 0.0
    %4263 = vmatpush1.msra.mxu0 %v4253
    %4264 = vmatprep.subr.mxu0 0.0
    %4265 = vmatpush1.msra.mxu0 0.0
    %4266 = vmatprep.subr.mxu0 0.0
    %4267 = vmatpush1.msra.mxu0 0.0
    %4268 = vmatprep.subr.mxu0 0.0
    %4269 = vmatpush1.msra.mxu0 0.0
    %4270 = vmatprep.subr.mxu0 0.0
    %4271 = vmatpush1.msra.mxu0 0.0
    %4272 = vmatprep.subr.mxu0 0.0
    %4273 = vmatpush1.msra.mxu0 0.0
    %4274 = vmatprep.subr.mxu0 0.0
    %4275 = vmatpush1.msra.mxu0 0.0
    %4276 = vmatprep.subr.mxu0 0.0
    %4277 = vmatpush1.msra.mxu0 0.0
    %4278 = vmatprep.subr.mxu0 0.0
    %4279 = vmatpush1.msra.mxu0 0.0
    %4280 = vmatprep.subr.mxu0 0.0
    %4281 = vmatpush1.msra.mxu0 0.0
    %4282 = vmatprep.subr.mxu0 0.0
    %4283 = vmatpush1.msra.mxu0 0.0
    %4284 = vmatprep.subr.mxu0 0.0
    %4285 = vmatpush1.msra.mxu0 0.0
    %4286 = vmatprep.subr.mxu0 0.0
    %4287 = vmatpush1.msra.mxu0 0.0
    %4288 = vmatprep.subr.mxu0 0.0
    %4289 = vmatpush1.msra.mxu0 0.0
    %4290 = vmatprep.subr.mxu0 0.0
    %4291 = vmatpush1.msra.mxu0 0.0
    %4292 = vmatprep.subr.mxu0 0.0
    %4293 = vmatpush1.msra.mxu0 0.0
    %4294 = vmatprep.subr.mxu0 0.0
    %4295 = vmatpush1.msra.mxu0 0.0
    %4296 = vmatprep.subr.mxu0 0.0
    %4297 = vmatpush1.msra.mxu0 0.0
    %4298 = vmatprep.subr.mxu0 0.0
    %4299 = vmatpush1.msra.mxu0 0.0
    %4300 = vmatprep.subr.mxu0 0.0
    %4301 = vmatpush1.msra.mxu0 0.0
    %4302 = vmatprep.subr.mxu0 0.0
    %4303 = vmatpush1.msra.mxu0 0.0
    %4304 = vmatprep.subr.mxu0 0.0
    %4305 = vmatpush1.msra.mxu0 0.0
    %4306 = vmatprep.subr.mxu0 0.0
    %4307 = vmatpush1.msra.mxu0 0.0
    %4308 = vmatprep.subr.mxu0 0.0
    %4309 = vmatpush1.msra.mxu0 0.0
    %4310 = vmatprep.subr.mxu0 0.0
    %4311 = vmatpush1.msra.mxu0 0.0
    %4312 = vmatprep.subr.mxu0 0.0
    %4313 = vmatpush1.msra.mxu0 0.0
    %4314 = vmatprep.subr.mxu0 0.0
    %4315 = vmatpush1.msra.mxu0 0.0
    %4316 = vmatprep.subr.mxu0 0.0
    %4317 = vmatpush1.msra.mxu0 0.0
    %4318 = vmatprep.subr.mxu0 0.0
    %4319 = vmatpush1.msra.mxu0 0.0
    %4320 = vmatprep.subr.mxu0 0.0
    %4321 = vmatpush1.msra.mxu0 0.0
    %4322 = vmatprep.subr.mxu0 0.0
    %4323 = vmatpush1.msra.mxu0 0.0
    %4324 = vmatprep.subr.mxu0 0.0
    %4325 = vmatpush1.msra.mxu0 0.0
    %4326 = vmatprep.mubr.f32.mxu0 0.0
    %4327 = vmatmul.mubr.f32.gmra.mrb[0].mxu0 %v4260
    %v4328 = vpop.f32.mrb[0].mxu0
    %v4329 = vadd.f32 0.0, %v4328
    %v4330 = vpop.f32.mrb[0].mxu0
    %4331 = vdwg.mxu0
    %v4333 = vsel %vm4258, %v4180, 0
    %4335 = vmatprep.subr.mxu0 0.0
    %4336 = vmatpush1.msra.mxu0 %v4177
    %4337 = vmatprep.subr.mxu0 0.0
    %4338 = vmatpush1.msra.mxu0 0.0
    %4339 = vmatprep.subr.mxu0 0.0
    %4340 = vmatpush1.msra.mxu0 0.0
    %4341 = vmatprep.subr.mxu0 0.0
    %4342 = vmatpush1.msra.mxu0 0.0
    %4343 = vmatprep.subr.mxu0 0.0
    %4344 = vmatpush1.msra.mxu0 0.0
    %4345 = vmatprep.subr.mxu0 0.0
    %4346 = vmatpush1.msra.mxu0 0.0
    %4347 = vmatprep.subr.mxu0 0.0
    %4348 = vmatpush1.msra.mxu0 0.0
    %4349 = vmatprep.subr.mxu0 0.0
    %4350 = vmatpush1.msra.mxu0 0.0
    %4351 = vmatprep.subr.mxu0 0.0
    %4352 = vmatpush1.msra.mxu0 0.0
    %4353 = vmatprep.subr.mxu0 0.0
    %4354 = vmatpush1.msra.mxu0 0.0
    %4355 = vmatprep.subr.mxu0 0.0
    %4356 = vmatpush1.msra.mxu0 0.0
    %4357 = vmatprep.subr.mxu0 0.0
    %4358 = vmatpush1.msra.mxu0 0.0
    %4359 = vmatprep.subr.mxu0 0.0
    %4360 = vmatpush1.msra.mxu0 0.0
    %4361 = vmatprep.subr.mxu0 0.0
    %4362 = vmatpush1.msra.mxu0 0.0
    %4363 = vmatprep.subr.mxu0 0.0
    %4364 = vmatpush1.msra.mxu0 0.0
    %4365 = vmatprep.subr.mxu0 0.0
    %4366 = vmatpush1.msra.mxu0 0.0
    %4367 = vmatprep.subr.mxu0 0.0
    %4368 = vmatpush1.msra.mxu0 0.0
    %4369 = vmatprep.subr.mxu0 0.0
    %4370 = vmatpush1.msra.mxu0 0.0
    %4371 = vmatprep.subr.mxu0 0.0
    %4372 = vmatpush1.msra.mxu0 0.0
    %4373 = vmatprep.subr.mxu0 0.0
    %4374 = vmatpush1.msra.mxu0 0.0
    %4375 = vmatprep.subr.mxu0 0.0
    %4376 = vmatpush1.msra.mxu0 0.0
    %4377 = vmatprep.subr.mxu0 0.0
    %4378 = vmatpush1.msra.mxu0 0.0
    %4379 = vmatprep.subr.mxu0 0.0
    %4380 = vmatpush1.msra.mxu0 0.0
    %4381 = vmatprep.subr.mxu0 0.0
    %4382 = vmatpush1.msra.mxu0 0.0
    %4383 = vmatprep.subr.mxu0 0.0
    %4384 = vmatpush1.msra.mxu0 0.0
    %4385 = vmatprep.subr.mxu0 0.0
    %4386 = vmatpush1.msra.mxu0 0.0
    %4387 = vmatprep.subr.mxu0 0.0
    %4388 = vmatpush1.msra.mxu0 0.0
    %4389 = vmatprep.subr.mxu0 0.0
    %4390 = vmatpush1.msra.mxu0 0.0
    %4391 = vmatprep.subr.mxu0 0.0
    %4392 = vmatpush1.msra.mxu0 0.0
    %4393 = vmatprep.subr.mxu0 0.0
    %4394 = vmatpush1.msra.mxu0 0.0
    %4395 = vmatprep.subr.mxu0 0.0
    %4396 = vmatpush1.msra.mxu0 0.0
    %4397 = vmatprep.subr.mxu0 0.0
    %4398 = vmatpush1.msra.mxu0 0.0
    %4399 = vmatprep.mubr.f32.mxu0 0.0
    %4400 = vmatmul.mubr.f32.gmra.mrb[0].mxu0 %v4333
    %v4401 = vpop.f32.mrb[0].mxu0
    %v4402 = vadd.f32 %v4329, %v4401
    %v4403 = vpop.f32.mrb[0].mxu0
    %4404 = vdwg.mxu0
    %s4405 = scalar_lea.vmem [#allocation3], 64
    %v4406 = vld [vmem:[%s4405] sm:$0xff]
    %v4407 = vld [vmem:[%s4405 + $0x8] sm:$0xff]
    %v4408 = vld [vmem:[%s4405 + $0x10] sm:$0xff]
    %v4409 = vld [vmem:[%s4405 + $0x18] sm:$0xff]
    %4410 = vmatprep.subr.mxu0 0.0
    %4411 = vmatpush1.msra.mxu0 %v4406
    %4412 = vmatprep.subr.mxu0 0.0
    %4413 = vmatpush1.msra.mxu0 %v4407
    %4414 = vmatprep.subr.mxu0 0.0
    %4415 = vmatpush1.msra.mxu0 %v4408
    %4416 = vmatprep.subr.mxu0 0.0
    %4417 = vmatpush1.msra.mxu0 %v4409
    %4418 = vmatprep.subr.mxu0 0.0
    %4419 = vmatpush1.msra.mxu0 0.0
    %4420 = vmatprep.subr.mxu0 0.0
    %4421 = vmatpush1.msra.mxu0 0.0
    %4422 = vmatprep.subr.mxu0 0.0
    %4423 = vmatpush1.msra.mxu0 0.0
    %4424 = vmatprep.subr.mxu0 0.0
    %4425 = vmatpush1.msra.mxu0 0.0
    %4426 = vmatprep.subr.mxu0 0.0
    %4427 = vmatpush1.msra.mxu0 0.0
    %4428 = vmatprep.subr.mxu0 0.0
    %4429 = vmatpush1.msra.mxu0 0.0
    %4430 = vmatprep.subr.mxu0 0.0
    %4431 = vmatpush1.msra.mxu0 0.0
    %4432 = vmatprep.subr.mxu0 0.0
    %4433 = vmatpush1.msra.mxu0 0.0
    %4434 = vmatprep.subr.mxu0 0.0
    %4435 = vmatpush1.msra.mxu0 0.0
    %4436 = vmatprep.subr.mxu0 0.0
    %4437 = vmatpush1.msra.mxu0 0.0
    %4438 = vmatprep.subr.mxu0 0.0
    %4439 = vmatpush1.msra.mxu0 0.0
    %4440 = vmatprep.subr.mxu0 0.0
    %4441 = vmatpush1.msra.mxu0 0.0
    %4442 = vmatprep.subr.mxu0 0.0
    %4443 = vmatpush1.msra.mxu0 0.0
    %4444 = vmatprep.subr.mxu0 0.0
    %4445 = vmatpush1.msra.mxu0 0.0
    %4446 = vmatprep.subr.mxu0 0.0
    %4447 = vmatpush1.msra.mxu0 0.0
    %4448 = vmatprep.subr.mxu0 0.0
    %4449 = vmatpush1.msra.mxu0 0.0
    %4450 = vmatprep.subr.mxu0 0.0
    %4451 = vmatpush1.msra.mxu0 0.0
    %4452 = vmatprep.subr.mxu0 0.0
    %4453 = vmatpush1.msra.mxu0 0.0
    %4454 = vmatprep.subr.mxu0 0.0
    %4455 = vmatpush1.msra.mxu0 0.0
    %4456 = vmatprep.subr.mxu0 0.0
    %4457 = vmatpush1.msra.mxu0 0.0
    %4458 = vmatprep.subr.mxu0 0.0
    %4459 = vmatpush1.msra.mxu0 0.0
    %4460 = vmatprep.subr.mxu0 0.0
    %4461 = vmatpush1.msra.mxu0 0.0
    %4462 = vmatprep.subr.mxu0 0.0
    %4463 = vmatpush1.msra.mxu0 0.0
    %4464 = vmatprep.subr.mxu0 0.0
    %4465 = vmatpush1.msra.mxu0 0.0
    %4466 = vmatprep.subr.mxu0 0.0
    %4467 = vmatpush1.msra.mxu0 0.0
    %4468 = vmatprep.subr.mxu0 0.0
    %4469 = vmatpush1.msra.mxu0 0.0
    %4470 = vmatprep.subr.mxu0 0.0
    %4471 = vmatpush1.msra.mxu0 0.0
    %4472 = vmatprep.subr.mxu0 0.0
    %4473 = vmatpush1.msra.mxu0 0.0
    %4474 = vmatprep.mubr.f32.mxu0 0.0
    %4475 = vmatmul.mubr.f32.gmra.mrb[0].mxu0 %v4108
    %v4476 = vpop.f32.mrb[0].mxu0
    %v4477 = vadd.f32 0.0, %v4476
    %v4478 = vpop.f32.mrb[0].mxu0
    %4479 = vdwg.mxu0
    %s4480 = scalar_lea.vmem %s7, 8
    %v4481 = vld [vmem:[%s4480] sm:$0xf]
    %v4483 = vsel %vm4258, %v4481, 0
    %4485 = vmatprep.subr.mxu0 0.0
    %4486 = vmatpush1.msra.mxu0 %v4477
    %4487 = vmatprep.subr.mxu0 0.0
    %4488 = vmatpush1.msra.mxu0 0.0
    %4489 = vmatprep.subr.mxu0 0.0
    %4490 = vmatpush1.msra.mxu0 0.0
    %4491 = vmatprep.subr.mxu0 0.0
    %4492 = vmatpush1.msra.mxu0 0.0
    %4493 = vmatprep.subr.mxu0 0.0
    %4494 = vmatpush1.msra.mxu0 0.0
    %4495 = vmatprep.subr.mxu0 0.0
    %4496 = vmatpush1.msra.mxu0 0.0
    %4497 = vmatprep.subr.mxu0 0.0
    %4498 = vmatpush1.msra.mxu0 0.0
    %4499 = vmatprep.subr.mxu0 0.0
    %4500 = vmatpush1.msra.mxu0 0.0
    %4501 = vmatprep.subr.mxu0 0.0
    %4502 = vmatpush1.msra.mxu0 0.0
    %4503 = vmatprep.subr.mxu0 0.0
    %4504 = vmatpush1.msra.mxu0 0.0
    %4505 = vmatprep.subr.mxu0 0.0
    %4506 = vmatpush1.msra.mxu0 0.0
    %4507 = vmatprep.subr.mxu0 0.0
    %4508 = vmatpush1.msra.mxu0 0.0
    %4509 = vmatprep.subr.mxu0 0.0
    %4510 = vmatpush1.msra.mxu0 0.0
    %4511 = vmatprep.subr.mxu0 0.0
    %4512 = vmatpush1.msra.mxu0 0.0
    %4513 = vmatprep.subr.mxu0 0.0
    %4514 = vmatpush1.msra.mxu0 0.0
    %4515 = vmatprep.subr.mxu0 0.0
    %4516 = vmatpush1.msra.mxu0 0.0
    %4517 = vmatprep.subr.mxu0 0.0
    %4518 = vmatpush1.msra.mxu0 0.0
    %4519 = vmatprep.subr.mxu0 0.0
    %4520 = vmatpush1.msra.mxu0 0.0
    %4521 = vmatprep.subr.mxu0 0.0
    %4522 = vmatpush1.msra.mxu0 0.0
    %4523 = vmatprep.subr.mxu0 0.0
    %4524 = vmatpush1.msra.mxu0 0.0
    %4525 = vmatprep.subr.mxu0 0.0
    %4526 = vmatpush1.msra.mxu0 0.0
    %4527 = vmatprep.subr.mxu0 0.0
    %4528 = vmatpush1.msra.mxu0 0.0
    %4529 = vmatprep.subr.mxu0 0.0
    %4530 = vmatpush1.msra.mxu0 0.0
    %4531 = vmatprep.subr.mxu0 0.0
    %4532 = vmatpush1.msra.mxu0 0.0
    %4533 = vmatprep.subr.mxu0 0.0
    %4534 = vmatpush1.msra.mxu0 0.0
    %4535 = vmatprep.subr.mxu0 0.0
    %4536 = vmatpush1.msra.mxu0 0.0
    %4537 = vmatprep.subr.mxu0 0.0
    %4538 = vmatpush1.msra.mxu0 0.0
    %4539 = vmatprep.subr.mxu0 0.0
    %4540 = vmatpush1.msra.mxu0 0.0
    %4541 = vmatprep.subr.mxu0 0.0
    %4542 = vmatpush1.msra.mxu0 0.0
    %4543 = vmatprep.subr.mxu0 0.0
    %4544 = vmatpush1.msra.mxu0 0.0
    %4545 = vmatprep.subr.mxu0 0.0
    %4546 = vmatpush1.msra.mxu0 0.0
    %4547 = vmatprep.subr.mxu0 0.0
    %4548 = vmatpush1.msra.mxu0 0.0
    %4549 = vmatprep.mubr.f32.mxu0 0.0
    %4550 = vmatmul.mubr.f32.gmra.mrb[0].mxu0 %v4483
    %v4551 = vpop.f32.mrb[0].mxu0
    %v4552 = vadd.f32 0.0, %v4551
    %v4553 = vpop.f32.mrb[0].mxu0
    %4554 = vdwg.mxu0
    %v4555 = vadd.f32 %v4402, %v4552
    %s4556 = scalar_lea.vmem [#allocation3], 96
    %v4557 = vld [vmem:[%s4556] sm:$0xff]
    %v4558 = vld [vmem:[%s4556 + $0x8] sm:$0xff]
    %v4559 = vld [vmem:[%s4556 + $0x10] sm:$0xff]
    %v4560 = vld [vmem:[%s4556 + $0x18] sm:$0xff]
    %4561 = vmatprep.subr.mxu0 0.0
    %4562 = vmatpush1.msra.mxu0 %v4557
    %4563 = vmatprep.subr.mxu0 0.0
    %4564 = vmatpush1.msra.mxu0 %v4558
    %4565 = vmatprep.subr.mxu0 0.0
    %4566 = vmatpush1.msra.mxu0 %v4559
    %4567 = vmatprep.subr.mxu0 0.0
    %4568 = vmatpush1.msra.mxu0 %v4560
    %4569 = vmatprep.subr.mxu0 0.0
    %4570 = vmatpush1.msra.mxu0 0.0
    %4571 = vmatprep.subr.mxu0 0.0
    %4572 = vmatpush1.msra.mxu0 0.0
    %4573 = vmatprep.subr.mxu0 0.0
    %4574 = vmatpush1.msra.mxu0 0.0
    %4575 = vmatprep.subr.mxu0 0.0
    %4576 = vmatpush1.msra.mxu0 0.0
    %4577 = vmatprep.subr.mxu0 0.0
    %4578 = vmatpush1.msra.mxu0 0.0
    %4579 = vmatprep.subr.mxu0 0.0
    %4580 = vmatpush1.msra.mxu0 0.0
    %4581 = vmatprep.subr.mxu0 0.0
    %4582 = vmatpush1.msra.mxu0 0.0
    %4583 = vmatprep.subr.mxu0 0.0
    %4584 = vmatpush1.msra.mxu0 0.0
    %4585 = vmatprep.subr.mxu0 0.0
    %4586 = vmatpush1.msra.mxu0 0.0
    %4587 = vmatprep.subr.mxu0 0.0
    %4588 = vmatpush1.msra.mxu0 0.0
    %4589 = vmatprep.subr.mxu0 0.0
    %4590 = vmatpush1.msra.mxu0 0.0
    %4591 = vmatprep.subr.mxu0 0.0
    %4592 = vmatpush1.msra.mxu0 0.0
    %4593 = vmatprep.subr.mxu0 0.0
    %4594 = vmatpush1.msra.mxu0 0.0
    %4595 = vmatprep.subr.mxu0 0.0
    %4596 = vmatpush1.msra.mxu0 0.0
    %4597 = vmatprep.subr.mxu0 0.0
    %4598 = vmatpush1.msra.mxu0 0.0
    %4599 = vmatprep.subr.mxu0 0.0
    %4600 = vmatpush1.msra.mxu0 0.0
    %4601 = vmatprep.subr.mxu0 0.0
    %4602 = vmatpush1.msra.mxu0 0.0
    %4603 = vmatprep.subr.mxu0 0.0
    %4604 = vmatpush1.msra.mxu0 0.0
    %4605 = vmatprep.subr.mxu0 0.0
    %4606 = vmatpush1.msra.mxu0 0.0
    %4607 = vmatprep.subr.mxu0 0.0
    %4608 = vmatpush1.msra.mxu0 0.0
    %4609 = vmatprep.subr.mxu0 0.0
    %4610 = vmatpush1.msra.mxu0 0.0
    %4611 = vmatprep.subr.mxu0 0.0
    %4612 = vmatpush1.msra.mxu0 0.0
    %4613 = vmatprep.subr.mxu0 0.0
    %4614 = vmatpush1.msra.mxu0 0.0
    %4615 = vmatprep.subr.mxu0 0.0
    %4616 = vmatpush1.msra.mxu0 0.0
    %4617 = vmatprep.subr.mxu0 0.0
    %4618 = vmatpush1.msra.mxu0 0.0
    %4619 = vmatprep.subr.mxu0 0.0
    %4620 = vmatpush1.msra.mxu0 0.0
    %4621 = vmatprep.subr.mxu0 0.0
    %4622 = vmatpush1.msra.mxu0 0.0
    %4623 = vmatprep.subr.mxu0 0.0
    %4624 = vmatpush1.msra.mxu0 0.0
    %4625 = vmatprep.mubr.f32.mxu0 0.0
    %4626 = vmatmul.mubr.f32.gmra.mrb[0].mxu0 %v4108
    %v4627 = vpop.f32.mrb[0].mxu0
    %v4628 = vadd.f32 0.0, %v4627
    %v4629 = vpop.f32.mrb[0].mxu0
    %4630 = vdwg.mxu0
    %s4631 = scalar_lea.vmem %s7, 12
    %v4632 = vld [vmem:[%s4631] sm:$0xf]
    %v4634 = vsel %vm4258, %v4632, 0
    %4636 = vmatprep.subr.mxu0 0.0
    %4637 = vmatpush1.msra.mxu0 %v4628
    %4638 = vmatprep.subr.mxu0 0.0
    %4639 = vmatpush1.msra.mxu0 0.0
    %4640 = vmatprep.subr.mxu0 0.0
    %4641 = vmatpush1.msra.mxu0 0.0
    %4642 = vmatprep.subr.mxu0 0.0
    %4643 = vmatpush1.msra.mxu0 0.0
    %4644 = vmatprep.subr.mxu0 0.0
    %4645 = vmatpush1.msra.mxu0 0.0
    %4646 = vmatprep.subr.mxu0 0.0
    %4647 = vmatpush1.msra.mxu0 0.0
    %4648 = vmatprep.subr.mxu0 0.0
    %4649 = vmatpush1.msra.mxu0 0.0
    %4650 = vmatprep.subr.mxu0 0.0
    %4651 = vmatpush1.msra.mxu0 0.0
    %4652 = vmatprep.subr.mxu0 0.0
    %4653 = vmatpush1.msra.mxu0 0.0
    %4654 = vmatprep.subr.mxu0 0.0
    %4655 = vmatpush1.msra.mxu0 0.0
    %4656 = vmatprep.subr.mxu0 0.0
    %4657 = vmatpush1.msra.mxu0 0.0
    %4658 = vmatprep.subr.mxu0 0.0
    %4659 = vmatpush1.msra.mxu0 0.0
    %4660 = vmatprep.subr.mxu0 0.0
    %4661 = vmatpush1.msra.mxu0 0.0
    %4662 = vmatprep.subr.mxu0 0.0
    %4663 = vmatpush1.msra.mxu0 0.0
    %4664 = vmatprep.subr.mxu0 0.0
    %4665 = vmatpush1.msra.mxu0 0.0
    %4666 = vmatprep.subr.mxu0 0.0
    %4667 = vmatpush1.msra.mxu0 0.0
    %4668 = vmatprep.subr.mxu0 0.0
    %4669 = vmatpush1.msra.mxu0 0.0
    %4670 = vmatprep.subr.mxu0 0.0
    %4671 = vmatpush1.msra.mxu0 0.0
    %4672 = vmatprep.subr.mxu0 0.0
    %4673 = vmatpush1.msra.mxu0 0.0
    %4674 = vmatprep.subr.mxu0 0.0
    %4675 = vmatpush1.msra.mxu0 0.0
    %4676 = vmatprep.subr.mxu0 0.0
    %4677 = vmatpush1.msra.mxu0 0.0
    %4678 = vmatprep.subr.mxu0 0.0
    %4679 = vmatpush1.msra.mxu0 0.0
    %4680 = vmatprep.subr.mxu0 0.0
    %4681 = vmatpush1.msra.mxu0 0.0
    %4682 = vmatprep.subr.mxu0 0.0
    %4683 = vmatpush1.msra.mxu0 0.0
    %4684 = vmatprep.subr.mxu0 0.0
    %4685 = vmatpush1.msra.mxu0 0.0
    %4686 = vmatprep.subr.mxu0 0.0
    %4687 = vmatpush1.msra.mxu0 0.0
    %4688 = vmatprep.subr.mxu0 0.0
    %4689 = vmatpush1.msra.mxu0 0.0
    %4690 = vmatprep.subr.mxu0 0.0
    %4691 = vmatpush1.msra.mxu0 0.0
    %4692 = vmatprep.subr.mxu0 0.0
    %4693 = vmatpush1.msra.mxu0 0.0
    %4694 = vmatprep.subr.mxu0 0.0
    %4695 = vmatpush1.msra.mxu0 0.0
    %4696 = vmatprep.subr.mxu0 0.0
    %4697 = vmatpush1.msra.mxu0 0.0
    %4698 = vmatprep.subr.mxu0 0.0
    %4699 = vmatpush1.msra.mxu0 0.0
    %4700 = vmatprep.mubr.f32.mxu0 0.0
    %4701 = vmatmul.mubr.f32.gmra.mrb[0].mxu0 %v4634
    %v4702 = vpop.f32.mrb[0].mxu0
    %v4703 = vadd.f32 0.0, %v4702
    %v4704 = vpop.f32.mrb[0].mxu0
    %4705 = vdwg.mxu0
    %v4706 = vadd.f32 %v4555, %v4703
    %s4707 = scalar_lea.vmem [#allocation3], 128
    %v4708 = vld [vmem:[%s4707] sm:$0xff]
    %v4709 = vld [vmem:[%s4707 + $0x8] sm:$0xff]
    %v4710 = vld [vmem:[%s4707 + $0x10] sm:$0xff]
    %v4711 = vld [vmem:[%s4707 + $0x18] sm:$0xff]
    %4712 = vmatprep.subr.mxu0 0.0
    %4713 = vmatpush1.msra.mxu0 %v4708
    %4714 = vmatprep.subr.mxu0 0.0
    %4715 = vmatpush1.msra.mxu0 %v4709
    %4716 = vmatprep.subr.mxu0 0.0
    %4717 = vmatpush1.msra.mxu0 %v4710
    %4718 = vmatprep.subr.mxu0 0.0
    %4719 = vmatpush1.msra.mxu0 %v4711
    %4720 = vmatprep.subr.mxu0 0.0
    %4721 = vmatpush1.msra.mxu0 0.0
    %4722 = vmatprep.subr.mxu0 0.0
    %4723 = vmatpush1.msra.mxu0 0.0
    %4724 = vmatprep.subr.mxu0 0.0
    %4725 = vmatpush1.msra.mxu0 0.0
    %4726 = vmatprep.subr.mxu0 0.0
    %4727 = vmatpush1.msra.mxu0 0.0
    %4728 = vmatprep.subr.mxu0 0.0
    %4729 = vmatpush1.msra.mxu0 0.0
    %4730 = vmatprep.subr.mxu0 0.0
    %4731 = vmatpush1.msra.mxu0 0.0
    %4732 = vmatprep.subr.mxu0 0.0
    %4733 = vmatpush1.msra.mxu0 0.0
    %4734 = vmatprep.subr.mxu0 0.0
    %4735 = vmatpush1.msra.mxu0 0.0
    %4736 = vmatprep.subr.mxu0 0.0
    %4737 = vmatpush1.msra.mxu0 0.0
    %4738 = vmatprep.subr.mxu0 0.0
    %4739 = vmatpush1.msra.mxu0 0.0
    %4740 = vmatprep.subr.mxu0 0.0
    %4741 = vmatpush1.msra.mxu0 0.0
    %4742 = vmatprep.subr.mxu0 0.0
    %4743 = vmatpush1.msra.mxu0 0.0
    %4744 = vmatprep.subr.mxu0 0.0
    %4745 = vmatpush1.msra.mxu0 0.0
    %4746 = vmatprep.subr.mxu0 0.0
    %4747 = vmatpush1.msra.mxu0 0.0
    %4748 = vmatprep.subr.mxu0 0.0
    %4749 = vmatpush1.msra.mxu0 0.0
    %4750 = vmatprep.subr.mxu0 0.0
    %4751 = vmatpush1.msra.mxu0 0.0
    %4752 = vmatprep.subr.mxu0 0.0
    %4753 = vmatpush1.msra.mxu0 0.0
    %4754 = vmatprep.subr.mxu0 0.0
    %4755 = vmatpush1.msra.mxu0 0.0
    %4756 = vmatprep.subr.mxu0 0.0
    %4757 = vmatpush1.msra.mxu0 0.0
    %4758 = vmatprep.subr.mxu0 0.0
    %4759 = vmatpush1.msra.mxu0 0.0
    %4760 = vmatprep.subr.mxu0 0.0
    %4761 = vmatpush1.msra.mxu0 0.0
    %4762 = vmatprep.subr.mxu0 0.0
    %4763 = vmatpush1.msra.mxu0 0.0
    %4764 = vmatprep.subr.mxu0 0.0
    %4765 = vmatpush1.msra.mxu0 0.0
    %4766 = vmatprep.subr.mxu0 0.0
    %4767 = vmatpush1.msra.mxu0 0.0
    %4768 = vmatprep.subr.mxu0 0.0
    %4769 = vmatpush1.msra.mxu0 0.0
    %4770 = vmatprep.subr.mxu0 0.0
    %4771 = vmatpush1.msra.mxu0 0.0
    %4772 = vmatprep.subr.mxu0 0.0
    %4773 = vmatpush1.msra.mxu0 0.0
    %4774 = vmatprep.subr.mxu0 0.0
    %4775 = vmatpush1.msra.mxu0 0.0
    %4776 = vmatprep.mubr.f32.mxu0 0.0
    %4777 = vmatmul.mubr.f32.gmra.mrb[0].mxu0 %v4108
    %v4778 = vpop.f32.mrb[0].mxu0
    %v4779 = vadd.f32 0.0, %v4778
    %v4780 = vpop.f32.mrb[0].mxu0
    %4781 = vdwg.mxu0
    %s4782 = scalar_lea.vmem %s7, 16
    %v4783 = vld [vmem:[%s4782] sm:$0xf]
    %v4785 = vsel %vm4258, %v4783, 0
    %4787 = vmatprep.subr.mxu0 0.0
    %4788 = vmatpush1.msra.mxu0 %v4779
    %4789 = vmatprep.subr.mxu0 0.0
    %4790 = vmatpush1.msra.mxu0 0.0
    %4791 = vmatprep.subr.mxu0 0.0
    %4792 = vmatpush1.msra.mxu0 0.0
    %4793 = vmatprep.subr.mxu0 0.0
    %4794 = vmatpush1.msra.mxu0 0.0
    %4795 = vmatprep.subr.mxu0 0.0
    %4796 = vmatpush1.msra.mxu0 0.0
    %4797 = vmatprep.subr.mxu0 0.0
    %4798 = vmatpush1.msra.mxu0 0.0
    %4799 = vmatprep.subr.mxu0 0.0
    %4800 = vmatpush1.msra.mxu0 0.0
    %4801 = vmatprep.subr.mxu0 0.0
    %4802 = vmatpush1.msra.mxu0 0.0
    %4803 = vmatprep.subr.mxu0 0.0
    %4804 = vmatpush1.msra.mxu0 0.0
    %4805 = vmatprep.subr.mxu0 0.0
    %4806 = vmatpush1.msra.mxu0 0.0
    %4807 = vmatprep.subr.mxu0 0.0
    %4808 = vmatpush1.msra.mxu0 0.0
    %4809 = vmatprep.subr.mxu0 0.0
    %4810 = vmatpush1.msra.mxu0 0.0
    %4811 = vmatprep.subr.mxu0 0.0
    %4812 = vmatpush1.msra.mxu0 0.0
    %4813 = vmatprep.subr.mxu0 0.0
    %4814 = vmatpush1.msra.mxu0 0.0
    %4815 = vmatprep.subr.mxu0 0.0
    %4816 = vmatpush1.msra.mxu0 0.0
    %4817 = vmatprep.subr.mxu0 0.0
    %4818 = vmatpush1.msra.mxu0 0.0
    %4819 = vmatprep.subr.mxu0 0.0
    %4820 = vmatpush1.msra.mxu0 0.0
    %4821 = vmatprep.subr.mxu0 0.0
    %4822 = vmatpush1.msra.mxu0 0.0
    %4823 = vmatprep.subr.mxu0 0.0
    %4824 = vmatpush1.msra.mxu0 0.0
    %4825 = vmatprep.subr.mxu0 0.0
    %4826 = vmatpush1.msra.mxu0 0.0
    %4827 = vmatprep.subr.mxu0 0.0
    %4828 = vmatpush1.msra.mxu0 0.0
    %4829 = vmatprep.subr.mxu0 0.0
    %4830 = vmatpush1.msra.mxu0 0.0
    %4831 = vmatprep.subr.mxu0 0.0
    %4832 = vmatpush1.msra.mxu0 0.0
    %4833 = vmatprep.subr.mxu0 0.0
    %4834 = vmatpush1.msra.mxu0 0.0
    %4835 = vmatprep.subr.mxu0 0.0
    %4836 = vmatpush1.msra.mxu0 0.0
    %4837 = vmatprep.subr.mxu0 0.0
    %4838 = vmatpush1.msra.mxu0 0.0
    %4839 = vmatprep.subr.mxu0 0.0
    %4840 = vmatpush1.msra.mxu0 0.0
    %4841 = vmatprep.subr.mxu0 0.0
    %4842 = vmatpush1.msra.mxu0 0.0
    %4843 = vmatprep.subr.mxu0 0.0
    %4844 = vmatpush1.msra.mxu0 0.0
    %4845 = vmatprep.subr.mxu0 0.0
    %4846 = vmatpush1.msra.mxu0 0.0
    %4847 = vmatprep.subr.mxu0 0.0
    %4848 = vmatpush1.msra.mxu0 0.0
    %4849 = vmatprep.subr.mxu0 0.0
    %4850 = vmatpush1.msra.mxu0 0.0
    %4851 = vmatprep.mubr.f32.mxu0 0.0
    %4852 = vmatmul.mubr.f32.gmra.mrb[0].mxu0 %v4785
    %v4853 = vpop.f32.mrb[0].mxu0
    %v4854 = vadd.f32 0.0, %v4853
    %v4855 = vpop.f32.mrb[0].mxu0
    %4856 = vdwg.mxu0
    %v4857 = vadd.f32 %v4706, %v4854
    %s4858 = scalar_lea.vmem [#allocation3], 160
    %v4859 = vld [vmem:[%s4858] sm:$0xff]
    %v4860 = vld [vmem:[%s4858 + $0x8] sm:$0xff]
    %v4861 = vld [vmem:[%s4858 + $0x10] sm:$0xff]
    %v4862 = vld [vmem:[%s4858 + $0x18] sm:$0xff]
    %4863 = vmatprep.subr.mxu0 0.0
    %4864 = vmatpush1.msra.mxu0 %v4859
    %4865 = vmatprep.subr.mxu0 0.0
    %4866 = vmatpush1.msra.mxu0 %v4860
    %4867 = vmatprep.subr.mxu0 0.0
    %4868 = vmatpush1.msra.mxu0 %v4861
    %4869 = vmatprep.subr.mxu0 0.0
    %4870 = vmatpush1.msra.mxu0 %v4862
    %4871 = vmatprep.subr.mxu0 0.0
    %4872 = vmatpush1.msra.mxu0 0.0
    %4873 = vmatprep.subr.mxu0 0.0
    %4874 = vmatpush1.msra.mxu0 0.0
    %4875 = vmatprep.subr.mxu0 0.0
    %4876 = vmatpush1.msra.mxu0 0.0
    %4877 = vmatprep.subr.mxu0 0.0
    %4878 = vmatpush1.msra.mxu0 0.0
    %4879 = vmatprep.subr.mxu0 0.0
    %4880 = vmatpush1.msra.mxu0 0.0
    %4881 = vmatprep.subr.mxu0 0.0
    %4882 = vmatpush1.msra.mxu0 0.0
    %4883 = vmatprep.subr.mxu0 0.0
    %4884 = vmatpush1.msra.mxu0 0.0
    %4885 = vmatprep.subr.mxu0 0.0
    %4886 = vmatpush1.msra.mxu0 0.0
    %4887 = vmatprep.subr.mxu0 0.0
    %4888 = vmatpush1.msra.mxu0 0.0
    %4889 = vmatprep.subr.mxu0 0.0
    %4890 = vmatpush1.msra.mxu0 0.0
    %4891 = vmatprep.subr.mxu0 0.0
    %4892 = vmatpush1.msra.mxu0 0.0
    %4893 = vmatprep.subr.mxu0 0.0
    %4894 = vmatpush1.msra.mxu0 0.0
    %4895 = vmatprep.subr.mxu0 0.0
    %4896 = vmatpush1.msra.mxu0 0.0
    %4897 = vmatprep.subr.mxu0 0.0
    %4898 = vmatpush1.msra.mxu0 0.0
    %4899 = vmatprep.subr.mxu0 0.0
    %4900 = vmatpush1.msra.mxu0 0.0
    %4901 = vmatprep.subr.mxu0 0.0
    %4902 = vmatpush1.msra.mxu0 0.0
    %4903 = vmatprep.subr.mxu0 0.0
    %4904 = vmatpush1.msra.mxu0 0.0
    %4905 = vmatprep.subr.mxu0 0.0
    %4906 = vmatpush1.msra.mxu0 0.0
    %4907 = vmatprep.subr.mxu0 0.0
    %4908 = vmatpush1.msra.mxu0 0.0
    %4909 = vmatprep.subr.mxu0 0.0
    %4910 = vmatpush1.msra.mxu0 0.0
    %4911 = vmatprep.subr.mxu0 0.0
    %4912 = vmatpush1.msra.mxu0 0.0
    %4913 = vmatprep.subr.mxu0 0.0
    %4914 = vmatpush1.msra.mxu0 0.0
    %4915 = vmatprep.subr.mxu0 0.0
    %4916 = vmatpush1.msra.mxu0 0.0
    %4917 = vmatprep.subr.mxu0 0.0
    %4918 = vmatpush1.msra.mxu0 0.0
    %4919 = vmatprep.subr.mxu0 0.0
    %4920 = vmatpush1.msra.mxu0 0.0
    %4921 = vmatprep.subr.mxu0 0.0
    %4922 = vmatpush1.msra.mxu0 0.0
    %4923 = vmatprep.subr.mxu0 0.0
    %4924 = vmatpush1.msra.mxu0 0.0
    %4925 = vmatprep.subr.mxu0 0.0
    %4926 = vmatpush1.msra.mxu0 0.0
    %4927 = vmatprep.mubr.f32.mxu0 0.0
    %4928 = vmatmul.mubr.f32.gmra.mrb[0].mxu0 %v4108
    %v4929 = vpop.f32.mrb[0].mxu0
    %v4930 = vadd.f32 0.0, %v4929
    %v4931 = vpop.f32.mrb[0].mxu0
    %4932 = vdwg.mxu0
    %s4933 = scalar_lea.vmem %s7, 20
    %v4934 = vld [vmem:[%s4933] sm:$0xf]
    %v4936 = vsel %vm4258, %v4934, 0
    %4938 = vmatprep.subr.mxu0 0.0
    %4939 = vmatpush1.msra.mxu0 %v4930
    %4940 = vmatprep.subr.mxu0 0.0
    %4941 = vmatpush1.msra.mxu0 0.0
    %4942 = vmatprep.subr.mxu0 0.0
    %4943 = vmatpush1.msra.mxu0 0.0
    %4944 = vmatprep.subr.mxu0 0.0
    %4945 = vmatpush1.msra.mxu0 0.0
    %4946 = vmatprep.subr.mxu0 0.0
    %4947 = vmatpush1.msra.mxu0 0.0
    %4948 = vmatprep.subr.mxu0 0.0
    %4949 = vmatpush1.msra.mxu0 0.0
    %4950 = vmatprep.subr.mxu0 0.0
    %4951 = vmatpush1.msra.mxu0 0.0
    %4952 = vmatprep.subr.mxu0 0.0
    %4953 = vmatpush1.msra.mxu0 0.0
    %4954 = vmatprep.subr.mxu0 0.0
    %4955 = vmatpush1.msra.mxu0 0.0
    %4956 = vmatprep.subr.mxu0 0.0
    %4957 = vmatpush1.msra.mxu0 0.0
    %4958 = vmatprep.subr.mxu0 0.0
    %4959 = vmatpush1.msra.mxu0 0.0
    %4960 = vmatprep.subr.mxu0 0.0
    %4961 = vmatpush1.msra.mxu0 0.0
    %4962 = vmatprep.subr.mxu0 0.0
    %4963 = vmatpush1.msra.mxu0 0.0
    %4964 = vmatprep.subr.mxu0 0.0
    %4965 = vmatpush1.msra.mxu0 0.0
    %4966 = vmatprep.subr.mxu0 0.0
    %4967 = vmatpush1.msra.mxu0 0.0
    %4968 = vmatprep.subr.mxu0 0.0
    %4969 = vmatpush1.msra.mxu0 0.0
    %4970 = vmatprep.subr.mxu0 0.0
    %4971 = vmatpush1.msra.mxu0 0.0
    %4972 = vmatprep.subr.mxu0 0.0
    %4973 = vmatpush1.msra.mxu0 0.0
    %4974 = vmatprep.subr.mxu0 0.0
    %4975 = vmatpush1.msra.mxu0 0.0
    %4976 = vmatprep.subr.mxu0 0.0
    %4977 = vmatpush1.msra.mxu0 0.0
    %4978 = vmatprep.subr.mxu0 0.0
    %4979 = vmatpush1.msra.mxu0 0.0
    %4980 = vmatprep.subr.mxu0 0.0
    %4981 = vmatpush1.msra.mxu0 0.0
    %4982 = vmatprep.subr.mxu0 0.0
    %4983 = vmatpush1.msra.mxu0 0.0
    %4984 = vmatprep.subr.mxu0 0.0
    %4985 = vmatpush1.msra.mxu0 0.0
    %4986 = vmatprep.subr.mxu0 0.0
    %4987 = vmatpush1.msra.mxu0 0.0
    %4988 = vmatprep.subr.mxu0 0.0
    %4989 = vmatpush1.msra.mxu0 0.0
    %4990 = vmatprep.subr.mxu0 0.0
    %4991 = vmatpush1.msra.mxu0 0.0
    %4992 = vmatprep.subr.mxu0 0.0
    %4993 = vmatpush1.msra.mxu0 0.0
    %4994 = vmatprep.subr.mxu0 0.0
    %4995 = vmatpush1.msra.mxu0 0.0
    %4996 = vmatprep.subr.mxu0 0.0
    %4997 = vmatpush1.msra.mxu0 0.0
    %4998 = vmatprep.subr.mxu0 0.0
    %4999 = vmatpush1.msra.mxu0 0.0
    %5000 = vmatprep.subr.mxu0 0.0
    %5001 = vmatpush1.msra.mxu0 0.0
    %5002 = vmatprep.mubr.f32.mxu0 0.0
    %5003 = vmatmul.mubr.f32.gmra.mrb[0].mxu0 %v4936
    %v5004 = vpop.f32.mrb[0].mxu0
    %v5005 = vadd.f32 0.0, %v5004
    %v5006 = vpop.f32.mrb[0].mxu0
    %5007 = vdwg.mxu0
    %v5008 = vadd.f32 %v4857, %v5005
    %s5009 = scalar_lea.vmem [#allocation3], 192
    %v5010 = vld [vmem:[%s5009] sm:$0xff]
    %v5011 = vld [vmem:[%s5009 + $0x8] sm:$0xff]
    %v5012 = vld [vmem:[%s5009 + $0x10] sm:$0xff]
    %v5013 = vld [vmem:[%s5009 + $0x18] sm:$0xff]
    %5014 = vmatprep.subr.mxu0 0.0
    %5015 = vmatpush1.msra.mxu0 %v5010
    %5016 = vmatprep.subr.mxu0 0.0
    %5017 = vmatpush1.msra.mxu0 %v5011
    %5018 = vmatprep.subr.mxu0 0.0
    %5019 = vmatpush1.msra.mxu0 %v5012
    %5020 = vmatprep.subr.mxu0 0.0
    %5021 = vmatpush1.msra.mxu0 %v5013
    %5022 = vmatprep.subr.mxu0 0.0
    %5023 = vmatpush1.msra.mxu0 0.0
    %5024 = vmatprep.subr.mxu0 0.0
    %5025 = vmatpush1.msra.mxu0 0.0
    %5026 = vmatprep.subr.mxu0 0.0
    %5027 = vmatpush1.msra.mxu0 0.0
    %5028 = vmatprep.subr.mxu0 0.0
    %5029 = vmatpush1.msra.mxu0 0.0
    %5030 = vmatprep.subr.mxu0 0.0
    %5031 = vmatpush1.msra.mxu0 0.0
    %5032 = vmatprep.subr.mxu0 0.0
    %5033 = vmatpush1.msra.mxu0 0.0
    %5034 = vmatprep.subr.mxu0 0.0
    %5035 = vmatpush1.msra.mxu0 0.0
    %5036 = vmatprep.subr.mxu0 0.0
    %5037 = vmatpush1.msra.mxu0 0.0
    %5038 = vmatprep.subr.mxu0 0.0
    %5039 = vmatpush1.msra.mxu0 0.0
    %5040 = vmatprep.subr.mxu0 0.0
    %5041 = vmatpush1.msra.mxu0 0.0
    %5042 = vmatprep.subr.mxu0 0.0
    %5043 = vmatpush1.msra.mxu0 0.0
    %5044 = vmatprep.subr.mxu0 0.0
    %5045 = vmatpush1.msra.mxu0 0.0
    %5046 = vmatprep.subr.mxu0 0.0
    %5047 = vmatpush1.msra.mxu0 0.0
    %5048 = vmatprep.subr.mxu0 0.0
    %5049 = vmatpush1.msra.mxu0 0.0
    %5050 = vmatprep.subr.mxu0 0.0
    %5051 = vmatpush1.msra.mxu0 0.0
    %5052 = vmatprep.subr.mxu0 0.0
    %5053 = vmatpush1.msra.mxu0 0.0
    %5054 = vmatprep.subr.mxu0 0.0
    %5055 = vmatpush1.msra.mxu0 0.0
    %5056 = vmatprep.subr.mxu0 0.0
    %5057 = vmatpush1.msra.mxu0 0.0
    %5058 = vmatprep.subr.mxu0 0.0
    %5059 = vmatpush1.msra.mxu0 0.0
    %5060 = vmatprep.subr.mxu0 0.0
    %5061 = vmatpush1.msra.mxu0 0.0
    %5062 = vmatprep.subr.mxu0 0.0
    %5063 = vmatpush1.msra.mxu0 0.0
    %5064 = vmatprep.subr.mxu0 0.0
    %5065 = vmatpush1.msra.mxu0 0.0
    %5066 = vmatprep.subr.mxu0 0.0
    %5067 = vmatpush1.msra.mxu0 0.0
    %5068 = vmatprep.subr.mxu0 0.0
    %5069 = vmatpush1.msra.mxu0 0.0
    %5070 = vmatprep.subr.mxu0 0.0
    %5071 = vmatpush1.msra.mxu0 0.0
    %5072 = vmatprep.subr.mxu0 0.0
    %5073 = vmatpush1.msra.mxu0 0.0
    %5074 = vmatprep.subr.mxu0 0.0
    %5075 = vmatpush1.msra.mxu0 0.0
    %5076 = vmatprep.subr.mxu0 0.0
    %5077 = vmatpush1.msra.mxu0 0.0
    %5078 = vmatprep.mubr.f32.mxu0 0.0
    %5079 = vmatmul.mubr.f32.gmra.mrb[0].mxu0 %v4108
    %v5080 = vpop.f32.mrb[0].mxu0
    %v5081 = vadd.f32 0.0, %v5080
    %v5082 = vpop.f32.mrb[0].mxu0
    %5083 = vdwg.mxu0
    %s5084 = scalar_lea.vmem %s7, 24
    %v5085 = vld [vmem:[%s5084] sm:$0xf]
    %v5087 = vsel %vm4258, %v5085, 0
    %5089 = vmatprep.subr.mxu0 0.0
    %5090 = vmatpush1.msra.mxu0 %v5081
    %5091 = vmatprep.subr.mxu0 0.0
    %5092 = vmatpush1.msra.mxu0 0.0
    %5093 = vmatprep.subr.mxu0 0.0
    %5094 = vmatpush1.msra.mxu0 0.0
    %5095 = vmatprep.subr.mxu0 0.0
    %5096 = vmatpush1.msra.mxu0 0.0
    %5097 = vmatprep.subr.mxu0 0.0
    %5098 = vmatpush1.msra.mxu0 0.0
    %5099 = vmatprep.subr.mxu0 0.0
    %5100 = vmatpush1.msra.mxu0 0.0
    %5101 = vmatprep.subr.mxu0 0.0
    %5102 = vmatpush1.msra.mxu0 0.0
    %5103 = vmatprep.subr.mxu0 0.0
    %5104 = vmatpush1.msra.mxu0 0.0
    %5105 = vmatprep.subr.mxu0 0.0
    %5106 = vmatpush1.msra.mxu0 0.0
    %5107 = vmatprep.subr.mxu0 0.0
    %5108 = vmatpush1.msra.mxu0 0.0
    %5109 = vmatprep.subr.mxu0 0.0
    %5110 = vmatpush1.msra.mxu0 0.0
    %5111 = vmatprep.subr.mxu0 0.0
    %5112 = vmatpush1.msra.mxu0 0.0
    %5113 = vmatprep.subr.mxu0 0.0
    %5114 = vmatpush1.msra.mxu0 0.0
    %5115 = vmatprep.subr.mxu0 0.0
    %5116 = vmatpush1.msra.mxu0 0.0
    %5117 = vmatprep.subr.mxu0 0.0
    %5118 = vmatpush1.msra.mxu0 0.0
    %5119 = vmatprep.subr.mxu0 0.0
    %5120 = vmatpush1.msra.mxu0 0.0
    %5121 = vmatprep.subr.mxu0 0.0
    %5122 = vmatpush1.msra.mxu0 0.0
    %5123 = vmatprep.subr.mxu0 0.0
    %5124 = vmatpush1.msra.mxu0 0.0
    %5125 = vmatprep.subr.mxu0 0.0
    %5126 = vmatpush1.msra.mxu0 0.0
    %5127 = vmatprep.subr.mxu0 0.0
    %5128 = vmatpush1.msra.mxu0 0.0
    %5129 = vmatprep.subr.mxu0 0.0
    %5130 = vmatpush1.msra.mxu0 0.0
    %5131 = vmatprep.subr.mxu0 0.0
    %5132 = vmatpush1.msra.mxu0 0.0
    %5133 = vmatprep.subr.mxu0 0.0
    %5134 = vmatpush1.msra.mxu0 0.0
    %5135 = vmatprep.subr.mxu0 0.0
    %5136 = vmatpush1.msra.mxu0 0.0
    %5137 = vmatprep.subr.mxu0 0.0
    %5138 = vmatpush1.msra.mxu0 0.0
    %5139 = vmatprep.subr.mxu0 0.0
    %5140 = vmatpush1.msra.mxu0 0.0
    %5141 = vmatprep.subr.mxu0 0.0
    %5142 = vmatpush1.msra.mxu0 0.0
    %5143 = vmatprep.subr.mxu0 0.0
    %5144 = vmatpush1.msra.mxu0 0.0
    %5145 = vmatprep.subr.mxu0 0.0
    %5146 = vmatpush1.msra.mxu0 0.0
    %5147 = vmatprep.subr.mxu0 0.0
    %5148 = vmatpush1.msra.mxu0 0.0
    %5149 = vmatprep.subr.mxu0 0.0
    %5150 = vmatpush1.msra.mxu0 0.0
    %5151 = vmatprep.subr.mxu0 0.0
    %5152 = vmatpush1.msra.mxu0 0.0
    %5153 = vmatprep.mubr.f32.mxu0 0.0
    %5154 = vmatmul.mubr.f32.gmra.mrb[0].mxu0 %v5087
    %v5155 = vpop.f32.mrb[0].mxu0
    %v5156 = vadd.f32 0.0, %v5155
    %v5157 = vpop.f32.mrb[0].mxu0
    %5158 = vdwg.mxu0
    %v5159 = vadd.f32 %v5008, %v5156
    %s5160 = scalar_lea.vmem [#allocation3], 224
    %v5161 = vld [vmem:[%s5160] sm:$0xff]
    %v5162 = vld [vmem:[%s5160 + $0x8] sm:$0xff]
    %v5163 = vld [vmem:[%s5160 + $0x10] sm:$0xff]
    %v5164 = vld [vmem:[%s5160 + $0x18] sm:$0xff]
    %5165 = vmatprep.subr.mxu0 0.0
    %5166 = vmatpush1.msra.mxu0 %v5161
    %5167 = vmatprep.subr.mxu0 0.0
    %5168 = vmatpush1.msra.mxu0 %v5162
    %5169 = vmatprep.subr.mxu0 0.0
    %5170 = vmatpush1.msra.mxu0 %v5163
    %5171 = vmatprep.subr.mxu0 0.0
    %5172 = vmatpush1.msra.mxu0 %v5164
    %5173 = vmatprep.subr.mxu0 0.0
    %5174 = vmatpush1.msra.mxu0 0.0
    %5175 = vmatprep.subr.mxu0 0.0
    %5176 = vmatpush1.msra.mxu0 0.0
    %5177 = vmatprep.subr.mxu0 0.0
    %5178 = vmatpush1.msra.mxu0 0.0
    %5179 = vmatprep.subr.mxu0 0.0
    %5180 = vmatpush1.msra.mxu0 0.0
    %5181 = vmatprep.subr.mxu0 0.0
    %5182 = vmatpush1.msra.mxu0 0.0
    %5183 = vmatprep.subr.mxu0 0.0
    %5184 = vmatpush1.msra.mxu0 0.0
    %5185 = vmatprep.subr.mxu0 0.0
    %5186 = vmatpush1.msra.mxu0 0.0
    %5187 = vmatprep.subr.mxu0 0.0
    %5188 = vmatpush1.msra.mxu0 0.0
    %5189 = vmatprep.subr.mxu0 0.0
    %5190 = vmatpush1.msra.mxu0 0.0
    %5191 = vmatprep.subr.mxu0 0.0
    %5192 = vmatpush1.msra.mxu0 0.0
    %5193 = vmatprep.subr.mxu0 0.0
    %5194 = vmatpush1.msra.mxu0 0.0
    %5195 = vmatprep.subr.mxu0 0.0
    %5196 = vmatpush1.msra.mxu0 0.0
    %5197 = vmatprep.subr.mxu0 0.0
    %5198 = vmatpush1.msra.mxu0 0.0
    %5199 = vmatprep.subr.mxu0 0.0
    %5200 = vmatpush1.msra.mxu0 0.0
    %5201 = vmatprep.subr.mxu0 0.0
    %5202 = vmatpush1.msra.mxu0 0.0
    %5203 = vmatprep.subr.mxu0 0.0
    %5204 = vmatpush1.msra.mxu0 0.0
    %5205 = vmatprep.subr.mxu0 0.0
    %5206 = vmatpush1.msra.mxu0 0.0
    %5207 = vmatprep.subr.mxu0 0.0
    %5208 = vmatpush1.msra.mxu0 0.0
    %5209 = vmatprep.subr.mxu0 0.0
    %5210 = vmatpush1.msra.mxu0 0.0
    %5211 = vmatprep.subr.mxu0 0.0
    %5212 = vmatpush1.msra.mxu0 0.0
    %5213 = vmatprep.subr.mxu0 0.0
    %5214 = vmatpush1.msra.mxu0 0.0
    %5215 = vmatprep.subr.mxu0 0.0
    %5216 = vmatpush1.msra.mxu0 0.0
    %5217 = vmatprep.subr.mxu0 0.0
    %5218 = vmatpush1.msra.mxu0 0.0
    %5219 = vmatprep.subr.mxu0 0.0
    %5220 = vmatpush1.msra.mxu0 0.0
    %5221 = vmatprep.subr.mxu0 0.0
    %5222 = vmatpush1.msra.mxu0 0.0
    %5223 = vmatprep.subr.mxu0 0.0
    %5224 = vmatpush1.msra.mxu0 0.0
    %5225 = vmatprep.subr.mxu0 0.0
    %5226 = vmatpush1.msra.mxu0 0.0
    %5227 = vmatprep.subr.mxu0 0.0
    %5228 = vmatpush1.msra.mxu0 0.0
    %5229 = vmatprep.mubr.f32.mxu0 0.0
    %5230 = vmatmul.mubr.f32.gmra.mrb[0].mxu0 %v4108
    %v5231 = vpop.f32.mrb[0].mxu0
    %v5232 = vadd.f32 0.0, %v5231
    %v5233 = vpop.f32.mrb[0].mxu0
    %5234 = vdwg.mxu0
    %s5235 = scalar_lea.vmem %s7, 28
    %v5236 = vld [vmem:[%s5235] sm:$0xf]
    %v5238 = vsel %vm4258, %v5236, 0
    %5240 = vmatprep.subr.mxu0 0.0
    %5241 = vmatpush1.msra.mxu0 %v5232
    %5242 = vmatprep.subr.mxu0 0.0
    %5243 = vmatpush1.msra.mxu0 0.0
    %5244 = vmatprep.subr.mxu0 0.0
    %5245 = vmatpush1.msra.mxu0 0.0
    %5246 = vmatprep.subr.mxu0 0.0
    %5247 = vmatpush1.msra.mxu0 0.0
    %5248 = vmatprep.subr.mxu0 0.0
    %5249 = vmatpush1.msra.mxu0 0.0
    %5250 = vmatprep.subr.mxu0 0.0
    %5251 = vmatpush1.msra.mxu0 0.0
    %5252 = vmatprep.subr.mxu0 0.0
    %5253 = vmatpush1.msra.mxu0 0.0
    %5254 = vmatprep.subr.mxu0 0.0
    %5255 = vmatpush1.msra.mxu0 0.0
    %5256 = vmatprep.subr.mxu0 0.0
    %5257 = vmatpush1.msra.mxu0 0.0
    %5258 = vmatprep.subr.mxu0 0.0
    %5259 = vmatpush1.msra.mxu0 0.0
    %5260 = vmatprep.subr.mxu0 0.0
    %5261 = vmatpush1.msra.mxu0 0.0
    %5262 = vmatprep.subr.mxu0 0.0
    %5263 = vmatpush1.msra.mxu0 0.0
    %5264 = vmatprep.subr.mxu0 0.0
    %5265 = vmatpush1.msra.mxu0 0.0
    %5266 = vmatprep.subr.mxu0 0.0
    %5267 = vmatpush1.msra.mxu0 0.0
    %5268 = vmatprep.subr.mxu0 0.0
    %5269 = vmatpush1.msra.mxu0 0.0
    %5270 = vmatprep.subr.mxu0 0.0
    %5271 = vmatpush1.msra.mxu0 0.0
    %5272 = vmatprep.subr.mxu0 0.0
    %5273 = vmatpush1.msra.mxu0 0.0
    %5274 = vmatprep.subr.mxu0 0.0
    %5275 = vmatpush1.msra.mxu0 0.0
    %5276 = vmatprep.subr.mxu0 0.0
    %5277 = vmatpush1.msra.mxu0 0.0
    %5278 = vmatprep.subr.mxu0 0.0
    %5279 = vmatpush1.msra.mxu0 0.0
    %5280 = vmatprep.subr.mxu0 0.0
    %5281 = vmatpush1.msra.mxu0 0.0
    %5282 = vmatprep.subr.mxu0 0.0
    %5283 = vmatpush1.msra.mxu0 0.0
    %5284 = vmatprep.subr.mxu0 0.0
    %5285 = vmatpush1.msra.mxu0 0.0
    %5286 = vmatprep.subr.mxu0 0.0
    %5287 = vmatpush1.msra.mxu0 0.0
    %5288 = vmatprep.subr.mxu0 0.0
    %5289 = vmatpush1.msra.mxu0 0.0
    %5290 = vmatprep.subr.mxu0 0.0
    %5291 = vmatpush1.msra.mxu0 0.0
    %5292 = vmatprep.subr.mxu0 0.0
    %5293 = vmatpush1.msra.mxu0 0.0
    %5294 = vmatprep.subr.mxu0 0.0
    %5295 = vmatpush1.msra.mxu0 0.0
    %5296 = vmatprep.subr.mxu0 0.0
    %5297 = vmatpush1.msra.mxu0 0.0
    %5298 = vmatprep.subr.mxu0 0.0
    %5299 = vmatpush1.msra.mxu0 0.0
    %5300 = vmatprep.subr.mxu0 0.0
    %5301 = vmatpush1.msra.mxu0 0.0
    %5302 = vmatprep.subr.mxu0 0.0
    %5303 = vmatpush1.msra.mxu0 0.0
    %5304 = vmatprep.mubr.f32.mxu0 0.0
    %5305 = vmatmul.mubr.f32.gmra.mrb[0].mxu0 %v5238
    %v5306 = vpop.f32.mrb[0].mxu0
    %v5307 = vadd.f32 0.0, %v5306
    %v5308 = vpop.f32.mrb[0].mxu0
    %5309 = vdwg.mxu0
    %v5310 = vadd.f32 %v5159, %v5307
    %s5311 = scalar_lea.vmem [#allocation3], 256
    %v5312 = vld [vmem:[%s5311] sm:$0xff]
    %v5313 = vld [vmem:[%s5311 + $0x8] sm:$0xff]
    %v5314 = vld [vmem:[%s5311 + $0x10] sm:$0xff]
    %v5315 = vld [vmem:[%s5311 + $0x18] sm:$0xff]
    %5316 = vmatprep.subr.mxu0 0.0
    %5317 = vmatpush1.msra.mxu0 %v5312
    %5318 = vmatprep.subr.mxu0 0.0
    %5319 = vmatpush1.msra.mxu0 %v5313
    %5320 = vmatprep.subr.mxu0 0.0
    %5321 = vmatpush1.msra.mxu0 %v5314
    %5322 = vmatprep.subr.mxu0 0.0
    %5323 = vmatpush1.msra.mxu0 %v5315
    %5324 = vmatprep.subr.mxu0 0.0
    %5325 = vmatpush1.msra.mxu0 0.0
    %5326 = vmatprep.subr.mxu0 0.0
    %5327 = vmatpush1.msra.mxu0 0.0
    %5328 = vmatprep.subr.mxu0 0.0
    %5329 = vmatpush1.msra.mxu0 0.0
    %5330 = vmatprep.subr.mxu0 0.0
    %5331 = vmatpush1.msra.mxu0 0.0
    %5332 = vmatprep.subr.mxu0 0.0
    %5333 = vmatpush1.msra.mxu0 0.0
    %5334 = vmatprep.subr.mxu0 0.0
    %5335 = vmatpush1.msra.mxu0 0.0
    %5336 = vmatprep.subr.mxu0 0.0
    %5337 = vmatpush1.msra.mxu0 0.0
    %5338 = vmatprep.subr.mxu0 0.0
    %5339 = vmatpush1.msra.mxu0 0.0
    %5340 = vmatprep.subr.mxu0 0.0
    %5341 = vmatpush1.msra.mxu0 0.0
    %5342 = vmatprep.subr.mxu0 0.0
    %5343 = vmatpush1.msra.mxu0 0.0
    %5344 = vmatprep.subr.mxu0 0.0
    %5345 = vmatpush1.msra.mxu0 0.0
    %5346 = vmatprep.subr.mxu0 0.0
    %5347 = vmatpush1.msra.mxu0 0.0
    %5348 = vmatprep.subr.mxu0 0.0
    %5349 = vmatpush1.msra.mxu0 0.0
    %5350 = vmatprep.subr.mxu0 0.0
    %5351 = vmatpush1.msra.mxu0 0.0
    %5352 = vmatprep.subr.mxu0 0.0
    %5353 = vmatpush1.msra.mxu0 0.0
    %5354 = vmatprep.subr.mxu0 0.0
    %5355 = vmatpush1.msra.mxu0 0.0
    %5356 = vmatprep.subr.mxu0 0.0
    %5357 = vmatpush1.msra.mxu0 0.0
    %5358 = vmatprep.subr.mxu0 0.0
    %5359 = vmatpush1.msra.mxu0 0.0
    %5360 = vmatprep.subr.mxu0 0.0
    %5361 = vmatpush1.msra.mxu0 0.0
    %5362 = vmatprep.subr.mxu0 0.0
    %5363 = vmatpush1.msra.mxu0 0.0
    %5364 = vmatprep.subr.mxu0 0.0
    %5365 = vmatpush1.msra.mxu0 0.0
    %5366 = vmatprep.subr.mxu0 0.0
    %5367 = vmatpush1.msra.mxu0 0.0
    %5368 = vmatprep.subr.mxu0 0.0
    %5369 = vmatpush1.msra.mxu0 0.0
    %5370 = vmatprep.subr.mxu0 0.0
    %5371 = vmatpush1.msra.mxu0 0.0
    %5372 = vmatprep.subr.mxu0 0.0
    %5373 = vmatpush1.msra.mxu0 0.0
    %5374 = vmatprep.subr.mxu0 0.0
    %5375 = vmatpush1.msra.mxu0 0.0
    %5376 = vmatprep.subr.mxu0 0.0
    %5377 = vmatpush1.msra.mxu0 0.0
    %5378 = vmatprep.subr.mxu0 0.0
    %5379 = vmatpush1.msra.mxu0 0.0
    %5380 = vmatprep.mubr.f32.mxu0 0.0
    %5381 = vmatmul.mubr.f32.gmra.mrb[0].mxu0 %v4108
    %v5382 = vpop.f32.mrb[0].mxu0
    %v5383 = vadd.f32 0.0, %v5382
    %v5384 = vpop.f32.mrb[0].mxu0
    %5385 = vdwg.mxu0
    %s5386 = scalar_lea.vmem %s7, 32
    %v5387 = vld [vmem:[%s5386] sm:$0xf]
    %v5389 = vsel %vm4258, %v5387, 0
    %5391 = vmatprep.subr.mxu0 0.0
    %5392 = vmatpush1.msra.mxu0 %v5383
    %5393 = vmatprep.subr.mxu0 0.0
    %5394 = vmatpush1.msra.mxu0 0.0
    %5395 = vmatprep.subr.mxu0 0.0
    %5396 = vmatpush1.msra.mxu0 0.0
    %5397 = vmatprep.subr.mxu0 0.0
    %5398 = vmatpush1.msra.mxu0 0.0
    %5399 = vmatprep.subr.mxu0 0.0
    %5400 = vmatpush1.msra.mxu0 0.0
    %5401 = vmatprep.subr.mxu0 0.0
    %5402 = vmatpush1.msra.mxu0 0.0
    %5403 = vmatprep.subr.mxu0 0.0
    %5404 = vmatpush1.msra.mxu0 0.0
    %5405 = vmatprep.subr.mxu0 0.0
    %5406 = vmatpush1.msra.mxu0 0.0
    %5407 = vmatprep.subr.mxu0 0.0
    %5408 = vmatpush1.msra.mxu0 0.0
    %5409 = vmatprep.subr.mxu0 0.0
    %5410 = vmatpush1.msra.mxu0 0.0
    %5411 = vmatprep.subr.mxu0 0.0
    %5412 = vmatpush1.msra.mxu0 0.0
    %5413 = vmatprep.subr.mxu0 0.0
    %5414 = vmatpush1.msra.mxu0 0.0
    %5415 = vmatprep.subr.mxu0 0.0
    %5416 = vmatpush1.msra.mxu0 0.0
    %5417 = vmatprep.subr.mxu0 0.0
    %5418 = vmatpush1.msra.mxu0 0.0
    %5419 = vmatprep.subr.mxu0 0.0
    %5420 = vmatpush1.msra.mxu0 0.0
    %5421 = vmatprep.subr.mxu0 0.0
    %5422 = vmatpush1.msra.mxu0 0.0
    %5423 = vmatprep.subr.mxu0 0.0
    %5424 = vmatpush1.msra.mxu0 0.0
    %5425 = vmatprep.subr.mxu0 0.0
    %5426 = vmatpush1.msra.mxu0 0.0
    %5427 = vmatprep.subr.mxu0 0.0
    %5428 = vmatpush1.msra.mxu0 0.0
    %5429 = vmatprep.subr.mxu0 0.0
    %5430 = vmatpush1.msra.mxu0 0.0
    %5431 = vmatprep.subr.mxu0 0.0
    %5432 = vmatpush1.msra.mxu0 0.0
    %5433 = vmatprep.subr.mxu0 0.0
    %5434 = vmatpush1.msra.mxu0 0.0
    %5435 = vmatprep.subr.mxu0 0.0
    %5436 = vmatpush1.msra.mxu0 0.0
    %5437 = vmatprep.subr.mxu0 0.0
    %5438 = vmatpush1.msra.mxu0 0.0
    %5439 = vmatprep.subr.mxu0 0.0
    %5440 = vmatpush1.msra.mxu0 0.0
    %5441 = vmatprep.subr.mxu0 0.0
    %5442 = vmatpush1.msra.mxu0 0.0
    %5443 = vmatprep.subr.mxu0 0.0
    %5444 = vmatpush1.msra.mxu0 0.0
    %5445 = vmatprep.subr.mxu0 0.0
    %5446 = vmatpush1.msra.mxu0 0.0
    %5447 = vmatprep.subr.mxu0 0.0
    %5448 = vmatpush1.msra.mxu0 0.0
    %5449 = vmatprep.subr.mxu0 0.0
    %5450 = vmatpush1.msra.mxu0 0.0
    %5451 = vmatprep.subr.mxu0 0.0
    %5452 = vmatpush1.msra.mxu0 0.0
    %5453 = vmatprep.subr.mxu0 0.0
    %5454 = vmatpush1.msra.mxu0 0.0
    %5455 = vmatprep.mubr.f32.mxu0 0.0
    %5456 = vmatmul.mubr.f32.gmra.mrb[0].mxu0 %v5389
    %v5457 = vpop.f32.mrb[0].mxu0
    %v5458 = vadd.f32 0.0, %v5457
    %v5459 = vpop.f32.mrb[0].mxu0
    %5460 = vdwg.mxu0
    %v5461 = vadd.f32 %v5310, %v5458
    %vm5462 = vcmask 60416
    %v5463 = vsel %vm5462, %v5461, 0.0
    %5464 = vadd.xlane.f32.xlu0 %v5463
    %v5465 = vpop.xlane.xlu0 %5464
    %v5466 = vmul.f32 %v5465, 0.125
    %v5467 = vsub.f32 %v5461, %v5466
    %v5468 = vmul.f32 %v5467, %v5467
    %v5469 = vsel %vm5462, %v5468, 0.0
    %5470 = vadd.xlane.f32.xlu0 %v5469
    %v5471 = vpop.xlane.xlu0 %5470
    %v5472 = vmul.f32 %v5471, 0.125
    %v5473 = vadd.f32 %v5472, 1e-05
    %v5474 = vrsqrt.pop %v5473
    %v5475 = vmul.f32 %v5467, %v5474
    %v5476 = vld [vmem:[%s8] sm:$0xf]
    %5478 = vset.pattern.permute.xlu0 0
    %5479 = vperm.xlu0 %5478, %v5476
    %v5480 = vpop.permute.xlu0 %5479
    %v5482 = vmul.f32 %v5475, %v5480
    %v5483 = vld [vmem:[%s9] sm:$0xf]
    %5485 = vset.pattern.permute.xlu0 0
    %5486 = vperm.xlu0 %5485, %v5483
    %v5487 = vpop.permute.xlu0 %5486
    %v5489 = vadd.f32 %v5482, %v5487
    %v5490 = vld [vmem:[%s16] sm:$0xff]
    %v5492 = vsel %vm4258, %v5489, 0
    %5494 = vmatprep.subr.mxu0 0.0
    %5495 = vmatpush1.msra.mxu0 %v5490
    %5496 = vmatprep.subr.mxu0 0.0
    %5497 = vmatpush1.msra.mxu0 0.0
    %5498 = vmatprep.subr.mxu0 0.0
    %5499 = vmatpush1.msra.mxu0 0.0
    %5500 = vmatprep.subr.mxu0 0.0
    %5501 = vmatpush1.msra.mxu0 0.0
    %5502 = vmatprep.subr.mxu0 0.0
    %5503 = vmatpush1.msra.mxu0 0.0
    %5504 = vmatprep.subr.mxu0 0.0
    %5505 = vmatpush1.msra.mxu0 0.0
    %5506 = vmatprep.subr.mxu0 0.0
    %5507 = vmatpush1.msra.mxu0 0.0
    %5508 = vmatprep.subr.mxu0 0.0
    %5509 = vmatpush1.msra.mxu0 0.0
    %5510 = vmatprep.subr.mxu0 0.0
    %5511 = vmatpush1.msra.mxu0 0.0
    %5512 = vmatprep.subr.mxu0 0.0
    %5513 = vmatpush1.msra.mxu0 0.0
    %5514 = vmatprep.subr.mxu0 0.0
    %5515 = vmatpush1.msra.mxu0 0.0
    %5516 = vmatprep.subr.mxu0 0.0
    %5517 = vmatpush1.msra.mxu0 0.0
    %5518 = vmatprep.subr.mxu0 0.0
    %5519 = vmatpush1.msra.mxu0 0.0
    %5520 = vmatprep.subr.mxu0 0.0
    %5521 = vmatpush1.msra.mxu0 0.0
    %5522 = vmatprep.subr.mxu0 0.0
    %5523 = vmatpush1.msra.mxu0 0.0
    %5524 = vmatprep.subr.mxu0 0.0
    %5525 = vmatpush1.msra.mxu0 0.0
    %5526 = vmatprep.subr.mxu0 0.0
    %5527 = vmatpush1.msra.mxu0 0.0
    %5528 = vmatprep.subr.mxu0 0.0
    %5529 = vmatpush1.msra.mxu0 0.0
    %5530 = vmatprep.subr.mxu0 0.0
    %5531 = vmatpush1.msra.mxu0 0.0
    %5532 = vmatprep.subr.mxu0 0.0
    %5533 = vmatpush1.msra.mxu0 0.0
    %5534 = vmatprep.subr.mxu0 0.0
    %5535 = vmatpush1.msra.mxu0 0.0
    %5536 = vmatprep.subr.mxu0 0.0
    %5537 = vmatpush1.msra.mxu0 0.0
    %5538 = vmatprep.subr.mxu0 0.0
    %5539 = vmatpush1.msra.mxu0 0.0
    %5540 = vmatprep.subr.mxu0 0.0
    %5541 = vmatpush1.msra.mxu0 0.0
    %5542 = vmatprep.subr.mxu0 0.0
    %5543 = vmatpush1.msra.mxu0 0.0
    %5544 = vmatprep.subr.mxu0 0.0
    %5545 = vmatpush1.msra.mxu0 0.0
    %5546 = vmatprep.subr.mxu0 0.0
    %5547 = vmatpush1.msra.mxu0 0.0
    %5548 = vmatprep.subr.mxu0 0.0
    %5549 = vmatpush1.msra.mxu0 0.0
    %5550 = vmatprep.subr.mxu0 0.0
    %5551 = vmatpush1.msra.mxu0 0.0
    %5552 = vmatprep.subr.mxu0 0.0
    %5553 = vmatpush1.msra.mxu0 0.0
    %5554 = vmatprep.subr.mxu0 0.0
    %5555 = vmatpush1.msra.mxu0 0.0
    %5556 = vmatprep.subr.mxu0 0.0
    %5557 = vmatpush1.msra.mxu0 0.0
    %5558 = vmatprep.mubr.f32.mxu0 0.0
    %5559 = vmatmul.mubr.f32.gmra.mrb[0].mxu0 %v5492
    %v5560 = vpop.f32.mrb[0].mxu0
    %v5561 = vadd.f32 0.0, %v5560
    %v5562 = vpop.f32.mrb[0].mxu0
    %5563 = vdwg.mxu0
    %v5564 = vld [vmem:[#allocation6] sm:$0x3]
    %vm5565 = vcmask 15360
    %v5567 = vsel %vm5565, %v5561, 0
    %vm5569 = vcmask 1041408
    %v5571 = vsel %vm5569, %v5564, 0
    %5573 = vmatprep.subr.mxu0 0.0
    %5574 = vmatpush1.msra.mxu0 %v5571
    %5575 = vmatprep.subr.mxu0 0.0
    %5576 = vmatpush1.msra.mxu0 0.0
    %5577 = vmatprep.subr.mxu0 0.0
    %5578 = vmatpush1.msra.mxu0 0.0
    %5579 = vmatprep.subr.mxu0 0.0
    %5580 = vmatpush1.msra.mxu0 0.0
    %5581 = vmatprep.subr.mxu0 0.0
    %5582 = vmatpush1.msra.mxu0 0.0
    %5583 = vmatprep.subr.mxu0 0.0
    %5584 = vmatpush1.msra.mxu0 0.0
    %5585 = vmatprep.subr.mxu0 0.0
    %5586 = vmatpush1.msra.mxu0 0.0
    %5587 = vmatprep.subr.mxu0 0.0
    %5588 = vmatpush1.msra.mxu0 0.0
    %5589 = vmatprep.subr.mxu0 0.0
    %5590 = vmatpush1.msra.mxu0 0.0
    %5591 = vmatprep.subr.mxu0 0.0
    %5592 = vmatpush1.msra.mxu0 0.0
    %5593 = vmatprep.subr.mxu0 0.0
    %5594 = vmatpush1.msra.mxu0 0.0
    %5595 = vmatprep.subr.mxu0 0.0
    %5596 = vmatpush1.msra.mxu0 0.0
    %5597 = vmatprep.subr.mxu0 0.0
    %5598 = vmatpush1.msra.mxu0 0.0
    %5599 = vmatprep.subr.mxu0 0.0
    %5600 = vmatpush1.msra.mxu0 0.0
    %5601 = vmatprep.subr.mxu0 0.0
    %5602 = vmatpush1.msra.mxu0 0.0
    %5603 = vmatprep.subr.mxu0 0.0
    %5604 = vmatpush1.msra.mxu0 0.0
    %5605 = vmatprep.subr.mxu0 0.0
    %5606 = vmatpush1.msra.mxu0 0.0
    %5607 = vmatprep.subr.mxu0 0.0
    %5608 = vmatpush1.msra.mxu0 0.0
    %5609 = vmatprep.subr.mxu0 0.0
    %5610 = vmatpush1.msra.mxu0 0.0
    %5611 = vmatprep.subr.mxu0 0.0
    %5612 = vmatpush1.msra.mxu0 0.0
    %5613 = vmatprep.subr.mxu0 0.0
    %5614 = vmatpush1.msra.mxu0 0.0
    %5615 = vmatprep.subr.mxu0 0.0
    %5616 = vmatpush1.msra.mxu0 0.0
    %5617 = vmatprep.subr.mxu0 0.0
    %5618 = vmatpush1.msra.mxu0 0.0
    %5619 = vmatprep.subr.mxu0 0.0
    %5620 = vmatpush1.msra.mxu0 0.0
    %5621 = vmatprep.subr.mxu0 0.0
    %5622 = vmatpush1.msra.mxu0 0.0
    %5623 = vmatprep.subr.mxu0 0.0
    %5624 = vmatpush1.msra.mxu0 0.0
    %5625 = vmatprep.subr.mxu0 0.0
    %5626 = vmatpush1.msra.mxu0 0.0
    %5627 = vmatprep.subr.mxu0 0.0
    %5628 = vmatpush1.msra.mxu0 0.0
    %5629 = vmatprep.subr.mxu0 0.0
    %5630 = vmatpush1.msra.mxu0 0.0
    %5631 = vmatprep.subr.mxu0 0.0
    %5632 = vmatpush1.msra.mxu0 0.0
    %5633 = vmatprep.subr.mxu0 0.0
    %5634 = vmatpush1.msra.mxu0 0.0
    %5635 = vmatprep.subr.mxu0 0.0
    %5636 = vmatpush1.msra.mxu0 0.0
    %5637 = vmatprep.mubr.f32.mxu0 0.0
    %5638 = vmatmul.mubr.f32.gmra.mrb[0].mxu0 %v5567
    %v5639 = vpop.f32.mrb[0].mxu0
    %v5640 = vadd.f32 0.0, %v5639
    %v5641 = vpop.f32.mrb[0].mxu0
    %5642 = vdwg.mxu0
    %v5643 = vld [vmem:[%s10] sm:$0x1]
    %s5644 = scalar_lea.vmem [#allocation6], 2
    %v5645 = vld [vmem:[%s5644] sm:$0x3]
    %v5647 = vsel %vm5569, %v5645, 0
    %5649 = vmatprep.subr.mxu0 0.0
    %5650 = vmatpush1.msra.mxu0 %v5647
    %5651 = vmatprep.subr.mxu0 0.0
    %5652 = vmatpush1.msra.mxu0 0.0
    %5653 = vmatprep.subr.mxu0 0.0
    %5654 = vmatpush1.msra.mxu0 0.0
    %5655 = vmatprep.subr.mxu0 0.0
    %5656 = vmatpush1.msra.mxu0 0.0
    %5657 = vmatprep.subr.mxu0 0.0
    %5658 = vmatpush1.msra.mxu0 0.0
    %5659 = vmatprep.subr.mxu0 0.0
    %5660 = vmatpush1.msra.mxu0 0.0
    %5661 = vmatprep.subr.mxu0 0.0
    %5662 = vmatpush1.msra.mxu0 0.0
    %5663 = vmatprep.subr.mxu0 0.0
    %5664 = vmatpush1.msra.mxu0 0.0
    %5665 = vmatprep.subr.mxu0 0.0
    %5666 = vmatpush1.msra.mxu0 0.0
    %5667 = vmatprep.subr.mxu0 0.0
    %5668 = vmatpush1.msra.mxu0 0.0
    %5669 = vmatprep.subr.mxu0 0.0
    %5670 = vmatpush1.msra.mxu0 0.0
    %5671 = vmatprep.subr.mxu0 0.0
    %5672 = vmatpush1.msra.mxu0 0.0
    %5673 = vmatprep.subr.mxu0 0.0
    %5674 = vmatpush1.msra.mxu0 0.0
    %5675 = vmatprep.subr.mxu0 0.0
    %5676 = vmatpush1.msra.mxu0 0.0
    %5677 = vmatprep.subr.mxu0 0.0
    %5678 = vmatpush1.msra.mxu0 0.0
    %5679 = vmatprep.subr.mxu0 0.0
    %5680 = vmatpush1.msra.mxu0 0.0
    %5681 = vmatprep.subr.mxu0 0.0
    %5682 = vmatpush1.msra.mxu0 0.0
    %5683 = vmatprep.subr.mxu0 0.0
    %5684 = vmatpush1.msra.mxu0 0.0
    %5685 = vmatprep.subr.mxu0 0.0
    %5686 = vmatpush1.msra.mxu0 0.0
    %5687 = vmatprep.subr.mxu0 0.0
    %5688 = vmatpush1.msra.mxu0 0.0
    %5689 = vmatprep.subr.mxu0 0.0
    %5690 = vmatpush1.msra.mxu0 0.0
    %5691 = vmatprep.subr.mxu0 0.0
    %5692 = vmatpush1.msra.mxu0 0.0
    %5693 = vmatprep.subr.mxu0 0.0
    %5694 = vmatpush1.msra.mxu0 0.0
    %5695 = vmatprep.subr.mxu0 0.0
    %5696 = vmatpush1.msra.mxu0 0.0
    %5697 = vmatprep.subr.mxu0 0.0
    %5698 = vmatpush1.msra.mxu0 0.0
    %5699 = vmatprep.subr.mxu0 0.0
    %5700 = vmatpush1.msra.mxu0 0.0
    %5701 = vmatprep.subr.mxu0 0.0
    %5702 = vmatpush1.msra.mxu0 0.0
    %5703 = vmatprep.subr.mxu0 0.0
    %5704 = vmatpush1.msra.mxu0 0.0
    %5705 = vmatprep.subr.mxu0 0.0
    %5706 = vmatpush1.msra.mxu0 0.0
    %5707 = vmatprep.subr.mxu0 0.0
    %5708 = vmatpush1.msra.mxu0 0.0
    %5709 = vmatprep.subr.mxu0 0.0
    %5710 = vmatpush1.msra.mxu0 0.0
    %5711 = vmatprep.subr.mxu0 0.0
    %5712 = vmatpush1.msra.mxu0 0.0
    %5713 = vmatprep.mubr.f32.mxu0 0.0
    %5714 = vmatmul.mubr.f32.gmra.mrb[0].mxu0 %v5567
    %v5715 = vpop.f32.mrb[0].mxu0
    %v5716 = vadd.f32 0.0, %v5715
    %v5717 = vpop.f32.mrb[0].mxu0
    %5718 = vdwg.mxu0
    %s5719 = scalar_lea.vmem %s10, 1
    %v5720 = vld [vmem:[%s5719] sm:$0x1]
    %v5722 = vsel %vm184, %v5720, 0
    %v5725 = vsel %vm191, %v5716, 0
    %5727 = vmatprep.subr.mxu0 0.0
    %5728 = vmatpush1.msra.mxu0 %v5725
    %5729 = vmatprep.subr.mxu0 0.0
    %5730 = vmatpush1.msra.mxu0 0.0
    %5731 = vmatprep.subr.mxu0 0.0
    %5732 = vmatpush1.msra.mxu0 0.0
    %5733 = vmatprep.subr.mxu0 0.0
    %5734 = vmatpush1.msra.mxu0 0.0
    %5735 = vmatprep.subr.mxu0 0.0
    %5736 = vmatpush1.msra.mxu0 0.0
    %5737 = vmatprep.subr.mxu0 0.0
    %5738 = vmatpush1.msra.mxu0 0.0
    %5739 = vmatprep.subr.mxu0 0.0
    %5740 = vmatpush1.msra.mxu0 0.0
    %5741 = vmatprep.subr.mxu0 0.0
    %5742 = vmatpush1.msra.mxu0 0.0
    %5743 = vmatprep.subr.mxu0 0.0
    %5744 = vmatpush1.msra.mxu0 0.0
    %5745 = vmatprep.subr.mxu0 0.0
    %5746 = vmatpush1.msra.mxu0 0.0
    %5747 = vmatprep.subr.mxu0 0.0
    %5748 = vmatpush1.msra.mxu0 0.0
    %5749 = vmatprep.subr.mxu0 0.0
    %5750 = vmatpush1.msra.mxu0 0.0
    %5751 = vmatprep.subr.mxu0 0.0
    %5752 = vmatpush1.msra.mxu0 0.0
    %5753 = vmatprep.subr.mxu0 0.0
    %5754 = vmatpush1.msra.mxu0 0.0
    %5755 = vmatprep.subr.mxu0 0.0
    %5756 = vmatpush1.msra.mxu0 0.0
    %5757 = vmatprep.subr.mxu0 0.0
    %5758 = vmatpush1.msra.mxu0 0.0
    %5759 = vmatprep.subr.mxu0 0.0
    %5760 = vmatpush1.msra.mxu0 0.0
    %5761 = vmatprep.subr.mxu0 0.0
    %5762 = vmatpush1.msra.mxu0 0.0
    %5763 = vmatprep.subr.mxu0 0.0
    %5764 = vmatpush1.msra.mxu0 0.0
    %5765 = vmatprep.subr.mxu0 0.0
    %5766 = vmatpush1.msra.mxu0 0.0
    %5767 = vmatprep.subr.mxu0 0.0
    %5768 = vmatpush1.msra.mxu0 0.0
    %5769 = vmatprep.subr.mxu0 0.0
    %5770 = vmatpush1.msra.mxu0 0.0
    %5771 = vmatprep.subr.mxu0 0.0
    %5772 = vmatpush1.msra.mxu0 0.0
    %5773 = vmatprep.subr.mxu0 0.0
    %5774 = vmatpush1.msra.mxu0 0.0
    %5775 = vmatprep.subr.mxu0 0.0
    %5776 = vmatpush1.msra.mxu0 0.0
    %5777 = vmatprep.subr.mxu0 0.0
    %5778 = vmatpush1.msra.mxu0 0.0
    %5779 = vmatprep.subr.mxu0 0.0
    %5780 = vmatpush1.msra.mxu0 0.0
    %5781 = vmatprep.subr.mxu0 0.0
    %5782 = vmatpush1.msra.mxu0 0.0
    %5783 = vmatprep.subr.mxu0 0.0
    %5784 = vmatpush1.msra.mxu0 0.0
    %5785 = vmatprep.subr.mxu0 0.0
    %5786 = vmatpush1.msra.mxu0 0.0
    %5787 = vmatprep.subr.mxu0 0.0
    %5788 = vmatpush1.msra.mxu0 0.0
    %5789 = vmatprep.subr.mxu0 0.0
    %5790 = vmatpush1.msra.mxu0 0.0
    %5791 = vmatprep.mubr.f32.mxu0 0.0
    %5792 = vmatmul.mubr.f32.gmra.mrb[0].mxu0 %v5722
    %v5793 = vpop.f32.mrb[0].mxu0
    %v5794 = vadd.f32 0.0, %v5793
    %v5795 = vpop.f32.mrb[0].mxu0
    %5796 = vdwg.mxu0
    %v5798 = vsel %vm184, %v5643, 0
    %v5801 = vsel %vm191, %v5640, 0
    %5803 = vmatprep.subr.mxu0 0.0
    %5804 = vmatpush1.msra.mxu0 %v5801
    %5805 = vmatprep.subr.mxu0 0.0
    %5806 = vmatpush1.msra.mxu0 0.0
    %5807 = vmatprep.subr.mxu0 0.0
    %5808 = vmatpush1.msra.mxu0 0.0
    %5809 = vmatprep.subr.mxu0 0.0
    %5810 = vmatpush1.msra.mxu0 0.0
    %5811 = vmatprep.subr.mxu0 0.0
    %5812 = vmatpush1.msra.mxu0 0.0
    %5813 = vmatprep.subr.mxu0 0.0
    %5814 = vmatpush1.msra.mxu0 0.0
    %5815 = vmatprep.subr.mxu0 0.0
    %5816 = vmatpush1.msra.mxu0 0.0
    %5817 = vmatprep.subr.mxu0 0.0
    %5818 = vmatpush1.msra.mxu0 0.0
    %5819 = vmatprep.subr.mxu0 0.0
    %5820 = vmatpush1.msra.mxu0 0.0
    %5821 = vmatprep.subr.mxu0 0.0
    %5822 = vmatpush1.msra.mxu0 0.0
    %5823 = vmatprep.subr.mxu0 0.0
    %5824 = vmatpush1.msra.mxu0 0.0
    %5825 = vmatprep.subr.mxu0 0.0
    %5826 = vmatpush1.msra.mxu0 0.0
    %5827 = vmatprep.subr.mxu0 0.0
    %5828 = vmatpush1.msra.mxu0 0.0
    %5829 = vmatprep.subr.mxu0 0.0
    %5830 = vmatpush1.msra.mxu0 0.0
    %5831 = vmatprep.subr.mxu0 0.0
    %5832 = vmatpush1.msra.mxu0 0.0
    %5833 = vmatprep.subr.mxu0 0.0
    %5834 = vmatpush1.msra.mxu0 0.0
    %5835 = vmatprep.subr.mxu0 0.0
    %5836 = vmatpush1.msra.mxu0 0.0
    %5837 = vmatprep.subr.mxu0 0.0
    %5838 = vmatpush1.msra.mxu0 0.0
    %5839 = vmatprep.subr.mxu0 0.0
    %5840 = vmatpush1.msra.mxu0 0.0
    %5841 = vmatprep.subr.mxu0 0.0
    %5842 = vmatpush1.msra.mxu0 0.0
    %5843 = vmatprep.subr.mxu0 0.0
    %5844 = vmatpush1.msra.mxu0 0.0
    %5845 = vmatprep.subr.mxu0 0.0
    %5846 = vmatpush1.msra.mxu0 0.0
    %5847 = vmatprep.subr.mxu0 0.0
    %5848 = vmatpush1.msra.mxu0 0.0
    %5849 = vmatprep.subr.mxu0 0.0
    %5850 = vmatpush1.msra.mxu0 0.0
    %5851 = vmatprep.subr.mxu0 0.0
    %5852 = vmatpush1.msra.mxu0 0.0
    %5853 = vmatprep.subr.mxu0 0.0
    %5854 = vmatpush1.msra.mxu0 0.0
    %5855 = vmatprep.subr.mxu0 0.0
    %5856 = vmatpush1.msra.mxu0 0.0
    %5857 = vmatprep.subr.mxu0 0.0
    %5858 = vmatpush1.msra.mxu0 0.0
    %5859 = vmatprep.subr.mxu0 0.0
    %5860 = vmatpush1.msra.mxu0 0.0
    %5861 = vmatprep.subr.mxu0 0.0
    %5862 = vmatpush1.msra.mxu0 0.0
    %5863 = vmatprep.subr.mxu0 0.0
    %5864 = vmatpush1.msra.mxu0 0.0
    %5865 = vmatprep.subr.mxu0 0.0
    %5866 = vmatpush1.msra.mxu0 0.0
    %5867 = vmatprep.mubr.f32.mxu0 0.0
    %5868 = vmatmul.mubr.f32.gmra.mrb[0].mxu0 %v5798
    %v5869 = vpop.f32.mrb[0].mxu0
    %v5870 = vadd.f32 %v5794, %v5869
    %v5871 = vpop.f32.mrb[0].mxu0
    %5872 = vdwg.mxu0
    %s5873 = scalar_lea.vmem [#allocation6], 4
    %v5874 = vld [vmem:[%s5873] sm:$0x3]
    %v5876 = vsel %vm5569, %v5874, 0
    %5878 = vmatprep.subr.mxu0 0.0
    %5879 = vmatpush1.msra.mxu0 %v5876
    %5880 = vmatprep.subr.mxu0 0.0
    %5881 = vmatpush1.msra.mxu0 0.0
    %5882 = vmatprep.subr.mxu0 0.0
    %5883 = vmatpush1.msra.mxu0 0.0
    %5884 = vmatprep.subr.mxu0 0.0
    %5885 = vmatpush1.msra.mxu0 0.0
    %5886 = vmatprep.subr.mxu0 0.0
    %5887 = vmatpush1.msra.mxu0 0.0
    %5888 = vmatprep.subr.mxu0 0.0
    %5889 = vmatpush1.msra.mxu0 0.0
    %5890 = vmatprep.subr.mxu0 0.0
    %5891 = vmatpush1.msra.mxu0 0.0
    %5892 = vmatprep.subr.mxu0 0.0
    %5893 = vmatpush1.msra.mxu0 0.0
    %5894 = vmatprep.subr.mxu0 0.0
    %5895 = vmatpush1.msra.mxu0 0.0
    %5896 = vmatprep.subr.mxu0 0.0
    %5897 = vmatpush1.msra.mxu0 0.0
    %5898 = vmatprep.subr.mxu0 0.0
    %5899 = vmatpush1.msra.mxu0 0.0
    %5900 = vmatprep.subr.mxu0 0.0
    %5901 = vmatpush1.msra.mxu0 0.0
    %5902 = vmatprep.subr.mxu0 0.0
    %5903 = vmatpush1.msra.mxu0 0.0
    %5904 = vmatprep.subr.mxu0 0.0
    %5905 = vmatpush1.msra.mxu0 0.0
    %5906 = vmatprep.subr.mxu0 0.0
    %5907 = vmatpush1.msra.mxu0 0.0
    %5908 = vmatprep.subr.mxu0 0.0
    %5909 = vmatpush1.msra.mxu0 0.0
    %5910 = vmatprep.subr.mxu0 0.0
    %5911 = vmatpush1.msra.mxu0 0.0
    %5912 = vmatprep.subr.mxu0 0.0
    %5913 = vmatpush1.msra.mxu0 0.0
    %5914 = vmatprep.subr.mxu0 0.0
    %5915 = vmatpush1.msra.mxu0 0.0
    %5916 = vmatprep.subr.mxu0 0.0
    %5917 = vmatpush1.msra.mxu0 0.0
    %5918 = vmatprep.subr.mxu0 0.0
    %5919 = vmatpush1.msra.mxu0 0.0
    %5920 = vmatprep.subr.mxu0 0.0
    %5921 = vmatpush1.msra.mxu0 0.0
    %5922 = vmatprep.subr.mxu0 0.0
    %5923 = vmatpush1.msra.mxu0 0.0
    %5924 = vmatprep.subr.mxu0 0.0
    %5925 = vmatpush1.msra.mxu0 0.0
    %5926 = vmatprep.subr.mxu0 0.0
    %5927 = vmatpush1.msra.mxu0 0.0
    %5928 = vmatprep.subr.mxu0 0.0
    %5929 = vmatpush1.msra.mxu0 0.0
    %5930 = vmatprep.subr.mxu0 0.0
    %5931 = vmatpush1.msra.mxu0 0.0
    %5932 = vmatprep.subr.mxu0 0.0
    %5933 = vmatpush1.msra.mxu0 0.0
    %5934 = vmatprep.subr.mxu0 0.0
    %5935 = vmatpush1.msra.mxu0 0.0
    %5936 = vmatprep.subr.mxu0 0.0
    %5937 = vmatpush1.msra.mxu0 0.0
    %5938 = vmatprep.subr.mxu0 0.0
    %5939 = vmatpush1.msra.mxu0 0.0
    %5940 = vmatprep.subr.mxu0 0.0
    %5941 = vmatpush1.msra.mxu0 0.0
    %5942 = vmatprep.mubr.f32.mxu0 0.0
    %5943 = vmatmul.mubr.f32.gmra.mrb[0].mxu0 %v5567
    %v5944 = vpop.f32.mrb[0].mxu0
    %v5945 = vadd.f32 0.0, %v5944
    %v5946 = vpop.f32.mrb[0].mxu0
    %5947 = vdwg.mxu0
    %s5948 = scalar_lea.vmem %s10, 2
    %v5949 = vld [vmem:[%s5948] sm:$0x1]
    %v5951 = vsel %vm184, %v5949, 0
    %v5954 = vsel %vm191, %v5945, 0
    %5956 = vmatprep.subr.mxu0 0.0
    %5957 = vmatpush1.msra.mxu0 %v5954
    %5958 = vmatprep.subr.mxu0 0.0
    %5959 = vmatpush1.msra.mxu0 0.0
    %5960 = vmatprep.subr.mxu0 0.0
    %5961 = vmatpush1.msra.mxu0 0.0
    %5962 = vmatprep.subr.mxu0 0.0
    %5963 = vmatpush1.msra.mxu0 0.0
    %5964 = vmatprep.subr.mxu0 0.0
    %5965 = vmatpush1.msra.mxu0 0.0
    %5966 = vmatprep.subr.mxu0 0.0
    %5967 = vmatpush1.msra.mxu0 0.0
    %5968 = vmatprep.subr.mxu0 0.0
    %5969 = vmatpush1.msra.mxu0 0.0
    %5970 = vmatprep.subr.mxu0 0.0
    %5971 = vmatpush1.msra.mxu0 0.0
    %5972 = vmatprep.subr.mxu0 0.0
    %5973 = vmatpush1.msra.mxu0 0.0
    %5974 = vmatprep.subr.mxu0 0.0
    %5975 = vmatpush1.msra.mxu0 0.0
    %5976 = vmatprep.subr.mxu0 0.0
    %5977 = vmatpush1.msra.mxu0 0.0
    %5978 = vmatprep.subr.mxu0 0.0
    %5979 = vmatpush1.msra.mxu0 0.0
    %5980 = vmatprep.subr.mxu0 0.0
    %5981 = vmatpush1.msra.mxu0 0.0
    %5982 = vmatprep.subr.mxu0 0.0
    %5983 = vmatpush1.msra.mxu0 0.0
    %5984 = vmatprep.subr.mxu0 0.0
    %5985 = vmatpush1.msra.mxu0 0.0
    %5986 = vmatprep.subr.mxu0 0.0
    %5987 = vmatpush1.msra.mxu0 0.0
    %5988 = vmatprep.subr.mxu0 0.0
    %5989 = vmatpush1.msra.mxu0 0.0
    %5990 = vmatprep.subr.mxu0 0.0
    %5991 = vmatpush1.msra.mxu0 0.0
    %5992 = vmatprep.subr.mxu0 0.0
    %5993 = vmatpush1.msra.mxu0 0.0
    %5994 = vmatprep.subr.mxu0 0.0
    %5995 = vmatpush1.msra.mxu0 0.0
    %5996 = vmatprep.subr.mxu0 0.0
    %5997 = vmatpush1.msra.mxu0 0.0
    %5998 = vmatprep.subr.mxu0 0.0
    %5999 = vmatpush1.msra.mxu0 0.0
    %6000 = vmatprep.subr.mxu0 0.0
    %6001 = vmatpush1.msra.mxu0 0.0
    %6002 = vmatprep.subr.mxu0 0.0
    %6003 = vmatpush1.msra.mxu0 0.0
    %6004 = vmatprep.subr.mxu0 0.0
    %6005 = vmatpush1.msra.mxu0 0.0
    %6006 = vmatprep.subr.mxu0 0.0
    %6007 = vmatpush1.msra.mxu0 0.0
    %6008 = vmatprep.subr.mxu0 0.0
    %6009 = vmatpush1.msra.mxu0 0.0
    %6010 = vmatprep.subr.mxu0 0.0
    %6011 = vmatpush1.msra.mxu0 0.0
    %6012 = vmatprep.subr.mxu0 0.0
    %6013 = vmatpush1.msra.mxu0 0.0
    %6014 = vmatprep.subr.mxu0 0.0
    %6015 = vmatpush1.msra.mxu0 0.0
    %6016 = vmatprep.subr.mxu0 0.0
    %6017 = vmatpush1.msra.mxu0 0.0
    %6018 = vmatprep.subr.mxu0 0.0
    %6019 = vmatpush1.msra.mxu0 0.0
    %6020 = vmatprep.mubr.f32.mxu0 0.0
    %6021 = vmatmul.mubr.f32.gmra.mrb[0].mxu0 %v5951
    %v6022 = vpop.f32.mrb[0].mxu0
    %v6023 = vadd.f32 0.0, %v6022
    %v6024 = vpop.f32.mrb[0].mxu0
    %6025 = vdwg.mxu0
    %v6026 = vadd.f32 %v5870, %v6023
    %s6027 = scalar_lea.vmem [#allocation6], 6
    %v6028 = vld [vmem:[%s6027] sm:$0x3]
    %v6030 = vsel %vm5569, %v6028, 0
    %6032 = vmatprep.subr.mxu0 0.0
    %6033 = vmatpush1.msra.mxu0 %v6030
    %6034 = vmatprep.subr.mxu0 0.0
    %6035 = vmatpush1.msra.mxu0 0.0
    %6036 = vmatprep.subr.mxu0 0.0
    %6037 = vmatpush1.msra.mxu0 0.0
    %6038 = vmatprep.subr.mxu0 0.0
    %6039 = vmatpush1.msra.mxu0 0.0
    %6040 = vmatprep.subr.mxu0 0.0
    %6041 = vmatpush1.msra.mxu0 0.0
    %6042 = vmatprep.subr.mxu0 0.0
    %6043 = vmatpush1.msra.mxu0 0.0
    %6044 = vmatprep.subr.mxu0 0.0
    %6045 = vmatpush1.msra.mxu0 0.0
    %6046 = vmatprep.subr.mxu0 0.0
    %6047 = vmatpush1.msra.mxu0 0.0
    %6048 = vmatprep.subr.mxu0 0.0
    %6049 = vmatpush1.msra.mxu0 0.0
    %6050 = vmatprep.subr.mxu0 0.0
    %6051 = vmatpush1.msra.mxu0 0.0
    %6052 = vmatprep.subr.mxu0 0.0
    %6053 = vmatpush1.msra.mxu0 0.0
    %6054 = vmatprep.subr.mxu0 0.0
    %6055 = vmatpush1.msra.mxu0 0.0
    %6056 = vmatprep.subr.mxu0 0.0
    %6057 = vmatpush1.msra.mxu0 0.0
    %6058 = vmatprep.subr.mxu0 0.0
    %6059 = vmatpush1.msra.mxu0 0.0
    %6060 = vmatprep.subr.mxu0 0.0
    %6061 = vmatpush1.msra.mxu0 0.0
    %6062 = vmatprep.subr.mxu0 0.0
    %6063 = vmatpush1.msra.mxu0 0.0
    %6064 = vmatprep.subr.mxu0 0.0
    %6065 = vmatpush1.msra.mxu0 0.0
    %6066 = vmatprep.subr.mxu0 0.0
    %6067 = vmatpush1.msra.mxu0 0.0
    %6068 = vmatprep.subr.mxu0 0.0
    %6069 = vmatpush1.msra.mxu0 0.0
    %6070 = vmatprep.subr.mxu0 0.0
    %6071 = vmatpush1.msra.mxu0 0.0
    %6072 = vmatprep.subr.mxu0 0.0
    %6073 = vmatpush1.msra.mxu0 0.0
    %6074 = vmatprep.subr.mxu0 0.0
    %6075 = vmatpush1.msra.mxu0 0.0
    %6076 = vmatprep.subr.mxu0 0.0
    %6077 = vmatpush1.msra.mxu0 0.0
    %6078 = vmatprep.subr.mxu0 0.0
    %6079 = vmatpush1.msra.mxu0 0.0
    %6080 = vmatprep.subr.mxu0 0.0
    %6081 = vmatpush1.msra.mxu0 0.0
    %6082 = vmatprep.subr.mxu0 0.0
    %6083 = vmatpush1.msra.mxu0 0.0
    %6084 = vmatprep.subr.mxu0 0.0
    %6085 = vmatpush1.msra.mxu0 0.0
    %6086 = vmatprep.subr.mxu0 0.0
    %6087 = vmatpush1.msra.mxu0 0.0
    %6088 = vmatprep.subr.mxu0 0.0
    %6089 = vmatpush1.msra.mxu0 0.0
    %6090 = vmatprep.subr.mxu0 0.0
    %6091 = vmatpush1.msra.mxu0 0.0
    %6092 = vmatprep.subr.mxu0 0.0
    %6093 = vmatpush1.msra.mxu0 0.0
    %6094 = vmatprep.subr.mxu0 0.0
    %6095 = vmatpush1.msra.mxu0 0.0
    %6096 = vmatprep.mubr.f32.mxu0 0.0
    %6097 = vmatmul.mubr.f32.gmra.mrb[0].mxu0 %v5567
    %v6098 = vpop.f32.mrb[0].mxu0
    %v6099 = vadd.f32 0.0, %v6098
    %v6100 = vpop.f32.mrb[0].mxu0
    %6101 = vdwg.mxu0
    %s6102 = scalar_lea.vmem %s10, 3
    %v6103 = vld [vmem:[%s6102] sm:$0x1]
    %v6105 = vsel %vm184, %v6103, 0
    %v6108 = vsel %vm191, %v6099, 0
    %6110 = vmatprep.subr.mxu0 0.0
    %6111 = vmatpush1.msra.mxu0 %v6108
    %6112 = vmatprep.subr.mxu0 0.0
    %6113 = vmatpush1.msra.mxu0 0.0
    %6114 = vmatprep.subr.mxu0 0.0
    %6115 = vmatpush1.msra.mxu0 0.0
    %6116 = vmatprep.subr.mxu0 0.0
    %6117 = vmatpush1.msra.mxu0 0.0
    %6118 = vmatprep.subr.mxu0 0.0
    %6119 = vmatpush1.msra.mxu0 0.0
    %6120 = vmatprep.subr.mxu0 0.0
    %6121 = vmatpush1.msra.mxu0 0.0
    %6122 = vmatprep.subr.mxu0 0.0
    %6123 = vmatpush1.msra.mxu0 0.0
    %6124 = vmatprep.subr.mxu0 0.0
    %6125 = vmatpush1.msra.mxu0 0.0
    %6126 = vmatprep.subr.mxu0 0.0
    %6127 = vmatpush1.msra.mxu0 0.0
    %6128 = vmatprep.subr.mxu0 0.0
    %6129 = vmatpush1.msra.mxu0 0.0
    %6130 = vmatprep.subr.mxu0 0.0
    %6131 = vmatpush1.msra.mxu0 0.0
    %6132 = vmatprep.subr.mxu0 0.0
    %6133 = vmatpush1.msra.mxu0 0.0
    %6134 = vmatprep.subr.mxu0 0.0
    %6135 = vmatpush1.msra.mxu0 0.0
    %6136 = vmatprep.subr.mxu0 0.0
    %6137 = vmatpush1.msra.mxu0 0.0
    %6138 = vmatprep.subr.mxu0 0.0
    %6139 = vmatpush1.msra.mxu0 0.0
    %6140 = vmatprep.subr.mxu0 0.0
    %6141 = vmatpush1.msra.mxu0 0.0
    %6142 = vmatprep.subr.mxu0 0.0
    %6143 = vmatpush1.msra.mxu0 0.0
    %6144 = vmatprep.subr.mxu0 0.0
    %6145 = vmatpush1.msra.mxu0 0.0
    %6146 = vmatprep.subr.mxu0 0.0
    %6147 = vmatpush1.msra.mxu0 0.0
    %6148 = vmatprep.subr.mxu0 0.0
    %6149 = vmatpush1.msra.mxu0 0.0
    %6150 = vmatprep.subr.mxu0 0.0
    %6151 = vmatpush1.msra.mxu0 0.0
    %6152 = vmatprep.subr.mxu0 0.0
    %6153 = vmatpush1.msra.mxu0 0.0
    %6154 = vmatprep.subr.mxu0 0.0
    %6155 = vmatpush1.msra.mxu0 0.0
    %6156 = vmatprep.subr.mxu0 0.0
    %6157 = vmatpush1.msra.mxu0 0.0
    %6158 = vmatprep.subr.mxu0 0.0
    %6159 = vmatpush1.msra.mxu0 0.0
    %6160 = vmatprep.subr.mxu0 0.0
    %6161 = vmatpush1.msra.mxu0 0.0
    %6162 = vmatprep.subr.mxu0 0.0
    %6163 = vmatpush1.msra.mxu0 0.0
    %6164 = vmatprep.subr.mxu0 0.0
    %6165 = vmatpush1.msra.mxu0 0.0
    %6166 = vmatprep.subr.mxu0 0.0
    %6167 = vmatpush1.msra.mxu0 0.0
    %6168 = vmatprep.subr.mxu0 0.0
    %6169 = vmatpush1.msra.mxu0 0.0
    %6170 = vmatprep.subr.mxu0 0.0
    %6171 = vmatpush1.msra.mxu0 0.0
    %6172 = vmatprep.subr.mxu0 0.0
    %6173 = vmatpush1.msra.mxu0 0.0
    %6174 = vmatprep.mubr.f32.mxu0 0.0
    %6175 = vmatmul.mubr.f32.gmra.mrb[0].mxu0 %v6105
    %v6176 = vpop.f32.mrb[0].mxu0
    %v6177 = vadd.f32 0.0, %v6176
    %v6178 = vpop.f32.mrb[0].mxu0
    %6179 = vdwg.mxu0
    %v6180 = vadd.f32 %v6026, %v6177
    %s6181 = scalar_lea.vmem [#allocation6], 8
    %v6182 = vld [vmem:[%s6181] sm:$0x3]
    %v6184 = vsel %vm5569, %v6182, 0
    %6186 = vmatprep.subr.mxu0 0.0
    %6187 = vmatpush1.msra.mxu0 %v6184
    %6188 = vmatprep.subr.mxu0 0.0
    %6189 = vmatpush1.msra.mxu0 0.0
    %6190 = vmatprep.subr.mxu0 0.0
    %6191 = vmatpush1.msra.mxu0 0.0
    %6192 = vmatprep.subr.mxu0 0.0
    %6193 = vmatpush1.msra.mxu0 0.0
    %6194 = vmatprep.subr.mxu0 0.0
    %6195 = vmatpush1.msra.mxu0 0.0
    %6196 = vmatprep.subr.mxu0 0.0
    %6197 = vmatpush1.msra.mxu0 0.0
    %6198 = vmatprep.subr.mxu0 0.0
    %6199 = vmatpush1.msra.mxu0 0.0
    %6200 = vmatprep.subr.mxu0 0.0
    %6201 = vmatpush1.msra.mxu0 0.0
    %6202 = vmatprep.subr.mxu0 0.0
    %6203 = vmatpush1.msra.mxu0 0.0
    %6204 = vmatprep.subr.mxu0 0.0
    %6205 = vmatpush1.msra.mxu0 0.0
    %6206 = vmatprep.subr.mxu0 0.0
    %6207 = vmatpush1.msra.mxu0 0.0
    %6208 = vmatprep.subr.mxu0 0.0
    %6209 = vmatpush1.msra.mxu0 0.0
    %6210 = vmatprep.subr.mxu0 0.0
    %6211 = vmatpush1.msra.mxu0 0.0
    %6212 = vmatprep.subr.mxu0 0.0
    %6213 = vmatpush1.msra.mxu0 0.0
    %6214 = vmatprep.subr.mxu0 0.0
    %6215 = vmatpush1.msra.mxu0 0.0
    %6216 = vmatprep.subr.mxu0 0.0
    %6217 = vmatpush1.msra.mxu0 0.0
    %6218 = vmatprep.subr.mxu0 0.0
    %6219 = vmatpush1.msra.mxu0 0.0
    %6220 = vmatprep.subr.mxu0 0.0
    %6221 = vmatpush1.msra.mxu0 0.0
    %6222 = vmatprep.subr.mxu0 0.0
    %6223 = vmatpush1.msra.mxu0 0.0
    %6224 = vmatprep.subr.mxu0 0.0
    %6225 = vmatpush1.msra.mxu0 0.0
    %6226 = vmatprep.subr.mxu0 0.0
    %6227 = vmatpush1.msra.mxu0 0.0
    %6228 = vmatprep.subr.mxu0 0.0
    %6229 = vmatpush1.msra.mxu0 0.0
    %6230 = vmatprep.subr.mxu0 0.0
    %6231 = vmatpush1.msra.mxu0 0.0
    %6232 = vmatprep.subr.mxu0 0.0
    %6233 = vmatpush1.msra.mxu0 0.0
    %6234 = vmatprep.subr.mxu0 0.0
    %6235 = vmatpush1.msra.mxu0 0.0
    %6236 = vmatprep.subr.mxu0 0.0
    %6237 = vmatpush1.msra.mxu0 0.0
    %6238 = vmatprep.subr.mxu0 0.0
    %6239 = vmatpush1.msra.mxu0 0.0
    %6240 = vmatprep.subr.mxu0 0.0
    %6241 = vmatpush1.msra.mxu0 0.0
    %6242 = vmatprep.subr.mxu0 0.0
    %6243 = vmatpush1.msra.mxu0 0.0
    %6244 = vmatprep.subr.mxu0 0.0
    %6245 = vmatpush1.msra.mxu0 0.0
    %6246 = vmatprep.subr.mxu0 0.0
    %6247 = vmatpush1.msra.mxu0 0.0
    %6248 = vmatprep.subr.mxu0 0.0
    %6249 = vmatpush1.msra.mxu0 0.0
    %6250 = vmatprep.mubr.f32.mxu0 0.0
    %6251 = vmatmul.mubr.f32.gmra.mrb[0].mxu0 %v5567
    %v6252 = vpop.f32.mrb[0].mxu0
    %v6253 = vadd.f32 0.0, %v6252
    %v6254 = vpop.f32.mrb[0].mxu0
    %6255 = vdwg.mxu0
    %s6256 = scalar_lea.vmem %s10, 4
    %v6257 = vld [vmem:[%s6256] sm:$0x1]
    %v6259 = vsel %vm184, %v6257, 0
    %v6262 = vsel %vm191, %v6253, 0
    %6264 = vmatprep.subr.mxu0 0.0
    %6265 = vmatpush1.msra.mxu0 %v6262
    %6266 = vmatprep.subr.mxu0 0.0
    %6267 = vmatpush1.msra.mxu0 0.0
    %6268 = vmatprep.subr.mxu0 0.0
    %6269 = vmatpush1.msra.mxu0 0.0
    %6270 = vmatprep.subr.mxu0 0.0
    %6271 = vmatpush1.msra.mxu0 0.0
    %6272 = vmatprep.subr.mxu0 0.0
    %6273 = vmatpush1.msra.mxu0 0.0
    %6274 = vmatprep.subr.mxu0 0.0
    %6275 = vmatpush1.msra.mxu0 0.0
    %6276 = vmatprep.subr.mxu0 0.0
    %6277 = vmatpush1.msra.mxu0 0.0
    %6278 = vmatprep.subr.mxu0 0.0
    %6279 = vmatpush1.msra.mxu0 0.0
    %6280 = vmatprep.subr.mxu0 0.0
    %6281 = vmatpush1.msra.mxu0 0.0
    %6282 = vmatprep.subr.mxu0 0.0
    %6283 = vmatpush1.msra.mxu0 0.0
    %6284 = vmatprep.subr.mxu0 0.0
    %6285 = vmatpush1.msra.mxu0 0.0
    %6286 = vmatprep.subr.mxu0 0.0
    %6287 = vmatpush1.msra.mxu0 0.0
    %6288 = vmatprep.subr.mxu0 0.0
    %6289 = vmatpush1.msra.mxu0 0.0
    %6290 = vmatprep.subr.mxu0 0.0
    %6291 = vmatpush1.msra.mxu0 0.0
    %6292 = vmatprep.subr.mxu0 0.0
    %6293 = vmatpush1.msra.mxu0 0.0
    %6294 = vmatprep.subr.mxu0 0.0
    %6295 = vmatpush1.msra.mxu0 0.0
    %6296 = vmatprep.subr.mxu0 0.0
    %6297 = vmatpush1.msra.mxu0 0.0
    %6298 = vmatprep.subr.mxu0 0.0
    %6299 = vmatpush1.msra.mxu0 0.0
    %6300 = vmatprep.subr.mxu0 0.0
    %6301 = vmatpush1.msra.mxu0 0.0
    %6302 = vmatprep.subr.mxu0 0.0
    %6303 = vmatpush1.msra.mxu0 0.0
    %6304 = vmatprep.subr.mxu0 0.0
    %6305 = vmatpush1.msra.mxu0 0.0
    %6306 = vmatprep.subr.mxu0 0.0
    %6307 = vmatpush1.msra.mxu0 0.0
    %6308 = vmatprep.subr.mxu0 0.0
    %6309 = vmatpush1.msra.mxu0 0.0
    %6310 = vmatprep.subr.mxu0 0.0
    %6311 = vmatpush1.msra.mxu0 0.0
    %6312 = vmatprep.subr.mxu0 0.0
    %6313 = vmatpush1.msra.mxu0 0.0
    %6314 = vmatprep.subr.mxu0 0.0
    %6315 = vmatpush1.msra.mxu0 0.0
    %6316 = vmatprep.subr.mxu0 0.0
    %6317 = vmatpush1.msra.mxu0 0.0
    %6318 = vmatprep.subr.mxu0 0.0
    %6319 = vmatpush1.msra.mxu0 0.0
    %6320 = vmatprep.subr.mxu0 0.0
    %6321 = vmatpush1.msra.mxu0 0.0
    %6322 = vmatprep.subr.mxu0 0.0
    %6323 = vmatpush1.msra.mxu0 0.0
    %6324 = vmatprep.subr.mxu0 0.0
    %6325 = vmatpush1.msra.mxu0 0.0
    %6326 = vmatprep.subr.mxu0 0.0
    %6327 = vmatpush1.msra.mxu0 0.0
    %6328 = vmatprep.mubr.f32.mxu0 0.0
    %6329 = vmatmul.mubr.f32.gmra.mrb[0].mxu0 %v6259
    %v6330 = vpop.f32.mrb[0].mxu0
    %v6331 = vadd.f32 0.0, %v6330
    %v6332 = vpop.f32.mrb[0].mxu0
    %6333 = vdwg.mxu0
    %v6334 = vadd.f32 %v6180, %v6331
    %s6335 = scalar_lea.vmem [#allocation6], 10
    %v6336 = vld [vmem:[%s6335] sm:$0x3]
    %v6338 = vsel %vm5569, %v6336, 0
    %6340 = vmatprep.subr.mxu0 0.0
    %6341 = vmatpush1.msra.mxu0 %v6338
    %6342 = vmatprep.subr.mxu0 0.0
    %6343 = vmatpush1.msra.mxu0 0.0
    %6344 = vmatprep.subr.mxu0 0.0
    %6345 = vmatpush1.msra.mxu0 0.0
    %6346 = vmatprep.subr.mxu0 0.0
    %6347 = vmatpush1.msra.mxu0 0.0
    %6348 = vmatprep.subr.mxu0 0.0
    %6349 = vmatpush1.msra.mxu0 0.0
    %6350 = vmatprep.subr.mxu0 0.0
    %6351 = vmatpush1.msra.mxu0 0.0
    %6352 = vmatprep.subr.mxu0 0.0
    %6353 = vmatpush1.msra.mxu0 0.0
    %6354 = vmatprep.subr.mxu0 0.0
    %6355 = vmatpush1.msra.mxu0 0.0
    %6356 = vmatprep.subr.mxu0 0.0
    %6357 = vmatpush1.msra.mxu0 0.0
    %6358 = vmatprep.subr.mxu0 0.0
    %6359 = vmatpush1.msra.mxu0 0.0
    %6360 = vmatprep.subr.mxu0 0.0
    %6361 = vmatpush1.msra.mxu0 0.0
    %6362 = vmatprep.subr.mxu0 0.0
    %6363 = vmatpush1.msra.mxu0 0.0
    %6364 = vmatprep.subr.mxu0 0.0
    %6365 = vmatpush1.msra.mxu0 0.0
    %6366 = vmatprep.subr.mxu0 0.0
    %6367 = vmatpush1.msra.mxu0 0.0
    %6368 = vmatprep.subr.mxu0 0.0
    %6369 = vmatpush1.msra.mxu0 0.0
    %6370 = vmatprep.subr.mxu0 0.0
    %6371 = vmatpush1.msra.mxu0 0.0
    %6372 = vmatprep.subr.mxu0 0.0
    %6373 = vmatpush1.msra.mxu0 0.0
    %6374 = vmatprep.subr.mxu0 0.0
    %6375 = vmatpush1.msra.mxu0 0.0
    %6376 = vmatprep.subr.mxu0 0.0
    %6377 = vmatpush1.msra.mxu0 0.0
    %6378 = vmatprep.subr.mxu0 0.0
    %6379 = vmatpush1.msra.mxu0 0.0
    %6380 = vmatprep.subr.mxu0 0.0
    %6381 = vmatpush1.msra.mxu0 0.0
    %6382 = vmatprep.subr.mxu0 0.0
    %6383 = vmatpush1.msra.mxu0 0.0
    %6384 = vmatprep.subr.mxu0 0.0
    %6385 = vmatpush1.msra.mxu0 0.0
    %6386 = vmatprep.subr.mxu0 0.0
    %6387 = vmatpush1.msra.mxu0 0.0
    %6388 = vmatprep.subr.mxu0 0.0
    %6389 = vmatpush1.msra.mxu0 0.0
    %6390 = vmatprep.subr.mxu0 0.0
    %6391 = vmatpush1.msra.mxu0 0.0
    %6392 = vmatprep.subr.mxu0 0.0
    %6393 = vmatpush1.msra.mxu0 0.0
    %6394 = vmatprep.subr.mxu0 0.0
    %6395 = vmatpush1.msra.mxu0 0.0
    %6396 = vmatprep.subr.mxu0 0.0
    %6397 = vmatpush1.msra.mxu0 0.0
    %6398 = vmatprep.subr.mxu0 0.0
    %6399 = vmatpush1.msra.mxu0 0.0
    %6400 = vmatprep.subr.mxu0 0.0
    %6401 = vmatpush1.msra.mxu0 0.0
    %6402 = vmatprep.subr.mxu0 0.0
    %6403 = vmatpush1.msra.mxu0 0.0
    %6404 = vmatprep.mubr.f32.mxu0 0.0
    %6405 = vmatmul.mubr.f32.gmra.mrb[0].mxu0 %v5567
    %v6406 = vpop.f32.mrb[0].mxu0
    %v6407 = vadd.f32 0.0, %v6406
    %v6408 = vpop.f32.mrb[0].mxu0
    %6409 = vdwg.mxu0
    %s6410 = scalar_lea.vmem %s10, 5
    %v6411 = vld [vmem:[%s6410] sm:$0x1]
    %v6413 = vsel %vm184, %v6411, 0
    %v6416 = vsel %vm191, %v6407, 0
    %6418 = vmatprep.subr.mxu0 0.0
    %6419 = vmatpush1.msra.mxu0 %v6416
    %6420 = vmatprep.subr.mxu0 0.0
    %6421 = vmatpush1.msra.mxu0 0.0
    %6422 = vmatprep.subr.mxu0 0.0
    %6423 = vmatpush1.msra.mxu0 0.0
    %6424 = vmatprep.subr.mxu0 0.0
    %6425 = vmatpush1.msra.mxu0 0.0
    %6426 = vmatprep.subr.mxu0 0.0
    %6427 = vmatpush1.msra.mxu0 0.0
    %6428 = vmatprep.subr.mxu0 0.0
    %6429 = vmatpush1.msra.mxu0 0.0
    %6430 = vmatprep.subr.mxu0 0.0
    %6431 = vmatpush1.msra.mxu0 0.0
    %6432 = vmatprep.subr.mxu0 0.0
    %6433 = vmatpush1.msra.mxu0 0.0
    %6434 = vmatprep.subr.mxu0 0.0
    %6435 = vmatpush1.msra.mxu0 0.0
    %6436 = vmatprep.subr.mxu0 0.0
    %6437 = vmatpush1.msra.mxu0 0.0
    %6438 = vmatprep.subr.mxu0 0.0
    %6439 = vmatpush1.msra.mxu0 0.0
    %6440 = vmatprep.subr.mxu0 0.0
    %6441 = vmatpush1.msra.mxu0 0.0
    %6442 = vmatprep.subr.mxu0 0.0
    %6443 = vmatpush1.msra.mxu0 0.0
    %6444 = vmatprep.subr.mxu0 0.0
    %6445 = vmatpush1.msra.mxu0 0.0
    %6446 = vmatprep.subr.mxu0 0.0
    %6447 = vmatpush1.msra.mxu0 0.0
    %6448 = vmatprep.subr.mxu0 0.0
    %6449 = vmatpush1.msra.mxu0 0.0
    %6450 = vmatprep.subr.mxu0 0.0
    %6451 = vmatpush1.msra.mxu0 0.0
    %6452 = vmatprep.subr.mxu0 0.0
    %6453 = vmatpush1.msra.mxu0 0.0
    %6454 = vmatprep.subr.mxu0 0.0
    %6455 = vmatpush1.msra.mxu0 0.0
    %6456 = vmatprep.subr.mxu0 0.0
    %6457 = vmatpush1.msra.mxu0 0.0
    %6458 = vmatprep.subr.mxu0 0.0
    %6459 = vmatpush1.msra.mxu0 0.0
    %6460 = vmatprep.subr.mxu0 0.0
    %6461 = vmatpush1.msra.mxu0 0.0
    %6462 = vmatprep.subr.mxu0 0.0
    %6463 = vmatpush1.msra.mxu0 0.0
    %6464 = vmatprep.subr.mxu0 0.0
    %6465 = vmatpush1.msra.mxu0 0.0
    %6466 = vmatprep.subr.mxu0 0.0
    %6467 = vmatpush1.msra.mxu0 0.0
    %6468 = vmatprep.subr.mxu0 0.0
    %6469 = vmatpush1.msra.mxu0 0.0
    %6470 = vmatprep.subr.mxu0 0.0
    %6471 = vmatpush1.msra.mxu0 0.0
    %6472 = vmatprep.subr.mxu0 0.0
    %6473 = vmatpush1.msra.mxu0 0.0
    %6474 = vmatprep.subr.mxu0 0.0
    %6475 = vmatpush1.msra.mxu0 0.0
    %6476 = vmatprep.subr.mxu0 0.0
    %6477 = vmatpush1.msra.mxu0 0.0
    %6478 = vmatprep.subr.mxu0 0.0
    %6479 = vmatpush1.msra.mxu0 0.0
    %6480 = vmatprep.subr.mxu0 0.0
    %6481 = vmatpush1.msra.mxu0 0.0
    %6482 = vmatprep.mubr.f32.mxu0 0.0
    %6483 = vmatmul.mubr.f32.gmra.mrb[0].mxu0 %v6413
    %v6484 = vpop.f32.mrb[0].mxu0
    %v6485 = vadd.f32 0.0, %v6484
    %v6486 = vpop.f32.mrb[0].mxu0
    %6487 = vdwg.mxu0
    %v6488 = vadd.f32 %v6334, %v6485
    %s6489 = scalar_lea.vmem [#allocation6], 12
    %v6490 = vld [vmem:[%s6489] sm:$0x3]
    %v6492 = vsel %vm5569, %v6490, 0
    %6494 = vmatprep.subr.mxu0 0.0
    %6495 = vmatpush1.msra.mxu0 %v6492
    %6496 = vmatprep.subr.mxu0 0.0
    %6497 = vmatpush1.msra.mxu0 0.0
    %6498 = vmatprep.subr.mxu0 0.0
    %6499 = vmatpush1.msra.mxu0 0.0
    %6500 = vmatprep.subr.mxu0 0.0
    %6501 = vmatpush1.msra.mxu0 0.0
    %6502 = vmatprep.subr.mxu0 0.0
    %6503 = vmatpush1.msra.mxu0 0.0
    %6504 = vmatprep.subr.mxu0 0.0
    %6505 = vmatpush1.msra.mxu0 0.0
    %6506 = vmatprep.subr.mxu0 0.0
    %6507 = vmatpush1.msra.mxu0 0.0
    %6508 = vmatprep.subr.mxu0 0.0
    %6509 = vmatpush1.msra.mxu0 0.0
    %6510 = vmatprep.subr.mxu0 0.0
    %6511 = vmatpush1.msra.mxu0 0.0
    %6512 = vmatprep.subr.mxu0 0.0
    %6513 = vmatpush1.msra.mxu0 0.0
    %6514 = vmatprep.subr.mxu0 0.0
    %6515 = vmatpush1.msra.mxu0 0.0
    %6516 = vmatprep.subr.mxu0 0.0
    %6517 = vmatpush1.msra.mxu0 0.0
    %6518 = vmatprep.subr.mxu0 0.0
    %6519 = vmatpush1.msra.mxu0 0.0
    %6520 = vmatprep.subr.mxu0 0.0
    %6521 = vmatpush1.msra.mxu0 0.0
    %6522 = vmatprep.subr.mxu0 0.0
    %6523 = vmatpush1.msra.mxu0 0.0
    %6524 = vmatprep.subr.mxu0 0.0
    %6525 = vmatpush1.msra.mxu0 0.0
    %6526 = vmatprep.subr.mxu0 0.0
    %6527 = vmatpush1.msra.mxu0 0.0
    %6528 = vmatprep.subr.mxu0 0.0
    %6529 = vmatpush1.msra.mxu0 0.0
    %6530 = vmatprep.subr.mxu0 0.0
    %6531 = vmatpush1.msra.mxu0 0.0
    %6532 = vmatprep.subr.mxu0 0.0
    %6533 = vmatpush1.msra.mxu0 0.0
    %6534 = vmatprep.subr.mxu0 0.0
    %6535 = vmatpush1.msra.mxu0 0.0
    %6536 = vmatprep.subr.mxu0 0.0
    %6537 = vmatpush1.msra.mxu0 0.0
    %6538 = vmatprep.subr.mxu0 0.0
    %6539 = vmatpush1.msra.mxu0 0.0
    %6540 = vmatprep.subr.mxu0 0.0
    %6541 = vmatpush1.msra.mxu0 0.0
    %6542 = vmatprep.subr.mxu0 0.0
    %6543 = vmatpush1.msra.mxu0 0.0
    %6544 = vmatprep.subr.mxu0 0.0
    %6545 = vmatpush1.msra.mxu0 0.0
    %6546 = vmatprep.subr.mxu0 0.0
    %6547 = vmatpush1.msra.mxu0 0.0
    %6548 = vmatprep.subr.mxu0 0.0
    %6549 = vmatpush1.msra.mxu0 0.0
    %6550 = vmatprep.subr.mxu0 0.0
    %6551 = vmatpush1.msra.mxu0 0.0
    %6552 = vmatprep.subr.mxu0 0.0
    %6553 = vmatpush1.msra.mxu0 0.0
    %6554 = vmatprep.subr.mxu0 0.0
    %6555 = vmatpush1.msra.mxu0 0.0
    %6556 = vmatprep.subr.mxu0 0.0
    %6557 = vmatpush1.msra.mxu0 0.0
    %6558 = vmatprep.mubr.f32.mxu0 0.0
    %6559 = vmatmul.mubr.f32.gmra.mrb[0].mxu0 %v5567
    %v6560 = vpop.f32.mrb[0].mxu0
    %v6561 = vadd.f32 0.0, %v6560
    %v6562 = vpop.f32.mrb[0].mxu0
    %6563 = vdwg.mxu0
    %s6564 = scalar_lea.vmem %s10, 6
    %v6565 = vld [vmem:[%s6564] sm:$0x1]
    %v6567 = vsel %vm184, %v6565, 0
    %v6570 = vsel %vm191, %v6561, 0
    %6572 = vmatprep.subr.mxu0 0.0
    %6573 = vmatpush1.msra.mxu0 %v6570
    %6574 = vmatprep.subr.mxu0 0.0
    %6575 = vmatpush1.msra.mxu0 0.0
    %6576 = vmatprep.subr.mxu0 0.0
    %6577 = vmatpush1.msra.mxu0 0.0
    %6578 = vmatprep.subr.mxu0 0.0
    %6579 = vmatpush1.msra.mxu0 0.0
    %6580 = vmatprep.subr.mxu0 0.0
    %6581 = vmatpush1.msra.mxu0 0.0
    %6582 = vmatprep.subr.mxu0 0.0
    %6583 = vmatpush1.msra.mxu0 0.0
    %6584 = vmatprep.subr.mxu0 0.0
    %6585 = vmatpush1.msra.mxu0 0.0
    %6586 = vmatprep.subr.mxu0 0.0
    %6587 = vmatpush1.msra.mxu0 0.0
    %6588 = vmatprep.subr.mxu0 0.0
    %6589 = vmatpush1.msra.mxu0 0.0
    %6590 = vmatprep.subr.mxu0 0.0
    %6591 = vmatpush1.msra.mxu0 0.0
    %6592 = vmatprep.subr.mxu0 0.0
    %6593 = vmatpush1.msra.mxu0 0.0
    %6594 = vmatprep.subr.mxu0 0.0
    %6595 = vmatpush1.msra.mxu0 0.0
    %6596 = vmatprep.subr.mxu0 0.0
    %6597 = vmatpush1.msra.mxu0 0.0
    %6598 = vmatprep.subr.mxu0 0.0
    %6599 = vmatpush1.msra.mxu0 0.0
    %6600 = vmatprep.subr.mxu0 0.0
    %6601 = vmatpush1.msra.mxu0 0.0
    %6602 = vmatprep.subr.mxu0 0.0
    %6603 = vmatpush1.msra.mxu0 0.0
    %6604 = vmatprep.subr.mxu0 0.0
    %6605 = vmatpush1.msra.mxu0 0.0
    %6606 = vmatprep.subr.mxu0 0.0
    %6607 = vmatpush1.msra.mxu0 0.0
    %6608 = vmatprep.subr.mxu0 0.0
    %6609 = vmatpush1.msra.mxu0 0.0
    %6610 = vmatprep.subr.mxu0 0.0
    %6611 = vmatpush1.msra.mxu0 0.0
    %6612 = vmatprep.subr.mxu0 0.0
    %6613 = vmatpush1.msra.mxu0 0.0
    %6614 = vmatprep.subr.mxu0 0.0
    %6615 = vmatpush1.msra.mxu0 0.0
    %6616 = vmatprep.subr.mxu0 0.0
    %6617 = vmatpush1.msra.mxu0 0.0
    %6618 = vmatprep.subr.mxu0 0.0
    %6619 = vmatpush1.msra.mxu0 0.0
    %6620 = vmatprep.subr.mxu0 0.0
    %6621 = vmatpush1.msra.mxu0 0.0
    %6622 = vmatprep.subr.mxu0 0.0
    %6623 = vmatpush1.msra.mxu0 0.0
    %6624 = vmatprep.subr.mxu0 0.0
    %6625 = vmatpush1.msra.mxu0 0.0
    %6626 = vmatprep.subr.mxu0 0.0
    %6627 = vmatpush1.msra.mxu0 0.0
    %6628 = vmatprep.subr.mxu0 0.0
    %6629 = vmatpush1.msra.mxu0 0.0
    %6630 = vmatprep.subr.mxu0 0.0
    %6631 = vmatpush1.msra.mxu0 0.0
    %6632 = vmatprep.subr.mxu0 0.0
    %6633 = vmatpush1.msra.mxu0 0.0
    %6634 = vmatprep.subr.mxu0 0.0
    %6635 = vmatpush1.msra.mxu0 0.0
    %6636 = vmatprep.mubr.f32.mxu0 0.0
    %6637 = vmatmul.mubr.f32.gmra.mrb[0].mxu0 %v6567
    %v6638 = vpop.f32.mrb[0].mxu0
    %v6639 = vadd.f32 0.0, %v6638
    %v6640 = vpop.f32.mrb[0].mxu0
    %6641 = vdwg.mxu0
    %v6642 = vadd.f32 %v6488, %v6639
    %s6643 = scalar_lea.vmem [#allocation6], 14
    %v6644 = vld [vmem:[%s6643] sm:$0x3]
    %v6646 = vsel %vm5569, %v6644, 0
    %6648 = vmatprep.subr.mxu0 0.0
    %6649 = vmatpush1.msra.mxu0 %v6646
    %6650 = vmatprep.subr.mxu0 0.0
    %6651 = vmatpush1.msra.mxu0 0.0
    %6652 = vmatprep.subr.mxu0 0.0
    %6653 = vmatpush1.msra.mxu0 0.0
    %6654 = vmatprep.subr.mxu0 0.0
    %6655 = vmatpush1.msra.mxu0 0.0
    %6656 = vmatprep.subr.mxu0 0.0
    %6657 = vmatpush1.msra.mxu0 0.0
    %6658 = vmatprep.subr.mxu0 0.0
    %6659 = vmatpush1.msra.mxu0 0.0
    %6660 = vmatprep.subr.mxu0 0.0
    %6661 = vmatpush1.msra.mxu0 0.0
    %6662 = vmatprep.subr.mxu0 0.0
    %6663 = vmatpush1.msra.mxu0 0.0
    %6664 = vmatprep.subr.mxu0 0.0
    %6665 = vmatpush1.msra.mxu0 0.0
    %6666 = vmatprep.subr.mxu0 0.0
    %6667 = vmatpush1.msra.mxu0 0.0
    %6668 = vmatprep.subr.mxu0 0.0
    %6669 = vmatpush1.msra.mxu0 0.0
    %6670 = vmatprep.subr.mxu0 0.0
    %6671 = vmatpush1.msra.mxu0 0.0
    %6672 = vmatprep.subr.mxu0 0.0
    %6673 = vmatpush1.msra.mxu0 0.0
    %6674 = vmatprep.subr.mxu0 0.0
    %6675 = vmatpush1.msra.mxu0 0.0
    %6676 = vmatprep.subr.mxu0 0.0
    %6677 = vmatpush1.msra.mxu0 0.0
    %6678 = vmatprep.subr.mxu0 0.0
    %6679 = vmatpush1.msra.mxu0 0.0
    %6680 = vmatprep.subr.mxu0 0.0
    %6681 = vmatpush1.msra.mxu0 0.0
    %6682 = vmatprep.subr.mxu0 0.0
    %6683 = vmatpush1.msra.mxu0 0.0
    %6684 = vmatprep.subr.mxu0 0.0
    %6685 = vmatpush1.msra.mxu0 0.0
    %6686 = vmatprep.subr.mxu0 0.0
    %6687 = vmatpush1.msra.mxu0 0.0
    %6688 = vmatprep.subr.mxu0 0.0
    %6689 = vmatpush1.msra.mxu0 0.0
    %6690 = vmatprep.subr.mxu0 0.0
    %6691 = vmatpush1.msra.mxu0 0.0
    %6692 = vmatprep.subr.mxu0 0.0
    %6693 = vmatpush1.msra.mxu0 0.0
    %6694 = vmatprep.subr.mxu0 0.0
    %6695 = vmatpush1.msra.mxu0 0.0
    %6696 = vmatprep.subr.mxu0 0.0
    %6697 = vmatpush1.msra.mxu0 0.0
    %6698 = vmatprep.subr.mxu0 0.0
    %6699 = vmatpush1.msra.mxu0 0.0
    %6700 = vmatprep.subr.mxu0 0.0
    %6701 = vmatpush1.msra.mxu0 0.0
    %6702 = vmatprep.subr.mxu0 0.0
    %6703 = vmatpush1.msra.mxu0 0.0
    %6704 = vmatprep.subr.mxu0 0.0
    %6705 = vmatpush1.msra.mxu0 0.0
    %6706 = vmatprep.subr.mxu0 0.0
    %6707 = vmatpush1.msra.mxu0 0.0
    %6708 = vmatprep.subr.mxu0 0.0
    %6709 = vmatpush1.msra.mxu0 0.0
    %6710 = vmatprep.subr.mxu0 0.0
    %6711 = vmatpush1.msra.mxu0 0.0
    %6712 = vmatprep.mubr.f32.mxu0 0.0
    %6713 = vmatmul.mubr.f32.gmra.mrb[0].mxu0 %v5567
    %v6714 = vpop.f32.mrb[0].mxu0
    %v6715 = vadd.f32 0.0, %v6714
    %v6716 = vpop.f32.mrb[0].mxu0
    %6717 = vdwg.mxu0
    %s6718 = scalar_lea.vmem %s10, 7
    %v6719 = vld [vmem:[%s6718] sm:$0x1]
    %v6721 = vsel %vm184, %v6719, 0
    %v6724 = vsel %vm191, %v6715, 0
    %6726 = vmatprep.subr.mxu0 0.0
    %6727 = vmatpush1.msra.mxu0 %v6724
    %6728 = vmatprep.subr.mxu0 0.0
    %6729 = vmatpush1.msra.mxu0 0.0
    %6730 = vmatprep.subr.mxu0 0.0
    %6731 = vmatpush1.msra.mxu0 0.0
    %6732 = vmatprep.subr.mxu0 0.0
    %6733 = vmatpush1.msra.mxu0 0.0
    %6734 = vmatprep.subr.mxu0 0.0
    %6735 = vmatpush1.msra.mxu0 0.0
    %6736 = vmatprep.subr.mxu0 0.0
    %6737 = vmatpush1.msra.mxu0 0.0
    %6738 = vmatprep.subr.mxu0 0.0
    %6739 = vmatpush1.msra.mxu0 0.0
    %6740 = vmatprep.subr.mxu0 0.0
    %6741 = vmatpush1.msra.mxu0 0.0
    %6742 = vmatprep.subr.mxu0 0.0
    %6743 = vmatpush1.msra.mxu0 0.0
    %6744 = vmatprep.subr.mxu0 0.0
    %6745 = vmatpush1.msra.mxu0 0.0
    %6746 = vmatprep.subr.mxu0 0.0
    %6747 = vmatpush1.msra.mxu0 0.0
    %6748 = vmatprep.subr.mxu0 0.0
    %6749 = vmatpush1.msra.mxu0 0.0
    %6750 = vmatprep.subr.mxu0 0.0
    %6751 = vmatpush1.msra.mxu0 0.0
    %6752 = vmatprep.subr.mxu0 0.0
    %6753 = vmatpush1.msra.mxu0 0.0
    %6754 = vmatprep.subr.mxu0 0.0
    %6755 = vmatpush1.msra.mxu0 0.0
    %6756 = vmatprep.subr.mxu0 0.0
    %6757 = vmatpush1.msra.mxu0 0.0
    %6758 = vmatprep.subr.mxu0 0.0
    %6759 = vmatpush1.msra.mxu0 0.0
    %6760 = vmatprep.subr.mxu0 0.0
    %6761 = vmatpush1.msra.mxu0 0.0
    %6762 = vmatprep.subr.mxu0 0.0
    %6763 = vmatpush1.msra.mxu0 0.0
    %6764 = vmatprep.subr.mxu0 0.0
    %6765 = vmatpush1.msra.mxu0 0.0
    %6766 = vmatprep.subr.mxu0 0.0
    %6767 = vmatpush1.msra.mxu0 0.0
    %6768 = vmatprep.subr.mxu0 0.0
    %6769 = vmatpush1.msra.mxu0 0.0
    %6770 = vmatprep.subr.mxu0 0.0
    %6771 = vmatpush1.msra.mxu0 0.0
    %6772 = vmatprep.subr.mxu0 0.0
    %6773 = vmatpush1.msra.mxu0 0.0
    %6774 = vmatprep.subr.mxu0 0.0
    %6775 = vmatpush1.msra.mxu0 0.0
    %6776 = vmatprep.subr.mxu0 0.0
    %6777 = vmatpush1.msra.mxu0 0.0
    %6778 = vmatprep.subr.mxu0 0.0
    %6779 = vmatpush1.msra.mxu0 0.0
    %6780 = vmatprep.subr.mxu0 0.0
    %6781 = vmatpush1.msra.mxu0 0.0
    %6782 = vmatprep.subr.mxu0 0.0
    %6783 = vmatpush1.msra.mxu0 0.0
    %6784 = vmatprep.subr.mxu0 0.0
    %6785 = vmatpush1.msra.mxu0 0.0
    %6786 = vmatprep.subr.mxu0 0.0
    %6787 = vmatpush1.msra.mxu0 0.0
    %6788 = vmatprep.subr.mxu0 0.0
    %6789 = vmatpush1.msra.mxu0 0.0
    %6790 = vmatprep.mubr.f32.mxu0 0.0
    %6791 = vmatmul.mubr.f32.gmra.mrb[0].mxu0 %v6721
    %v6792 = vpop.f32.mrb[0].mxu0
    %v6793 = vadd.f32 0.0, %v6792
    %v6794 = vpop.f32.mrb[0].mxu0
    %6795 = vdwg.mxu0
    %v6796 = vadd.f32 %v6642, %v6793
    %s6797 = scalar_lea.vmem [#allocation6], 16
    %v6798 = vld [vmem:[%s6797] sm:$0x3]
    %v6800 = vsel %vm5569, %v6798, 0
    %6802 = vmatprep.subr.mxu0 0.0
    %6803 = vmatpush1.msra.mxu0 %v6800
    %6804 = vmatprep.subr.mxu0 0.0
    %6805 = vmatpush1.msra.mxu0 0.0
    %6806 = vmatprep.subr.mxu0 0.0
    %6807 = vmatpush1.msra.mxu0 0.0
    %6808 = vmatprep.subr.mxu0 0.0
    %6809 = vmatpush1.msra.mxu0 0.0
    %6810 = vmatprep.subr.mxu0 0.0
    %6811 = vmatpush1.msra.mxu0 0.0
    %6812 = vmatprep.subr.mxu0 0.0
    %6813 = vmatpush1.msra.mxu0 0.0
    %6814 = vmatprep.subr.mxu0 0.0
    %6815 = vmatpush1.msra.mxu0 0.0
    %6816 = vmatprep.subr.mxu0 0.0
    %6817 = vmatpush1.msra.mxu0 0.0
    %6818 = vmatprep.subr.mxu0 0.0
    %6819 = vmatpush1.msra.mxu0 0.0
    %6820 = vmatprep.subr.mxu0 0.0
    %6821 = vmatpush1.msra.mxu0 0.0
    %6822 = vmatprep.subr.mxu0 0.0
    %6823 = vmatpush1.msra.mxu0 0.0
    %6824 = vmatprep.subr.mxu0 0.0
    %6825 = vmatpush1.msra.mxu0 0.0
    %6826 = vmatprep.subr.mxu0 0.0
    %6827 = vmatpush1.msra.mxu0 0.0
    %6828 = vmatprep.subr.mxu0 0.0
    %6829 = vmatpush1.msra.mxu0 0.0
    %6830 = vmatprep.subr.mxu0 0.0
    %6831 = vmatpush1.msra.mxu0 0.0
    %6832 = vmatprep.subr.mxu0 0.0
    %6833 = vmatpush1.msra.mxu0 0.0
    %6834 = vmatprep.subr.mxu0 0.0
    %6835 = vmatpush1.msra.mxu0 0.0
    %6836 = vmatprep.subr.mxu0 0.0
    %6837 = vmatpush1.msra.mxu0 0.0
    %6838 = vmatprep.subr.mxu0 0.0
    %6839 = vmatpush1.msra.mxu0 0.0
    %6840 = vmatprep.subr.mxu0 0.0
    %6841 = vmatpush1.msra.mxu0 0.0
    %6842 = vmatprep.subr.mxu0 0.0
    %6843 = vmatpush1.msra.mxu0 0.0
    %6844 = vmatprep.subr.mxu0 0.0
    %6845 = vmatpush1.msra.mxu0 0.0
    %6846 = vmatprep.subr.mxu0 0.0
    %6847 = vmatpush1.msra.mxu0 0.0
    %6848 = vmatprep.subr.mxu0 0.0
    %6849 = vmatpush1.msra.mxu0 0.0
    %6850 = vmatprep.subr.mxu0 0.0
    %6851 = vmatpush1.msra.mxu0 0.0
    %6852 = vmatprep.subr.mxu0 0.0
    %6853 = vmatpush1.msra.mxu0 0.0
    %6854 = vmatprep.subr.mxu0 0.0
    %6855 = vmatpush1.msra.mxu0 0.0
    %6856 = vmatprep.subr.mxu0 0.0
    %6857 = vmatpush1.msra.mxu0 0.0
    %6858 = vmatprep.subr.mxu0 0.0
    %6859 = vmatpush1.msra.mxu0 0.0
    %6860 = vmatprep.subr.mxu0 0.0
    %6861 = vmatpush1.msra.mxu0 0.0
    %6862 = vmatprep.subr.mxu0 0.0
    %6863 = vmatpush1.msra.mxu0 0.0
    %6864 = vmatprep.subr.mxu0 0.0
    %6865 = vmatpush1.msra.mxu0 0.0
    %6866 = vmatprep.mubr.f32.mxu0 0.0
    %6867 = vmatmul.mubr.f32.gmra.mrb[0].mxu0 %v5567
    %v6868 = vpop.f32.mrb[0].mxu0
    %v6869 = vadd.f32 0.0, %v6868
    %v6870 = vpop.f32.mrb[0].mxu0
    %6871 = vdwg.mxu0
    %s6872 = scalar_lea.vmem %s10, 8
    %v6873 = vld [vmem:[%s6872] sm:$0x1]
    %v6875 = vsel %vm184, %v6873, 0
    %v6878 = vsel %vm191, %v6869, 0
    %6880 = vmatprep.subr.mxu0 0.0
    %6881 = vmatpush1.msra.mxu0 %v6878
    %6882 = vmatprep.subr.mxu0 0.0
    %6883 = vmatpush1.msra.mxu0 0.0
    %6884 = vmatprep.subr.mxu0 0.0
    %6885 = vmatpush1.msra.mxu0 0.0
    %6886 = vmatprep.subr.mxu0 0.0
    %6887 = vmatpush1.msra.mxu0 0.0
    %6888 = vmatprep.subr.mxu0 0.0
    %6889 = vmatpush1.msra.mxu0 0.0
    %6890 = vmatprep.subr.mxu0 0.0
    %6891 = vmatpush1.msra.mxu0 0.0
    %6892 = vmatprep.subr.mxu0 0.0
    %6893 = vmatpush1.msra.mxu0 0.0
    %6894 = vmatprep.subr.mxu0 0.0
    %6895 = vmatpush1.msra.mxu0 0.0
    %6896 = vmatprep.subr.mxu0 0.0
    %6897 = vmatpush1.msra.mxu0 0.0
    %6898 = vmatprep.subr.mxu0 0.0
    %6899 = vmatpush1.msra.mxu0 0.0
    %6900 = vmatprep.subr.mxu0 0.0
    %6901 = vmatpush1.msra.mxu0 0.0
    %6902 = vmatprep.subr.mxu0 0.0
    %6903 = vmatpush1.msra.mxu0 0.0
    %6904 = vmatprep.subr.mxu0 0.0
    %6905 = vmatpush1.msra.mxu0 0.0
    %6906 = vmatprep.subr.mxu0 0.0
    %6907 = vmatpush1.msra.mxu0 0.0
    %6908 = vmatprep.subr.mxu0 0.0
    %6909 = vmatpush1.msra.mxu0 0.0
    %6910 = vmatprep.subr.mxu0 0.0
    %6911 = vmatpush1.msra.mxu0 0.0
    %6912 = vmatprep.subr.mxu0 0.0
    %6913 = vmatpush1.msra.mxu0 0.0
    %6914 = vmatprep.subr.mxu0 0.0
    %6915 = vmatpush1.msra.mxu0 0.0
    %6916 = vmatprep.subr.mxu0 0.0
    %6917 = vmatpush1.msra.mxu0 0.0
    %6918 = vmatprep.subr.mxu0 0.0
    %6919 = vmatpush1.msra.mxu0 0.0
    %6920 = vmatprep.subr.mxu0 0.0
    %6921 = vmatpush1.msra.mxu0 0.0
    %6922 = vmatprep.subr.mxu0 0.0
    %6923 = vmatpush1.msra.mxu0 0.0
    %6924 = vmatprep.subr.mxu0 0.0
    %6925 = vmatpush1.msra.mxu0 0.0
    %6926 = vmatprep.subr.mxu0 0.0
    %6927 = vmatpush1.msra.mxu0 0.0
    %6928 = vmatprep.subr.mxu0 0.0
    %6929 = vmatpush1.msra.mxu0 0.0
    %6930 = vmatprep.subr.mxu0 0.0
    %6931 = vmatpush1.msra.mxu0 0.0
    %6932 = vmatprep.subr.mxu0 0.0
    %6933 = vmatpush1.msra.mxu0 0.0
    %6934 = vmatprep.subr.mxu0 0.0
    %6935 = vmatpush1.msra.mxu0 0.0
    %6936 = vmatprep.subr.mxu0 0.0
    %6937 = vmatpush1.msra.mxu0 0.0
    %6938 = vmatprep.subr.mxu0 0.0
    %6939 = vmatpush1.msra.mxu0 0.0
    %6940 = vmatprep.subr.mxu0 0.0
    %6941 = vmatpush1.msra.mxu0 0.0
    %6942 = vmatprep.subr.mxu0 0.0
    %6943 = vmatpush1.msra.mxu0 0.0
    %6944 = vmatprep.mubr.f32.mxu0 0.0
    %6945 = vmatmul.mubr.f32.gmra.mrb[0].mxu0 %v6875
    %v6946 = vpop.f32.mrb[0].mxu0
    %v6947 = vadd.f32 0.0, %v6946
    %v6948 = vpop.f32.mrb[0].mxu0
    %6949 = vdwg.mxu0
    %v6950 = vadd.f32 %v6796, %v6947
    %v6951 = vld [vmem:[#allocation2] sm:$0x1]
    %6953 = vset.pattern.permute.xlu0 0
    %6954 = vperm.xlu0 %6953, %v6951
    %v6955 = vpop.permute.xlu0 %6954
    %v6957 = vlaneseq
    %v6958 = vshrl.u32 %v6957, 7
    %v6959 = vsub.s32 0, %v6958
    %v6960 = vrot.slane %v6955, %v6959
    %v6961 = vadd.f32 %v6950, %v6960
    %vm6962 = vcmask 8192
    %6963 = vst.msk [vmem:[#allocation8] sm:$0x1] %vm6962, %v6961
    // Predicated region
    $region82: #{discriminator_forward.1} parent=1 // pred_check
      _
    $region83: #{discriminator_forward.1} parent=1 // pred_check_branch
      %6965 = sbr.rel (0) target = $region85
    $region84: #{discriminator_forward.1} parent=1 // pred_region
      %s6967 = ssub.s32 16, 16
      %6968 = vsyncadd [#allocation5], %s6967
      %s6970 = sshll.u32 [#allocation8], 4
      %s6971 = int_to_ptr.vmem [resolvable:$true] %s6970
      %6973 = dma.vmem_to_hbm [thread:$0]  %s6971, 16, %s18, [#allocation5]
    $region85: #{discriminator_forward.1} parent=1 // pred_fallthru
      _
    // Predicated region
    $region86: #{discriminator_forward.1} parent=1 // pred_check
      _
    $region87: #{discriminator_forward.1} parent=1 // pred_check_branch
      %6975 = sbr.rel (0) target = $region89
    $region88: #{discriminator_forward.1} parent=1 // pred_region
      %6976 = dma.done [#allocation5], 16
    $region89: #{discriminator_forward.1} parent=1 // pred_fallthru
      _
    %6977 = vsyncpa [#allocation4], 1
    %6978 = vsyncpa [#allocation7], 1
    %6979 = vsyncpa [#allocation5], 1

</llo_original>
